<compile_context>
chip_gen: v6e
topology: v6e:2x2x1
jax: 0.10.0
libtpu: 0.0.40
codegen_flags: <defaults>
</compile_context>

<pallas_src>
import functools

import jax
import jax.numpy as jnp
from jax.experimental import pallas as pl
from jax.experimental.pallas import tpu as pltpu


# Set to jnp.bfloat16 on v6e / v7x for ~2-3x MXU throughput (accumulation stays
# f32 via preferred_element_type).  Kept at f32 by default for exact parity
# with the PyTorch reference numerics.
MXU_INPUT_DTYPE = jnp.float32


def _mxu(x):
    return x.astype(MXU_INPUT_DTYPE)


def _row_tile(M, target=256):
    """Pick a row-tile TM that divides M (full M if small / no clean divisor)."""
    if M <= target:
        return M
    for tm in range(target, 7, -8):
        if tm % 8 == 0 and M % tm == 0:
            return tm
    return M


def _layernorm_f32(x, g, b, eps):
    mu = jnp.mean(x, axis=-1, keepdims=True)
    xc = x - mu
    var = jnp.mean(xc * xc, axis=-1, keepdims=True)
    return xc * jax.lax.rsqrt(var + eps) * g + b


def _mha_out_proj(q, k, v, wo, num_heads, dh, scale):
    """softmax(q k^T * scale) v  followed by the output projection, accumulated
    per head with static lane slices (no in-kernel reshape / concat)."""
    acc = None
    for h in range(num_heads):
        lo, hi = h * dh, (h + 1) * dh
        s = jax.lax.dot_general(_mxu(q[:, lo:hi]), _mxu(k[:, lo:hi]),
                                (((1,), (1,)), ((), ())),
                                preferred_element_type=jnp.float32) * scale
        s = s - jnp.max(s, axis=-1, keepdims=True)
        p = jnp.exp(s)
        p = p * pl.reciprocal(jnp.sum(p, axis=-1, keepdims=True), approx=True)
        oh = jnp.dot(_mxu(p), _mxu(v[:, lo:hi]),
                     preferred_element_type=jnp.float32)
        contrib = jnp.dot(_mxu(oh), _mxu(wo[lo:hi, :]),
                          preferred_element_type=jnp.float32)
        acc = contrib if acc is None else acc + contrib
    return acc


# ----------------------------------------------------------------------------
# Kernel 1: LayerNorm -> (+pos) -> fused Q|K projection, V projection
# ----------------------------------------------------------------------------
def _ln_pos_qkv_kernel(x_ref, pos_ref, g_ref, b_ref, wqk_ref, wv_ref, bqk_ref,
                       bv_ref, xn_ref, q_ref, k_ref, v_ref, *, eps, E):
    x = x_ref[...].astype(jnp.float32)
    xn = _layernorm_f32(x, g_ref[...], b_ref[...], eps)
    xp = xn + pos_ref[...].astype(jnp.float32)
    qk = jnp.dot(_mxu(xp), _mxu(wqk_ref[...]),
                 preferred_element_type=jnp.float32) + bqk_ref[...]
    v = jnp.dot(_mxu(xn), _mxu(wv_ref[...]),
                preferred_element_type=jnp.float32) + bv_ref[...]
    xn_ref[...] = xn.astype(xn_ref.dtype)
    q_ref[...] = qk[:, :E].astype(q_ref.dtype)
    k_ref[...] = qk[:, E:].astype(k_ref.dtype)
    v_ref[...] = v.astype(v_ref.dtype)


def ln_pos_qkv_pallas(x, pos, gamma, beta, wqk, wv, bqk, bv, eps=1e-5):
    M, E = x.shape
    TM = _row_tile(M)
    row = lambda i: (i, 0)
    const = lambda i: (0, 0)
    kernel = functools.partial(_ln_pos_qkv_kernel, eps=eps, E=E)
    out_shape = tuple(jax.ShapeDtypeStruct((M, E), x.dtype) for _ in range(4))
    return pl.pallas_call(
        kernel,
        out_shape=out_shape,
        grid=(M // TM,),
        in_specs=[
            pl.BlockSpec((TM, E), row),        # x
            pl.BlockSpec((TM, E), row),        # pos
            pl.BlockSpec((1, E), const),       # gamma
            pl.BlockSpec((1, E), const),       # beta
            pl.BlockSpec((E, 2 * E), const),   # wqk (fused q|k weight)
            pl.BlockSpec((E, E), const),       # wv
            pl.BlockSpec((1, 2 * E), const),   # bqk
            pl.BlockSpec((1, E), const),       # bv
        ],
        out_specs=tuple(pl.BlockSpec((TM, E), row) for _ in range(4)),
        compiler_params=pltpu.CompilerParams(dimension_semantics=("parallel",)),
    )(x, pos, gamma.reshape(1, E), beta.reshape(1, E), wqk, wv,
      bqk.reshape(1, 2 * E), bv.reshape(1, E))


# ----------------------------------------------------------------------------
# Kernel 2 (fused, per batch):
#   x1  = res + MHA(q, k, v) @ wo + bo
#   xn  = LN(x1)
#   out = xn + relu(xn @ w1 + b1) @ w2 + b2
# Used by the encoder layer and the decoder cross-attn + FFN block.
# ----------------------------------------------------------------------------
def _attn_ffn_kernel(q_ref, k_ref, v_ref, res_ref, wo_ref, bo_ref,
                     g_ref, b_ref, w1_ref, b1_ref, w2_ref, b2_ref, o_ref, *,
                     num_heads, dh, scale, eps):
    q = q_ref[0].astype(jnp.float32)      # (Lq, E)
    k = k_ref[0].astype(jnp.float32)      # (Lk, E)
    v = v_ref[0].astype(jnp.float32)      # (Lk, E)
    wo = wo_ref[...].astype(jnp.float32)  # (E, E)

    attn = _mha_out_proj(q, k, v, wo, num_heads, dh, scale)
    x1 = attn + bo_ref[...].astype(jnp.float32) + res_ref[0].astype(jnp.float32)

    xn = _layernorm_f32(x1, g_ref[...], b_ref[...], eps)
    h = jnp.dot(_mxu(xn), _mxu(w1_ref[...]),
                preferred_element_type=jnp.float32) + b1_ref[...]
    h = jnp.maximum(h, 0.0)
    y = jnp.dot(_mxu(h), _mxu(w2_ref[...]),
                preferred_element_type=jnp.float32) + b2_ref[...]
    o_ref[0] = (xn + y).astype(o_ref.dtype)


def attn_ffn_pallas(q, k, v, res, wo, bo, gamma, beta, w1, b1, w2, b2,
                    num_heads, eps=1e-5):
    N, Lq, E = q.shape
    Lk = k.shape[1]
    H = w1.shape[1]
    dh = E // num_heads
    scale = 1.0 / (dh ** 0.5)
    kernel = functools.partial(_attn_ffn_kernel, num_heads=num_heads, dh=dh,
                               scale=scale, eps=eps)
    bat = lambda b: (b, 0, 0)
    const = lambda b: (0, 0)
    return pl.pallas_call(
        kernel,
        out_shape=jax.ShapeDtypeStruct((N, Lq, E), q.dtype),
        grid=(N,),
        in_specs=[
            pl.BlockSpec((1, Lq, E), bat),   # q
            pl.BlockSpec((1, Lk, E), bat),   # k
            pl.BlockSpec((1, Lk, E), bat),   # v
            pl.BlockSpec((1, Lq, E), bat),   # residual
            pl.BlockSpec((E, E), const),     # wo
            pl.BlockSpec((1, E), const),     # bo
            pl.BlockSpec((1, E), const),     # ln gamma
            pl.BlockSpec((1, E), const),     # ln beta
            pl.BlockSpec((E, H), const),     # w1
            pl.BlockSpec((1, H), const),     # b1
            pl.BlockSpec((H, E), const),     # w2
            pl.BlockSpec((1, E), const),     # b2
        ],
        out_specs=pl.BlockSpec((1, Lq, E), bat),
        compiler_params=pltpu.CompilerParams(dimension_semantics=("parallel",)),
    )(q, k, v, res, wo, bo.reshape(1, E), gamma.reshape(1, E),
      beta.reshape(1, E), w1, b1.reshape(1, H), w2, b2.reshape(1, E))


# ----------------------------------------------------------------------------
# Kernel 3 (fused, per batch): decoder self-attn + cross-attn query-side prep
#   x1  = res + MHA(q, k, v) @ wo + bo
#   xn  = LN2(x1)                         (residual of the cross-attn block)
#   cq  = (xn + qpos) @ wq_cross + bq_cross
# ----------------------------------------------------------------------------
def _attn_crossq_kernel(q_ref, k_ref, v_ref, res_ref, wo_ref, bo_ref,
                        g_ref, b_ref, qpos_ref, wq_ref, bq_ref,
                        xn_ref, cq_ref, *, num_heads, dh, scale, eps):
    q = q_ref[0].astype(jnp.float32)
    k = k_ref[0].astype(jnp.float32)
    v = v_ref[0].astype(jnp.float32)
    wo = wo_ref[...].astype(jnp.float32)

    attn = _mha_out_proj(q, k, v, wo, num_heads, dh, scale)
    x1 = attn + bo_ref[...].astype(jnp.float32) + res_ref[0].astype(jnp.float32)

    xn = _layernorm_f32(x1, g_ref[...], b_ref[...], eps)
    xp = xn + qpos_ref[0].astype(jnp.float32)
    cq = jnp.dot(_mxu(xp), _mxu(wq_ref[...]),
                 preferred_element_type=jnp.float32) + bq_ref[...]
    xn_ref[0] = xn.astype(xn_ref.dtype)
    cq_ref[0] = cq.astype(cq_ref.dtype)


def attn_crossq_pallas(q, k, v, res, wo, bo, gamma, beta, qpos, wq, bq,
                       num_heads, eps=1e-5):
    N, Lq, E = q.shape
    dh = E // num_heads
    scale = 1.0 / (dh ** 0.5)
    kernel = functools.partial(_attn_crossq_kernel, num_heads=num_heads, dh=dh,
                               scale=scale, eps=eps)
    bat = lambda b: (b, 0, 0)
    const = lambda b: (0, 0)
    out_shape = (jax.ShapeDtypeStruct((N, Lq, E), q.dtype),
                 jax.ShapeDtypeStruct((N, Lq, E), q.dtype))
    return pl.pallas_call(
        kernel,
        out_shape=out_shape,
        grid=(N,),
        in_specs=[
            pl.BlockSpec((1, Lq, E), bat),   # q (self)
            pl.BlockSpec((1, Lq, E), bat),   # k (self)
            pl.BlockSpec((1, Lq, E), bat),   # v (self)
            pl.BlockSpec((1, Lq, E), bat),   # residual
            pl.BlockSpec((E, E), const),     # wo (self)
            pl.BlockSpec((1, E), const),     # bo (self)
            pl.BlockSpec((1, E), const),     # ln2 gamma
            pl.BlockSpec((1, E), const),     # ln2 beta
            pl.BlockSpec((1, Lq, E), bat),   # query pos
            pl.BlockSpec((E, E), const),     # wq (cross)
            pl.BlockSpec((1, E), const),     # bq (cross)
        ],
        out_specs=(pl.BlockSpec((1, Lq, E), bat), pl.BlockSpec((1, Lq, E), bat)),
        compiler_params=pltpu.CompilerParams(dimension_semantics=("parallel",)),
    )(q, k, v, res, wo, bo.reshape(1, E), gamma.reshape(1, E),
      beta.reshape(1, E), qpos, wq, bq.reshape(1, E))


# ----------------------------------------------------------------------------
# Kernel 4: memory-side k/v projections for cross-attention
#   k = (mem + mpos) @ wk + bk ;  v = mem @ wv + bv
# ----------------------------------------------------------------------------
def _pos_kv_kernel(m_ref, pos_ref, wk_ref, wv_ref, bk_ref, bv_ref, k_ref, v_ref):
    m = m_ref[...].astype(jnp.float32)
    mp = m + pos_ref[...].astype(jnp.float32)
    k = jnp.dot(_mxu(mp), _mxu(wk_ref[...]),
                preferred_element_type=jnp.float32) + bk_ref[...]
    v = jnp.dot(_mxu(m), _mxu(wv_ref[...]),
                preferred_element_type=jnp.float32) + bv_ref[...]
    k_ref[...] = k.astype(k_ref.dtype)
    v_ref[...] = v.astype(v_ref.dtype)


def pos_kv_pallas(mem, mpos, wk, wv, bk, bv):
    M, E = mem.shape
    TM = _row_tile(M)
    row = lambda i: (i, 0)
    const = lambda i: (0, 0)
    out_shape = (jax.ShapeDtypeStruct((M, E), mem.dtype),
                 jax.ShapeDtypeStruct((M, E), mem.dtype))
    return pl.pallas_call(
        _pos_kv_kernel,
        out_shape=out_shape,
        grid=(M // TM,),
        in_specs=[
            pl.BlockSpec((TM, E), row),
            pl.BlockSpec((TM, E), row),
            pl.BlockSpec((E, E), const),
            pl.BlockSpec((E, E), const),
            pl.BlockSpec((1, E), const),
            pl.BlockSpec((1, E), const),
        ],
        out_specs=(pl.BlockSpec((TM, E), row), pl.BlockSpec((TM, E), row)),
        compiler_params=pltpu.CompilerParams(dimension_semantics=("parallel",)),
    )(mem, mpos, wk, wv, bk.reshape(1, E), bv.reshape(1, E))


# ----------------------------------------------------------------------------
# Kernel 5: plain LayerNorm (final encoder / decoder norms)
# ----------------------------------------------------------------------------
def _layernorm_kernel(x_ref, g_ref, b_ref, o_ref, *, eps):
    x = x_ref[...].astype(jnp.float32)
    o_ref[...] = _layernorm_f32(x, g_ref[...], b_ref[...], eps).astype(o_ref.dtype)


def layernorm_pallas(x, gamma, beta, eps=1e-5):
    M, E = x.shape
    TM = _row_tile(M)
    kernel = functools.partial(_layernorm_kernel, eps=eps)
    return pl.pallas_call(
        kernel,
        out_shape=jax.ShapeDtypeStruct((M, E), x.dtype),
        grid=(M // TM,),
        in_specs=[pl.BlockSpec((TM, E), lambda i: (i, 0)),
                  pl.BlockSpec((1, E), lambda i: (0, 0)),
                  pl.BlockSpec((1, E), lambda i: (0, 0))],
        out_specs=pl.BlockSpec((TM, E), lambda i: (i, 0)),
        compiler_params=pltpu.CompilerParams(dimension_semantics=("parallel",)),
    )(x, gamma.reshape(1, E), beta.reshape(1, E))


# ----------------------------------------------------------------------------
# Model glue (plain JAX reshapes around the fused Pallas kernels)
# ----------------------------------------------------------------------------
def encoder_layer_forward(p, x, pos, num_heads):
    """x, pos: (N, L, E).  is_before_norm = False path."""
    N, L, E = x.shape
    x2 = x.reshape(N * L, E)
    pos2 = pos.reshape(N * L, E)
    a, f = p["attn"], p["ffn"]
    xn, q, k, v = ln_pos_qkv_pallas(x2, pos2, p["ln1_g"], p["ln1_b"],
                                    a["wqk"], a["wv"], a["bqk"], a["bv"])
    y = attn_ffn_pallas(q.reshape(N, L, E), k.reshape(N, L, E),
                        v.reshape(N, L, E), xn.reshape(N, L, E),
                        a["wo"], a["bo"], p["ln2_g"], p["ln2_b"],
                        f["w1"], f["b1"], f["w2"], f["b2"], num_heads)
    return y


def decoder_layer_forward(p, q, mem, qpos, mpos, num_heads):
    """q: (N, Lq, E), mem/mpos: (N, Lk, E)."""
    N, Lq, E = q.shape
    Lk = mem.shape[1]
    q2 = q.reshape(N * Lq, E)
    qpos2 = qpos.reshape(N * Lq, E)

    # ---- self-attention block + cross-attn query-side prep (fused)
    sa, ca, f = p["self_attn"], p["cross_attn"], p["ffn"]
    wq_c, wk_c = ca["wqk"][:, :E], ca["wqk"][:, E:]
    bq_c, bk_c = ca["bqk"][:E], ca["bqk"][E:]

    xn, sq, sk, sv = ln_pos_qkv_pallas(q2, qpos2, p["ln1_g"], p["ln1_b"],
                                       sa["wqk"], sa["wv"], sa["bqk"], sa["bv"])
    xn2, cq = attn_crossq_pallas(sq.reshape(N, Lq, E), sk.reshape(N, Lq, E),
                                 sv.reshape(N, Lq, E), xn.reshape(N, Lq, E),
                                 sa["wo"], sa["bo"], p["ln2_g"], p["ln2_b"],
                                 qpos, wq_c, bq_c, num_heads)

    # ---- memory-side projections for cross-attention
    ck, cv = pos_kv_pallas(mem.reshape(N * Lk, E), mpos.reshape(N * Lk, E),
                           wk_c, ca["wv"], bk_c, ca["bv"])

    # ---- cross-attention + FFN block (fused)
    q3 = attn_ffn_pallas(cq, ck.reshape(N, Lk, E), cv.reshape(N, Lk, E), xn2,
                         ca["wo"], ca["bo"], p["ln3_g"], p["ln3_b"],
                         f["w1"], f["b1"], f["w2"], f["b2"], num_heads)
    return q3


def transformer_forward(params, x, memory_pos, query_pos, num_heads):
    n, c, h, w = x.shape
    hw = h * w
    # Batch-first (N, L, E) layout; equivalent to the reference's (L, N, E).
    src = x.reshape(n, c, hw).transpose(0, 2, 1)            # (N, HW, C)
    mpos = memory_pos.reshape(n, c, hw).transpose(0, 2, 1)  # (N, HW, C)
    nq = query_pos.shape[0]
    qpos = jnp.broadcast_to(query_pos[None, :, :], (n, nq, c))

    # encoder
    mem = src
    for lp in params["enc_layers"]:
        mem = encoder_layer_forward(lp, mem, mpos, num_heads)
    mem = layernorm_pallas(mem.reshape(n * hw, c),
                           params["enc_norm_g"], params["enc_norm_b"]).reshape(n, hw, c)

    # decoder (query starts as zeros, like torch.zeros_like(query_pos))
    q = jnp.zeros((n, nq, c), src.dtype)
    for lp in params["dec_layers"]:
        q = decoder_layer_forward(lp, q, mem, qpos, mpos, num_heads)
    q = layernorm_pallas(q.reshape(n * nq, c),
                         params["dec_norm_g"], params["dec_norm_b"]).reshape(n, nq, c)
    return q                                                 # (N, num_queries, C)


# ----------------------------------------------------------------------------
# Deterministic parameter init (xavier_uniform for matrices, zeros for biases,
# ones/zeros for LayerNorm — mirrors reset_parameters' effect for dim>1 params)
# ----------------------------------------------------------------------------
def _xavier(key, out_dim, in_dim):
    limit = (6.0 / (in_dim + out_dim)) ** 0.5
    w = jax.random.uniform(key, (out_dim, in_dim), jnp.float32, -limit, limit)
    return w.T  # stored transposed: (in, out)


def _init_mha(key, E):
    k1, k2 = jax.random.split(key)
    in_proj = _xavier(k1, 3 * E, E)            # (E, 3E) after transpose
    return {
        "wqk": in_proj[:, :2 * E],             # fused q|k weight (E, 2E)
        "wv": in_proj[:, 2 * E:],
        "bqk": jnp.zeros((2 * E,), jnp.float32),
        "bv": jnp.zeros((E,), jnp.float32),
        "wo": _xavier(k2, E, E),
        "bo": jnp.zeros((E,), jnp.float32),
    }


def _init_ffn(key, E, H):
    k1, k2 = jax.random.split(key)
    return {
        "w1": _xavier(k1, H, E), "b1": jnp.zeros((H,), jnp.float32),
        "w2": _xavier(k2, E, H), "b2": jnp.zeros((E,), jnp.float32),
    }


def _init_enc_layer(key, E, H):
    k1, k2 = jax.random.split(key)
    return {
        "attn": _init_mha(k1, E),
        "ffn": _init_ffn(k2, E, H),
        "ln1_g": jnp.ones((E,), jnp.float32), "ln1_b": jnp.zeros((E,), jnp.float32),
        "ln2_g": jnp.ones((E,), jnp.float32), "ln2_b": jnp.zeros((E,), jnp.float32),
    }


def _init_dec_layer(key, E, H):
    k1, k2, k3 = jax.random.split(key, 3)
    return {
        "self_attn": _init_mha(k1, E),
        "cross_attn": _init_mha(k2, E),
        "ffn": _init_ffn(k3, E, H),
        "ln1_g": jnp.ones((E,), jnp.float32), "ln1_b": jnp.zeros((E,), jnp.float32),
        "ln2_g": jnp.ones((E,), jnp.float32), "ln2_b": jnp.zeros((E,), jnp.float32),
        "ln3_g": jnp.ones((E,), jnp.float32), "ln3_b": jnp.zeros((E,), jnp.float32),
    }


def init_transformer_params(key, E, ffn_hidden, n_enc, n_dec):
    keys = jax.random.split(key, n_enc + n_dec)
    return {
        "enc_layers": [_init_enc_layer(keys[i], E, ffn_hidden) for i in range(n_enc)],
        "dec_layers": [_init_dec_layer(keys[n_enc + i], E, ffn_hidden) for i in range(n_dec)],
        "enc_norm_g": jnp.ones((E,), jnp.float32), "enc_norm_b": jnp.zeros((E,), jnp.float32),
        "dec_norm_g": jnp.ones((E,), jnp.float32), "dec_norm_b": jnp.zeros((E,), jnp.float32),
    }


# ----------------------------------------------------------------------------
if __name__ == "__main__":
    embed_dim = 32
    num_heads = 4
    num_encoder_layers = 2
    num_decoder_layers = 2
    ffn_hidden_dim = 64
    n, h, w = 2, 4, 4
    num_queries = 8

    root = jax.random.PRNGKey(0)
    kp, kx, km, kq = jax.random.split(root, 4)

    params = init_transformer_params(kp, embed_dim, ffn_hidden_dim,
                                     num_encoder_layers, num_decoder_layers)

    x = jax.random.normal(kx, (n, embed_dim, h, w), jnp.float32)           # NCHW
    memory_pos = jax.random.normal(km, (n, embed_dim, h, w), jnp.float32)  # NCHW
    query_pos = jax.random.normal(kq, (num_queries, embed_dim), jnp.float32)

    fwd = jax.jit(functools.partial(transformer_forward, num_heads=num_heads))
    out = fwd(params, x, memory_pos, query_pos)
    out = jax.block_until_ready(out)

    assert out.shape == (n, num_queries, embed_dim)
    assert bool(jnp.all(jnp.isfinite(out)))
    print("KERNEL_OK")
</pallas_src>

<mosaic_0001>
module attributes {stable_mosaic.version = 11 : i64} {
  func.func @_layernorm_kernel(%arg0: i32, %arg1: memref<32x32xf32, #tpu.memory_space<vmem>>, %arg2: memref<1x32xf32, #tpu.memory_space<vmem>>, %arg3: memref<1x32xf32, #tpu.memory_space<vmem>>, %arg4: memref<32x32xf32, #tpu.memory_space<vmem>>) attributes {dimension_semantics = [#tpu.dimension_semantics<parallel>], iteration_bounds = array<i64: 1>, scalar_prefetch = 0 : i64, scratch_operands = 0 : i64, tpu.core_type = #tpu.core_type<tc>, window_params = [{transform_indices = @transform_0, window_bounds = array<i64: 32, 32>}, {pipeline_mode = #tpu.pipeline_mode<synchronous>, transform_indices = @transform_1, window_bounds = array<i64: 1, 32>}, {pipeline_mode = #tpu.pipeline_mode<synchronous>, transform_indices = @transform_2, window_bounds = array<i64: 1, 32>}, {transform_indices = @transform_3, window_bounds = array<i64: 32, 32>}]} {
    %c0 = arith.constant 0 : index
    %c0_0 = arith.constant 0 : index
    %0 = vector.load %arg1[%c0, %c0_0] : memref<32x32xf32, #tpu.memory_space<vmem>>, vector<32x32xf32>
    %c0_1 = arith.constant 0 : index
    %c0_2 = arith.constant 0 : index
    %1 = vector.load %arg2[%c0_1, %c0_2] : memref<1x32xf32, #tpu.memory_space<vmem>>, vector<1x32xf32>
    %c0_3 = arith.constant 0 : index
    %c0_4 = arith.constant 0 : index
    %2 = vector.load %arg3[%c0_3, %c0_4] : memref<1x32xf32, #tpu.memory_space<vmem>>, vector<1x32xf32>
    %cst = arith.constant dense<0.000000e+00> : vector<32xf32>
    %3 = vector.multi_reduction <add>, %0, %cst [1] : vector<32x32xf32> to vector<32xf32>
    %4 = vector.shape_cast %3 : vector<32xf32> to vector<32x1xf32>
    %cst_5 = arith.constant 3.200000e+01 : f32
    %5 = vector.broadcast %cst_5 : f32 to vector<32x1xf32>
    %6 = arith.divf %4, %5 : vector<32x1xf32>
    %7 = vector.broadcast %6 : vector<32x1xf32> to vector<32x32xf32>
    %8 = arith.subf %0, %7 : vector<32x32xf32>
    %9 = arith.mulf %8, %8 : vector<32x32xf32>
    %cst_6 = arith.constant dense<0.000000e+00> : vector<32xf32>
    %10 = vector.multi_reduction <add>, %9, %cst_6 [1] : vector<32x32xf32> to vector<32xf32>
    %11 = vector.shape_cast %10 : vector<32xf32> to vector<32x1xf32>
    %cst_7 = arith.constant 3.200000e+01 : f32
    %12 = vector.broadcast %cst_7 : f32 to vector<32x1xf32>
    %13 = arith.divf %11, %12 : vector<32x1xf32>
    %cst_8 = arith.constant 9.99999974E-6 : f32
    %14 = vector.broadcast %cst_8 : f32 to vector<32x1xf32>
    %15 = arith.addf %13, %14 : vector<32x1xf32>
    %16 = math.rsqrt %15 : vector<32x1xf32>
    %17 = vector.broadcast %16 : vector<32x1xf32> to vector<32x32xf32>
    %18 = arith.mulf %8, %17 : vector<32x32xf32>
    %19 = vector.broadcast %1 : vector<1x32xf32> to vector<32x32xf32>
    %20 = arith.mulf %18, %19 : vector<32x32xf32>
    %21 = vector.broadcast %2 : vector<1x32xf32> to vector<32x32xf32>
    %22 = arith.addf %20, %21 : vector<32x32xf32>
    %c0_9 = arith.constant 0 : index
    %c0_10 = arith.constant 0 : index
    %23 = vector.load %arg4[%c0_9, %c0_10] : memref<32x32xf32, #tpu.memory_space<vmem>>, vector<32x32xf32>
    tpu.vector_store %arg4[%c0_9, %c0_10], %22 {strides = array<i32>} : memref<32x32xf32, #tpu.memory_space<vmem>>, vector<32x32xf32>,
    return
  }
  func.func @transform_0(%arg0: i32) -> (i32, i32) {
    %c0_i32 = arith.constant 0 : i32
    %c0_i32_0 = arith.constant 0 : i32
    return %arg0, %c0_i32 : i32, i32
  }
  func.func @transform_1(%arg0: i32) -> (i32, i32) {
    %c0_i32 = arith.constant 0 : i32
    %c0_i32_0 = arith.constant 0 : i32
    %c0_i32_1 = arith.constant 0 : i32
    return %c0_i32, %c0_i32_0 : i32, i32
  }
  func.func @transform_2(%arg0: i32) -> (i32, i32) {
    %c0_i32 = arith.constant 0 : i32
    %c0_i32_0 = arith.constant 0 : i32
    %c0_i32_1 = arith.constant 0 : i32
    return %c0_i32, %c0_i32_0 : i32, i32
  }
  func.func @transform_3(%arg0: i32) -> (i32, i32) {
    %c0_i32 = arith.constant 0 : i32
    %c0_i32_0 = arith.constant 0 : i32
    return %arg0, %c0_i32 : i32, i32
  }
}

module attributes {stable_mosaic.version = 11 : i64} {
  func.func @_ln_pos_qkv_kernel(%arg0: i32, %arg1: memref<32x32xf32, #tpu.memory_space<vmem>>, %arg2: memref<32x32xf32, #tpu.memory_space<vmem>>, %arg3: memref<1x32xf32, #tpu.memory_space<vmem>>, %arg4: memref<1x32xf32, #tpu.memory_space<vmem>>, %arg5: memref<32x64xf32, #tpu.memory_space<vmem>>, %arg6: memref<32x32xf32, #tpu.memory_space<vmem>>, %arg7: memref<1x64xf32, #tpu.memory_space<vmem>>, %arg8: memref<1x32xf32, #tpu.memory_space<vmem>>, %arg9: memref<32x32xf32, #tpu.memory_space<vmem>>, %arg10: memref<32x32xf32, #tpu.memory_space<vmem>>, %arg11: memref<32x32xf32, #tpu.memory_space<vmem>>, %arg12: memref<32x32xf32, #tpu.memory_space<vmem>>) attributes {dimension_semantics = [#tpu.dimension_semantics<parallel>], iteration_bounds = array<i64: 1>, scalar_prefetch = 0 : i64, scratch_operands = 0 : i64, tpu.core_type = #tpu.core_type<tc>, window_params = [{transform_indices = @transform_0, window_bounds = array<i64: 32, 32>}, {transform_indices = @transform_1, window_bounds = array<i64: 32, 32>}, {pipeline_mode = #tpu.pipeline_mode<synchronous>, transform_indices = @transform_2, window_bounds = array<i64: 1, 32>}, {pipeline_mode = #tpu.pipeline_mode<synchronous>, transform_indices = @transform_3, window_bounds = array<i64: 1, 32>}, {pipeline_mode = #tpu.pipeline_mode<synchronous>, transform_indices = @transform_4, window_bounds = array<i64: 32, 64>}, {pipeline_mode = #tpu.pipeline_mode<synchronous>, transform_indices = @transform_5, window_bounds = array<i64: 32, 32>}, {pipeline_mode = #tpu.pipeline_mode<synchronous>, transform_indices = @transform_6, window_bounds = array<i64: 1, 64>}, {pipeline_mode = #tpu.pipeline_mode<synchronous>, transform_indices = @transform_7, window_bounds = array<i64: 1, 32>}, {transform_indices = @transform_8, window_bounds = array<i64: 32, 32>}, {transform_indices = @transform_9, window_bounds = array<i64: 32, 32>}, {transform_indices = @transform_10, window_bounds = array<i64: 32, 32>}, {transform_indices = @transform_11, window_bounds = array<i64: 32, 32>}]} {
    %c0 = arith.constant 0 : index
    %c0_0 = arith.constant 0 : index
    %0 = vector.load %arg1[%c0, %c0_0] : memref<32x32xf32, #tpu.memory_space<vmem>>, vector<32x32xf32>
    %c0_1 = arith.constant 0 : index
    %c0_2 = arith.constant 0 : index
    %1 = vector.load %arg3[%c0_1, %c0_2] : memref<1x32xf32, #tpu.memory_space<vmem>>, vector<1x32xf32>
    %c0_3 = arith.constant 0 : index
    %c0_4 = arith.constant 0 : index
    %2 = vector.load %arg4[%c0_3, %c0_4] : memref<1x32xf32, #tpu.memory_space<vmem>>, vector<1x32xf32>
    %cst = arith.constant dense<0.000000e+00> : vector<32xf32>
    %3 = vector.multi_reduction <add>, %0, %cst [1] : vector<32x32xf32> to vector<32xf32>
    %4 = vector.shape_cast %3 : vector<32xf32> to vector<32x1xf32>
    %cst_5 = arith.constant 3.200000e+01 : f32
    %5 = vector.broadcast %cst_5 : f32 to vector<32x1xf32>
    %6 = arith.divf %4, %5 : vector<32x1xf32>
    %7 = vector.broadcast %6 : vector<32x1xf32> to vector<32x32xf32>
    %8 = arith.subf %0, %7 : vector<32x32xf32>
    %9 = arith.mulf %8, %8 : vector<32x32xf32>
    %cst_6 = arith.constant dense<0.000000e+00> : vector<32xf32>
    %10 = vector.multi_reduction <add>, %9, %cst_6 [1] : vector<32x32xf32> to vector<32xf32>
    %11 = vector.shape_cast %10 : vector<32xf32> to vector<32x1xf32>
    %cst_7 = arith.constant 3.200000e+01 : f32
    %12 = vector.broadcast %cst_7 : f32 to vector<32x1xf32>
    %13 = arith.divf %11, %12 : vector<32x1xf32>
    %cst_8 = arith.constant 9.99999974E-6 : f32
    %14 = vector.broadcast %cst_8 : f32 to vector<32x1xf32>
    %15 = arith.addf %13, %14 : vector<32x1xf32>
    %16 = math.rsqrt %15 : vector<32x1xf32>
    %17 = vector.broadcast %16 : vector<32x1xf32> to vector<32x32xf32>
    %18 = arith.mulf %8, %17 : vector<32x32xf32>
    %19 = vector.broadcast %1 : vector<1x32xf32> to vector<32x32xf32>
    %20 = arith.mulf %18, %19 : vector<32x32xf32>
    %21 = vector.broadcast %2 : vector<1x32xf32> to vector<32x32xf32>
    %22 = arith.addf %20, %21 : vector<32x32xf32>
    %c0_9 = arith.constant 0 : index
    %c0_10 = arith.constant 0 : index
    %23 = vector.load %arg2[%c0_9, %c0_10] : memref<32x32xf32, #tpu.memory_space<vmem>>, vector<32x32xf32>
    %24 = arith.addf %22, %23 : vector<32x32xf32>
    %c0_11 = arith.constant 0 : index
    %c0_12 = arith.constant 0 : index
    %25 = vector.load %arg5[%c0_11, %c0_12] : memref<32x64xf32, #tpu.memory_space<vmem>>, vector<32x64xf32>
    %cst_13 = arith.constant dense<0.000000e+00> : vector<32x64xf32>
    %26 = tpu.matmul %24, %25, %cst_13 {dimension_numbers = #tpu.dot_dimension_numbers<[1], [0], [0], [1], [0, 0, 1, 1], [], []>} : vector<32x32xf32>, vector<32x64xf32>, vector<32x64xf32> -> vector<32x64xf32>
    %c0_14 = arith.constant 0 : index
    %c0_15 = arith.constant 0 : index
    %27 = vector.load %arg7[%c0_14, %c0_15] : memref<1x64xf32, #tpu.memory_space<vmem>>, vector<1x64xf32>
    %28 = vector.broadcast %27 : vector<1x64xf32> to vector<32x64xf32>
    %29 = arith.addf %26, %28 : vector<32x64xf32>
    %c0_16 = arith.constant 0 : index
    %c0_17 = arith.constant 0 : index
    %30 = vector.load %arg6[%c0_16, %c0_17] : memref<32x32xf32, #tpu.memory_space<vmem>>, vector<32x32xf32>
    %cst_18 = arith.constant dense<0.000000e+00> : vector<32x32xf32>
    %31 = tpu.matmul %22, %30, %cst_18 {dimension_numbers = #tpu.dot_dimension_numbers<[1], [0], [0], [1], [0, 0, 1, 1], [], []>} : vector<32x32xf32>, vector<32x32xf32>, vector<32x32xf32> -> vector<32x32xf32>
    %c0_19 = arith.constant 0 : index
    %c0_20 = arith.constant 0 : index
    %32 = vector.load %arg8[%c0_19, %c0_20] : memref<1x32xf32, #tpu.memory_space<vmem>>, vector<1x32xf32>
    %33 = vector.broadcast %32 : vector<1x32xf32> to vector<32x32xf32>
    %34 = arith.addf %31, %33 : vector<32x32xf32>
    %c0_21 = arith.constant 0 : index
    %c0_22 = arith.constant 0 : index
    %35 = vector.load %arg9[%c0_21, %c0_22] : memref<32x32xf32, #tpu.memory_space<vmem>>, vector<32x32xf32>
    tpu.vector_store %arg9[%c0_21, %c0_22], %22 {strides = array<i32>} : memref<32x32xf32, #tpu.memory_space<vmem>>, vector<32x32xf32>,
    %36 = vector.extract_strided_slice %29 {offsets = [0, 0], sizes = [32, 32], strides = [1, 1]} : vector<32x64xf32> to vector<32x32xf32>
    %c0_23 = arith.constant 0 : index
    %c0_24 = arith.constant 0 : index
    %37 = vector.load %arg10[%c0_23, %c0_24] : memref<32x32xf32, #tpu.memory_space<vmem>>, vector<32x32xf32>
    tpu.vector_store %arg10[%c0_23, %c0_24], %36 {strides = array<i32>} : memref<32x32xf32, #tpu.memory_space<vmem>>, vector<32x32xf32>,
    %38 = vector.extract_strided_slice %29 {offsets = [0, 32], sizes = [32, 32], strides = [1, 1]} : vector<32x64xf32> to vector<32x32xf32>
    %c0_25 = arith.constant 0 : index
    %c0_26 = arith.constant 0 : index
    %39 = vector.load %arg11[%c0_25, %c0_26] : memref<32x32xf32, #tpu.memory_space<vmem>>, vector<32x32xf32>
    tpu.vector_store %arg11[%c0_25, %c0_26], %38 {strides = array<i32>} : memref<32x32xf32, #tpu.memory_space<vmem>>, vector<32x32xf32>,
    %c0_27 = arith.constant 0 : index
    %c0_28 = arith.constant 0 : index
    %40 = vector.load %arg12[%c0_27, %c0_28] : memref<32x32xf32, #tpu.memory_space<vmem>>, vector<32x32xf32>
    tpu.vector_store %arg12[%c0_27, %c0_28], %34 {strides = array<i32>} : memref<32x32xf32, #tpu.memory_space<vmem>>, vector<32x32xf32>,
    return
  }
  func.func @transform_0(%arg0: i32) -> (i32, i32) {
    %c0_i32 = arith.constant 0 : i32
    %c0_i32_0 = arith.constant 0 : i32
    return %arg0, %c0_i32 : i32, i32
  }
  func.func @transform_1(%arg0: i32) -> (i32, i32) {
    %c0_i32 = arith.constant 0 : i32
    %c0_i32_0 = arith.constant 0 : i32
    return %arg0, %c0_i32 : i32, i32
  }
  func.func @transform_2(%arg0: i32) -> (i32, i32) {
    %c0_i32 = arith.constant 0 : i32
    %c0_i32_0 = arith.constant 0 : i32
    %c0_i32_1 = arith.constant 0 : i32
    return %c0_i32, %c0_i32_0 : i32, i32
  }
  func.func @transform_3(%arg0: i32) -> (i32, i32) {
    %c0_i32 = arith.constant 0 : i32
    %c0_i32_0 = arith.constant 0 : i32
    %c0_i32_1 = arith.constant 0 : i32
    return %c0_i32, %c0_i32_0 : i32, i32
  }
  func.func @transform_4(%arg0: i32) -> (i32, i32) {
    %c0_i32 = arith.constant 0 : i32
    %c0_i32_0 = arith.constant 0 : i32
    %c0_i32_1 = arith.constant 0 : i32
    return %c0_i32, %c0_i32_0 : i32, i32
  }
  func.func @transform_5(%arg0: i32) -> (i32, i32) {
    %c0_i32 = arith.constant 0 : i32
    %c0_i32_0 = arith.constant 0 : i32
    %c0_i32_1 = arith.constant 0 : i32
    return %c0_i32, %c0_i32_0 : i32, i32
  }
  func.func @transform_6(%arg0: i32) -> (i32, i32) {
    %c0_i32 = arith.constant 0 : i32
    %c0_i32_0 = arith.constant 0 : i32
    %c0_i32_1 = arith.constant 0 : i32
    return %c0_i32, %c0_i32_0 : i32, i32
  }
  func.func @transform_7(%arg0: i32) -> (i32, i32) {
    %c0_i32 = arith.constant 0 : i32
    %c0_i32_0 = arith.constant 0 : i32
    %c0_i32_1 = arith.constant 0 : i32
    return %c0_i32, %c0_i32_0 : i32, i32
  }
  func.func @transform_8(%arg0: i32) -> (i32, i32) {
    %c0_i32 = arith.constant 0 : i32
    %c0_i32_0 = arith.constant 0 : i32
    return %arg0, %c0_i32 : i32, i32
  }
  func.func @transform_9(%arg0: i32) -> (i32, i32) {
    %c0_i32 = arith.constant 0 : i32
    %c0_i32_0 = arith.constant 0 : i32
    return %arg0, %c0_i32 : i32, i32
  }
  func.func @transform_10(%arg0: i32) -> (i32, i32) {
    %c0_i32 = arith.constant 0 : i32
    %c0_i32_0 = arith.constant 0 : i32
    return %arg0, %c0_i32 : i32, i32
  }
  func.func @transform_11(%arg0: i32) -> (i32, i32) {
    %c0_i32 = arith.constant 0 : i32
    %c0_i32_0 = arith.constant 0 : i32
    return %arg0, %c0_i32 : i32, i32
  }
}

module attributes {stable_mosaic.version = 11 : i64} {
  func.func @_attn_ffn_kernel(%arg0: i32, %arg1: memref<1x16x32xf32, #tpu.memory_space<vmem>>, %arg2: memref<1x16x32xf32, #tpu.memory_space<vmem>>, %arg3: memref<1x16x32xf32, #tpu.memory_space<vmem>>, %arg4: memref<1x16x32xf32, #tpu.memory_space<vmem>>, %arg5: memref<32x32xf32, #tpu.memory_space<vmem>>, %arg6: memref<1x32xf32, #tpu.memory_space<vmem>>, %arg7: memref<1x32xf32, #tpu.memory_space<vmem>>, %arg8: memref<1x32xf32, #tpu.memory_space<vmem>>, %arg9: memref<32x64xf32, #tpu.memory_space<vmem>>, %arg10: memref<1x64xf32, #tpu.memory_space<vmem>>, %arg11: memref<64x32xf32, #tpu.memory_space<vmem>>, %arg12: memref<1x32xf32, #tpu.memory_space<vmem>>, %arg13: memref<1x16x32xf32, #tpu.memory_space<vmem>>) attributes {dimension_semantics = [#tpu.dimension_semantics<parallel>], iteration_bounds = array<i64: 2>, scalar_prefetch = 0 : i64, scratch_operands = 0 : i64, tpu.core_type = #tpu.core_type<tc>, window_params = [{transform_indices = @transform_0, window_bounds = array<i64: 1, 16, 32>}, {transform_indices = @transform_1, window_bounds = array<i64: 1, 16, 32>}, {transform_indices = @transform_2, window_bounds = array<i64: 1, 16, 32>}, {transform_indices = @transform_3, window_bounds = array<i64: 1, 16, 32>}, {pipeline_mode = #tpu.pipeline_mode<synchronous>, transform_indices = @transform_4, window_bounds = array<i64: 32, 32>}, {pipeline_mode = #tpu.pipeline_mode<synchronous>, transform_indices = @transform_5, window_bounds = array<i64: 1, 32>}, {pipeline_mode = #tpu.pipeline_mode<synchronous>, transform_indices = @transform_6, window_bounds = array<i64: 1, 32>}, {pipeline_mode = #tpu.pipeline_mode<synchronous>, transform_indices = @transform_7, window_bounds = array<i64: 1, 32>}, {pipeline_mode = #tpu.pipeline_mode<synchronous>, transform_indices = @transform_8, window_bounds = array<i64: 32, 64>}, {pipeline_mode = #tpu.pipeline_mode<synchronous>, transform_indices = @transform_9, window_bounds = array<i64: 1, 64>}, {pipeline_mode = #tpu.pipeline_mode<synchronous>, transform_indices = @transform_10, window_bounds = array<i64: 64, 32>}, {pipeline_mode = #tpu.pipeline_mode<synchronous>, transform_indices = @transform_11, window_bounds = array<i64: 1, 32>}, {transform_indices = @transform_12, window_bounds = array<i64: 1, 16, 32>}]} {
    %c0 = arith.constant 0 : index
    %c0_0 = arith.constant 0 : index
    %c0_1 = arith.constant 0 : index
    %0 = vector.load %arg1[%c0, %c0_0, %c0_1] : memref<1x16x32xf32, #tpu.memory_space<vmem>>, vector<1x16x32xf32>
    %1 = vector.shape_cast %0 : vector<1x16x32xf32> to vector<16x32xf32>
    %c0_2 = arith.constant 0 : index
    %c0_3 = arith.constant 0 : index
    %c0_4 = arith.constant 0 : index
    %2 = vector.load %arg2[%c0_2, %c0_3, %c0_4] : memref<1x16x32xf32, #tpu.memory_space<vmem>>, vector<1x16x32xf32>
    %3 = vector.shape_cast %2 : vector<1x16x32xf32> to vector<16x32xf32>
    %c0_5 = arith.constant 0 : index
    %c0_6 = arith.constant 0 : index
    %c0_7 = arith.constant 0 : index
    %4 = vector.load %arg3[%c0_5, %c0_6, %c0_7] : memref<1x16x32xf32, #tpu.memory_space<vmem>>, vector<1x16x32xf32>
    %5 = vector.shape_cast %4 : vector<1x16x32xf32> to vector<16x32xf32>
    %c0_8 = arith.constant 0 : index
    %c0_9 = arith.constant 0 : index
    %6 = vector.load %arg5[%c0_8, %c0_9] : memref<32x32xf32, #tpu.memory_space<vmem>>, vector<32x32xf32>
    %7 = vector.extract_strided_slice %1 {offsets = [0, 0], sizes = [16, 8], strides = [1, 1]} : vector<16x32xf32> to vector<16x8xf32>
    %8 = vector.extract_strided_slice %3 {offsets = [0, 0], sizes = [16, 8], strides = [1, 1]} : vector<16x32xf32> to vector<16x8xf32>
    %cst = arith.constant dense<0.000000e+00> : vector<16x16xf32>
    %9 = tpu.matmul %7, %8, %cst {dimension_numbers = #tpu.dot_dimension_numbers<[1], [1], [0], [0], [0, 0, 1, 0], [], []>} : vector<16x8xf32>, vector<16x8xf32>, vector<16x16xf32> -> vector<16x16xf32>
    %cst_10 = arith.constant 0.353553385 : f32
    %10 = vector.broadcast %cst_10 : f32 to vector<16x16xf32>
    %11 = arith.mulf %9, %10 : vector<16x16xf32>
    %cst_11 = arith.constant dense<0xFF800000> : vector<16xf32>
    %12 = vector.multi_reduction <maximumf>, %11, %cst_11 [1] : vector<16x16xf32> to vector<16xf32>
    %13 = vector.shape_cast %12 : vector<16xf32> to vector<16x1xf32>
    %14 = vector.broadcast %13 : vector<16x1xf32> to vector<16x16xf32>
    %15 = arith.subf %11, %14 : vector<16x16xf32>
    %16 = math.exp %15 : vector<16x16xf32>
    %cst_12 = arith.constant dense<0.000000e+00> : vector<16xf32>
    %17 = vector.multi_reduction <add>, %16, %cst_12 [1] : vector<16x16xf32> to vector<16xf32>
    %18 = vector.shape_cast %17 : vector<16xf32> to vector<16x1xf32>
    %19 = tpu.reciprocal %18 {approx = true} : vector<16x1xf32> -> vector<16x1xf32>
    %20 = vector.broadcast %19 : vector<16x1xf32> to vector<16x16xf32>
    %21 = arith.mulf %16, %20 : vector<16x16xf32>
    %22 = vector.extract_strided_slice %5 {offsets = [0, 0], sizes = [16, 8], strides = [1, 1]} : vector<16x32xf32> to vector<16x8xf32>
    %cst_13 = arith.constant dense<0.000000e+00> : vector<16x8xf32>
    %23 = tpu.matmul %21, %22, %cst_13 {dimension_numbers = #tpu.dot_dimension_numbers<[1], [0], [0], [1], [0, 0, 1, 1], [], []>} : vector<16x16xf32>, vector<16x8xf32>, vector<16x8xf32> -> vector<16x8xf32>
    %24 = vector.extract_strided_slice %6 {offsets = [0, 0], sizes = [8, 32], strides = [1, 1]} : vector<32x32xf32> to vector<8x32xf32>
    %cst_14 = arith.constant dense<0.000000e+00> : vector<16x32xf32>
    %25 = tpu.matmul %23, %24, %cst_14 {dimension_numbers = #tpu.dot_dimension_numbers<[1], [0], [0], [1], [0, 0, 1, 1], [], []>} : vector<16x8xf32>, vector<8x32xf32>, vector<16x32xf32> -> vector<16x32xf32>
    %26 = vector.extract_strided_slice %1 {offsets = [0, 8], sizes = [16, 8], strides = [1, 1]} : vector<16x32xf32> to vector<16x8xf32>
    %27 = vector.extract_strided_slice %3 {offsets = [0, 8], sizes = [16, 8], strides = [1, 1]} : vector<16x32xf32> to vector<16x8xf32>
    %cst_15 = arith.constant dense<0.000000e+00> : vector<16x16xf32>
    %28 = tpu.matmul %26, %27, %cst_15 {dimension_numbers = #tpu.dot_dimension_numbers<[1], [1], [0], [0], [0, 0, 1, 0], [], []>} : vector<16x8xf32>, vector<16x8xf32>, vector<16x16xf32> -> vector<16x16xf32>
    %cst_16 = arith.constant 0.353553385 : f32
    %29 = vector.broadcast %cst_16 : f32 to vector<16x16xf32>
    %30 = arith.mulf %28, %29 : vector<16x16xf32>
    %cst_17 = arith.constant dense<0xFF800000> : vector<16xf32>
    %31 = vector.multi_reduction <maximumf>, %30, %cst_17 [1] : vector<16x16xf32> to vector<16xf32>
    %32 = vector.shape_cast %31 : vector<16xf32> to vector<16x1xf32>
    %33 = vector.broadcast %32 : vector<16x1xf32> to vector<16x16xf32>
    %34 = arith.subf %30, %33 : vector<16x16xf32>
    %35 = math.exp %34 : vector<16x16xf32>
    %cst_18 = arith.constant dense<0.000000e+00> : vector<16xf32>
    %36 = vector.multi_reduction <add>, %35, %cst_18 [1] : vector<16x16xf32> to vector<16xf32>
    %37 = vector.shape_cast %36 : vector<16xf32> to vector<16x1xf32>
    %38 = tpu.reciprocal %37 {approx = true} : vector<16x1xf32> -> vector<16x1xf32>
    %39 = vector.broadcast %38 : vector<16x1xf32> to vector<16x16xf32>
    %40 = arith.mulf %35, %39 : vector<16x16xf32>
    %41 = vector.extract_strided_slice %5 {offsets = [0, 8], sizes = [16, 8], strides = [1, 1]} : vector<16x32xf32> to vector<16x8xf32>
    %cst_19 = arith.constant dense<0.000000e+00> : vector<16x8xf32>
    %42 = tpu.matmul %40, %41, %cst_19 {dimension_numbers = #tpu.dot_dimension_numbers<[1], [0], [0], [1], [0, 0, 1, 1], [], []>} : vector<16x16xf32>, vector<16x8xf32>, vector<16x8xf32> -> vector<16x8xf32>
    %43 = vector.extract_strided_slice %6 {offsets = [8, 0], sizes = [8, 32], strides = [1, 1]} : vector<32x32xf32> to vector<8x32xf32>
    %cst_20 = arith.constant dense<0.000000e+00> : vector<16x32xf32>
    %44 = tpu.matmul %42, %43, %cst_20 {dimension_numbers = #tpu.dot_dimension_numbers<[1], [0], [0], [1], [0, 0, 1, 1], [], []>} : vector<16x8xf32>, vector<8x32xf32>, vector<16x32xf32> -> vector<16x32xf32>
    %45 = arith.addf %25, %44 : vector<16x32xf32>
    %46 = vector.extract_strided_slice %1 {offsets = [0, 16], sizes = [16, 8], strides = [1, 1]} : vector<16x32xf32> to vector<16x8xf32>
    %47 = vector.extract_strided_slice %3 {offsets = [0, 16], sizes = [16, 8], strides = [1, 1]} : vector<16x32xf32> to vector<16x8xf32>
    %cst_21 = arith.constant dense<0.000000e+00> : vector<16x16xf32>
    %48 = tpu.matmul %46, %47, %cst_21 {dimension_numbers = #tpu.dot_dimension_numbers<[1], [1], [0], [0], [0, 0, 1, 0], [], []>} : vector<16x8xf32>, vector<16x8xf32>, vector<16x16xf32> -> vector<16x16xf32>
    %cst_22 = arith.constant 0.353553385 : f32
    %49 = vector.broadcast %cst_22 : f32 to vector<16x16xf32>
    %50 = arith.mulf %48, %49 : vector<16x16xf32>
    %cst_23 = arith.constant dense<0xFF800000> : vector<16xf32>
    %51 = vector.multi_reduction <maximumf>, %50, %cst_23 [1] : vector<16x16xf32> to vector<16xf32>
    %52 = vector.shape_cast %51 : vector<16xf32> to vector<16x1xf32>
    %53 = vector.broadcast %52 : vector<16x1xf32> to vector<16x16xf32>
    %54 = arith.subf %50, %53 : vector<16x16xf32>
    %55 = math.exp %54 : vector<16x16xf32>
    %cst_24 = arith.constant dense<0.000000e+00> : vector<16xf32>
    %56 = vector.multi_reduction <add>, %55, %cst_24 [1] : vector<16x16xf32> to vector<16xf32>
    %57 = vector.shape_cast %56 : vector<16xf32> to vector<16x1xf32>
    %58 = tpu.reciprocal %57 {approx = true} : vector<16x1xf32> -> vector<16x1xf32>
    %59 = vector.broadcast %58 : vector<16x1xf32> to vector<16x16xf32>
    %60 = arith.mulf %55, %59 : vector<16x16xf32>
    %61 = vector.extract_strided_slice %5 {offsets = [0, 16], sizes = [16, 8], strides = [1, 1]} : vector<16x32xf32> to vector<16x8xf32>
    %cst_25 = arith.constant dense<0.000000e+00> : vector<16x8xf32>
    %62 = tpu.matmul %60, %61, %cst_25 {dimension_numbers = #tpu.dot_dimension_numbers<[1], [0], [0], [1], [0, 0, 1, 1], [], []>} : vector<16x16xf32>, vector<16x8xf32>, vector<16x8xf32> -> vector<16x8xf32>
    %63 = vector.extract_strided_slice %6 {offsets = [16, 0], sizes = [8, 32], strides = [1, 1]} : vector<32x32xf32> to vector<8x32xf32>
    %cst_26 = arith.constant dense<0.000000e+00> : vector<16x32xf32>
    %64 = tpu.matmul %62, %63, %cst_26 {dimension_numbers = #tpu.dot_dimension_numbers<[1], [0], [0], [1], [0, 0, 1, 1], [], []>} : vector<16x8xf32>, vector<8x32xf32>, vector<16x32xf32> -> vector<16x32xf32>
    %65 = arith.addf %45, %64 : vector<16x32xf32>
    %66 = vector.extract_strided_slice %1 {offsets = [0, 24], sizes = [16, 8], strides = [1, 1]} : vector<16x32xf32> to vector<16x8xf32>
    %67 = vector.extract_strided_slice %3 {offsets = [0, 24], sizes = [16, 8], strides = [1, 1]} : vector<16x32xf32> to vector<16x8xf32>
    %cst_27 = arith.constant dense<0.000000e+00> : vector<16x16xf32>
    %68 = tpu.matmul %66, %67, %cst_27 {dimension_numbers = #tpu.dot_dimension_numbers<[1], [1], [0], [0], [0, 0, 1, 0], [], []>} : vector<16x8xf32>, vector<16x8xf32>, vector<16x16xf32> -> vector<16x16xf32>
    %cst_28 = arith.constant 0.353553385 : f32
    %69 = vector.broadcast %cst_28 : f32 to vector<16x16xf32>
    %70 = arith.mulf %68, %69 : vector<16x16xf32>
    %cst_29 = arith.constant dense<0xFF800000> : vector<16xf32>
    %71 = vector.multi_reduction <maximumf>, %70, %cst_29 [1] : vector<16x16xf32> to vector<16xf32>
    %72 = vector.shape_cast %71 : vector<16xf32> to vector<16x1xf32>
    %73 = vector.broadcast %72 : vector<16x1xf32> to vector<16x16xf32>
    %74 = arith.subf %70, %73 : vector<16x16xf32>
    %75 = math.exp %74 : vector<16x16xf32>
    %cst_30 = arith.constant dense<0.000000e+00> : vector<16xf32>
    %76 = vector.multi_reduction <add>, %75, %cst_30 [1] : vector<16x16xf32> to vector<16xf32>
    %77 = vector.shape_cast %76 : vector<16xf32> to vector<16x1xf32>
    %78 = tpu.reciprocal %77 {approx = true} : vector<16x1xf32> -> vector<16x1xf32>
    %79 = vector.broadcast %78 : vector<16x1xf32> to vector<16x16xf32>
    %80 = arith.mulf %75, %79 : vector<16x16xf32>
    %81 = vector.extract_strided_slice %5 {offsets = [0, 24], sizes = [16, 8], strides = [1, 1]} : vector<16x32xf32> to vector<16x8xf32>
    %cst_31 = arith.constant dense<0.000000e+00> : vector<16x8xf32>
    %82 = tpu.matmul %80, %81, %cst_31 {dimension_numbers = #tpu.dot_dimension_numbers<[1], [0], [0], [1], [0, 0, 1, 1], [], []>} : vector<16x16xf32>, vector<16x8xf32>, vector<16x8xf32> -> vector<16x8xf32>
    %83 = vector.extract_strided_slice %6 {offsets = [24, 0], sizes = [8, 32], strides = [1, 1]} : vector<32x32xf32> to vector<8x32xf32>
    %cst_32 = arith.constant dense<0.000000e+00> : vector<16x32xf32>
    %84 = tpu.matmul %82, %83, %cst_32 {dimension_numbers = #tpu.dot_dimension_numbers<[1], [0], [0], [1], [0, 0, 1, 1], [], []>} : vector<16x8xf32>, vector<8x32xf32>, vector<16x32xf32> -> vector<16x32xf32>
    %85 = arith.addf %65, %84 : vector<16x32xf32>
    %c0_33 = arith.constant 0 : index
    %c0_34 = arith.constant 0 : index
    %86 = vector.load %arg6[%c0_33, %c0_34] : memref<1x32xf32, #tpu.memory_space<vmem>>, vector<1x32xf32>
    %87 = vector.broadcast %86 : vector<1x32xf32> to vector<16x32xf32>
    %88 = arith.addf %85, %87 : vector<16x32xf32>
    %c0_35 = arith.constant 0 : index
    %c0_36 = arith.constant 0 : index
    %c0_37 = arith.constant 0 : index
    %89 = vector.load %arg4[%c0_35, %c0_36, %c0_37] : memref<1x16x32xf32, #tpu.memory_space<vmem>>, vector<1x16x32xf32>
    %90 = vector.shape_cast %89 : vector<1x16x32xf32> to vector<16x32xf32>
    %91 = arith.addf %88, %90 : vector<16x32xf32>
    %c0_38 = arith.constant 0 : index
    %c0_39 = arith.constant 0 : index
    %92 = vector.load %arg7[%c0_38, %c0_39] : memref<1x32xf32, #tpu.memory_space<vmem>>, vector<1x32xf32>
    %c0_40 = arith.constant 0 : index
    %c0_41 = arith.constant 0 : index
    %93 = vector.load %arg8[%c0_40, %c0_41] : memref<1x32xf32, #tpu.memory_space<vmem>>, vector<1x32xf32>
    %cst_42 = arith.constant dense<0.000000e+00> : vector<16xf32>
    %94 = vector.multi_reduction <add>, %91, %cst_42 [1] : vector<16x32xf32> to vector<16xf32>
    %95 = vector.shape_cast %94 : vector<16xf32> to vector<16x1xf32>
    %cst_43 = arith.constant 3.200000e+01 : f32
    %96 = vector.broadcast %cst_43 : f32 to vector<16x1xf32>
    %97 = arith.divf %95, %96 : vector<16x1xf32>
    %98 = vector.broadcast %97 : vector<16x1xf32> to vector<16x32xf32>
    %99 = arith.subf %91, %98 : vector<16x32xf32>
    %100 = arith.mulf %99, %99 : vector<16x32xf32>
    %cst_44 = arith.constant dense<0.000000e+00> : vector<16xf32>
    %101 = vector.multi_reduction <add>, %100, %cst_44 [1] : vector<16x32xf32> to vector<16xf32>
    %102 = vector.shape_cast %101 : vector<16xf32> to vector<16x1xf32>
    %cst_45 = arith.constant 3.200000e+01 : f32
    %103 = vector.broadcast %cst_45 : f32 to vector<16x1xf32>
    %104 = arith.divf %102, %103 : vector<16x1xf32>
    %cst_46 = arith.constant 9.99999974E-6 : f32
    %105 = vector.broadcast %cst_46 : f32 to vector<16x1xf32>
    %106 = arith.addf %104, %105 : vector<16x1xf32>
    %107 = math.rsqrt %106 : vector<16x1xf32>
    %108 = vector.broadcast %107 : vector<16x1xf32> to vector<16x32xf32>
    %109 = arith.mulf %99, %108 : vector<16x32xf32>
    %110 = vector.broadcast %92 : vector<1x32xf32> to vector<16x32xf32>
    %111 = arith.mulf %109, %110 : vector<16x32xf32>
    %112 = vector.broadcast %93 : vector<1x32xf32> to vector<16x32xf32>
    %113 = arith.addf %111, %112 : vector<16x32xf32>
    %c0_47 = arith.constant 0 : index
    %c0_48 = arith.constant 0 : index
    %114 = vector.load %arg9[%c0_47, %c0_48] : memref<32x64xf32, #tpu.memory_space<vmem>>, vector<32x64xf32>
    %cst_49 = arith.constant dense<0.000000e+00> : vector<16x64xf32>
    %115 = tpu.matmul %113, %114, %cst_49 {dimension_numbers = #tpu.dot_dimension_numbers<[1], [0], [0], [1], [0, 0, 1, 1], [], []>} : vector<16x32xf32>, vector<32x64xf32>, vector<16x64xf32> -> vector<16x64xf32>
    %c0_50 = arith.constant 0 : index
    %c0_51 = arith.constant 0 : index
    %116 = vector.load %arg10[%c0_50, %c0_51] : memref<1x64xf32, #tpu.memory_space<vmem>>, vector<1x64xf32>
    %117 = vector.broadcast %116 : vector<1x64xf32> to vector<16x64xf32>
    %118 = arith.addf %115, %117 : vector<16x64xf32>
    %cst_52 = arith.constant 0.000000e+00 : f32
    %119 = vector.broadcast %cst_52 : f32 to vector<16x64xf32>
    %120 = arith.maximumf %118, %119 : vector<16x64xf32>
    %c0_53 = arith.constant 0 : index
    %c0_54 = arith.constant 0 : index
    %121 = vector.load %arg11[%c0_53, %c0_54] : memref<64x32xf32, #tpu.memory_space<vmem>>, vector<64x32xf32>
    %cst_55 = arith.constant dense<0.000000e+00> : vector<16x32xf32>
    %122 = tpu.matmul %120, %121, %cst_55 {dimension_numbers = #tpu.dot_dimension_numbers<[1], [0], [0], [1], [0, 0, 1, 1], [], []>} : vector<16x64xf32>, vector<64x32xf32>, vector<16x32xf32> -> vector<16x32xf32>
    %c0_56 = arith.constant 0 : index
    %c0_57 = arith.constant 0 : index
    %123 = vector.load %arg12[%c0_56, %c0_57] : memref<1x32xf32, #tpu.memory_space<vmem>>, vector<1x32xf32>
    %124 = vector.broadcast %123 : vector<1x32xf32> to vector<16x32xf32>
    %125 = arith.addf %122, %124 : vector<16x32xf32>
    %126 = arith.addf %113, %125 : vector<16x32xf32>
    %c0_58 = arith.constant 0 : index
    %c0_59 = arith.constant 0 : index
    %c0_60 = arith.constant 0 : index
    %127 = vector.load %arg13[%c0_58, %c0_59, %c0_60] : memref<1x16x32xf32, #tpu.memory_space<vmem>>, vector<1x16x32xf32>
    %128 = vector.shape_cast %127 : vector<1x16x32xf32> to vector<16x32xf32>
    %129 = vector.shape_cast %126 : vector<16x32xf32> to vector<1x16x32xf32>
    tpu.vector_store %arg13[%c0_58, %c0_59, %c0_60], %129 {strides = array<i32>} : memref<1x16x32xf32, #tpu.memory_space<vmem>>, vector<1x16x32xf32>,
    return
  }
  func.func @transform_0(%arg0: i32) -> (i32, i32, i32) {
    %c0_i32 = arith.constant 0 : i32
    %c0_i32_0 = arith.constant 0 : i32
    %c0_i32_1 = arith.constant 0 : i32
    return %arg0, %c0_i32, %c0_i32_0 : i32, i32, i32
  }
  func.func @transform_1(%arg0: i32) -> (i32, i32, i32) {
    %c0_i32 = arith.constant 0 : i32
    %c0_i32_0 = arith.constant 0 : i32
    %c0_i32_1 = arith.constant 0 : i32
    return %arg0, %c0_i32, %c0_i32_0 : i32, i32, i32
  }
  func.func @transform_2(%arg0: i32) -> (i32, i32, i32) {
    %c0_i32 = arith.constant 0 : i32
    %c0_i32_0 = arith.constant 0 : i32
    %c0_i32_1 = arith.constant 0 : i32
    return %arg0, %c0_i32, %c0_i32_0 : i32, i32, i32
  }
  func.func @transform_3(%arg0: i32) -> (i32, i32, i32) {
    %c0_i32 = arith.constant 0 : i32
    %c0_i32_0 = arith.constant 0 : i32
    %c0_i32_1 = arith.constant 0 : i32
    return %arg0, %c0_i32, %c0_i32_0 : i32, i32, i32
  }
  func.func @transform_4(%arg0: i32) -> (i32, i32) {
    %c0_i32 = arith.constant 0 : i32
    %c0_i32_0 = arith.constant 0 : i32
    %c0_i32_1 = arith.constant 0 : i32
    return %c0_i32, %c0_i32_0 : i32, i32
  }
  func.func @transform_5(%arg0: i32) -> (i32, i32) {
    %c0_i32 = arith.constant 0 : i32
    %c0_i32_0 = arith.constant 0 : i32
    %c0_i32_1 = arith.constant 0 : i32
    return %c0_i32, %c0_i32_0 : i32, i32
  }
  func.func @transform_6(%arg0: i32) -> (i32, i32) {
    %c0_i32 = arith.constant 0 : i32
    %c0_i32_0 = arith.constant 0 : i32
    %c0_i32_1 = arith.constant 0 : i32
    return %c0_i32, %c0_i32_0 : i32, i32
  }
  func.func @transform_7(%arg0: i32) -> (i32, i32) {
    %c0_i32 = arith.constant 0 : i32
    %c0_i32_0 = arith.constant 0 : i32
    %c0_i32_1 = arith.constant 0 : i32
    return %c0_i32, %c0_i32_0 : i32, i32
  }
  func.func @transform_8(%arg0: i32) -> (i32, i32) {
    %c0_i32 = arith.constant 0 : i32
    %c0_i32_0 = arith.constant 0 : i32
    %c0_i32_1 = arith.constant 0 : i32
    return %c0_i32, %c0_i32_0 : i32, i32
  }
  func.func @transform_9(%arg0: i32) -> (i32, i32) {
    %c0_i32 = arith.constant 0 : i32
    %c0_i32_0 = arith.constant 0 : i32
    %c0_i32_1 = arith.constant 0 : i32
    return %c0_i32, %c0_i32_0 : i32, i32
  }
  func.func @transform_10(%arg0: i32) -> (i32, i32) {
    %c0_i32 = arith.constant 0 : i32
    %c0_i32_0 = arith.constant 0 : i32
    %c0_i32_1 = arith.constant 0 : i32
    return %c0_i32, %c0_i32_0 : i32, i32
  }
  func.func @transform_11(%arg0: i32) -> (i32, i32) {
    %c0_i32 = arith.constant 0 : i32
    %c0_i32_0 = arith.constant 0 : i32
    %c0_i32_1 = arith.constant 0 : i32
    return %c0_i32, %c0_i32_0 : i32, i32
  }
  func.func @transform_12(%arg0: i32) -> (i32, i32, i32) {
    %c0_i32 = arith.constant 0 : i32
    %c0_i32_0 = arith.constant 0 : i32
    %c0_i32_1 = arith.constant 0 : i32
    return %arg0, %c0_i32, %c0_i32_0 : i32, i32, i32
  }
}

module attributes {stable_mosaic.version = 11 : i64} {
  func.func @_pos_kv_kernel(%arg0: i32, %arg1: memref<32x32xf32, #tpu.memory_space<vmem>>, %arg2: memref<32x32xf32, #tpu.memory_space<vmem>>, %arg3: memref<32x32xf32, #tpu.memory_space<vmem>>, %arg4: memref<32x32xf32, #tpu.memory_space<vmem>>, %arg5: memref<1x32xf32, #tpu.memory_space<vmem>>, %arg6: memref<1x32xf32, #tpu.memory_space<vmem>>, %arg7: memref<32x32xf32, #tpu.memory_space<vmem>>, %arg8: memref<32x32xf32, #tpu.memory_space<vmem>>) attributes {dimension_semantics = [#tpu.dimension_semantics<parallel>], iteration_bounds = array<i64: 1>, scalar_prefetch = 0 : i64, scratch_operands = 0 : i64, tpu.core_type = #tpu.core_type<tc>, window_params = [{transform_indices = @transform_0, window_bounds = array<i64: 32, 32>}, {transform_indices = @transform_1, window_bounds = array<i64: 32, 32>}, {pipeline_mode = #tpu.pipeline_mode<synchronous>, transform_indices = @transform_2, window_bounds = array<i64: 32, 32>}, {pipeline_mode = #tpu.pipeline_mode<synchronous>, transform_indices = @transform_3, window_bounds = array<i64: 32, 32>}, {pipeline_mode = #tpu.pipeline_mode<synchronous>, transform_indices = @transform_4, window_bounds = array<i64: 1, 32>}, {pipeline_mode = #tpu.pipeline_mode<synchronous>, transform_indices = @transform_5, window_bounds = array<i64: 1, 32>}, {transform_indices = @transform_6, window_bounds = array<i64: 32, 32>}, {transform_indices = @transform_7, window_bounds = array<i64: 32, 32>}]} {
    %c0 = arith.constant 0 : index
    %c0_0 = arith.constant 0 : index
    %0 = vector.load %arg1[%c0, %c0_0] : memref<32x32xf32, #tpu.memory_space<vmem>>, vector<32x32xf32>
    %c0_1 = arith.constant 0 : index
    %c0_2 = arith.constant 0 : index
    %1 = vector.load %arg2[%c0_1, %c0_2] : memref<32x32xf32, #tpu.memory_space<vmem>>, vector<32x32xf32>
    %2 = arith.addf %0, %1 : vector<32x32xf32>
    %c0_3 = arith.constant 0 : index
    %c0_4 = arith.constant 0 : index
    %3 = vector.load %arg3[%c0_3, %c0_4] : memref<32x32xf32, #tpu.memory_space<vmem>>, vector<32x32xf32>
    %cst = arith.constant dense<0.000000e+00> : vector<32x32xf32>
    %4 = tpu.matmul %2, %3, %cst {dimension_numbers = #tpu.dot_dimension_numbers<[1], [0], [0], [1], [0, 0, 1, 1], [], []>} : vector<32x32xf32>, vector<32x32xf32>, vector<32x32xf32> -> vector<32x32xf32>
    %c0_5 = arith.constant 0 : index
    %c0_6 = arith.constant 0 : index
    %5 = vector.load %arg5[%c0_5, %c0_6] : memref<1x32xf32, #tpu.memory_space<vmem>>, vector<1x32xf32>
    %6 = vector.broadcast %5 : vector<1x32xf32> to vector<32x32xf32>
    %7 = arith.addf %4, %6 : vector<32x32xf32>
    %c0_7 = arith.constant 0 : index
    %c0_8 = arith.constant 0 : index
    %8 = vector.load %arg4[%c0_7, %c0_8] : memref<32x32xf32, #tpu.memory_space<vmem>>, vector<32x32xf32>
    %cst_9 = arith.constant dense<0.000000e+00> : vector<32x32xf32>
    %9 = tpu.matmul %0, %8, %cst_9 {dimension_numbers = #tpu.dot_dimension_numbers<[1], [0], [0], [1], [0, 0, 1, 1], [], []>} : vector<32x32xf32>, vector<32x32xf32>, vector<32x32xf32> -> vector<32x32xf32>
    %c0_10 = arith.constant 0 : index
    %c0_11 = arith.constant 0 : index
    %10 = vector.load %arg6[%c0_10, %c0_11] : memref<1x32xf32, #tpu.memory_space<vmem>>, vector<1x32xf32>
    %11 = vector.broadcast %10 : vector<1x32xf32> to vector<32x32xf32>
    %12 = arith.addf %9, %11 : vector<32x32xf32>
    %c0_12 = arith.constant 0 : index
    %c0_13 = arith.constant 0 : index
    %13 = vector.load %arg7[%c0_12, %c0_13] : memref<32x32xf32, #tpu.memory_space<vmem>>, vector<32x32xf32>
    tpu.vector_store %arg7[%c0_12, %c0_13], %7 {strides = array<i32>} : memref<32x32xf32, #tpu.memory_space<vmem>>, vector<32x32xf32>,
    %c0_14 = arith.constant 0 : index
    %c0_15 = arith.constant 0 : index
    %14 = vector.load %arg8[%c0_14, %c0_15] : memref<32x32xf32, #tpu.memory_space<vmem>>, vector<32x32xf32>
    tpu.vector_store %arg8[%c0_14, %c0_15], %12 {strides = array<i32>} : memref<32x32xf32, #tpu.memory_space<vmem>>, vector<32x32xf32>,
    return
  }
  func.func @transform_0(%arg0: i32) -> (i32, i32) {
    %c0_i32 = arith.constant 0 : i32
    %c0_i32_0 = arith.constant 0 : i32
    return %arg0, %c0_i32 : i32, i32
  }
  func.func @transform_1(%arg0: i32) -> (i32, i32) {
    %c0_i32 = arith.constant 0 : i32
    %c0_i32_0 = arith.constant 0 : i32
    return %arg0, %c0_i32 : i32, i32
  }
  func.func @transform_2(%arg0: i32) -> (i32, i32) {
    %c0_i32 = arith.constant 0 : i32
    %c0_i32_0 = arith.constant 0 : i32
    %c0_i32_1 = arith.constant 0 : i32
    return %c0_i32, %c0_i32_0 : i32, i32
  }
  func.func @transform_3(%arg0: i32) -> (i32, i32) {
    %c0_i32 = arith.constant 0 : i32
    %c0_i32_0 = arith.constant 0 : i32
    %c0_i32_1 = arith.constant 0 : i32
    return %c0_i32, %c0_i32_0 : i32, i32
  }
  func.func @transform_4(%arg0: i32) -> (i32, i32) {
    %c0_i32 = arith.constant 0 : i32
    %c0_i32_0 = arith.constant 0 : i32
    %c0_i32_1 = arith.constant 0 : i32
    return %c0_i32, %c0_i32_0 : i32, i32
  }
  func.func @transform_5(%arg0: i32) -> (i32, i32) {
    %c0_i32 = arith.constant 0 : i32
    %c0_i32_0 = arith.constant 0 : i32
    %c0_i32_1 = arith.constant 0 : i32
    return %c0_i32, %c0_i32_0 : i32, i32
  }
  func.func @transform_6(%arg0: i32) -> (i32, i32) {
    %c0_i32 = arith.constant 0 : i32
    %c0_i32_0 = arith.constant 0 : i32
    return %arg0, %c0_i32 : i32, i32
  }
  func.func @transform_7(%arg0: i32) -> (i32, i32) {
    %c0_i32 = arith.constant 0 : i32
    %c0_i32_0 = arith.constant 0 : i32
    return %arg0, %c0_i32 : i32, i32
  }
}

module attributes {stable_mosaic.version = 11 : i64} {
  func.func @_ln_pos_qkv_kernel(%arg0: i32, %arg1: memref<16x32xf32, #tpu.memory_space<vmem>>, %arg2: memref<16x32xf32, #tpu.memory_space<vmem>>, %arg3: memref<1x32xf32, #tpu.memory_space<vmem>>, %arg4: memref<1x32xf32, #tpu.memory_space<vmem>>, %arg5: memref<32x64xf32, #tpu.memory_space<vmem>>, %arg6: memref<32x32xf32, #tpu.memory_space<vmem>>, %arg7: memref<1x64xf32, #tpu.memory_space<vmem>>, %arg8: memref<1x32xf32, #tpu.memory_space<vmem>>, %arg9: memref<16x32xf32, #tpu.memory_space<vmem>>, %arg10: memref<16x32xf32, #tpu.memory_space<vmem>>, %arg11: memref<16x32xf32, #tpu.memory_space<vmem>>, %arg12: memref<16x32xf32, #tpu.memory_space<vmem>>) attributes {dimension_semantics = [#tpu.dimension_semantics<parallel>], iteration_bounds = array<i64: 1>, scalar_prefetch = 0 : i64, scratch_operands = 0 : i64, tpu.core_type = #tpu.core_type<tc>, window_params = [{transform_indices = @transform_0, window_bounds = array<i64: 16, 32>}, {transform_indices = @transform_1, window_bounds = array<i64: 16, 32>}, {pipeline_mode = #tpu.pipeline_mode<synchronous>, transform_indices = @transform_2, window_bounds = array<i64: 1, 32>}, {pipeline_mode = #tpu.pipeline_mode<synchronous>, transform_indices = @transform_3, window_bounds = array<i64: 1, 32>}, {pipeline_mode = #tpu.pipeline_mode<synchronous>, transform_indices = @transform_4, window_bounds = array<i64: 32, 64>}, {pipeline_mode = #tpu.pipeline_mode<synchronous>, transform_indices = @transform_5, window_bounds = array<i64: 32, 32>}, {pipeline_mode = #tpu.pipeline_mode<synchronous>, transform_indices = @transform_6, window_bounds = array<i64: 1, 64>}, {pipeline_mode = #tpu.pipeline_mode<synchronous>, transform_indices = @transform_7, window_bounds = array<i64: 1, 32>}, {transform_indices = @transform_8, window_bounds = array<i64: 16, 32>}, {transform_indices = @transform_9, window_bounds = array<i64: 16, 32>}, {transform_indices = @transform_10, window_bounds = array<i64: 16, 32>}, {transform_indices = @transform_11, window_bounds = array<i64: 16, 32>}]} {
    %c0 = arith.constant 0 : index
    %c0_0 = arith.constant 0 : index
    %0 = vector.load %arg1[%c0, %c0_0] : memref<16x32xf32, #tpu.memory_space<vmem>>, vector<16x32xf32>
    %c0_1 = arith.constant 0 : index
    %c0_2 = arith.constant 0 : index
    %1 = vector.load %arg3[%c0_1, %c0_2] : memref<1x32xf32, #tpu.memory_space<vmem>>, vector<1x32xf32>
    %c0_3 = arith.constant 0 : index
    %c0_4 = arith.constant 0 : index
    %2 = vector.load %arg4[%c0_3, %c0_4] : memref<1x32xf32, #tpu.memory_space<vmem>>, vector<1x32xf32>
    %cst = arith.constant dense<0.000000e+00> : vector<16xf32>
    %3 = vector.multi_reduction <add>, %0, %cst [1] : vector<16x32xf32> to vector<16xf32>
    %4 = vector.shape_cast %3 : vector<16xf32> to vector<16x1xf32>
    %cst_5 = arith.constant 3.200000e+01 : f32
    %5 = vector.broadcast %cst_5 : f32 to vector<16x1xf32>
    %6 = arith.divf %4, %5 : vector<16x1xf32>
    %7 = vector.broadcast %6 : vector<16x1xf32> to vector<16x32xf32>
    %8 = arith.subf %0, %7 : vector<16x32xf32>
    %9 = arith.mulf %8, %8 : vector<16x32xf32>
    %cst_6 = arith.constant dense<0.000000e+00> : vector<16xf32>
    %10 = vector.multi_reduction <add>, %9, %cst_6 [1] : vector<16x32xf32> to vector<16xf32>
    %11 = vector.shape_cast %10 : vector<16xf32> to vector<16x1xf32>
    %cst_7 = arith.constant 3.200000e+01 : f32
    %12 = vector.broadcast %cst_7 : f32 to vector<16x1xf32>
    %13 = arith.divf %11, %12 : vector<16x1xf32>
    %cst_8 = arith.constant 9.99999974E-6 : f32
    %14 = vector.broadcast %cst_8 : f32 to vector<16x1xf32>
    %15 = arith.addf %13, %14 : vector<16x1xf32>
    %16 = math.rsqrt %15 : vector<16x1xf32>
    %17 = vector.broadcast %16 : vector<16x1xf32> to vector<16x32xf32>
    %18 = arith.mulf %8, %17 : vector<16x32xf32>
    %19 = vector.broadcast %1 : vector<1x32xf32> to vector<16x32xf32>
    %20 = arith.mulf %18, %19 : vector<16x32xf32>
    %21 = vector.broadcast %2 : vector<1x32xf32> to vector<16x32xf32>
    %22 = arith.addf %20, %21 : vector<16x32xf32>
    %c0_9 = arith.constant 0 : index
    %c0_10 = arith.constant 0 : index
    %23 = vector.load %arg2[%c0_9, %c0_10] : memref<16x32xf32, #tpu.memory_space<vmem>>, vector<16x32xf32>
    %24 = arith.addf %22, %23 : vector<16x32xf32>
    %c0_11 = arith.constant 0 : index
    %c0_12 = arith.constant 0 : index
    %25 = vector.load %arg5[%c0_11, %c0_12] : memref<32x64xf32, #tpu.memory_space<vmem>>, vector<32x64xf32>
    %cst_13 = arith.constant dense<0.000000e+00> : vector<16x64xf32>
    %26 = tpu.matmul %24, %25, %cst_13 {dimension_numbers = #tpu.dot_dimension_numbers<[1], [0], [0], [1], [0, 0, 1, 1], [], []>} : vector<16x32xf32>, vector<32x64xf32>, vector<16x64xf32> -> vector<16x64xf32>
    %c0_14 = arith.constant 0 : index
    %c0_15 = arith.constant 0 : index
    %27 = vector.load %arg7[%c0_14, %c0_15] : memref<1x64xf32, #tpu.memory_space<vmem>>, vector<1x64xf32>
    %28 = vector.broadcast %27 : vector<1x64xf32> to vector<16x64xf32>
    %29 = arith.addf %26, %28 : vector<16x64xf32>
    %c0_16 = arith.constant 0 : index
    %c0_17 = arith.constant 0 : index
    %30 = vector.load %arg6[%c0_16, %c0_17] : memref<32x32xf32, #tpu.memory_space<vmem>>, vector<32x32xf32>
    %cst_18 = arith.constant dense<0.000000e+00> : vector<16x32xf32>
    %31 = tpu.matmul %22, %30, %cst_18 {dimension_numbers = #tpu.dot_dimension_numbers<[1], [0], [0], [1], [0, 0, 1, 1], [], []>} : vector<16x32xf32>, vector<32x32xf32>, vector<16x32xf32> -> vector<16x32xf32>
    %c0_19 = arith.constant 0 : index
    %c0_20 = arith.constant 0 : index
    %32 = vector.load %arg8[%c0_19, %c0_20] : memref<1x32xf32, #tpu.memory_space<vmem>>, vector<1x32xf32>
    %33 = vector.broadcast %32 : vector<1x32xf32> to vector<16x32xf32>
    %34 = arith.addf %31, %33 : vector<16x32xf32>
    %c0_21 = arith.constant 0 : index
    %c0_22 = arith.constant 0 : index
    %35 = vector.load %arg9[%c0_21, %c0_22] : memref<16x32xf32, #tpu.memory_space<vmem>>, vector<16x32xf32>
    tpu.vector_store %arg9[%c0_21, %c0_22], %22 {strides = array<i32>} : memref<16x32xf32, #tpu.memory_space<vmem>>, vector<16x32xf32>,
    %36 = vector.extract_strided_slice %29 {offsets = [0, 0], sizes = [16, 32], strides = [1, 1]} : vector<16x64xf32> to vector<16x32xf32>
    %c0_23 = arith.constant 0 : index
    %c0_24 = arith.constant 0 : index
    %37 = vector.load %arg10[%c0_23, %c0_24] : memref<16x32xf32, #tpu.memory_space<vmem>>, vector<16x32xf32>
    tpu.vector_store %arg10[%c0_23, %c0_24], %36 {strides = array<i32>} : memref<16x32xf32, #tpu.memory_space<vmem>>, vector<16x32xf32>,
    %38 = vector.extract_strided_slice %29 {offsets = [0, 32], sizes = [16, 32], strides = [1, 1]} : vector<16x64xf32> to vector<16x32xf32>
    %c0_25 = arith.constant 0 : index
    %c0_26 = arith.constant 0 : index
    %39 = vector.load %arg11[%c0_25, %c0_26] : memref<16x32xf32, #tpu.memory_space<vmem>>, vector<16x32xf32>
    tpu.vector_store %arg11[%c0_25, %c0_26], %38 {strides = array<i32>} : memref<16x32xf32, #tpu.memory_space<vmem>>, vector<16x32xf32>,
    %c0_27 = arith.constant 0 : index
    %c0_28 = arith.constant 0 : index
    %40 = vector.load %arg12[%c0_27, %c0_28] : memref<16x32xf32, #tpu.memory_space<vmem>>, vector<16x32xf32>
    tpu.vector_store %arg12[%c0_27, %c0_28], %34 {strides = array<i32>} : memref<16x32xf32, #tpu.memory_space<vmem>>, vector<16x32xf32>,
    return
  }
  func.func @transform_0(%arg0: i32) -> (i32, i32) {
    %c0_i32 = arith.constant 0 : i32
    %c0_i32_0 = arith.constant 0 : i32
    return %arg0, %c0_i32 : i32, i32
  }
  func.func @transform_1(%arg0: i32) -> (i32, i32) {
    %c0_i32 = arith.constant 0 : i32
    %c0_i32_0 = arith.constant 0 : i32
    return %arg0, %c0_i32 : i32, i32
  }
  func.func @transform_2(%arg0: i32) -> (i32, i32) {
    %c0_i32 = arith.constant 0 : i32
    %c0_i32_0 = arith.constant 0 : i32
    %c0_i32_1 = arith.constant 0 : i32
    return %c0_i32, %c0_i32_0 : i32, i32
  }
  func.func @transform_3(%arg0: i32) -> (i32, i32) {
    %c0_i32 = arith.constant 0 : i32
    %c0_i32_0 = arith.constant 0 : i32
    %c0_i32_1 = arith.constant 0 : i32
    return %c0_i32, %c0_i32_0 : i32, i32
  }
  func.func @transform_4(%arg0: i32) -> (i32, i32) {
    %c0_i32 = arith.constant 0 : i32
    %c0_i32_0 = arith.constant 0 : i32
    %c0_i32_1 = arith.constant 0 : i32
    return %c0_i32, %c0_i32_0 : i32, i32
  }
  func.func @transform_5(%arg0: i32) -> (i32, i32) {
    %c0_i32 = arith.constant 0 : i32
    %c0_i32_0 = arith.constant 0 : i32
    %c0_i32_1 = arith.constant 0 : i32
    return %c0_i32, %c0_i32_0 : i32, i32
  }
  func.func @transform_6(%arg0: i32) -> (i32, i32) {
    %c0_i32 = arith.constant 0 : i32
    %c0_i32_0 = arith.constant 0 : i32
    %c0_i32_1 = arith.constant 0 : i32
    return %c0_i32, %c0_i32_0 : i32, i32
  }
  func.func @transform_7(%arg0: i32) -> (i32, i32) {
    %c0_i32 = arith.constant 0 : i32
    %c0_i32_0 = arith.constant 0 : i32
    %c0_i32_1 = arith.constant 0 : i32
    return %c0_i32, %c0_i32_0 : i32, i32
  }
  func.func @transform_8(%arg0: i32) -> (i32, i32) {
    %c0_i32 = arith.constant 0 : i32
    %c0_i32_0 = arith.constant 0 : i32
    return %arg0, %c0_i32 : i32, i32
  }
  func.func @transform_9(%arg0: i32) -> (i32, i32) {
    %c0_i32 = arith.constant 0 : i32
    %c0_i32_0 = arith.constant 0 : i32
    return %arg0, %c0_i32 : i32, i32
  }
  func.func @transform_10(%arg0: i32) -> (i32, i32) {
    %c0_i32 = arith.constant 0 : i32
    %c0_i32_0 = arith.constant 0 : i32
    return %arg0, %c0_i32 : i32, i32
  }
  func.func @transform_11(%arg0: i32) -> (i32, i32) {
    %c0_i32 = arith.constant 0 : i32
    %c0_i32_0 = arith.constant 0 : i32
    return %arg0, %c0_i32 : i32, i32
  }
}

module attributes {stable_mosaic.version = 11 : i64} {
  func.func @_layernorm_kernel(%arg0: i32, %arg1: memref<16x32xf32, #tpu.memory_space<vmem>>, %arg2: memref<1x32xf32, #tpu.memory_space<vmem>>, %arg3: memref<1x32xf32, #tpu.memory_space<vmem>>, %arg4: memref<16x32xf32, #tpu.memory_space<vmem>>) attributes {dimension_semantics = [#tpu.dimension_semantics<parallel>], iteration_bounds = array<i64: 1>, scalar_prefetch = 0 : i64, scratch_operands = 0 : i64, tpu.core_type = #tpu.core_type<tc>, window_params = [{transform_indices = @transform_0, window_bounds = array<i64: 16, 32>}, {pipeline_mode = #tpu.pipeline_mode<synchronous>, transform_indices = @transform_1, window_bounds = array<i64: 1, 32>}, {pipeline_mode = #tpu.pipeline_mode<synchronous>, transform_indices = @transform_2, window_bounds = array<i64: 1, 32>}, {transform_indices = @transform_3, window_bounds = array<i64: 16, 32>}]} {
    %c0 = arith.constant 0 : index
    %c0_0 = arith.constant 0 : index
    %0 = vector.load %arg1[%c0, %c0_0] : memref<16x32xf32, #tpu.memory_space<vmem>>, vector<16x32xf32>
    %c0_1 = arith.constant 0 : index
    %c0_2 = arith.constant 0 : index
    %1 = vector.load %arg2[%c0_1, %c0_2] : memref<1x32xf32, #tpu.memory_space<vmem>>, vector<1x32xf32>
    %c0_3 = arith.constant 0 : index
    %c0_4 = arith.constant 0 : index
    %2 = vector.load %arg3[%c0_3, %c0_4] : memref<1x32xf32, #tpu.memory_space<vmem>>, vector<1x32xf32>
    %cst = arith.constant dense<0.000000e+00> : vector<16xf32>
    %3 = vector.multi_reduction <add>, %0, %cst [1] : vector<16x32xf32> to vector<16xf32>
    %4 = vector.shape_cast %3 : vector<16xf32> to vector<16x1xf32>
    %cst_5 = arith.constant 3.200000e+01 : f32
    %5 = vector.broadcast %cst_5 : f32 to vector<16x1xf32>
    %6 = arith.divf %4, %5 : vector<16x1xf32>
    %7 = vector.broadcast %6 : vector<16x1xf32> to vector<16x32xf32>
    %8 = arith.subf %0, %7 : vector<16x32xf32>
    %9 = arith.mulf %8, %8 : vector<16x32xf32>
    %cst_6 = arith.constant dense<0.000000e+00> : vector<16xf32>
    %10 = vector.multi_reduction <add>, %9, %cst_6 [1] : vector<16x32xf32> to vector<16xf32>
    %11 = vector.shape_cast %10 : vector<16xf32> to vector<16x1xf32>
    %cst_7 = arith.constant 3.200000e+01 : f32
    %12 = vector.broadcast %cst_7 : f32 to vector<16x1xf32>
    %13 = arith.divf %11, %12 : vector<16x1xf32>
    %cst_8 = arith.constant 9.99999974E-6 : f32
    %14 = vector.broadcast %cst_8 : f32 to vector<16x1xf32>
    %15 = arith.addf %13, %14 : vector<16x1xf32>
    %16 = math.rsqrt %15 : vector<16x1xf32>
    %17 = vector.broadcast %16 : vector<16x1xf32> to vector<16x32xf32>
    %18 = arith.mulf %8, %17 : vector<16x32xf32>
    %19 = vector.broadcast %1 : vector<1x32xf32> to vector<16x32xf32>
    %20 = arith.mulf %18, %19 : vector<16x32xf32>
    %21 = vector.broadcast %2 : vector<1x32xf32> to vector<16x32xf32>
    %22 = arith.addf %20, %21 : vector<16x32xf32>
    %c0_9 = arith.constant 0 : index
    %c0_10 = arith.constant 0 : index
    %23 = vector.load %arg4[%c0_9, %c0_10] : memref<16x32xf32, #tpu.memory_space<vmem>>, vector<16x32xf32>
    tpu.vector_store %arg4[%c0_9, %c0_10], %22 {strides = array<i32>} : memref<16x32xf32, #tpu.memory_space<vmem>>, vector<16x32xf32>,
    return
  }
  func.func @transform_0(%arg0: i32) -> (i32, i32) {
    %c0_i32 = arith.constant 0 : i32
    %c0_i32_0 = arith.constant 0 : i32
    return %arg0, %c0_i32 : i32, i32
  }
  func.func @transform_1(%arg0: i32) -> (i32, i32) {
    %c0_i32 = arith.constant 0 : i32
    %c0_i32_0 = arith.constant 0 : i32
    %c0_i32_1 = arith.constant 0 : i32
    return %c0_i32, %c0_i32_0 : i32, i32
  }
  func.func @transform_2(%arg0: i32) -> (i32, i32) {
    %c0_i32 = arith.constant 0 : i32
    %c0_i32_0 = arith.constant 0 : i32
    %c0_i32_1 = arith.constant 0 : i32
    return %c0_i32, %c0_i32_0 : i32, i32
  }
  func.func @transform_3(%arg0: i32) -> (i32, i32) {
    %c0_i32 = arith.constant 0 : i32
    %c0_i32_0 = arith.constant 0 : i32
    return %arg0, %c0_i32 : i32, i32
  }
}

module attributes {stable_mosaic.version = 11 : i64} {
  func.func @_attn_crossq_kernel(%arg0: i32, %arg1: memref<1x8x32xf32, #tpu.memory_space<vmem>>, %arg2: memref<1x8x32xf32, #tpu.memory_space<vmem>>, %arg3: memref<1x8x32xf32, #tpu.memory_space<vmem>>, %arg4: memref<1x8x32xf32, #tpu.memory_space<vmem>>, %arg5: memref<32x32xf32, #tpu.memory_space<vmem>>, %arg6: memref<1x32xf32, #tpu.memory_space<vmem>>, %arg7: memref<1x32xf32, #tpu.memory_space<vmem>>, %arg8: memref<1x32xf32, #tpu.memory_space<vmem>>, %arg9: memref<1x8x32xf32, #tpu.memory_space<vmem>>, %arg10: memref<32x32xf32, #tpu.memory_space<vmem>>, %arg11: memref<1x32xf32, #tpu.memory_space<vmem>>, %arg12: memref<1x8x32xf32, #tpu.memory_space<vmem>>, %arg13: memref<1x8x32xf32, #tpu.memory_space<vmem>>) attributes {dimension_semantics = [#tpu.dimension_semantics<parallel>], iteration_bounds = array<i64: 2>, scalar_prefetch = 0 : i64, scratch_operands = 0 : i64, tpu.core_type = #tpu.core_type<tc>, window_params = [{transform_indices = @transform_0, window_bounds = array<i64: 1, 8, 32>}, {transform_indices = @transform_1, window_bounds = array<i64: 1, 8, 32>}, {transform_indices = @transform_2, window_bounds = array<i64: 1, 8, 32>}, {transform_indices = @transform_3, window_bounds = array<i64: 1, 8, 32>}, {pipeline_mode = #tpu.pipeline_mode<synchronous>, transform_indices = @transform_4, window_bounds = array<i64: 32, 32>}, {pipeline_mode = #tpu.pipeline_mode<synchronous>, transform_indices = @transform_5, window_bounds = array<i64: 1, 32>}, {pipeline_mode = #tpu.pipeline_mode<synchronous>, transform_indices = @transform_6, window_bounds = array<i64: 1, 32>}, {pipeline_mode = #tpu.pipeline_mode<synchronous>, transform_indices = @transform_7, window_bounds = array<i64: 1, 32>}, {transform_indices = @transform_8, window_bounds = array<i64: 1, 8, 32>}, {pipeline_mode = #tpu.pipeline_mode<synchronous>, transform_indices = @transform_9, window_bounds = array<i64: 32, 32>}, {pipeline_mode = #tpu.pipeline_mode<synchronous>, transform_indices = @transform_10, window_bounds = array<i64: 1, 32>}, {transform_indices = @transform_11, window_bounds = array<i64: 1, 8, 32>}, {transform_indices = @transform_12, window_bounds = array<i64: 1, 8, 32>}]} {
    %c0 = arith.constant 0 : index
    %c0_0 = arith.constant 0 : index
    %c0_1 = arith.constant 0 : index
    %0 = vector.load %arg1[%c0, %c0_0, %c0_1] : memref<1x8x32xf32, #tpu.memory_space<vmem>>, vector<1x8x32xf32>
    %1 = vector.shape_cast %0 : vector<1x8x32xf32> to vector<8x32xf32>
    %c0_2 = arith.constant 0 : index
    %c0_3 = arith.constant 0 : index
    %c0_4 = arith.constant 0 : index
    %2 = vector.load %arg2[%c0_2, %c0_3, %c0_4] : memref<1x8x32xf32, #tpu.memory_space<vmem>>, vector<1x8x32xf32>
    %3 = vector.shape_cast %2 : vector<1x8x32xf32> to vector<8x32xf32>
    %c0_5 = arith.constant 0 : index
    %c0_6 = arith.constant 0 : index
    %c0_7 = arith.constant 0 : index
    %4 = vector.load %arg3[%c0_5, %c0_6, %c0_7] : memref<1x8x32xf32, #tpu.memory_space<vmem>>, vector<1x8x32xf32>
    %5 = vector.shape_cast %4 : vector<1x8x32xf32> to vector<8x32xf32>
    %c0_8 = arith.constant 0 : index
    %c0_9 = arith.constant 0 : index
    %6 = vector.load %arg5[%c0_8, %c0_9] : memref<32x32xf32, #tpu.memory_space<vmem>>, vector<32x32xf32>
    %7 = vector.extract_strided_slice %1 {offsets = [0, 0], sizes = [8, 8], strides = [1, 1]} : vector<8x32xf32> to vector<8x8xf32>
    %8 = vector.extract_strided_slice %3 {offsets = [0, 0], sizes = [8, 8], strides = [1, 1]} : vector<8x32xf32> to vector<8x8xf32>
    %cst = arith.constant dense<0.000000e+00> : vector<8x8xf32>
    %9 = tpu.matmul %7, %8, %cst {dimension_numbers = #tpu.dot_dimension_numbers<[1], [1], [0], [0], [0, 0, 1, 0], [], []>} : vector<8x8xf32>, vector<8x8xf32>, vector<8x8xf32> -> vector<8x8xf32>
    %cst_10 = arith.constant 0.353553385 : f32
    %10 = vector.broadcast %cst_10 : f32 to vector<8x8xf32>
    %11 = arith.mulf %9, %10 : vector<8x8xf32>
    %cst_11 = arith.constant dense<0xFF800000> : vector<8xf32>
    %12 = vector.multi_reduction <maximumf>, %11, %cst_11 [1] : vector<8x8xf32> to vector<8xf32>
    %13 = vector.shape_cast %12 : vector<8xf32> to vector<8x1xf32>
    %14 = vector.broadcast %13 : vector<8x1xf32> to vector<8x8xf32>
    %15 = arith.subf %11, %14 : vector<8x8xf32>
    %16 = math.exp %15 : vector<8x8xf32>
    %cst_12 = arith.constant dense<0.000000e+00> : vector<8xf32>
    %17 = vector.multi_reduction <add>, %16, %cst_12 [1] : vector<8x8xf32> to vector<8xf32>
    %18 = vector.shape_cast %17 : vector<8xf32> to vector<8x1xf32>
    %19 = tpu.reciprocal %18 {approx = true} : vector<8x1xf32> -> vector<8x1xf32>
    %20 = vector.broadcast %19 : vector<8x1xf32> to vector<8x8xf32>
    %21 = arith.mulf %16, %20 : vector<8x8xf32>
    %22 = vector.extract_strided_slice %5 {offsets = [0, 0], sizes = [8, 8], strides = [1, 1]} : vector<8x32xf32> to vector<8x8xf32>
    %cst_13 = arith.constant dense<0.000000e+00> : vector<8x8xf32>
    %23 = tpu.matmul %21, %22, %cst_13 {dimension_numbers = #tpu.dot_dimension_numbers<[1], [0], [0], [1], [0, 0, 1, 1], [], []>} : vector<8x8xf32>, vector<8x8xf32>, vector<8x8xf32> -> vector<8x8xf32>
    %24 = vector.extract_strided_slice %6 {offsets = [0, 0], sizes = [8, 32], strides = [1, 1]} : vector<32x32xf32> to vector<8x32xf32>
    %cst_14 = arith.constant dense<0.000000e+00> : vector<8x32xf32>
    %25 = tpu.matmul %23, %24, %cst_14 {dimension_numbers = #tpu.dot_dimension_numbers<[1], [0], [0], [1], [0, 0, 1, 1], [], []>} : vector<8x8xf32>, vector<8x32xf32>, vector<8x32xf32> -> vector<8x32xf32>
    %26 = vector.extract_strided_slice %1 {offsets = [0, 8], sizes = [8, 8], strides = [1, 1]} : vector<8x32xf32> to vector<8x8xf32>
    %27 = vector.extract_strided_slice %3 {offsets = [0, 8], sizes = [8, 8], strides = [1, 1]} : vector<8x32xf32> to vector<8x8xf32>
    %cst_15 = arith.constant dense<0.000000e+00> : vector<8x8xf32>
    %28 = tpu.matmul %26, %27, %cst_15 {dimension_numbers = #tpu.dot_dimension_numbers<[1], [1], [0], [0], [0, 0, 1, 0], [], []>} : vector<8x8xf32>, vector<8x8xf32>, vector<8x8xf32> -> vector<8x8xf32>
    %cst_16 = arith.constant 0.353553385 : f32
    %29 = vector.broadcast %cst_16 : f32 to vector<8x8xf32>
    %30 = arith.mulf %28, %29 : vector<8x8xf32>
    %cst_17 = arith.constant dense<0xFF800000> : vector<8xf32>
    %31 = vector.multi_reduction <maximumf>, %30, %cst_17 [1] : vector<8x8xf32> to vector<8xf32>
    %32 = vector.shape_cast %31 : vector<8xf32> to vector<8x1xf32>
    %33 = vector.broadcast %32 : vector<8x1xf32> to vector<8x8xf32>
    %34 = arith.subf %30, %33 : vector<8x8xf32>
    %35 = math.exp %34 : vector<8x8xf32>
    %cst_18 = arith.constant dense<0.000000e+00> : vector<8xf32>
    %36 = vector.multi_reduction <add>, %35, %cst_18 [1] : vector<8x8xf32> to vector<8xf32>
    %37 = vector.shape_cast %36 : vector<8xf32> to vector<8x1xf32>
    %38 = tpu.reciprocal %37 {approx = true} : vector<8x1xf32> -> vector<8x1xf32>
    %39 = vector.broadcast %38 : vector<8x1xf32> to vector<8x8xf32>
    %40 = arith.mulf %35, %39 : vector<8x8xf32>
    %41 = vector.extract_strided_slice %5 {offsets = [0, 8], sizes = [8, 8], strides = [1, 1]} : vector<8x32xf32> to vector<8x8xf32>
    %cst_19 = arith.constant dense<0.000000e+00> : vector<8x8xf32>
    %42 = tpu.matmul %40, %41, %cst_19 {dimension_numbers = #tpu.dot_dimension_numbers<[1], [0], [0], [1], [0, 0, 1, 1], [], []>} : vector<8x8xf32>, vector<8x8xf32>, vector<8x8xf32> -> vector<8x8xf32>
    %43 = vector.extract_strided_slice %6 {offsets = [8, 0], sizes = [8, 32], strides = [1, 1]} : vector<32x32xf32> to vector<8x32xf32>
    %cst_20 = arith.constant dense<0.000000e+00> : vector<8x32xf32>
    %44 = tpu.matmul %42, %43, %cst_20 {dimension_numbers = #tpu.dot_dimension_numbers<[1], [0], [0], [1], [0, 0, 1, 1], [], []>} : vector<8x8xf32>, vector<8x32xf32>, vector<8x32xf32> -> vector<8x32xf32>
    %45 = arith.addf %25, %44 : vector<8x32xf32>
    %46 = vector.extract_strided_slice %1 {offsets = [0, 16], sizes = [8, 8], strides = [1, 1]} : vector<8x32xf32> to vector<8x8xf32>
    %47 = vector.extract_strided_slice %3 {offsets = [0, 16], sizes = [8, 8], strides = [1, 1]} : vector<8x32xf32> to vector<8x8xf32>
    %cst_21 = arith.constant dense<0.000000e+00> : vector<8x8xf32>
    %48 = tpu.matmul %46, %47, %cst_21 {dimension_numbers = #tpu.dot_dimension_numbers<[1], [1], [0], [0], [0, 0, 1, 0], [], []>} : vector<8x8xf32>, vector<8x8xf32>, vector<8x8xf32> -> vector<8x8xf32>
    %cst_22 = arith.constant 0.353553385 : f32
    %49 = vector.broadcast %cst_22 : f32 to vector<8x8xf32>
    %50 = arith.mulf %48, %49 : vector<8x8xf32>
    %cst_23 = arith.constant dense<0xFF800000> : vector<8xf32>
    %51 = vector.multi_reduction <maximumf>, %50, %cst_23 [1] : vector<8x8xf32> to vector<8xf32>
    %52 = vector.shape_cast %51 : vector<8xf32> to vector<8x1xf32>
    %53 = vector.broadcast %52 : vector<8x1xf32> to vector<8x8xf32>
    %54 = arith.subf %50, %53 : vector<8x8xf32>
    %55 = math.exp %54 : vector<8x8xf32>
    %cst_24 = arith.constant dense<0.000000e+00> : vector<8xf32>
    %56 = vector.multi_reduction <add>, %55, %cst_24 [1] : vector<8x8xf32> to vector<8xf32>
    %57 = vector.shape_cast %56 : vector<8xf32> to vector<8x1xf32>
    %58 = tpu.reciprocal %57 {approx = true} : vector<8x1xf32> -> vector<8x1xf32>
    %59 = vector.broadcast %58 : vector<8x1xf32> to vector<8x8xf32>
    %60 = arith.mulf %55, %59 : vector<8x8xf32>
    %61 = vector.extract_strided_slice %5 {offsets = [0, 16], sizes = [8, 8], strides = [1, 1]} : vector<8x32xf32> to vector<8x8xf32>
    %cst_25 = arith.constant dense<0.000000e+00> : vector<8x8xf32>
    %62 = tpu.matmul %60, %61, %cst_25 {dimension_numbers = #tpu.dot_dimension_numbers<[1], [0], [0], [1], [0, 0, 1, 1], [], []>} : vector<8x8xf32>, vector<8x8xf32>, vector<8x8xf32> -> vector<8x8xf32>
    %63 = vector.extract_strided_slice %6 {offsets = [16, 0], sizes = [8, 32], strides = [1, 1]} : vector<32x32xf32> to vector<8x32xf32>
    %cst_26 = arith.constant dense<0.000000e+00> : vector<8x32xf32>
    %64 = tpu.matmul %62, %63, %cst_26 {dimension_numbers = #tpu.dot_dimension_numbers<[1], [0], [0], [1], [0, 0, 1, 1], [], []>} : vector<8x8xf32>, vector<8x32xf32>, vector<8x32xf32> -> vector<8x32xf32>
    %65 = arith.addf %45, %64 : vector<8x32xf32>
    %66 = vector.extract_strided_slice %1 {offsets = [0, 24], sizes = [8, 8], strides = [1, 1]} : vector<8x32xf32> to vector<8x8xf32>
    %67 = vector.extract_strided_slice %3 {offsets = [0, 24], sizes = [8, 8], strides = [1, 1]} : vector<8x32xf32> to vector<8x8xf32>
    %cst_27 = arith.constant dense<0.000000e+00> : vector<8x8xf32>
    %68 = tpu.matmul %66, %67, %cst_27 {dimension_numbers = #tpu.dot_dimension_numbers<[1], [1], [0], [0], [0, 0, 1, 0], [], []>} : vector<8x8xf32>, vector<8x8xf32>, vector<8x8xf32> -> vector<8x8xf32>
    %cst_28 = arith.constant 0.353553385 : f32
    %69 = vector.broadcast %cst_28 : f32 to vector<8x8xf32>
    %70 = arith.mulf %68, %69 : vector<8x8xf32>
    %cst_29 = arith.constant dense<0xFF800000> : vector<8xf32>
    %71 = vector.multi_reduction <maximumf>, %70, %cst_29 [1] : vector<8x8xf32> to vector<8xf32>
    %72 = vector.shape_cast %71 : vector<8xf32> to vector<8x1xf32>
    %73 = vector.broadcast %72 : vector<8x1xf32> to vector<8x8xf32>
    %74 = arith.subf %70, %73 : vector<8x8xf32>
    %75 = math.exp %74 : vector<8x8xf32>
    %cst_30 = arith.constant dense<0.000000e+00> : vector<8xf32>
    %76 = vector.multi_reduction <add>, %75, %cst_30 [1] : vector<8x8xf32> to vector<8xf32>
    %77 = vector.shape_cast %76 : vector<8xf32> to vector<8x1xf32>
    %78 = tpu.reciprocal %77 {approx = true} : vector<8x1xf32> -> vector<8x1xf32>
    %79 = vector.broadcast %78 : vector<8x1xf32> to vector<8x8xf32>
    %80 = arith.mulf %75, %79 : vector<8x8xf32>
    %81 = vector.extract_strided_slice %5 {offsets = [0, 24], sizes = [8, 8], strides = [1, 1]} : vector<8x32xf32> to vector<8x8xf32>
    %cst_31 = arith.constant dense<0.000000e+00> : vector<8x8xf32>
    %82 = tpu.matmul %80, %81, %cst_31 {dimension_numbers = #tpu.dot_dimension_numbers<[1], [0], [0], [1], [0, 0, 1, 1], [], []>} : vector<8x8xf32>, vector<8x8xf32>, vector<8x8xf32> -> vector<8x8xf32>
    %83 = vector.extract_strided_slice %6 {offsets = [24, 0], sizes = [8, 32], strides = [1, 1]} : vector<32x32xf32> to vector<8x32xf32>
    %cst_32 = arith.constant dense<0.000000e+00> : vector<8x32xf32>
    %84 = tpu.matmul %82, %83, %cst_32 {dimension_numbers = #tpu.dot_dimension_numbers<[1], [0], [0], [1], [0, 0, 1, 1], [], []>} : vector<8x8xf32>, vector<8x32xf32>, vector<8x32xf32> -> vector<8x32xf32>
    %85 = arith.addf %65, %84 : vector<8x32xf32>
    %c0_33 = arith.constant 0 : index
    %c0_34 = arith.constant 0 : index
    %86 = vector.load %arg6[%c0_33, %c0_34] : memref<1x32xf32, #tpu.memory_space<vmem>>, vector<1x32xf32>
    %87 = vector.broadcast %86 : vector<1x32xf32> to vector<8x32xf32>
    %88 = arith.addf %85, %87 : vector<8x32xf32>
    %c0_35 = arith.constant 0 : index
    %c0_36 = arith.constant 0 : index
    %c0_37 = arith.constant 0 : index
    %89 = vector.load %arg4[%c0_35, %c0_36, %c0_37] : memref<1x8x32xf32, #tpu.memory_space<vmem>>, vector<1x8x32xf32>
    %90 = vector.shape_cast %89 : vector<1x8x32xf32> to vector<8x32xf32>
    %91 = arith.addf %88, %90 : vector<8x32xf32>
    %c0_38 = arith.constant 0 : index
    %c0_39 = arith.constant 0 : index
    %92 = vector.load %arg7[%c0_38, %c0_39] : memref<1x32xf32, #tpu.memory_space<vmem>>, vector<1x32xf32>
    %c0_40 = arith.constant 0 : index
    %c0_41 = arith.constant 0 : index
    %93 = vector.load %arg8[%c0_40, %c0_41] : memref<1x32xf32, #tpu.memory_space<vmem>>, vector<1x32xf32>
    %cst_42 = arith.constant dense<0.000000e+00> : vector<8xf32>
    %94 = vector.multi_reduction <add>, %91, %cst_42 [1] : vector<8x32xf32> to vector<8xf32>
    %95 = vector.shape_cast %94 : vector<8xf32> to vector<8x1xf32>
    %cst_43 = arith.constant 3.200000e+01 : f32
    %96 = vector.broadcast %cst_43 : f32 to vector<8x1xf32>
    %97 = arith.divf %95, %96 : vector<8x1xf32>
    %98 = vector.broadcast %97 : vector<8x1xf32> to vector<8x32xf32>
    %99 = arith.subf %91, %98 : vector<8x32xf32>
    %100 = arith.mulf %99, %99 : vector<8x32xf32>
    %cst_44 = arith.constant dense<0.000000e+00> : vector<8xf32>
    %101 = vector.multi_reduction <add>, %100, %cst_44 [1] : vector<8x32xf32> to vector<8xf32>
    %102 = vector.shape_cast %101 : vector<8xf32> to vector<8x1xf32>
    %cst_45 = arith.constant 3.200000e+01 : f32
    %103 = vector.broadcast %cst_45 : f32 to vector<8x1xf32>
    %104 = arith.divf %102, %103 : vector<8x1xf32>
    %cst_46 = arith.constant 9.99999974E-6 : f32
    %105 = vector.broadcast %cst_46 : f32 to vector<8x1xf32>
    %106 = arith.addf %104, %105 : vector<8x1xf32>
    %107 = math.rsqrt %106 : vector<8x1xf32>
    %108 = vector.broadcast %107 : vector<8x1xf32> to vector<8x32xf32>
    %109 = arith.mulf %99, %108 : vector<8x32xf32>
    %110 = vector.broadcast %92 : vector<1x32xf32> to vector<8x32xf32>
    %111 = arith.mulf %109, %110 : vector<8x32xf32>
    %112 = vector.broadcast %93 : vector<1x32xf32> to vector<8x32xf32>
    %113 = arith.addf %111, %112 : vector<8x32xf32>
    %c0_47 = arith.constant 0 : index
    %c0_48 = arith.constant 0 : index
    %c0_49 = arith.constant 0 : index
    %114 = vector.load %arg9[%c0_47, %c0_48, %c0_49] : memref<1x8x32xf32, #tpu.memory_space<vmem>>, vector<1x8x32xf32>
    %115 = vector.shape_cast %114 : vector<1x8x32xf32> to vector<8x32xf32>
    %116 = arith.addf %113, %115 : vector<8x32xf32>
    %c0_50 = arith.constant 0 : index
    %c0_51 = arith.constant 0 : index
    %117 = vector.load %arg10[%c0_50, %c0_51] : memref<32x32xf32, #tpu.memory_space<vmem>>, vector<32x32xf32>
    %cst_52 = arith.constant dense<0.000000e+00> : vector<8x32xf32>
    %118 = tpu.matmul %116, %117, %cst_52 {dimension_numbers = #tpu.dot_dimension_numbers<[1], [0], [0], [1], [0, 0, 1, 1], [], []>} : vector<8x32xf32>, vector<32x32xf32>, vector<8x32xf32> -> vector<8x32xf32>
    %c0_53 = arith.constant 0 : index
    %c0_54 = arith.constant 0 : index
    %119 = vector.load %arg11[%c0_53, %c0_54] : memref<1x32xf32, #tpu.memory_space<vmem>>, vector<1x32xf32>
    %120 = vector.broadcast %119 : vector<1x32xf32> to vector<8x32xf32>
    %121 = arith.addf %118, %120 : vector<8x32xf32>
    %c0_55 = arith.constant 0 : index
    %c0_56 = arith.constant 0 : index
    %c0_57 = arith.constant 0 : index
    %122 = vector.load %arg12[%c0_55, %c0_56, %c0_57] : memref<1x8x32xf32, #tpu.memory_space<vmem>>, vector<1x8x32xf32>
    %123 = vector.shape_cast %122 : vector<1x8x32xf32> to vector<8x32xf32>
    %124 = vector.shape_cast %113 : vector<8x32xf32> to vector<1x8x32xf32>
    tpu.vector_store %arg12[%c0_55, %c0_56, %c0_57], %124 {strides = array<i32>} : memref<1x8x32xf32, #tpu.memory_space<vmem>>, vector<1x8x32xf32>,
    %c0_58 = arith.constant 0 : index
    %c0_59 = arith.constant 0 : index
    %c0_60 = arith.constant 0 : index
    %125 = vector.load %arg13[%c0_58, %c0_59, %c0_60] : memref<1x8x32xf32, #tpu.memory_space<vmem>>, vector<1x8x32xf32>
    %126 = vector.shape_cast %125 : vector<1x8x32xf32> to vector<8x32xf32>
    %127 = vector.shape_cast %121 : vector<8x32xf32> to vector<1x8x32xf32>
    tpu.vector_store %arg13[%c0_58, %c0_59, %c0_60], %127 {strides = array<i32>} : memref<1x8x32xf32, #tpu.memory_space<vmem>>, vector<1x8x32xf32>,
    return
  }
  func.func @transform_0(%arg0: i32) -> (i32, i32, i32) {
    %c0_i32 = arith.constant 0 : i32
    %c0_i32_0 = arith.constant 0 : i32
    %c0_i32_1 = arith.constant 0 : i32
    return %arg0, %c0_i32, %c0_i32_0 : i32, i32, i32
  }
  func.func @transform_1(%arg0: i32) -> (i32, i32, i32) {
    %c0_i32 = arith.constant 0 : i32
    %c0_i32_0 = arith.constant 0 : i32
    %c0_i32_1 = arith.constant 0 : i32
    return %arg0, %c0_i32, %c0_i32_0 : i32, i32, i32
  }
  func.func @transform_2(%arg0: i32) -> (i32, i32, i32) {
    %c0_i32 = arith.constant 0 : i32
    %c0_i32_0 = arith.constant 0 : i32
    %c0_i32_1 = arith.constant 0 : i32
    return %arg0, %c0_i32, %c0_i32_0 : i32, i32, i32
  }
  func.func @transform_3(%arg0: i32) -> (i32, i32, i32) {
    %c0_i32 = arith.constant 0 : i32
    %c0_i32_0 = arith.constant 0 : i32
    %c0_i32_1 = arith.constant 0 : i32
    return %arg0, %c0_i32, %c0_i32_0 : i32, i32, i32
  }
  func.func @transform_4(%arg0: i32) -> (i32, i32) {
    %c0_i32 = arith.constant 0 : i32
    %c0_i32_0 = arith.constant 0 : i32
    %c0_i32_1 = arith.constant 0 : i32
    return %c0_i32, %c0_i32_0 : i32, i32
  }
  func.func @transform_5(%arg0: i32) -> (i32, i32) {
    %c0_i32 = arith.constant 0 : i32
    %c0_i32_0 = arith.constant 0 : i32
    %c0_i32_1 = arith.constant 0 : i32
    return %c0_i32, %c0_i32_0 : i32, i32
  }
  func.func @transform_6(%arg0: i32) -> (i32, i32) {
    %c0_i32 = arith.constant 0 : i32
    %c0_i32_0 = arith.constant 0 : i32
    %c0_i32_1 = arith.constant 0 : i32
    return %c0_i32, %c0_i32_0 : i32, i32
  }
  func.func @transform_7(%arg0: i32) -> (i32, i32) {
    %c0_i32 = arith.constant 0 : i32
    %c0_i32_0 = arith.constant 0 : i32
    %c0_i32_1 = arith.constant 0 : i32
    return %c0_i32, %c0_i32_0 : i32, i32
  }
  func.func @transform_8(%arg0: i32) -> (i32, i32, i32) {
    %c0_i32 = arith.constant 0 : i32
    %c0_i32_0 = arith.constant 0 : i32
    %c0_i32_1 = arith.constant 0 : i32
    return %arg0, %c0_i32, %c0_i32_0 : i32, i32, i32
  }
  func.func @transform_9(%arg0: i32) -> (i32, i32) {
    %c0_i32 = arith.constant 0 : i32
    %c0_i32_0 = arith.constant 0 : i32
    %c0_i32_1 = arith.constant 0 : i32
    return %c0_i32, %c0_i32_0 : i32, i32
  }
  func.func @transform_10(%arg0: i32) -> (i32, i32) {
    %c0_i32 = arith.constant 0 : i32
    %c0_i32_0 = arith.constant 0 : i32
    %c0_i32_1 = arith.constant 0 : i32
    return %c0_i32, %c0_i32_0 : i32, i32
  }
  func.func @transform_11(%arg0: i32) -> (i32, i32, i32) {
    %c0_i32 = arith.constant 0 : i32
    %c0_i32_0 = arith.constant 0 : i32
    %c0_i32_1 = arith.constant 0 : i32
    return %arg0, %c0_i32, %c0_i32_0 : i32, i32, i32
  }
  func.func @transform_12(%arg0: i32) -> (i32, i32, i32) {
    %c0_i32 = arith.constant 0 : i32
    %c0_i32_0 = arith.constant 0 : i32
    %c0_i32_1 = arith.constant 0 : i32
    return %arg0, %c0_i32, %c0_i32_0 : i32, i32, i32
  }
}

module attributes {stable_mosaic.version = 11 : i64} {
  func.func @_attn_ffn_kernel(%arg0: i32, %arg1: memref<1x8x32xf32, #tpu.memory_space<vmem>>, %arg2: memref<1x16x32xf32, #tpu.memory_space<vmem>>, %arg3: memref<1x16x32xf32, #tpu.memory_space<vmem>>, %arg4: memref<1x8x32xf32, #tpu.memory_space<vmem>>, %arg5: memref<32x32xf32, #tpu.memory_space<vmem>>, %arg6: memref<1x32xf32, #tpu.memory_space<vmem>>, %arg7: memref<1x32xf32, #tpu.memory_space<vmem>>, %arg8: memref<1x32xf32, #tpu.memory_space<vmem>>, %arg9: memref<32x64xf32, #tpu.memory_space<vmem>>, %arg10: memref<1x64xf32, #tpu.memory_space<vmem>>, %arg11: memref<64x32xf32, #tpu.memory_space<vmem>>, %arg12: memref<1x32xf32, #tpu.memory_space<vmem>>, %arg13: memref<1x8x32xf32, #tpu.memory_space<vmem>>) attributes {dimension_semantics = [#tpu.dimension_semantics<parallel>], iteration_bounds = array<i64: 2>, scalar_prefetch = 0 : i64, scratch_operands = 0 : i64, tpu.core_type = #tpu.core_type<tc>, window_params = [{transform_indices = @transform_0, window_bounds = array<i64: 1, 8, 32>}, {transform_indices = @transform_1, window_bounds = array<i64: 1, 16, 32>}, {transform_indices = @transform_2, window_bounds = array<i64: 1, 16, 32>}, {transform_indices = @transform_3, window_bounds = array<i64: 1, 8, 32>}, {pipeline_mode = #tpu.pipeline_mode<synchronous>, transform_indices = @transform_4, window_bounds = array<i64: 32, 32>}, {pipeline_mode = #tpu.pipeline_mode<synchronous>, transform_indices = @transform_5, window_bounds = array<i64: 1, 32>}, {pipeline_mode = #tpu.pipeline_mode<synchronous>, transform_indices = @transform_6, window_bounds = array<i64: 1, 32>}, {pipeline_mode = #tpu.pipeline_mode<synchronous>, transform_indices = @transform_7, window_bounds = array<i64: 1, 32>}, {pipeline_mode = #tpu.pipeline_mode<synchronous>, transform_indices = @transform_8, window_bounds = array<i64: 32, 64>}, {pipeline_mode = #tpu.pipeline_mode<synchronous>, transform_indices = @transform_9, window_bounds = array<i64: 1, 64>}, {pipeline_mode = #tpu.pipeline_mode<synchronous>, transform_indices = @transform_10, window_bounds = array<i64: 64, 32>}, {pipeline_mode = #tpu.pipeline_mode<synchronous>, transform_indices = @transform_11, window_bounds = array<i64: 1, 32>}, {transform_indices = @transform_12, window_bounds = array<i64: 1, 8, 32>}]} {
    %c0 = arith.constant 0 : index
    %c0_0 = arith.constant 0 : index
    %c0_1 = arith.constant 0 : index
    %0 = vector.load %arg1[%c0, %c0_0, %c0_1] : memref<1x8x32xf32, #tpu.memory_space<vmem>>, vector<1x8x32xf32>
    %1 = vector.shape_cast %0 : vector<1x8x32xf32> to vector<8x32xf32>
    %c0_2 = arith.constant 0 : index
    %c0_3 = arith.constant 0 : index
    %c0_4 = arith.constant 0 : index
    %2 = vector.load %arg2[%c0_2, %c0_3, %c0_4] : memref<1x16x32xf32, #tpu.memory_space<vmem>>, vector<1x16x32xf32>
    %3 = vector.shape_cast %2 : vector<1x16x32xf32> to vector<16x32xf32>
    %c0_5 = arith.constant 0 : index
    %c0_6 = arith.constant 0 : index
    %c0_7 = arith.constant 0 : index
    %4 = vector.load %arg3[%c0_5, %c0_6, %c0_7] : memref<1x16x32xf32, #tpu.memory_space<vmem>>, vector<1x16x32xf32>
    %5 = vector.shape_cast %4 : vector<1x16x32xf32> to vector<16x32xf32>
    %c0_8 = arith.constant 0 : index
    %c0_9 = arith.constant 0 : index
    %6 = vector.load %arg5[%c0_8, %c0_9] : memref<32x32xf32, #tpu.memory_space<vmem>>, vector<32x32xf32>
    %7 = vector.extract_strided_slice %1 {offsets = [0, 0], sizes = [8, 8], strides = [1, 1]} : vector<8x32xf32> to vector<8x8xf32>
    %8 = vector.extract_strided_slice %3 {offsets = [0, 0], sizes = [16, 8], strides = [1, 1]} : vector<16x32xf32> to vector<16x8xf32>
    %cst = arith.constant dense<0.000000e+00> : vector<8x16xf32>
    %9 = tpu.matmul %7, %8, %cst {dimension_numbers = #tpu.dot_dimension_numbers<[1], [1], [0], [0], [0, 0, 1, 0], [], []>} : vector<8x8xf32>, vector<16x8xf32>, vector<8x16xf32> -> vector<8x16xf32>
    %cst_10 = arith.constant 0.353553385 : f32
    %10 = vector.broadcast %cst_10 : f32 to vector<8x16xf32>
    %11 = arith.mulf %9, %10 : vector<8x16xf32>
    %cst_11 = arith.constant dense<0xFF800000> : vector<8xf32>
    %12 = vector.multi_reduction <maximumf>, %11, %cst_11 [1] : vector<8x16xf32> to vector<8xf32>
    %13 = vector.shape_cast %12 : vector<8xf32> to vector<8x1xf32>
    %14 = vector.broadcast %13 : vector<8x1xf32> to vector<8x16xf32>
    %15 = arith.subf %11, %14 : vector<8x16xf32>
    %16 = math.exp %15 : vector<8x16xf32>
    %cst_12 = arith.constant dense<0.000000e+00> : vector<8xf32>
    %17 = vector.multi_reduction <add>, %16, %cst_12 [1] : vector<8x16xf32> to vector<8xf32>
    %18 = vector.shape_cast %17 : vector<8xf32> to vector<8x1xf32>
    %19 = tpu.reciprocal %18 {approx = true} : vector<8x1xf32> -> vector<8x1xf32>
    %20 = vector.broadcast %19 : vector<8x1xf32> to vector<8x16xf32>
    %21 = arith.mulf %16, %20 : vector<8x16xf32>
    %22 = vector.extract_strided_slice %5 {offsets = [0, 0], sizes = [16, 8], strides = [1, 1]} : vector<16x32xf32> to vector<16x8xf32>
    %cst_13 = arith.constant dense<0.000000e+00> : vector<8x8xf32>
    %23 = tpu.matmul %21, %22, %cst_13 {dimension_numbers = #tpu.dot_dimension_numbers<[1], [0], [0], [1], [0, 0, 1, 1], [], []>} : vector<8x16xf32>, vector<16x8xf32>, vector<8x8xf32> -> vector<8x8xf32>
    %24 = vector.extract_strided_slice %6 {offsets = [0, 0], sizes = [8, 32], strides = [1, 1]} : vector<32x32xf32> to vector<8x32xf32>
    %cst_14 = arith.constant dense<0.000000e+00> : vector<8x32xf32>
    %25 = tpu.matmul %23, %24, %cst_14 {dimension_numbers = #tpu.dot_dimension_numbers<[1], [0], [0], [1], [0, 0, 1, 1], [], []>} : vector<8x8xf32>, vector<8x32xf32>, vector<8x32xf32> -> vector<8x32xf32>
    %26 = vector.extract_strided_slice %1 {offsets = [0, 8], sizes = [8, 8], strides = [1, 1]} : vector<8x32xf32> to vector<8x8xf32>
    %27 = vector.extract_strided_slice %3 {offsets = [0, 8], sizes = [16, 8], strides = [1, 1]} : vector<16x32xf32> to vector<16x8xf32>
    %cst_15 = arith.constant dense<0.000000e+00> : vector<8x16xf32>
    %28 = tpu.matmul %26, %27, %cst_15 {dimension_numbers = #tpu.dot_dimension_numbers<[1], [1], [0], [0], [0, 0, 1, 0], [], []>} : vector<8x8xf32>, vector<16x8xf32>, vector<8x16xf32> -> vector<8x16xf32>
    %cst_16 = arith.constant 0.353553385 : f32
    %29 = vector.broadcast %cst_16 : f32 to vector<8x16xf32>
    %30 = arith.mulf %28, %29 : vector<8x16xf32>
    %cst_17 = arith.constant dense<0xFF800000> : vector<8xf32>
    %31 = vector.multi_reduction <maximumf>, %30, %cst_17 [1] : vector<8x16xf32> to vector<8xf32>
    %32 = vector.shape_cast %31 : vector<8xf32> to vector<8x1xf32>
    %33 = vector.broadcast %32 : vector<8x1xf32> to vector<8x16xf32>
    %34 = arith.subf %30, %33 : vector<8x16xf32>
    %35 = math.exp %34 : vector<8x16xf32>
    %cst_18 = arith.constant dense<0.000000e+00> : vector<8xf32>
    %36 = vector.multi_reduction <add>, %35, %cst_18 [1] : vector<8x16xf32> to vector<8xf32>
    %37 = vector.shape_cast %36 : vector<8xf32> to vector<8x1xf32>
    %38 = tpu.reciprocal %37 {approx = true} : vector<8x1xf32> -> vector<8x1xf32>
    %39 = vector.broadcast %38 : vector<8x1xf32> to vector<8x16xf32>
    %40 = arith.mulf %35, %39 : vector<8x16xf32>
    %41 = vector.extract_strided_slice %5 {offsets = [0, 8], sizes = [16, 8], strides = [1, 1]} : vector<16x32xf32> to vector<16x8xf32>
    %cst_19 = arith.constant dense<0.000000e+00> : vector<8x8xf32>
    %42 = tpu.matmul %40, %41, %cst_19 {dimension_numbers = #tpu.dot_dimension_numbers<[1], [0], [0], [1], [0, 0, 1, 1], [], []>} : vector<8x16xf32>, vector<16x8xf32>, vector<8x8xf32> -> vector<8x8xf32>
    %43 = vector.extract_strided_slice %6 {offsets = [8, 0], sizes = [8, 32], strides = [1, 1]} : vector<32x32xf32> to vector<8x32xf32>
    %cst_20 = arith.constant dense<0.000000e+00> : vector<8x32xf32>
    %44 = tpu.matmul %42, %43, %cst_20 {dimension_numbers = #tpu.dot_dimension_numbers<[1], [0], [0], [1], [0, 0, 1, 1], [], []>} : vector<8x8xf32>, vector<8x32xf32>, vector<8x32xf32> -> vector<8x32xf32>
    %45 = arith.addf %25, %44 : vector<8x32xf32>
    %46 = vector.extract_strided_slice %1 {offsets = [0, 16], sizes = [8, 8], strides = [1, 1]} : vector<8x32xf32> to vector<8x8xf32>
    %47 = vector.extract_strided_slice %3 {offsets = [0, 16], sizes = [16, 8], strides = [1, 1]} : vector<16x32xf32> to vector<16x8xf32>
    %cst_21 = arith.constant dense<0.000000e+00> : vector<8x16xf32>
    %48 = tpu.matmul %46, %47, %cst_21 {dimension_numbers = #tpu.dot_dimension_numbers<[1], [1], [0], [0], [0, 0, 1, 0], [], []>} : vector<8x8xf32>, vector<16x8xf32>, vector<8x16xf32> -> vector<8x16xf32>
    %cst_22 = arith.constant 0.353553385 : f32
    %49 = vector.broadcast %cst_22 : f32 to vector<8x16xf32>
    %50 = arith.mulf %48, %49 : vector<8x16xf32>
    %cst_23 = arith.constant dense<0xFF800000> : vector<8xf32>
    %51 = vector.multi_reduction <maximumf>, %50, %cst_23 [1] : vector<8x16xf32> to vector<8xf32>
    %52 = vector.shape_cast %51 : vector<8xf32> to vector<8x1xf32>
    %53 = vector.broadcast %52 : vector<8x1xf32> to vector<8x16xf32>
    %54 = arith.subf %50, %53 : vector<8x16xf32>
    %55 = math.exp %54 : vector<8x16xf32>
    %cst_24 = arith.constant dense<0.000000e+00> : vector<8xf32>
    %56 = vector.multi_reduction <add>, %55, %cst_24 [1] : vector<8x16xf32> to vector<8xf32>
    %57 = vector.shape_cast %56 : vector<8xf32> to vector<8x1xf32>
    %58 = tpu.reciprocal %57 {approx = true} : vector<8x1xf32> -> vector<8x1xf32>
    %59 = vector.broadcast %58 : vector<8x1xf32> to vector<8x16xf32>
    %60 = arith.mulf %55, %59 : vector<8x16xf32>
    %61 = vector.extract_strided_slice %5 {offsets = [0, 16], sizes = [16, 8], strides = [1, 1]} : vector<16x32xf32> to vector<16x8xf32>
    %cst_25 = arith.constant dense<0.000000e+00> : vector<8x8xf32>
    %62 = tpu.matmul %60, %61, %cst_25 {dimension_numbers = #tpu.dot_dimension_numbers<[1], [0], [0], [1], [0, 0, 1, 1], [], []>} : vector<8x16xf32>, vector<16x8xf32>, vector<8x8xf32> -> vector<8x8xf32>
    %63 = vector.extract_strided_slice %6 {offsets = [16, 0], sizes = [8, 32], strides = [1, 1]} : vector<32x32xf32> to vector<8x32xf32>
    %cst_26 = arith.constant dense<0.000000e+00> : vector<8x32xf32>
    %64 = tpu.matmul %62, %63, %cst_26 {dimension_numbers = #tpu.dot_dimension_numbers<[1], [0], [0], [1], [0, 0, 1, 1], [], []>} : vector<8x8xf32>, vector<8x32xf32>, vector<8x32xf32> -> vector<8x32xf32>
    %65 = arith.addf %45, %64 : vector<8x32xf32>
    %66 = vector.extract_strided_slice %1 {offsets = [0, 24], sizes = [8, 8], strides = [1, 1]} : vector<8x32xf32> to vector<8x8xf32>
    %67 = vector.extract_strided_slice %3 {offsets = [0, 24], sizes = [16, 8], strides = [1, 1]} : vector<16x32xf32> to vector<16x8xf32>
    %cst_27 = arith.constant dense<0.000000e+00> : vector<8x16xf32>
    %68 = tpu.matmul %66, %67, %cst_27 {dimension_numbers = #tpu.dot_dimension_numbers<[1], [1], [0], [0], [0, 0, 1, 0], [], []>} : vector<8x8xf32>, vector<16x8xf32>, vector<8x16xf32> -> vector<8x16xf32>
    %cst_28 = arith.constant 0.353553385 : f32
    %69 = vector.broadcast %cst_28 : f32 to vector<8x16xf32>
    %70 = arith.mulf %68, %69 : vector<8x16xf32>
    %cst_29 = arith.constant dense<0xFF800000> : vector<8xf32>
    %71 = vector.multi_reduction <maximumf>, %70, %cst_29 [1] : vector<8x16xf32> to vector<8xf32>
    %72 = vector.shape_cast %71 : vector<8xf32> to vector<8x1xf32>
    %73 = vector.broadcast %72 : vector<8x1xf32> to vector<8x16xf32>
    %74 = arith.subf %70, %73 : vector<8x16xf32>
    %75 = math.exp %74 : vector<8x16xf32>
    %cst_30 = arith.constant dense<0.000000e+00> : vector<8xf32>
    %76 = vector.multi_reduction <add>, %75, %cst_30 [1] : vector<8x16xf32> to vector<8xf32>
    %77 = vector.shape_cast %76 : vector<8xf32> to vector<8x1xf32>
    %78 = tpu.reciprocal %77 {approx = true} : vector<8x1xf32> -> vector<8x1xf32>
    %79 = vector.broadcast %78 : vector<8x1xf32> to vector<8x16xf32>
    %80 = arith.mulf %75, %79 : vector<8x16xf32>
    %81 = vector.extract_strided_slice %5 {offsets = [0, 24], sizes = [16, 8], strides = [1, 1]} : vector<16x32xf32> to vector<16x8xf32>
    %cst_31 = arith.constant dense<0.000000e+00> : vector<8x8xf32>
    %82 = tpu.matmul %80, %81, %cst_31 {dimension_numbers = #tpu.dot_dimension_numbers<[1], [0], [0], [1], [0, 0, 1, 1], [], []>} : vector<8x16xf32>, vector<16x8xf32>, vector<8x8xf32> -> vector<8x8xf32>
    %83 = vector.extract_strided_slice %6 {offsets = [24, 0], sizes = [8, 32], strides = [1, 1]} : vector<32x32xf32> to vector<8x32xf32>
    %cst_32 = arith.constant dense<0.000000e+00> : vector<8x32xf32>
    %84 = tpu.matmul %82, %83, %cst_32 {dimension_numbers = #tpu.dot_dimension_numbers<[1], [0], [0], [1], [0, 0, 1, 1], [], []>} : vector<8x8xf32>, vector<8x32xf32>, vector<8x32xf32> -> vector<8x32xf32>
    %85 = arith.addf %65, %84 : vector<8x32xf32>
    %c0_33 = arith.constant 0 : index
    %c0_34 = arith.constant 0 : index
    %86 = vector.load %arg6[%c0_33, %c0_34] : memref<1x32xf32, #tpu.memory_space<vmem>>, vector<1x32xf32>
    %87 = vector.broadcast %86 : vector<1x32xf32> to vector<8x32xf32>
    %88 = arith.addf %85, %87 : vector<8x32xf32>
    %c0_35 = arith.constant 0 : index
    %c0_36 = arith.constant 0 : index
    %c0_37 = arith.constant 0 : index
    %89 = vector.load %arg4[%c0_35, %c0_36, %c0_37] : memref<1x8x32xf32, #tpu.memory_space<vmem>>, vector<1x8x32xf32>
    %90 = vector.shape_cast %89 : vector<1x8x32xf32> to vector<8x32xf32>
    %91 = arith.addf %88, %90 : vector<8x32xf32>
    %c0_38 = arith.constant 0 : index
    %c0_39 = arith.constant 0 : index
    %92 = vector.load %arg7[%c0_38, %c0_39] : memref<1x32xf32, #tpu.memory_space<vmem>>, vector<1x32xf32>
    %c0_40 = arith.constant 0 : index
    %c0_41 = arith.constant 0 : index
    %93 = vector.load %arg8[%c0_40, %c0_41] : memref<1x32xf32, #tpu.memory_space<vmem>>, vector<1x32xf32>
    %cst_42 = arith.constant dense<0.000000e+00> : vector<8xf32>
    %94 = vector.multi_reduction <add>, %91, %cst_42 [1] : vector<8x32xf32> to vector<8xf32>
    %95 = vector.shape_cast %94 : vector<8xf32> to vector<8x1xf32>
    %cst_43 = arith.constant 3.200000e+01 : f32
    %96 = vector.broadcast %cst_43 : f32 to vector<8x1xf32>
    %97 = arith.divf %95, %96 : vector<8x1xf32>
    %98 = vector.broadcast %97 : vector<8x1xf32> to vector<8x32xf32>
    %99 = arith.subf %91, %98 : vector<8x32xf32>
    %100 = arith.mulf %99, %99 : vector<8x32xf32>
    %cst_44 = arith.constant dense<0.000000e+00> : vector<8xf32>
    %101 = vector.multi_reduction <add>, %100, %cst_44 [1] : vector<8x32xf32> to vector<8xf32>
    %102 = vector.shape_cast %101 : vector<8xf32> to vector<8x1xf32>
    %cst_45 = arith.constant 3.200000e+01 : f32
    %103 = vector.broadcast %cst_45 : f32 to vector<8x1xf32>
    %104 = arith.divf %102, %103 : vector<8x1xf32>
    %cst_46 = arith.constant 9.99999974E-6 : f32
    %105 = vector.broadcast %cst_46 : f32 to vector<8x1xf32>
    %106 = arith.addf %104, %105 : vector<8x1xf32>
    %107 = math.rsqrt %106 : vector<8x1xf32>
    %108 = vector.broadcast %107 : vector<8x1xf32> to vector<8x32xf32>
    %109 = arith.mulf %99, %108 : vector<8x32xf32>
    %110 = vector.broadcast %92 : vector<1x32xf32> to vector<8x32xf32>
    %111 = arith.mulf %109, %110 : vector<8x32xf32>
    %112 = vector.broadcast %93 : vector<1x32xf32> to vector<8x32xf32>
    %113 = arith.addf %111, %112 : vector<8x32xf32>
    %c0_47 = arith.constant 0 : index
    %c0_48 = arith.constant 0 : index
    %114 = vector.load %arg9[%c0_47, %c0_48] : memref<32x64xf32, #tpu.memory_space<vmem>>, vector<32x64xf32>
    %cst_49 = arith.constant dense<0.000000e+00> : vector<8x64xf32>
    %115 = tpu.matmul %113, %114, %cst_49 {dimension_numbers = #tpu.dot_dimension_numbers<[1], [0], [0], [1], [0, 0, 1, 1], [], []>} : vector<8x32xf32>, vector<32x64xf32>, vector<8x64xf32> -> vector<8x64xf32>
    %c0_50 = arith.constant 0 : index
    %c0_51 = arith.constant 0 : index
    %116 = vector.load %arg10[%c0_50, %c0_51] : memref<1x64xf32, #tpu.memory_space<vmem>>, vector<1x64xf32>
    %117 = vector.broadcast %116 : vector<1x64xf32> to vector<8x64xf32>
    %118 = arith.addf %115, %117 : vector<8x64xf32>
    %cst_52 = arith.constant 0.000000e+00 : f32
    %119 = vector.broadcast %cst_52 : f32 to vector<8x64xf32>
    %120 = arith.maximumf %118, %119 : vector<8x64xf32>
    %c0_53 = arith.constant 0 : index
    %c0_54 = arith.constant 0 : index
    %121 = vector.load %arg11[%c0_53, %c0_54] : memref<64x32xf32, #tpu.memory_space<vmem>>, vector<64x32xf32>
    %cst_55 = arith.constant dense<0.000000e+00> : vector<8x32xf32>
    %122 = tpu.matmul %120, %121, %cst_55 {dimension_numbers = #tpu.dot_dimension_numbers<[1], [0], [0], [1], [0, 0, 1, 1], [], []>} : vector<8x64xf32>, vector<64x32xf32>, vector<8x32xf32> -> vector<8x32xf32>
    %c0_56 = arith.constant 0 : index
    %c0_57 = arith.constant 0 : index
    %123 = vector.load %arg12[%c0_56, %c0_57] : memref<1x32xf32, #tpu.memory_space<vmem>>, vector<1x32xf32>
    %124 = vector.broadcast %123 : vector<1x32xf32> to vector<8x32xf32>
    %125 = arith.addf %122, %124 : vector<8x32xf32>
    %126 = arith.addf %113, %125 : vector<8x32xf32>
    %c0_58 = arith.constant 0 : index
    %c0_59 = arith.constant 0 : index
    %c0_60 = arith.constant 0 : index
    %127 = vector.load %arg13[%c0_58, %c0_59, %c0_60] : memref<1x8x32xf32, #tpu.memory_space<vmem>>, vector<1x8x32xf32>
    %128 = vector.shape_cast %127 : vector<1x8x32xf32> to vector<8x32xf32>
    %129 = vector.shape_cast %126 : vector<8x32xf32> to vector<1x8x32xf32>
    tpu.vector_store %arg13[%c0_58, %c0_59, %c0_60], %129 {strides = array<i32>} : memref<1x8x32xf32, #tpu.memory_space<vmem>>, vector<1x8x32xf32>,
    return
  }
  func.func @transform_0(%arg0: i32) -> (i32, i32, i32) {
    %c0_i32 = arith.constant 0 : i32
    %c0_i32_0 = arith.constant 0 : i32
    %c0_i32_1 = arith.constant 0 : i32
    return %arg0, %c0_i32, %c0_i32_0 : i32, i32, i32
  }
  func.func @transform_1(%arg0: i32) -> (i32, i32, i32) {
    %c0_i32 = arith.constant 0 : i32
    %c0_i32_0 = arith.constant 0 : i32
    %c0_i32_1 = arith.constant 0 : i32
    return %arg0, %c0_i32, %c0_i32_0 : i32, i32, i32
  }
  func.func @transform_2(%arg0: i32) -> (i32, i32, i32) {
    %c0_i32 = arith.constant 0 : i32
    %c0_i32_0 = arith.constant 0 : i32
    %c0_i32_1 = arith.constant 0 : i32
    return %arg0, %c0_i32, %c0_i32_0 : i32, i32, i32
  }
  func.func @transform_3(%arg0: i32) -> (i32, i32, i32) {
    %c0_i32 = arith.constant 0 : i32
    %c0_i32_0 = arith.constant 0 : i32
    %c0_i32_1 = arith.constant 0 : i32
    return %arg0, %c0_i32, %c0_i32_0 : i32, i32, i32
  }
  func.func @transform_4(%arg0: i32) -> (i32, i32) {
    %c0_i32 = arith.constant 0 : i32
    %c0_i32_0 = arith.constant 0 : i32
    %c0_i32_1 = arith.constant 0 : i32
    return %c0_i32, %c0_i32_0 : i32, i32
  }
  func.func @transform_5(%arg0: i32) -> (i32, i32) {
    %c0_i32 = arith.constant 0 : i32
    %c0_i32_0 = arith.constant 0 : i32
    %c0_i32_1 = arith.constant 0 : i32
    return %c0_i32, %c0_i32_0 : i32, i32
  }
  func.func @transform_6(%arg0: i32) -> (i32, i32) {
    %c0_i32 = arith.constant 0 : i32
    %c0_i32_0 = arith.constant 0 : i32
    %c0_i32_1 = arith.constant 0 : i32
    return %c0_i32, %c0_i32_0 : i32, i32
  }
  func.func @transform_7(%arg0: i32) -> (i32, i32) {
    %c0_i32 = arith.constant 0 : i32
    %c0_i32_0 = arith.constant 0 : i32
    %c0_i32_1 = arith.constant 0 : i32
    return %c0_i32, %c0_i32_0 : i32, i32
  }
  func.func @transform_8(%arg0: i32) -> (i32, i32) {
    %c0_i32 = arith.constant 0 : i32
    %c0_i32_0 = arith.constant 0 : i32
    %c0_i32_1 = arith.constant 0 : i32
    return %c0_i32, %c0_i32_0 : i32, i32
  }
  func.func @transform_9(%arg0: i32) -> (i32, i32) {
    %c0_i32 = arith.constant 0 : i32
    %c0_i32_0 = arith.constant 0 : i32
    %c0_i32_1 = arith.constant 0 : i32
    return %c0_i32, %c0_i32_0 : i32, i32
  }
  func.func @transform_10(%arg0: i32) -> (i32, i32) {
    %c0_i32 = arith.constant 0 : i32
    %c0_i32_0 = arith.constant 0 : i32
    %c0_i32_1 = arith.constant 0 : i32
    return %c0_i32, %c0_i32_0 : i32, i32
  }
  func.func @transform_11(%arg0: i32) -> (i32, i32) {
    %c0_i32 = arith.constant 0 : i32
    %c0_i32_0 = arith.constant 0 : i32
    %c0_i32_1 = arith.constant 0 : i32
    return %c0_i32, %c0_i32_0 : i32, i32
  }
  func.func @transform_12(%arg0: i32) -> (i32, i32, i32) {
    %c0_i32 = arith.constant 0 : i32
    %c0_i32_0 = arith.constant 0 : i32
    %c0_i32_1 = arith.constant 0 : i32
    return %arg0, %c0_i32, %c0_i32_0 : i32, i32, i32
  }
}

</mosaic_0001>

<llo_original>
// kernel: transformer_forward.18
$region0: #{transformer_forward.18}
  #allocation0 [shape = 'u32[]', space=smem, size = 0x4, offset = 0x4, fixed_abs, tag = 'smem constant byte address 0x4 - core index']
  #allocation1 [shape = 'u32[144,128]{1,0:T(1,128)}', space=vmem, size = 0x12000, scoped, tag = 'internal scratch']
  %s0 = inlined_call_operand.vmem [shape: f32[32,32], index: 0, kind: input, shape index: {}]
  %s1 = inlined_call_operand.vmem [shape: f32[1,32], index: 1, kind: input, shape index: {}]
  %s2 = inlined_call_operand.vmem [shape: f32[1,32], index: 2, kind: input, shape index: {}]
  %s3 = inlined_call_operand.vmem [shape: f32[32,32], index: 3, kind: output, shape index: {}]
  %s4 = sld [smem:[#allocation0]]
  $region22: #{transformer_forward.18} parent=0
    _
  %s6 = ssub.s32 1, %s4
  %s7 = scalar_select 0, %s6, %s4
  // Predicated region
  $region2: #{transformer_forward.18} parent=0 // pred_check
    _
  $region3: #{transformer_forward.18} parent=0 // pred_check_branch
    %9 = sbr.rel (0) target = $region5
  $region4: #{transformer_forward.18} parent=0 // pred_region
    _
  $region5: #{transformer_forward.18} parent=0 // pred_fallthru
    _
  // Predicated region
  $region6: #{transformer_forward.18} parent=0 // pred_check
    _
  $region7: #{transformer_forward.18} parent=0 // pred_check_branch
    %11 = sbr.rel (0) target = $region9
  $region8: #{transformer_forward.18} parent=0 // pred_region
    _
  $region9: #{transformer_forward.18} parent=0 // pred_fallthru
    _
  // Predicated region
  $region10: #{transformer_forward.18} parent=0 // pred_check
    _
  $region11: #{transformer_forward.18} parent=0 // pred_check_branch
    %13 = sbr.rel (0) target = $region13
  $region12: #{transformer_forward.18} parent=0 // pred_region
    _
  $region13: #{transformer_forward.18} parent=0 // pred_fallthru
    _
  %v14 = vld [vmem:[%s0] sm:$0xff]
  %v15 = vld [vmem:[%s0 + $0x8] sm:$0xff]
  %v16 = vld [vmem:[%s0 + $0x10] sm:$0xff]
  %v17 = vld [vmem:[%s0 + $0x18] sm:$0xff]
  %v18 = vld [vmem:[%s1] sm:$0x1]
  %v19 = vld [vmem:[%s2] sm:$0x1]
  %vm20 = vcmask 261120
  %v21 = vsel %vm20, %v14, 0.0
  %22 = vadd.xlane.f32.xlu0 %v21
  %v23 = vpop.xlane.xlu0 %22
  %v24 = vsel %vm20, %v15, 0.0
  %25 = vadd.xlane.f32.xlu0 %v24
  %v26 = vpop.xlane.xlu0 %25
  %v27 = vsel %vm20, %v16, 0.0
  %28 = vadd.xlane.f32.xlu0 %v27
  %v29 = vpop.xlane.xlu0 %28
  %v30 = vsel %vm20, %v17, 0.0
  %31 = vadd.xlane.f32.xlu0 %v30
  %v32 = vpop.xlane.xlu0 %31
  %v33 = vrcp.pop 32.0
  %v34 = vmul.f32 %v23, %v33
  %v35 = vmul.f32 %v26, %v33
  %v36 = vmul.f32 %v29, %v33
  %v37 = vmul.f32 %v32, %v33
  %v38 = vsub.f32 %v14, %v34
  %v39 = vsub.f32 %v15, %v35
  %v40 = vsub.f32 %v16, %v36
  %v41 = vsub.f32 %v17, %v37
  %v42 = vmul.f32 %v38, %v38
  %v43 = vmul.f32 %v39, %v39
  %v44 = vmul.f32 %v40, %v40
  %v45 = vmul.f32 %v41, %v41
  %v46 = vsel %vm20, %v42, 0.0
  %47 = vadd.xlane.f32.xlu0 %v46
  %v48 = vpop.xlane.xlu0 %47
  %v49 = vsel %vm20, %v43, 0.0
  %50 = vadd.xlane.f32.xlu0 %v49
  %v51 = vpop.xlane.xlu0 %50
  %v52 = vsel %vm20, %v44, 0.0
  %53 = vadd.xlane.f32.xlu0 %v52
  %v54 = vpop.xlane.xlu0 %53
  %v55 = vsel %vm20, %v45, 0.0
  %56 = vadd.xlane.f32.xlu0 %v55
  %v57 = vpop.xlane.xlu0 %56
  %v58 = vmul.f32 %v48, %v33
  %v59 = vmul.f32 %v51, %v33
  %v60 = vmul.f32 %v54, %v33
  %v61 = vmul.f32 %v57, %v33
  %v62 = vadd.f32 %v58, 1e-05
  %v63 = vadd.f32 %v59, 1e-05
  %v64 = vadd.f32 %v60, 1e-05
  %v65 = vadd.f32 %v61, 1e-05
  %v66 = vrsqrt.pop %v62
  %v67 = vrsqrt.pop %v63
  %v68 = vrsqrt.pop %v64
  %v69 = vrsqrt.pop %v65
  %v70 = vmul.f32 %v38, %v66
  %v71 = vmul.f32 %v39, %v67
  %v72 = vmul.f32 %v40, %v68
  %v73 = vmul.f32 %v41, %v69
  %v75 = vlaneseq
  %v76 = vshrl.u32 %v75, 7
  %v77 = vsub.s32 0, %v76
  %v78 = vrot.slane %v18, %v77
  %v80 = vmul.f32 %v70, %v78
  %v81 = vmul.f32 %v71, %v78
  %v82 = vmul.f32 %v72, %v78
  %v83 = vmul.f32 %v73, %v78
  %v85 = vlaneseq
  %v86 = vshrl.u32 %v85, 7
  %v87 = vsub.s32 0, %v86
  %v88 = vrot.slane %v19, %v87
  %v90 = vadd.f32 %v80, %v88
  %v91 = vadd.f32 %v81, %v88
  %v92 = vadd.f32 %v82, %v88
  %v93 = vadd.f32 %v83, %v88
  %94 = vst.msk [vmem:[%s3] sm:$0xff] %vm20, %v90
  %95 = vst.msk [vmem:[%s3 + $0x8] sm:$0xff] %vm20, %v91
  %96 = vst.msk [vmem:[%s3 + $0x10] sm:$0xff] %vm20, %v92
  %97 = vst.msk [vmem:[%s3 + $0x18] sm:$0xff] %vm20, %v93
  // Predicated region
  $region14: #{transformer_forward.18} parent=0 // pred_check
    _
  $region15: #{transformer_forward.18} parent=0 // pred_check_branch
    %99 = sbr.rel (0) target = $region17
  $region16: #{transformer_forward.18} parent=0 // pred_region
    _
  $region17: #{transformer_forward.18} parent=0 // pred_fallthru
    _
  // Predicated region
  $region18: #{transformer_forward.18} parent=0 // pred_check
    _
  $region19: #{transformer_forward.18} parent=0 // pred_check_branch
    %101 = sbr.rel (0) target = $region21
  $region20: #{transformer_forward.18} parent=0 // pred_region
    _
  $region21: #{transformer_forward.18} parent=0 // pred_fallthru
    _

// kernel: transformer_forward.14
$region0: #{transformer_forward.14}
  #allocation0 [shape = 'u32[]', space=smem, size = 0x4, offset = 0x4, fixed_abs, tag = 'smem constant byte address 0x4 - core index']
  #allocation1 [shape = 'u32[144,128]{1,0:T(1,128)}', space=vmem, size = 0x12000, scoped, tag = 'internal scratch']
  %s0 = inlined_call_operand.vmem [shape: f32[32,32], index: 0, kind: input, shape index: {}]
  %s1 = inlined_call_operand.vmem [shape: f32[32,32], index: 1, kind: input, shape index: {}]
  %s2 = inlined_call_operand.vmem [shape: f32[1,32], index: 2, kind: input, shape index: {}]
  %s3 = inlined_call_operand.vmem [shape: f32[1,32], index: 3, kind: input, shape index: {}]
  %s4 = inlined_call_operand.vmem [shape: f32[32,64], index: 4, kind: input, shape index: {}]
  %s5 = inlined_call_operand.vmem [shape: f32[32,32], index: 5, kind: input, shape index: {}]
  %s6 = inlined_call_operand.vmem [shape: f32[1,64], index: 6, kind: input, shape index: {}]
  %s7 = inlined_call_operand.vmem [shape: f32[1,32], index: 7, kind: input, shape index: {}]
  %s8 = inlined_call_operand.vmem [shape: f32[32,32], index: 8, kind: output, shape index: {0}]
  %s9 = inlined_call_operand.vmem [shape: f32[32,32], index: 9, kind: output, shape index: {1}]
  %s10 = inlined_call_operand.vmem [shape: f32[32,32], index: 10, kind: output, shape index: {2}]
  %s11 = inlined_call_operand.vmem [shape: f32[32,32], index: 11, kind: output, shape index: {3}]
  %12 = xla_tuple %s8, %s9, %s10, %s11
  %s13 = sld [smem:[#allocation0]]
  $region66: #{transformer_forward.14} parent=0
    _
  %s15 = ssub.s32 1, %s13
  %s16 = scalar_select 0, %s15, %s13
  // Predicated region
  $region2: #{transformer_forward.14} parent=0 // pred_check
    _
  $region3: #{transformer_forward.14} parent=0 // pred_check_branch
    %18 = sbr.rel (0) target = $region5
  $region4: #{transformer_forward.14} parent=0 // pred_region
    _
  $region5: #{transformer_forward.14} parent=0 // pred_fallthru
    _
  // Predicated region
  $region6: #{transformer_forward.14} parent=0 // pred_check
    _
  $region7: #{transformer_forward.14} parent=0 // pred_check_branch
    %20 = sbr.rel (0) target = $region9
  $region8: #{transformer_forward.14} parent=0 // pred_region
    _
  $region9: #{transformer_forward.14} parent=0 // pred_fallthru
    _
  // Predicated region
  $region10: #{transformer_forward.14} parent=0 // pred_check
    _
  $region11: #{transformer_forward.14} parent=0 // pred_check_branch
    %22 = sbr.rel (0) target = $region13
  $region12: #{transformer_forward.14} parent=0 // pred_region
    _
  $region13: #{transformer_forward.14} parent=0 // pred_fallthru
    _
  // Predicated region
  $region14: #{transformer_forward.14} parent=0 // pred_check
    _
  $region15: #{transformer_forward.14} parent=0 // pred_check_branch
    %24 = sbr.rel (0) target = $region17
  $region16: #{transformer_forward.14} parent=0 // pred_region
    _
  $region17: #{transformer_forward.14} parent=0 // pred_fallthru
    _
  // Predicated region
  $region18: #{transformer_forward.14} parent=0 // pred_check
    _
  $region19: #{transformer_forward.14} parent=0 // pred_check_branch
    %26 = sbr.rel (0) target = $region21
  $region20: #{transformer_forward.14} parent=0 // pred_region
    _
  $region21: #{transformer_forward.14} parent=0 // pred_fallthru
    _
  // Predicated region
  $region22: #{transformer_forward.14} parent=0 // pred_check
    _
  $region23: #{transformer_forward.14} parent=0 // pred_check_branch
    %28 = sbr.rel (0) target = $region25
  $region24: #{transformer_forward.14} parent=0 // pred_region
    _
  $region25: #{transformer_forward.14} parent=0 // pred_fallthru
    _
  // Predicated region
  $region26: #{transformer_forward.14} parent=0 // pred_check
    _
  $region27: #{transformer_forward.14} parent=0 // pred_check_branch
    %30 = sbr.rel (0) target = $region29
  $region28: #{transformer_forward.14} parent=0 // pred_region
    _
  $region29: #{transformer_forward.14} parent=0 // pred_fallthru
    _
  // Predicated region
  $region30: #{transformer_forward.14} parent=0 // pred_check
    _
  $region31: #{transformer_forward.14} parent=0 // pred_check_branch
    %32 = sbr.rel (0) target = $region33
  $region32: #{transformer_forward.14} parent=0 // pred_region
    _
  $region33: #{transformer_forward.14} parent=0 // pred_fallthru
    _
  %v33 = vld [vmem:[%s0] sm:$0xff]
  %v34 = vld [vmem:[%s0 + $0x8] sm:$0xff]
  %v35 = vld [vmem:[%s0 + $0x10] sm:$0xff]
  %v36 = vld [vmem:[%s0 + $0x18] sm:$0xff]
  %v37 = vld [vmem:[%s2] sm:$0x1]
  %v38 = vld [vmem:[%s3] sm:$0x1]
  %vm39 = vcmask 261120
  %v40 = vsel %vm39, %v33, 0.0
  %41 = vadd.xlane.f32.xlu0 %v40
  %v42 = vpop.xlane.xlu0 %41
  %v43 = vsel %vm39, %v34, 0.0
  %44 = vadd.xlane.f32.xlu0 %v43
  %v45 = vpop.xlane.xlu0 %44
  %v46 = vsel %vm39, %v35, 0.0
  %47 = vadd.xlane.f32.xlu0 %v46
  %v48 = vpop.xlane.xlu0 %47
  %v49 = vsel %vm39, %v36, 0.0
  %50 = vadd.xlane.f32.xlu0 %v49
  %v51 = vpop.xlane.xlu0 %50
  %v52 = vrcp.pop 32.0
  %v53 = vmul.f32 %v42, %v52
  %v54 = vmul.f32 %v45, %v52
  %v55 = vmul.f32 %v48, %v52
  %v56 = vmul.f32 %v51, %v52
  %v57 = vsub.f32 %v33, %v53
  %v58 = vsub.f32 %v34, %v54
  %v59 = vsub.f32 %v35, %v55
  %v60 = vsub.f32 %v36, %v56
  %v61 = vmul.f32 %v57, %v57
  %v62 = vmul.f32 %v58, %v58
  %v63 = vmul.f32 %v59, %v59
  %v64 = vmul.f32 %v60, %v60
  %v65 = vsel %vm39, %v61, 0.0
  %66 = vadd.xlane.f32.xlu0 %v65
  %v67 = vpop.xlane.xlu0 %66
  %v68 = vsel %vm39, %v62, 0.0
  %69 = vadd.xlane.f32.xlu0 %v68
  %v70 = vpop.xlane.xlu0 %69
  %v71 = vsel %vm39, %v63, 0.0
  %72 = vadd.xlane.f32.xlu0 %v71
  %v73 = vpop.xlane.xlu0 %72
  %v74 = vsel %vm39, %v64, 0.0
  %75 = vadd.xlane.f32.xlu0 %v74
  %v76 = vpop.xlane.xlu0 %75
  %v77 = vmul.f32 %v67, %v52
  %v78 = vmul.f32 %v70, %v52
  %v79 = vmul.f32 %v73, %v52
  %v80 = vmul.f32 %v76, %v52
  %v81 = vadd.f32 %v77, 1e-05
  %v82 = vadd.f32 %v78, 1e-05
  %v83 = vadd.f32 %v79, 1e-05
  %v84 = vadd.f32 %v80, 1e-05
  %v85 = vrsqrt.pop %v81
  %v86 = vrsqrt.pop %v82
  %v87 = vrsqrt.pop %v83
  %v88 = vrsqrt.pop %v84
  %v89 = vmul.f32 %v57, %v85
  %v90 = vmul.f32 %v58, %v86
  %v91 = vmul.f32 %v59, %v87
  %v92 = vmul.f32 %v60, %v88
  %v94 = vlaneseq
  %v95 = vshrl.u32 %v94, 7
  %v96 = vsub.s32 0, %v95
  %v97 = vrot.slane %v37, %v96
  %v99 = vmul.f32 %v89, %v97
  %v100 = vmul.f32 %v90, %v97
  %v101 = vmul.f32 %v91, %v97
  %v102 = vmul.f32 %v92, %v97
  %v104 = vlaneseq
  %v105 = vshrl.u32 %v104, 7
  %v106 = vsub.s32 0, %v105
  %v107 = vrot.slane %v38, %v106
  %v109 = vadd.f32 %v99, %v107
  %v110 = vadd.f32 %v100, %v107
  %v111 = vadd.f32 %v101, %v107
  %v112 = vadd.f32 %v102, %v107
  %v113 = vld [vmem:[%s1] sm:$0xff]
  %v114 = vld [vmem:[%s1 + $0x8] sm:$0xff]
  %v115 = vld [vmem:[%s1 + $0x10] sm:$0xff]
  %v116 = vld [vmem:[%s1 + $0x18] sm:$0xff]
  %v117 = vadd.f32 %v109, %v113
  %v118 = vadd.f32 %v110, %v114
  %v119 = vadd.f32 %v111, %v115
  %v120 = vadd.f32 %v112, %v116
  %v121 = vld [vmem:[%s4] sm:$0xff]
  %v122 = vld [vmem:[%s4 + $0x8] sm:$0xff]
  %v123 = vld [vmem:[%s4 + $0x10] sm:$0xff]
  %v124 = vld [vmem:[%s4 + $0x18] sm:$0xff]
  %v125 = vld [vmem:[%s6] sm:$0x1]
  %v127 = vlaneseq
  %v128 = vshrl.u32 %v127, 7
  %v129 = vsub.s32 0, %v128
  %v130 = vrot.slane %v125, %v129
  %v133 = vsel %vm39, %v117, 0
  %v136 = vsel %vm39, %v118, 0
  %v139 = vsel %vm39, %v119, 0
  %v142 = vsel %vm39, %v120, 0
  %144 = vmatprep.subr.mxu0 0.0
  %145 = vmatpush1.msra.mxu0 0.0
  %146 = vmatprep.subr.mxu0 0.0
  %147 = vmatpush1.msra.mxu0 0.0
  %148 = vmatprep.subr.mxu0 0.0
  %149 = vmatpush1.msra.mxu0 0.0
  %150 = vmatprep.subr.mxu0 0.0
  %151 = vmatpush1.msra.mxu0 0.0
  %152 = vmatprep.subr.mxu0 0.0
  %153 = vmatpush1.msra.mxu0 0.0
  %154 = vmatprep.subr.mxu0 0.0
  %155 = vmatpush1.msra.mxu0 0.0
  %156 = vmatprep.subr.mxu0 0.0
  %157 = vmatpush1.msra.mxu0 0.0
  %158 = vmatprep.subr.mxu0 0.0
  %159 = vmatpush1.msra.mxu0 0.0
  %160 = vmatprep.subr.mxu0 0.0
  %161 = vmatpush1.msra.mxu0 0.0
  %162 = vmatprep.subr.mxu0 0.0
  %163 = vmatpush1.msra.mxu0 0.0
  %164 = vmatprep.subr.mxu0 0.0
  %165 = vmatpush1.msra.mxu0 0.0
  %166 = vmatprep.subr.mxu0 0.0
  %167 = vmatpush1.msra.mxu0 0.0
  %168 = vmatprep.subr.mxu0 0.0
  %169 = vmatpush1.msra.mxu0 %v124
  %170 = vmatprep.subr.mxu0 0.0
  %171 = vmatpush1.msra.mxu0 %v123
  %172 = vmatprep.subr.mxu0 0.0
  %173 = vmatpush1.msra.mxu0 %v122
  %174 = vmatprep.subr.mxu0 0.0
  %175 = vmatpush1.msra.mxu0 %v121
  %176 = vmatprep.subr.mxu0 0.0
  %177 = vmatpush2.msra.mxu0 0.0
  %178 = vmatprep.subr.mxu0 0.0
  %179 = vmatpush2.msra.mxu0 0.0
  %180 = vmatprep.subr.mxu0 0.0
  %181 = vmatpush2.msra.mxu0 0.0
  %182 = vmatprep.subr.mxu0 0.0
  %183 = vmatpush2.msra.mxu0 0.0
  %184 = vmatprep.subr.mxu0 0.0
  %185 = vmatpush2.msra.mxu0 0.0
  %186 = vmatprep.subr.mxu0 0.0
  %187 = vmatpush2.msra.mxu0 0.0
  %188 = vmatprep.subr.mxu0 0.0
  %189 = vmatpush2.msra.mxu0 0.0
  %190 = vmatprep.subr.mxu0 0.0
  %191 = vmatpush2.msra.mxu0 0.0
  %192 = vmatprep.subr.mxu0 0.0
  %193 = vmatpush2.msra.mxu0 0.0
  %194 = vmatprep.subr.mxu0 0.0
  %195 = vmatpush2.msra.mxu0 0.0
  %196 = vmatprep.subr.mxu0 0.0
  %197 = vmatpush2.msra.mxu0 0.0
  %198 = vmatprep.subr.mxu0 0.0
  %199 = vmatpush2.msra.mxu0 0.0
  %200 = vmatprep.subr.mxu0 0.0
  %201 = vmatpush2.msra.mxu0 0.0
  %202 = vmatprep.subr.mxu0 0.0
  %203 = vmatpush2.msra.mxu0 0.0
  %204 = vmatprep.subr.mxu0 0.0
  %205 = vmatpush2.msra.mxu0 0.0
  %206 = vmatprep.subr.mxu0 0.0
  %207 = vmatpush2.msra.mxu0 0.0
  %208 = vmatprep.mubr.f32.mxu0 0.0
  %209 = vmatmul.mubr.f32.gmra.mxu0 %v133
  %v210 = vpop.f32.mrf.mxu0
  %v211 = vadd.f32 %v130, %v210
  %v212 = vpop.f32.mrf.mxu0
  %213 = vmatprep.mubr.f32.mxu0 0.0
  %214 = vmatmul.mubr.f32.gmra.mxu0 %v136
  %v215 = vpop.f32.mrf.mxu0
  %v216 = vadd.f32 %v130, %v215
  %v217 = vpop.f32.mrf.mxu0
  %218 = vmatprep.mubr.f32.mxu0 0.0
  %219 = vmatmul.mubr.f32.gmra.mxu0 %v139
  %v220 = vpop.f32.mrf.mxu0
  %v221 = vadd.f32 %v130, %v220
  %v222 = vpop.f32.mrf.mxu0
  %223 = vmatprep.mubr.f32.mxu0 0.0
  %224 = vmatmul.mubr.f32.gmra.mxu0 %v142
  %v225 = vpop.f32.mrf.mxu0
  %v226 = vadd.f32 %v130, %v225
  %v227 = vpop.f32.mrf.mxu0
  %228 = vdwg.mxu0
  %v229 = vld [vmem:[%s5] sm:$0xff]
  %v230 = vld [vmem:[%s5 + $0x8] sm:$0xff]
  %v231 = vld [vmem:[%s5 + $0x10] sm:$0xff]
  %v232 = vld [vmem:[%s5 + $0x18] sm:$0xff]
  %v233 = vld [vmem:[%s7] sm:$0x1]
  %v235 = vlaneseq
  %v236 = vshrl.u32 %v235, 7
  %v237 = vsub.s32 0, %v236
  %v238 = vrot.slane %v233, %v237
  %v241 = vsel %vm39, %v109, 0
  %v244 = vsel %vm39, %v110, 0
  %v247 = vsel %vm39, %v111, 0
  %v250 = vsel %vm39, %v112, 0
  %252 = vmatprep.subr.mxu0 0.0
  %253 = vmatpush1.msra.mxu0 0.0
  %254 = vmatprep.subr.mxu0 0.0
  %255 = vmatpush1.msra.mxu0 0.0
  %256 = vmatprep.subr.mxu0 0.0
  %257 = vmatpush1.msra.mxu0 0.0
  %258 = vmatprep.subr.mxu0 0.0
  %259 = vmatpush1.msra.mxu0 0.0
  %260 = vmatprep.subr.mxu0 0.0
  %261 = vmatpush1.msra.mxu0 0.0
  %262 = vmatprep.subr.mxu0 0.0
  %263 = vmatpush1.msra.mxu0 0.0
  %264 = vmatprep.subr.mxu0 0.0
  %265 = vmatpush1.msra.mxu0 0.0
  %266 = vmatprep.subr.mxu0 0.0
  %267 = vmatpush1.msra.mxu0 0.0
  %268 = vmatprep.subr.mxu0 0.0
  %269 = vmatpush1.msra.mxu0 0.0
  %270 = vmatprep.subr.mxu0 0.0
  %271 = vmatpush1.msra.mxu0 0.0
  %272 = vmatprep.subr.mxu0 0.0
  %273 = vmatpush1.msra.mxu0 0.0
  %274 = vmatprep.subr.mxu0 0.0
  %275 = vmatpush1.msra.mxu0 0.0
  %276 = vmatprep.subr.mxu0 0.0
  %277 = vmatpush1.msra.mxu0 %v232
  %278 = vmatprep.subr.mxu0 0.0
  %279 = vmatpush1.msra.mxu0 %v231
  %280 = vmatprep.subr.mxu0 0.0
  %281 = vmatpush1.msra.mxu0 %v230
  %282 = vmatprep.subr.mxu0 0.0
  %283 = vmatpush1.msra.mxu0 %v229
  %284 = vmatprep.subr.mxu0 0.0
  %285 = vmatpush2.msra.mxu0 0.0
  %286 = vmatprep.subr.mxu0 0.0
  %287 = vmatpush2.msra.mxu0 0.0
  %288 = vmatprep.subr.mxu0 0.0
  %289 = vmatpush2.msra.mxu0 0.0
  %290 = vmatprep.subr.mxu0 0.0
  %291 = vmatpush2.msra.mxu0 0.0
  %292 = vmatprep.subr.mxu0 0.0
  %293 = vmatpush2.msra.mxu0 0.0
  %294 = vmatprep.subr.mxu0 0.0
  %295 = vmatpush2.msra.mxu0 0.0
  %296 = vmatprep.subr.mxu0 0.0
  %297 = vmatpush2.msra.mxu0 0.0
  %298 = vmatprep.subr.mxu0 0.0
  %299 = vmatpush2.msra.mxu0 0.0
  %300 = vmatprep.subr.mxu0 0.0
  %301 = vmatpush2.msra.mxu0 0.0
  %302 = vmatprep.subr.mxu0 0.0
  %303 = vmatpush2.msra.mxu0 0.0
  %304 = vmatprep.subr.mxu0 0.0
  %305 = vmatpush2.msra.mxu0 0.0
  %306 = vmatprep.subr.mxu0 0.0
  %307 = vmatpush2.msra.mxu0 0.0
  %308 = vmatprep.subr.mxu0 0.0
  %309 = vmatpush2.msra.mxu0 0.0
  %310 = vmatprep.subr.mxu0 0.0
  %311 = vmatpush2.msra.mxu0 0.0
  %312 = vmatprep.subr.mxu0 0.0
  %313 = vmatpush2.msra.mxu0 0.0
  %314 = vmatprep.subr.mxu0 0.0
  %315 = vmatpush2.msra.mxu0 0.0
  %316 = vmatprep.mubr.f32.mxu0 0.0
  %317 = vmatmul.mubr.f32.gmra.mxu0 %v241
  %v318 = vpop.f32.mrf.mxu0
  %v319 = vadd.f32 %v238, %v318
  %v320 = vpop.f32.mrf.mxu0
  %321 = vmatprep.mubr.f32.mxu0 0.0
  %322 = vmatmul.mubr.f32.gmra.mxu0 %v244
  %v323 = vpop.f32.mrf.mxu0
  %v324 = vadd.f32 %v238, %v323
  %v325 = vpop.f32.mrf.mxu0
  %326 = vmatprep.mubr.f32.mxu0 0.0
  %327 = vmatmul.mubr.f32.gmra.mxu0 %v247
  %v328 = vpop.f32.mrf.mxu0
  %v329 = vadd.f32 %v238, %v328
  %v330 = vpop.f32.mrf.mxu0
  %331 = vmatprep.mubr.f32.mxu0 0.0
  %332 = vmatmul.mubr.f32.gmra.mxu0 %v250
  %v333 = vpop.f32.mrf.mxu0
  %v334 = vadd.f32 %v238, %v333
  %v335 = vpop.f32.mrf.mxu0
  %336 = vdwg.mxu0
  %337 = vst.msk [vmem:[%s8] sm:$0xff] %vm39, %v109
  %338 = vst.msk [vmem:[%s8 + $0x8] sm:$0xff] %vm39, %v110
  %339 = vst.msk [vmem:[%s8 + $0x10] sm:$0xff] %vm39, %v111
  %340 = vst.msk [vmem:[%s8 + $0x18] sm:$0xff] %vm39, %v112
  %341 = vst.msk [vmem:[%s9] sm:$0xff] %vm39, %v211
  %342 = vst.msk [vmem:[%s9 + $0x8] sm:$0xff] %vm39, %v216
  %343 = vst.msk [vmem:[%s9 + $0x10] sm:$0xff] %vm39, %v221
  %344 = vst.msk [vmem:[%s9 + $0x18] sm:$0xff] %vm39, %v226
  %349 = vrot.lane.b32.xlu0 %v211, 96
  %v350 = vpop.permute.xlu0 %349
  %351 = vrot.lane.b32.xlu0 %v216, 96
  %v352 = vpop.permute.xlu0 %351
  %353 = vrot.lane.b32.xlu0 %v221, 96
  %v354 = vpop.permute.xlu0 %353
  %355 = vrot.lane.b32.xlu0 %v226, 96
  %v356 = vpop.permute.xlu0 %355
  %361 = vst.msk [vmem:[%s10] sm:$0xff] %vm39, %v350
  %362 = vst.msk [vmem:[%s10 + $0x8] sm:$0xff] %vm39, %v352
  %363 = vst.msk [vmem:[%s10 + $0x10] sm:$0xff] %vm39, %v354
  %364 = vst.msk [vmem:[%s10 + $0x18] sm:$0xff] %vm39, %v356
  %365 = vst.msk [vmem:[%s11] sm:$0xff] %vm39, %v319
  %366 = vst.msk [vmem:[%s11 + $0x8] sm:$0xff] %vm39, %v324
  %367 = vst.msk [vmem:[%s11 + $0x10] sm:$0xff] %vm39, %v329
  %368 = vst.msk [vmem:[%s11 + $0x18] sm:$0xff] %vm39, %v334
  // Predicated region
  $region34: #{transformer_forward.14} parent=0 // pred_check
    _
  $region35: #{transformer_forward.14} parent=0 // pred_check_branch
    %370 = sbr.rel (0) target = $region37
  $region36: #{transformer_forward.14} parent=0 // pred_region
    _
  $region37: #{transformer_forward.14} parent=0 // pred_fallthru
    _
  // Predicated region
  $region38: #{transformer_forward.14} parent=0 // pred_check
    _
  $region39: #{transformer_forward.14} parent=0 // pred_check_branch
    %372 = sbr.rel (0) target = $region41
  $region40: #{transformer_forward.14} parent=0 // pred_region
    _
  $region41: #{transformer_forward.14} parent=0 // pred_fallthru
    _
  // Predicated region
  $region42: #{transformer_forward.14} parent=0 // pred_check
    _
  $region43: #{transformer_forward.14} parent=0 // pred_check_branch
    %374 = sbr.rel (0) target = $region45
  $region44: #{transformer_forward.14} parent=0 // pred_region
    _
  $region45: #{transformer_forward.14} parent=0 // pred_fallthru
    _
  // Predicated region
  $region46: #{transformer_forward.14} parent=0 // pred_check
    _
  $region47: #{transformer_forward.14} parent=0 // pred_check_branch
    %376 = sbr.rel (0) target = $region49
  $region48: #{transformer_forward.14} parent=0 // pred_region
    _
  $region49: #{transformer_forward.14} parent=0 // pred_fallthru
    _
  // Predicated region
  $region50: #{transformer_forward.14} parent=0 // pred_check
    _
  $region51: #{transformer_forward.14} parent=0 // pred_check_branch
    %378 = sbr.rel (0) target = $region53
  $region52: #{transformer_forward.14} parent=0 // pred_region
    _
  $region53: #{transformer_forward.14} parent=0 // pred_fallthru
    _
  // Predicated region
  $region54: #{transformer_forward.14} parent=0 // pred_check
    _
  $region55: #{transformer_forward.14} parent=0 // pred_check_branch
    %380 = sbr.rel (0) target = $region57
  $region56: #{transformer_forward.14} parent=0 // pred_region
    _
  $region57: #{transformer_forward.14} parent=0 // pred_fallthru
    _
  // Predicated region
  $region58: #{transformer_forward.14} parent=0 // pred_check
    _
  $region59: #{transformer_forward.14} parent=0 // pred_check_branch
    %382 = sbr.rel (0) target = $region61
  $region60: #{transformer_forward.14} parent=0 // pred_region
    _
  $region61: #{transformer_forward.14} parent=0 // pred_fallthru
    _
  // Predicated region
  $region62: #{transformer_forward.14} parent=0 // pred_check
    _
  $region63: #{transformer_forward.14} parent=0 // pred_check_branch
    %384 = sbr.rel (0) target = $region65
  $region64: #{transformer_forward.14} parent=0 // pred_region
    _
  $region65: #{transformer_forward.14} parent=0 // pred_fallthru
    _

// kernel: transformer_forward.21
$region0: #{transformer_forward.21}
  #allocation0 [shape = 'u32[]', space=smem, size = 0x4, offset = 0x4, fixed_abs, tag = 'smem constant byte address 0x4 - core index']
  #allocation1 [shape = 'u32[144,128]{1,0:T(1,128)}', space=vmem, size = 0x12000, scoped, tag = 'internal scratch']
  %s0 = inlined_call_operand.vmem [shape: f32[32,32], index: 0, kind: input, shape index: {}]
  %s1 = inlined_call_operand.vmem [shape: f32[32,32], index: 1, kind: input, shape index: {}]
  %s2 = inlined_call_operand.vmem [shape: f32[32,32], index: 2, kind: input, shape index: {}]
  %s3 = inlined_call_operand.vmem [shape: f32[32,32], index: 3, kind: input, shape index: {}]
  %s4 = inlined_call_operand.vmem [shape: f32[1,32], index: 4, kind: input, shape index: {}]
  %s5 = inlined_call_operand.vmem [shape: f32[1,32], index: 5, kind: input, shape index: {}]
  %s6 = inlined_call_operand.vmem [shape: f32[32,32], index: 6, kind: output, shape index: {0}]
  %s7 = inlined_call_operand.vmem [shape: f32[32,32], index: 7, kind: output, shape index: {1}]
  %8 = xla_tuple %s6, %s7
  %s9 = sld [smem:[#allocation0]]
  $region42: #{transformer_forward.21} parent=0
    _
  %s11 = ssub.s32 1, %s9
  %s12 = scalar_select 0, %s11, %s9
  // Predicated region
  $region2: #{transformer_forward.21} parent=0 // pred_check
    _
  $region3: #{transformer_forward.21} parent=0 // pred_check_branch
    %14 = sbr.rel (0) target = $region5
  $region4: #{transformer_forward.21} parent=0 // pred_region
    _
  $region5: #{transformer_forward.21} parent=0 // pred_fallthru
    _
  // Predicated region
  $region6: #{transformer_forward.21} parent=0 // pred_check
    _
  $region7: #{transformer_forward.21} parent=0 // pred_check_branch
    %16 = sbr.rel (0) target = $region9
  $region8: #{transformer_forward.21} parent=0 // pred_region
    _
  $region9: #{transformer_forward.21} parent=0 // pred_fallthru
    _
  // Predicated region
  $region10: #{transformer_forward.21} parent=0 // pred_check
    _
  $region11: #{transformer_forward.21} parent=0 // pred_check_branch
    %18 = sbr.rel (0) target = $region13
  $region12: #{transformer_forward.21} parent=0 // pred_region
    _
  $region13: #{transformer_forward.21} parent=0 // pred_fallthru
    _
  // Predicated region
  $region14: #{transformer_forward.21} parent=0 // pred_check
    _
  $region15: #{transformer_forward.21} parent=0 // pred_check_branch
    %20 = sbr.rel (0) target = $region17
  $region16: #{transformer_forward.21} parent=0 // pred_region
    _
  $region17: #{transformer_forward.21} parent=0 // pred_fallthru
    _
  // Predicated region
  $region18: #{transformer_forward.21} parent=0 // pred_check
    _
  $region19: #{transformer_forward.21} parent=0 // pred_check_branch
    %22 = sbr.rel (0) target = $region21
  $region20: #{transformer_forward.21} parent=0 // pred_region
    _
  $region21: #{transformer_forward.21} parent=0 // pred_fallthru
    _
  // Predicated region
  $region22: #{transformer_forward.21} parent=0 // pred_check
    _
  $region23: #{transformer_forward.21} parent=0 // pred_check_branch
    %24 = sbr.rel (0) target = $region25
  $region24: #{transformer_forward.21} parent=0 // pred_region
    _
  $region25: #{transformer_forward.21} parent=0 // pred_fallthru
    _
  %v25 = vld [vmem:[%s0] sm:$0xff]
  %v26 = vld [vmem:[%s0 + $0x8] sm:$0xff]
  %v27 = vld [vmem:[%s0 + $0x10] sm:$0xff]
  %v28 = vld [vmem:[%s0 + $0x18] sm:$0xff]
  %v29 = vld [vmem:[%s1] sm:$0xff]
  %v30 = vld [vmem:[%s1 + $0x8] sm:$0xff]
  %v31 = vld [vmem:[%s1 + $0x10] sm:$0xff]
  %v32 = vld [vmem:[%s1 + $0x18] sm:$0xff]
  %v33 = vadd.f32 %v25, %v29
  %v34 = vadd.f32 %v26, %v30
  %v35 = vadd.f32 %v27, %v31
  %v36 = vadd.f32 %v28, %v32
  %v37 = vld [vmem:[%s2] sm:$0xff]
  %v38 = vld [vmem:[%s2 + $0x8] sm:$0xff]
  %v39 = vld [vmem:[%s2 + $0x10] sm:$0xff]
  %v40 = vld [vmem:[%s2 + $0x18] sm:$0xff]
  %v41 = vld [vmem:[%s4] sm:$0x1]
  %v43 = vlaneseq
  %v44 = vshrl.u32 %v43, 7
  %v45 = vsub.s32 0, %v44
  %v46 = vrot.slane %v41, %v45
  %vm48 = vcmask 261120
  %v50 = vsel %vm48, %v33, 0
  %v53 = vsel %vm48, %v34, 0
  %v56 = vsel %vm48, %v35, 0
  %v59 = vsel %vm48, %v36, 0
  %61 = vmatprep.subr.mxu0 0.0
  %62 = vmatpush1.msra.mxu0 0.0
  %63 = vmatprep.subr.mxu0 0.0
  %64 = vmatpush1.msra.mxu0 0.0
  %65 = vmatprep.subr.mxu0 0.0
  %66 = vmatpush1.msra.mxu0 0.0
  %67 = vmatprep.subr.mxu0 0.0
  %68 = vmatpush1.msra.mxu0 0.0
  %69 = vmatprep.subr.mxu0 0.0
  %70 = vmatpush1.msra.mxu0 0.0
  %71 = vmatprep.subr.mxu0 0.0
  %72 = vmatpush1.msra.mxu0 0.0
  %73 = vmatprep.subr.mxu0 0.0
  %74 = vmatpush1.msra.mxu0 0.0
  %75 = vmatprep.subr.mxu0 0.0
  %76 = vmatpush1.msra.mxu0 0.0
  %77 = vmatprep.subr.mxu0 0.0
  %78 = vmatpush1.msra.mxu0 0.0
  %79 = vmatprep.subr.mxu0 0.0
  %80 = vmatpush1.msra.mxu0 0.0
  %81 = vmatprep.subr.mxu0 0.0
  %82 = vmatpush1.msra.mxu0 0.0
  %83 = vmatprep.subr.mxu0 0.0
  %84 = vmatpush1.msra.mxu0 0.0
  %85 = vmatprep.subr.mxu0 0.0
  %86 = vmatpush1.msra.mxu0 %v40
  %87 = vmatprep.subr.mxu0 0.0
  %88 = vmatpush1.msra.mxu0 %v39
  %89 = vmatprep.subr.mxu0 0.0
  %90 = vmatpush1.msra.mxu0 %v38
  %91 = vmatprep.subr.mxu0 0.0
  %92 = vmatpush1.msra.mxu0 %v37
  %93 = vmatprep.subr.mxu0 0.0
  %94 = vmatpush2.msra.mxu0 0.0
  %95 = vmatprep.subr.mxu0 0.0
  %96 = vmatpush2.msra.mxu0 0.0
  %97 = vmatprep.subr.mxu0 0.0
  %98 = vmatpush2.msra.mxu0 0.0
  %99 = vmatprep.subr.mxu0 0.0
  %100 = vmatpush2.msra.mxu0 0.0
  %101 = vmatprep.subr.mxu0 0.0
  %102 = vmatpush2.msra.mxu0 0.0
  %103 = vmatprep.subr.mxu0 0.0
  %104 = vmatpush2.msra.mxu0 0.0
  %105 = vmatprep.subr.mxu0 0.0
  %106 = vmatpush2.msra.mxu0 0.0
  %107 = vmatprep.subr.mxu0 0.0
  %108 = vmatpush2.msra.mxu0 0.0
  %109 = vmatprep.subr.mxu0 0.0
  %110 = vmatpush2.msra.mxu0 0.0
  %111 = vmatprep.subr.mxu0 0.0
  %112 = vmatpush2.msra.mxu0 0.0
  %113 = vmatprep.subr.mxu0 0.0
  %114 = vmatpush2.msra.mxu0 0.0
  %115 = vmatprep.subr.mxu0 0.0
  %116 = vmatpush2.msra.mxu0 0.0
  %117 = vmatprep.subr.mxu0 0.0
  %118 = vmatpush2.msra.mxu0 0.0
  %119 = vmatprep.subr.mxu0 0.0
  %120 = vmatpush2.msra.mxu0 0.0
  %121 = vmatprep.subr.mxu0 0.0
  %122 = vmatpush2.msra.mxu0 0.0
  %123 = vmatprep.subr.mxu0 0.0
  %124 = vmatpush2.msra.mxu0 0.0
  %125 = vmatprep.mubr.f32.mxu0 0.0
  %126 = vmatmul.mubr.f32.gmra.mxu0 %v50
  %v127 = vpop.f32.mrf.mxu0
  %v128 = vadd.f32 %v46, %v127
  %v129 = vpop.f32.mrf.mxu0
  %130 = vmatprep.mubr.f32.mxu0 0.0
  %131 = vmatmul.mubr.f32.gmra.mxu0 %v53
  %v132 = vpop.f32.mrf.mxu0
  %v133 = vadd.f32 %v46, %v132
  %v134 = vpop.f32.mrf.mxu0
  %135 = vmatprep.mubr.f32.mxu0 0.0
  %136 = vmatmul.mubr.f32.gmra.mxu0 %v56
  %v137 = vpop.f32.mrf.mxu0
  %v138 = vadd.f32 %v46, %v137
  %v139 = vpop.f32.mrf.mxu0
  %140 = vmatprep.mubr.f32.mxu0 0.0
  %141 = vmatmul.mubr.f32.gmra.mxu0 %v59
  %v142 = vpop.f32.mrf.mxu0
  %v143 = vadd.f32 %v46, %v142
  %v144 = vpop.f32.mrf.mxu0
  %145 = vdwg.mxu0
  %v146 = vld [vmem:[%s3] sm:$0xff]
  %v147 = vld [vmem:[%s3 + $0x8] sm:$0xff]
  %v148 = vld [vmem:[%s3 + $0x10] sm:$0xff]
  %v149 = vld [vmem:[%s3 + $0x18] sm:$0xff]
  %v150 = vld [vmem:[%s5] sm:$0x1]
  %v152 = vlaneseq
  %v153 = vshrl.u32 %v152, 7
  %v154 = vsub.s32 0, %v153
  %v155 = vrot.slane %v150, %v154
  %v158 = vsel %vm48, %v25, 0
  %v161 = vsel %vm48, %v26, 0
  %v164 = vsel %vm48, %v27, 0
  %v167 = vsel %vm48, %v28, 0
  %169 = vmatprep.subr.mxu0 0.0
  %170 = vmatpush1.msra.mxu0 0.0
  %171 = vmatprep.subr.mxu0 0.0
  %172 = vmatpush1.msra.mxu0 0.0
  %173 = vmatprep.subr.mxu0 0.0
  %174 = vmatpush1.msra.mxu0 0.0
  %175 = vmatprep.subr.mxu0 0.0
  %176 = vmatpush1.msra.mxu0 0.0
  %177 = vmatprep.subr.mxu0 0.0
  %178 = vmatpush1.msra.mxu0 0.0
  %179 = vmatprep.subr.mxu0 0.0
  %180 = vmatpush1.msra.mxu0 0.0
  %181 = vmatprep.subr.mxu0 0.0
  %182 = vmatpush1.msra.mxu0 0.0
  %183 = vmatprep.subr.mxu0 0.0
  %184 = vmatpush1.msra.mxu0 0.0
  %185 = vmatprep.subr.mxu0 0.0
  %186 = vmatpush1.msra.mxu0 0.0
  %187 = vmatprep.subr.mxu0 0.0
  %188 = vmatpush1.msra.mxu0 0.0
  %189 = vmatprep.subr.mxu0 0.0
  %190 = vmatpush1.msra.mxu0 0.0
  %191 = vmatprep.subr.mxu0 0.0
  %192 = vmatpush1.msra.mxu0 0.0
  %193 = vmatprep.subr.mxu0 0.0
  %194 = vmatpush1.msra.mxu0 %v149
  %195 = vmatprep.subr.mxu0 0.0
  %196 = vmatpush1.msra.mxu0 %v148
  %197 = vmatprep.subr.mxu0 0.0
  %198 = vmatpush1.msra.mxu0 %v147
  %199 = vmatprep.subr.mxu0 0.0
  %200 = vmatpush1.msra.mxu0 %v146
  %201 = vmatprep.subr.mxu0 0.0
  %202 = vmatpush2.msra.mxu0 0.0
  %203 = vmatprep.subr.mxu0 0.0
  %204 = vmatpush2.msra.mxu0 0.0
  %205 = vmatprep.subr.mxu0 0.0
  %206 = vmatpush2.msra.mxu0 0.0
  %207 = vmatprep.subr.mxu0 0.0
  %208 = vmatpush2.msra.mxu0 0.0
  %209 = vmatprep.subr.mxu0 0.0
  %210 = vmatpush2.msra.mxu0 0.0
  %211 = vmatprep.subr.mxu0 0.0
  %212 = vmatpush2.msra.mxu0 0.0
  %213 = vmatprep.subr.mxu0 0.0
  %214 = vmatpush2.msra.mxu0 0.0
  %215 = vmatprep.subr.mxu0 0.0
  %216 = vmatpush2.msra.mxu0 0.0
  %217 = vmatprep.subr.mxu0 0.0
  %218 = vmatpush2.msra.mxu0 0.0
  %219 = vmatprep.subr.mxu0 0.0
  %220 = vmatpush2.msra.mxu0 0.0
  %221 = vmatprep.subr.mxu0 0.0
  %222 = vmatpush2.msra.mxu0 0.0
  %223 = vmatprep.subr.mxu0 0.0
  %224 = vmatpush2.msra.mxu0 0.0
  %225 = vmatprep.subr.mxu0 0.0
  %226 = vmatpush2.msra.mxu0 0.0
  %227 = vmatprep.subr.mxu0 0.0
  %228 = vmatpush2.msra.mxu0 0.0
  %229 = vmatprep.subr.mxu0 0.0
  %230 = vmatpush2.msra.mxu0 0.0
  %231 = vmatprep.subr.mxu0 0.0
  %232 = vmatpush2.msra.mxu0 0.0
  %233 = vmatprep.mubr.f32.mxu0 0.0
  %234 = vmatmul.mubr.f32.gmra.mxu0 %v158
  %v235 = vpop.f32.mrf.mxu0
  %v236 = vadd.f32 %v155, %v235
  %v237 = vpop.f32.mrf.mxu0
  %238 = vmatprep.mubr.f32.mxu0 0.0
  %239 = vmatmul.mubr.f32.gmra.mxu0 %v161
  %v240 = vpop.f32.mrf.mxu0
  %v241 = vadd.f32 %v155, %v240
  %v242 = vpop.f32.mrf.mxu0
  %243 = vmatprep.mubr.f32.mxu0 0.0
  %244 = vmatmul.mubr.f32.gmra.mxu0 %v164
  %v245 = vpop.f32.mrf.mxu0
  %v246 = vadd.f32 %v155, %v245
  %v247 = vpop.f32.mrf.mxu0
  %248 = vmatprep.mubr.f32.mxu0 0.0
  %249 = vmatmul.mubr.f32.gmra.mxu0 %v167
  %v250 = vpop.f32.mrf.mxu0
  %v251 = vadd.f32 %v155, %v250
  %v252 = vpop.f32.mrf.mxu0
  %253 = vdwg.mxu0
  %254 = vst.msk [vmem:[%s6] sm:$0xff] %vm48, %v128
  %255 = vst.msk [vmem:[%s6 + $0x8] sm:$0xff] %vm48, %v133
  %256 = vst.msk [vmem:[%s6 + $0x10] sm:$0xff] %vm48, %v138
  %257 = vst.msk [vmem:[%s6 + $0x18] sm:$0xff] %vm48, %v143
  %258 = vst.msk [vmem:[%s7] sm:$0xff] %vm48, %v236
  %259 = vst.msk [vmem:[%s7 + $0x8] sm:$0xff] %vm48, %v241
  %260 = vst.msk [vmem:[%s7 + $0x10] sm:$0xff] %vm48, %v246
  %261 = vst.msk [vmem:[%s7 + $0x18] sm:$0xff] %vm48, %v251
  // Predicated region
  $region26: #{transformer_forward.21} parent=0 // pred_check
    _
  $region27: #{transformer_forward.21} parent=0 // pred_check_branch
    %263 = sbr.rel (0) target = $region29
  $region28: #{transformer_forward.21} parent=0 // pred_region
    _
  $region29: #{transformer_forward.21} parent=0 // pred_fallthru
    _
  // Predicated region
  $region30: #{transformer_forward.21} parent=0 // pred_check
    _
  $region31: #{transformer_forward.21} parent=0 // pred_check_branch
    %265 = sbr.rel (0) target = $region33
  $region32: #{transformer_forward.21} parent=0 // pred_region
    _
  $region33: #{transformer_forward.21} parent=0 // pred_fallthru
    _
  // Predicated region
  $region34: #{transformer_forward.21} parent=0 // pred_check
    _
  $region35: #{transformer_forward.21} parent=0 // pred_check_branch
    %267 = sbr.rel (0) target = $region37
  $region36: #{transformer_forward.21} parent=0 // pred_region
    _
  $region37: #{transformer_forward.21} parent=0 // pred_fallthru
    _
  // Predicated region
  $region38: #{transformer_forward.21} parent=0 // pred_check
    _
  $region39: #{transformer_forward.21} parent=0 // pred_check_branch
    %269 = sbr.rel (0) target = $region41
  $region40: #{transformer_forward.21} parent=0 // pred_region
    _
  $region41: #{transformer_forward.21} parent=0 // pred_fallthru
    _

// kernel: transformer_forward.15
$region0: #{transformer_forward.15}
  #allocation0 [shape = 'u32[]', space=smem, size = 0x4, offset = 0x4, fixed_abs, tag = 'smem constant byte address 0x4 - core index']
  #allocation1 [shape = 'u32[144,128]{1,0:T(1,128)}', space=vmem, size = 0x12000, scoped, tag = 'internal scratch']
  %s0 = inlined_call_operand.vmem [shape: f32[2,16,32], index: 0, kind: input, shape index: {}]
  %s1 = inlined_call_operand.vmem [shape: f32[2,16,32], index: 1, kind: input, shape index: {}]
  %s2 = inlined_call_operand.vmem [shape: f32[2,16,32], index: 2, kind: input, shape index: {}]
  %s3 = inlined_call_operand.vmem [shape: f32[2,16,32], index: 3, kind: input, shape index: {}]
  %s4 = inlined_call_operand.vmem [shape: f32[32,32], index: 4, kind: input, shape index: {}]
  %s5 = inlined_call_operand.vmem [shape: f32[1,32], index: 5, kind: input, shape index: {}]
  %s6 = inlined_call_operand.vmem [shape: f32[1,32], index: 6, kind: input, shape index: {}]
  %s7 = inlined_call_operand.vmem [shape: f32[1,32], index: 7, kind: input, shape index: {}]
  %s8 = inlined_call_operand.vmem [shape: f32[32,64], index: 8, kind: input, shape index: {}]
  %s9 = inlined_call_operand.vmem [shape: f32[1,64], index: 9, kind: input, shape index: {}]
  %s10 = inlined_call_operand.vmem [shape: f32[64,32], index: 10, kind: input, shape index: {}]
  %s11 = inlined_call_operand.vmem [shape: f32[1,32], index: 11, kind: input, shape index: {}]
  %s12 = inlined_call_operand.vmem [shape: f32[2,16,32], index: 12, kind: output, shape index: {}]
  %s13 = sld [smem:[#allocation0]]
  $region81: #{transformer_forward.15} parent=0
    _
  %s15 = ssub.s32 1, %s13
  %s16 = scalar_select 0, %s15, %s13
  loop: start=0, step=1, limit=4
  $region2: #{transformer_forward.15} parent=0 // loop_pre_header
    _
  $region3: #{transformer_forward.15} parent=0 // loop_header
    %s18 = sphi 0, %s22
    %p19 = scmp.ge.s32.totalorder %s18, 4
    %s28 = sphi 0, %s30
    %s31 = sphi 0, %s28
    %s32 = sphi 0, %s31
    %s48 = sphi 0, %s32
    %s54 = sphi 0, %s56
    %s57 = sphi 0, %s54
    %s58 = sphi 0, %s57
    %s74 = sphi 0, %s58
    %s80 = sphi 0, %s82
    %s83 = sphi 0, %s80
    %s84 = sphi 0, %s83
    %s100 = sphi 0, %s84
    %s106 = sphi 0, %s108
    %s109 = sphi 0, %s106
    %s110 = sphi 0, %s109
    %s126 = sphi 0, %s110
    %s130 = sphi 0, %s130
    %s132 = sphi 0, %s130
    %s133 = sphi 0, %s132
    %s147 = sphi 0, %s133
    %s151 = sphi 0, %s151
    %s153 = sphi 0, %s151
    %s154 = sphi 0, %s153
    %s168 = sphi 0, %s154
    %s172 = sphi 0, %s172
    %s174 = sphi 0, %s172
    %s175 = sphi 0, %s174
    %s189 = sphi 0, %s175
    %s193 = sphi 0, %s193
    %s195 = sphi 0, %s193
    %s196 = sphi 0, %s195
    %s210 = sphi 0, %s196
    %s214 = sphi 0, %s214
    %s216 = sphi 0, %s214
    %s217 = sphi 0, %s216
    %s231 = sphi 0, %s217
    %s235 = sphi 0, %s235
    %s237 = sphi 0, %s235
    %s238 = sphi 0, %s237
    %s252 = sphi 0, %s238
    %s256 = sphi 0, %s256
    %s258 = sphi 0, %s256
    %s259 = sphi 0, %s258
    %s273 = sphi 0, %s259
    %s277 = sphi 0, %s277
    %s279 = sphi 0, %s277
    %s280 = sphi 0, %s279
    %s294 = sphi 0, %s280
    %s300 = sphi 0, %s302
    %s303 = sphi 0, %s300
    %s304 = sphi 0, %s303
    %s320 = sphi 0, %s304
  $region4: #{transformer_forward.15} parent=0 // loop_header_branch
    %21 = sbr.rel (%p19) target = $region8
  $region5: #{transformer_forward.15} parent=0 // loop_body
    %s23 = ssub.s32 %s18, 1
    %s24 = ssub.s32 %s18, 2
    %s25 = sadd.s32 %s18, 1
    %s26 = ssub.s32 %s18, %s25
    %p27 = scmp.eq.s32.totalorder %s26, 0
    %s29 = sadd.s32 %s28, 1
    %s30 = scalar_select %p27, %s28, %s29
    %p33 = pneg %p27
    %p34 = scmp.eq.s32.totalorder %s18, 1
    %p35 = por %p33, %p34
    %p36 = scmp.ne.s32.totalorder %s28, %s31
    %p37 = scmp.eq.s32.totalorder %s18, 0
    %p38 = por %p36, %p37
    %p39 = scmp.ne.s32.totalorder %s28, %s31
    %p40 = scmp.eq.s32.totalorder %s23, 1
    %p41 = por %p39, %p40
    %p42 = scmp.ne.s32.totalorder %s31, %s32
    %p43 = scmp.eq.s32.totalorder %s23, 0
    %p44 = por %p42, %p43
    %p45 = scmp.ne.s32.totalorder %s31, %s32
    %p46 = scmp.eq.s32.totalorder %s24, 1
    %p47 = por %p45, %p46
    %p49 = scmp.ne.s32.totalorder %s32, %s48
    %p50 = scmp.eq.s32.totalorder %s24, 0
    %p51 = por %p49, %p50
    %s52 = ssub.s32 %s18, %s25
    %p53 = scmp.eq.s32.totalorder %s52, 0
    %s55 = sadd.s32 %s54, 1
    %s56 = scalar_select %p53, %s54, %s55
    %p59 = pneg %p53
    %p60 = scmp.eq.s32.totalorder %s18, 1
    %p61 = por %p59, %p60
    %p62 = scmp.ne.s32.totalorder %s54, %s57
    %p63 = scmp.eq.s32.totalorder %s18, 0
    %p64 = por %p62, %p63
    %p65 = scmp.ne.s32.totalorder %s54, %s57
    %p66 = scmp.eq.s32.totalorder %s23, 1
    %p67 = por %p65, %p66
    %p68 = scmp.ne.s32.totalorder %s57, %s58
    %p69 = scmp.eq.s32.totalorder %s23, 0
    %p70 = por %p68, %p69
    %p71 = scmp.ne.s32.totalorder %s57, %s58
    %p72 = scmp.eq.s32.totalorder %s24, 1
    %p73 = por %p71, %p72
    %p75 = scmp.ne.s32.totalorder %s58, %s74
    %p76 = scmp.eq.s32.totalorder %s24, 0
    %p77 = por %p75, %p76
    %s78 = ssub.s32 %s18, %s25
    %p79 = scmp.eq.s32.totalorder %s78, 0
    %s81 = sadd.s32 %s80, 1
    %s82 = scalar_select %p79, %s80, %s81
    %p85 = pneg %p79
    %p86 = scmp.eq.s32.totalorder %s18, 1
    %p87 = por %p85, %p86
    %p88 = scmp.ne.s32.totalorder %s80, %s83
    %p89 = scmp.eq.s32.totalorder %s18, 0
    %p90 = por %p88, %p89
    %p91 = scmp.ne.s32.totalorder %s80, %s83
    %p92 = scmp.eq.s32.totalorder %s23, 1
    %p93 = por %p91, %p92
    %p94 = scmp.ne.s32.totalorder %s83, %s84
    %p95 = scmp.eq.s32.totalorder %s23, 0
    %p96 = por %p94, %p95
    %p97 = scmp.ne.s32.totalorder %s83, %s84
    %p98 = scmp.eq.s32.totalorder %s24, 1
    %p99 = por %p97, %p98
    %p101 = scmp.ne.s32.totalorder %s84, %s100
    %p102 = scmp.eq.s32.totalorder %s24, 0
    %p103 = por %p101, %p102
    %s104 = ssub.s32 %s18, %s25
    %p105 = scmp.eq.s32.totalorder %s104, 0
    %s107 = sadd.s32 %s106, 1
    %s108 = scalar_select %p105, %s106, %s107
    %p111 = pneg %p105
    %p112 = scmp.eq.s32.totalorder %s18, 1
    %p113 = por %p111, %p112
    %p114 = scmp.ne.s32.totalorder %s106, %s109
    %p115 = scmp.eq.s32.totalorder %s18, 0
    %p116 = por %p114, %p115
    %p117 = scmp.ne.s32.totalorder %s106, %s109
    %p118 = scmp.eq.s32.totalorder %s23, 1
    %p119 = por %p117, %p118
    %p120 = scmp.ne.s32.totalorder %s109, %s110
    %p121 = scmp.eq.s32.totalorder %s23, 0
    %p122 = por %p120, %p121
    %p123 = scmp.ne.s32.totalorder %s109, %s110
    %p124 = scmp.eq.s32.totalorder %s24, 1
    %p125 = por %p123, %p124
    %p127 = scmp.ne.s32.totalorder %s110, %s126
    %p128 = scmp.eq.s32.totalorder %s24, 0
    %p129 = por %p127, %p128
    %s131 = sadd.s32 %s130, 1
    %p134 = scmp.eq.s32.totalorder %s18, 1
    %p135 = scmp.ne.s32.totalorder %s130, %s132
    %p136 = scmp.eq.s32.totalorder %s18, 0
    %p137 = por %p135, %p136
    %p138 = scmp.ne.s32.totalorder %s130, %s132
    %p139 = scmp.eq.s32.totalorder %s23, 1
    %p140 = por %p138, %p139
    %p141 = scmp.ne.s32.totalorder %s132, %s133
    %p142 = scmp.eq.s32.totalorder %s23, 0
    %p143 = por %p141, %p142
    %p144 = scmp.ne.s32.totalorder %s132, %s133
    %p145 = scmp.eq.s32.totalorder %s24, 1
    %p146 = por %p144, %p145
    %p148 = scmp.ne.s32.totalorder %s133, %s147
    %p149 = scmp.eq.s32.totalorder %s24, 0
    %p150 = por %p148, %p149
    %s152 = sadd.s32 %s151, 1
    %p155 = scmp.eq.s32.totalorder %s18, 1
    %p156 = scmp.ne.s32.totalorder %s151, %s153
    %p157 = scmp.eq.s32.totalorder %s18, 0
    %p158 = por %p156, %p157
    %p159 = scmp.ne.s32.totalorder %s151, %s153
    %p160 = scmp.eq.s32.totalorder %s23, 1
    %p161 = por %p159, %p160
    %p162 = scmp.ne.s32.totalorder %s153, %s154
    %p163 = scmp.eq.s32.totalorder %s23, 0
    %p164 = por %p162, %p163
    %p165 = scmp.ne.s32.totalorder %s153, %s154
    %p166 = scmp.eq.s32.totalorder %s24, 1
    %p167 = por %p165, %p166
    %p169 = scmp.ne.s32.totalorder %s154, %s168
    %p170 = scmp.eq.s32.totalorder %s24, 0
    %p171 = por %p169, %p170
    %s173 = sadd.s32 %s172, 1
    %p176 = scmp.eq.s32.totalorder %s18, 1
    %p177 = scmp.ne.s32.totalorder %s172, %s174
    %p178 = scmp.eq.s32.totalorder %s18, 0
    %p179 = por %p177, %p178
    %p180 = scmp.ne.s32.totalorder %s172, %s174
    %p181 = scmp.eq.s32.totalorder %s23, 1
    %p182 = por %p180, %p181
    %p183 = scmp.ne.s32.totalorder %s174, %s175
    %p184 = scmp.eq.s32.totalorder %s23, 0
    %p185 = por %p183, %p184
    %p186 = scmp.ne.s32.totalorder %s174, %s175
    %p187 = scmp.eq.s32.totalorder %s24, 1
    %p188 = por %p186, %p187
    %p190 = scmp.ne.s32.totalorder %s175, %s189
    %p191 = scmp.eq.s32.totalorder %s24, 0
    %p192 = por %p190, %p191
    %s194 = sadd.s32 %s193, 1
    %p197 = scmp.eq.s32.totalorder %s18, 1
    %p198 = scmp.ne.s32.totalorder %s193, %s195
    %p199 = scmp.eq.s32.totalorder %s18, 0
    %p200 = por %p198, %p199
    %p201 = scmp.ne.s32.totalorder %s193, %s195
    %p202 = scmp.eq.s32.totalorder %s23, 1
    %p203 = por %p201, %p202
    %p204 = scmp.ne.s32.totalorder %s195, %s196
    %p205 = scmp.eq.s32.totalorder %s23, 0
    %p206 = por %p204, %p205
    %p207 = scmp.ne.s32.totalorder %s195, %s196
    %p208 = scmp.eq.s32.totalorder %s24, 1
    %p209 = por %p207, %p208
    %p211 = scmp.ne.s32.totalorder %s196, %s210
    %p212 = scmp.eq.s32.totalorder %s24, 0
    %p213 = por %p211, %p212
    %s215 = sadd.s32 %s214, 1
    %p218 = scmp.eq.s32.totalorder %s18, 1
    %p219 = scmp.ne.s32.totalorder %s214, %s216
    %p220 = scmp.eq.s32.totalorder %s18, 0
    %p221 = por %p219, %p220
    %p222 = scmp.ne.s32.totalorder %s214, %s216
    %p223 = scmp.eq.s32.totalorder %s23, 1
    %p224 = por %p222, %p223
    %p225 = scmp.ne.s32.totalorder %s216, %s217
    %p226 = scmp.eq.s32.totalorder %s23, 0
    %p227 = por %p225, %p226
    %p228 = scmp.ne.s32.totalorder %s216, %s217
    %p229 = scmp.eq.s32.totalorder %s24, 1
    %p230 = por %p228, %p229
    %p232 = scmp.ne.s32.totalorder %s217, %s231
    %p233 = scmp.eq.s32.totalorder %s24, 0
    %p234 = por %p232, %p233
    %s236 = sadd.s32 %s235, 1
    %p239 = scmp.eq.s32.totalorder %s18, 1
    %p240 = scmp.ne.s32.totalorder %s235, %s237
    %p241 = scmp.eq.s32.totalorder %s18, 0
    %p242 = por %p240, %p241
    %p243 = scmp.ne.s32.totalorder %s235, %s237
    %p244 = scmp.eq.s32.totalorder %s23, 1
    %p245 = por %p243, %p244
    %p246 = scmp.ne.s32.totalorder %s237, %s238
    %p247 = scmp.eq.s32.totalorder %s23, 0
    %p248 = por %p246, %p247
    %p249 = scmp.ne.s32.totalorder %s237, %s238
    %p250 = scmp.eq.s32.totalorder %s24, 1
    %p251 = por %p249, %p250
    %p253 = scmp.ne.s32.totalorder %s238, %s252
    %p254 = scmp.eq.s32.totalorder %s24, 0
    %p255 = por %p253, %p254
    %s257 = sadd.s32 %s256, 1
    %p260 = scmp.eq.s32.totalorder %s18, 1
    %p261 = scmp.ne.s32.totalorder %s256, %s258
    %p262 = scmp.eq.s32.totalorder %s18, 0
    %p263 = por %p261, %p262
    %p264 = scmp.ne.s32.totalorder %s256, %s258
    %p265 = scmp.eq.s32.totalorder %s23, 1
    %p266 = por %p264, %p265
    %p267 = scmp.ne.s32.totalorder %s258, %s259
    %p268 = scmp.eq.s32.totalorder %s23, 0
    %p269 = por %p267, %p268
    %p270 = scmp.ne.s32.totalorder %s258, %s259
    %p271 = scmp.eq.s32.totalorder %s24, 1
    %p272 = por %p270, %p271
    %p274 = scmp.ne.s32.totalorder %s259, %s273
    %p275 = scmp.eq.s32.totalorder %s24, 0
    %p276 = por %p274, %p275
    %s278 = sadd.s32 %s277, 1
    %p281 = scmp.eq.s32.totalorder %s18, 1
    %p282 = scmp.ne.s32.totalorder %s277, %s279
    %p283 = scmp.eq.s32.totalorder %s18, 0
    %p284 = por %p282, %p283
    %p285 = scmp.ne.s32.totalorder %s277, %s279
    %p286 = scmp.eq.s32.totalorder %s23, 1
    %p287 = por %p285, %p286
    %p288 = scmp.ne.s32.totalorder %s279, %s280
    %p289 = scmp.eq.s32.totalorder %s23, 0
    %p290 = por %p288, %p289
    %p291 = scmp.ne.s32.totalorder %s279, %s280
    %p292 = scmp.eq.s32.totalorder %s24, 1
    %p293 = por %p291, %p292
    %p295 = scmp.ne.s32.totalorder %s280, %s294
    %p296 = scmp.eq.s32.totalorder %s24, 0
    %p297 = por %p295, %p296
    %s298 = ssub.s32 %s18, %s25
    %p299 = scmp.eq.s32.totalorder %s298, 0
    %s301 = sadd.s32 %s300, 1
    %s302 = scalar_select %p299, %s300, %s301
    %p305 = pneg %p299
    %p306 = scmp.eq.s32.totalorder %s18, 1
    %p307 = por %p305, %p306
    %p308 = scmp.ne.s32.totalorder %s300, %s303
    %p309 = scmp.eq.s32.totalorder %s18, 0
    %p310 = por %p308, %p309
    %p311 = scmp.ne.s32.totalorder %s300, %s303
    %p312 = scmp.eq.s32.totalorder %s23, 1
    %p313 = por %p311, %p312
    %p314 = scmp.ne.s32.totalorder %s303, %s304
    %p315 = scmp.eq.s32.totalorder %s23, 0
    %p316 = por %p314, %p315
    %p317 = scmp.ne.s32.totalorder %s303, %s304
    %p318 = scmp.eq.s32.totalorder %s24, 1
    %p319 = por %p317, %p318
    %p321 = scmp.ne.s32.totalorder %s304, %s320
    %p322 = scmp.eq.s32.totalorder %s24, 0
    %p323 = por %p321, %p322
    %p324 = scmp.le.s32.totalorder 1, %s18
    %p325 = scmp.lt.s32.totalorder %s18, 3
    %p326 = pnand %p324, %p325
    %p327 = pneg %p326
    // Predicated region
    $region9: #{transformer_forward.15} parent=5 // pred_check
      _
    $region10: #{transformer_forward.15} parent=5 // pred_check_branch
      %329 = sbr.rel (%p326) target = $region12
    $region11: #{transformer_forward.15} parent=5 // pred_region
      %s330 = ssub.s32 %s18, 1
      // Predicated region
      $region13: #{transformer_forward.15} parent=11 // pred_check
        %p331 = pneg %p143
      $region14: #{transformer_forward.15} parent=11 // pred_check_branch
        %333 = sbr.rel (%p331) target = $region16
      $region15: #{transformer_forward.15} parent=11 // pred_region
        _
      $region16: #{transformer_forward.15} parent=11 // pred_fallthru
        _
      // Predicated region
      $region17: #{transformer_forward.15} parent=11 // pred_check
        %p334 = pneg %p164
      $region18: #{transformer_forward.15} parent=11 // pred_check_branch
        %336 = sbr.rel (%p334) target = $region20
      $region19: #{transformer_forward.15} parent=11 // pred_region
        _
      $region20: #{transformer_forward.15} parent=11 // pred_fallthru
        _
      // Predicated region
      $region21: #{transformer_forward.15} parent=11 // pred_check
        %p337 = pneg %p185
      $region22: #{transformer_forward.15} parent=11 // pred_check_branch
        %339 = sbr.rel (%p337) target = $region24
      $region23: #{transformer_forward.15} parent=11 // pred_region
        _
      $region24: #{transformer_forward.15} parent=11 // pred_fallthru
        _
      // Predicated region
      $region25: #{transformer_forward.15} parent=11 // pred_check
        %p340 = pneg %p206
      $region26: #{transformer_forward.15} parent=11 // pred_check_branch
        %342 = sbr.rel (%p340) target = $region28
      $region27: #{transformer_forward.15} parent=11 // pred_region
        _
      $region28: #{transformer_forward.15} parent=11 // pred_fallthru
        _
      // Predicated region
      $region29: #{transformer_forward.15} parent=11 // pred_check
        %p343 = pneg %p227
      $region30: #{transformer_forward.15} parent=11 // pred_check_branch
        %345 = sbr.rel (%p343) target = $region32
      $region31: #{transformer_forward.15} parent=11 // pred_region
        _
      $region32: #{transformer_forward.15} parent=11 // pred_fallthru
        _
      // Predicated region
      $region33: #{transformer_forward.15} parent=11 // pred_check
        %p346 = pneg %p248
      $region34: #{transformer_forward.15} parent=11 // pred_check_branch
        %348 = sbr.rel (%p346) target = $region36
      $region35: #{transformer_forward.15} parent=11 // pred_region
        _
      $region36: #{transformer_forward.15} parent=11 // pred_fallthru
        _
      // Predicated region
      $region37: #{transformer_forward.15} parent=11 // pred_check
        %p349 = pneg %p269
      $region38: #{transformer_forward.15} parent=11 // pred_check_branch
        %351 = sbr.rel (%p349) target = $region40
      $region39: #{transformer_forward.15} parent=11 // pred_region
        _
      $region40: #{transformer_forward.15} parent=11 // pred_fallthru
        _
      // Predicated region
      $region41: #{transformer_forward.15} parent=11 // pred_check
        %p352 = pneg %p290
      $region42: #{transformer_forward.15} parent=11 // pred_check_branch
        %354 = sbr.rel (%p352) target = $region44
      $region43: #{transformer_forward.15} parent=11 // pred_region
        _
      $region44: #{transformer_forward.15} parent=11 // pred_fallthru
        _
    $region12: #{transformer_forward.15} parent=5 // pred_fallthru
      _
    %p355 = scmp.lt.s32.totalorder %s18, 2
    // Predicated region
    $region45: #{transformer_forward.15} parent=5 // pred_check
      %p356 = pneg %p355
    $region46: #{transformer_forward.15} parent=5 // pred_check_branch
      %358 = sbr.rel (%p356) target = $region48
    $region47: #{transformer_forward.15} parent=5 // pred_region
      // Predicated region
      $region49: #{transformer_forward.15} parent=47 // pred_check
        %p359 = pneg %p38
      $region50: #{transformer_forward.15} parent=47 // pred_check_branch
        %361 = sbr.rel (%p359) target = $region52
      $region51: #{transformer_forward.15} parent=47 // pred_region
        %p362 = scmp.lt.s32.totalorder %s18, 1
        %s363 = scalar_select %p362, %s18, 1
        %s364 = smul.addr %s363, 2
        %s365 = smul.addr %s364, 8
        %s366 = scalar_lea.vmem %s0, %s365
      $region52: #{transformer_forward.15} parent=47 // pred_fallthru
        _
      // Predicated region
      $region53: #{transformer_forward.15} parent=47 // pred_check
        %p367 = pneg %p64
      $region54: #{transformer_forward.15} parent=47 // pred_check_branch
        %369 = sbr.rel (%p367) target = $region56
      $region55: #{transformer_forward.15} parent=47 // pred_region
        %p370 = scmp.lt.s32.totalorder %s18, 1
        %s371 = scalar_select %p370, %s18, 1
        %s372 = smul.addr %s371, 2
        %s373 = smul.addr %s372, 8
        %s374 = scalar_lea.vmem %s1, %s373
      $region56: #{transformer_forward.15} parent=47 // pred_fallthru
        _
      // Predicated region
      $region57: #{transformer_forward.15} parent=47 // pred_check
        %p375 = pneg %p90
      $region58: #{transformer_forward.15} parent=47 // pred_check_branch
        %377 = sbr.rel (%p375) target = $region60
      $region59: #{transformer_forward.15} parent=47 // pred_region
        %p378 = scmp.lt.s32.totalorder %s18, 1
        %s379 = scalar_select %p378, %s18, 1
        %s380 = smul.addr %s379, 2
        %s381 = smul.addr %s380, 8
        %s382 = scalar_lea.vmem %s2, %s381
      $region60: #{transformer_forward.15} parent=47 // pred_fallthru
        _
      // Predicated region
      $region61: #{transformer_forward.15} parent=47 // pred_check
        %p383 = pneg %p116
      $region62: #{transformer_forward.15} parent=47 // pred_check_branch
        %385 = sbr.rel (%p383) target = $region64
      $region63: #{transformer_forward.15} parent=47 // pred_region
        %p386 = scmp.lt.s32.totalorder %s18, 1
        %s387 = scalar_select %p386, %s18, 1
        %s388 = smul.addr %s387, 2
        %s389 = smul.addr %s388, 8
        %s390 = scalar_lea.vmem %s3, %s389
      $region64: #{transformer_forward.15} parent=47 // pred_fallthru
        _
    $region48: #{transformer_forward.15} parent=5 // pred_fallthru
      _
    %p391 = scmp.le.s32.totalorder 1, %s18
    %p392 = scmp.lt.s32.totalorder %s18, 3
    %p393 = pnand %p391, %p392
    %p394 = pneg %p393
    // Predicated region
    $region65: #{transformer_forward.15} parent=5 // pred_check
      _
    $region66: #{transformer_forward.15} parent=5 // pred_check_branch
      %396 = sbr.rel (%p393) target = $region68
    $region67: #{transformer_forward.15} parent=5 // pred_region
      %s397 = ssub.s32 %s18, 1
      %p398 = scmp.lt.s32.totalorder %s23, 1
      %s399 = scalar_select %p398, %s23, 1
      %s400 = smul.addr %s399, 2
      %s401 = smul.addr %s400, 8
      %s402 = scalar_lea.vmem %s0, %s401
      %p403 = pneg %p44
      %p404 = pneg %p41
      %p405 = scmp.lt.s32.totalorder %s23, 1
      %s406 = scalar_select %p405, %s23, 1
      %s407 = smul.addr %s406, 2
      %s408 = smul.addr %s407, 8
      %s409 = scalar_lea.vmem %s1, %s408
      %p410 = pneg %p70
      %p411 = pneg %p67
      %p412 = scmp.lt.s32.totalorder %s23, 1
      %s413 = scalar_select %p412, %s23, 1
      %s414 = smul.addr %s413, 2
      %s415 = smul.addr %s414, 8
      %s416 = scalar_lea.vmem %s2, %s415
      %p417 = pneg %p96
      %p418 = pneg %p93
      %p419 = scmp.lt.s32.totalorder %s23, 1
      %s420 = scalar_select %p419, %s23, 1
      %s421 = smul.addr %s420, 2
      %s422 = smul.addr %s421, 8
      %s423 = scalar_lea.vmem %s3, %s422
      %p424 = pneg %p122
      %p425 = pneg %p119
      %p426 = pneg %p143
      %p427 = pneg %p140
      %p428 = pneg %p164
      %p429 = pneg %p161
      %p430 = pneg %p185
      %p431 = pneg %p182
      %p432 = pneg %p206
      %p433 = pneg %p203
      %p434 = pneg %p227
      %p435 = pneg %p224
      %p436 = pneg %p248
      %p437 = pneg %p245
      %p438 = pneg %p269
      %p439 = pneg %p266
      %p440 = pneg %p290
      %p441 = pneg %p287
      %p442 = pneg %p316
      %p443 = pneg %p313
      %p444 = scmp.lt.s32.totalorder %s23, 1
      %s445 = scalar_select %p444, %s23, 1
      %s446 = smul.addr %s445, 2
      %s447 = smul.addr %s446, 8
      %s448 = scalar_lea.vmem %s12, %s447
      %p449 = scmp.lt.s32.totalorder %s23, 1
      %s450 = scalar_select %p449, %s23, 1
      %s451 = smul.addr %s450, 2
      %s452 = smul.addr %s451, 8
      %s453 = scalar_lea.vmem %s0, %s452
      %p454 = scmp.lt.s32.totalorder %s23, 1
      %s455 = scalar_select %p454, %s23, 1
      %s456 = smul.addr %s455, 2
      %s457 = smul.addr %s456, 8
      %s458 = scalar_lea.vmem %s1, %s457
      %p459 = scmp.lt.s32.totalorder %s23, 1
      %s460 = scalar_select %p459, %s23, 1
      %s461 = smul.addr %s460, 2
      %s462 = smul.addr %s461, 8
      %s463 = scalar_lea.vmem %s2, %s462
      %p464 = scmp.lt.s32.totalorder %s23, 1
      %s465 = scalar_select %p464, %s23, 1
      %s466 = smul.addr %s465, 2
      %s467 = smul.addr %s466, 8
      %s468 = scalar_lea.vmem %s3, %s467
      %p469 = scmp.lt.s32.totalorder %s23, 1
      %s470 = scalar_select %p469, %s23, 1
      %s471 = smul.addr %s470, 2
      %s472 = smul.addr %s471, 8
      %s473 = scalar_lea.vmem %s12, %s472
      %v474 = vld [vmem:[%s453] sm:$0xff]
      %v475 = vld [vmem:[%s453 + $0x8] sm:$0xff]
      %v476 = vld [vmem:[%s458] sm:$0xff]
      %v477 = vld [vmem:[%s458 + $0x8] sm:$0xff]
      %v478 = vld [vmem:[%s463] sm:$0xff]
      %v479 = vld [vmem:[%s463 + $0x8] sm:$0xff]
      %v480 = vld [vmem:[%s4] sm:$0xff]
      %v481 = vld [vmem:[%s4 + $0x8] sm:$0xff]
      %v482 = vld [vmem:[%s4 + $0x10] sm:$0xff]
      %v483 = vld [vmem:[%s4 + $0x18] sm:$0xff]
      %vm484 = vcmask 64512
      %v486 = vsel %vm484, %v474, 0
      %v489 = vsel %vm484, %v475, 0
      %v492 = vsel %vm484, %v476, 0
      %v495 = vsel %vm484, %v477, 0
      %497 = vmatprep.subr.mxu0 0.0
      %498 = vmatpush1.xpose.msra.mxu0 0.0
      %499 = vmatprep.subr.mxu0 0.0
      %500 = vmatpush1.xpose.msra.mxu0 0.0
      %501 = vmatprep.subr.mxu0 0.0
      %502 = vmatpush1.xpose.msra.mxu0 0.0
      %503 = vmatprep.subr.mxu0 0.0
      %504 = vmatpush1.xpose.msra.mxu0 0.0
      %505 = vmatprep.subr.mxu0 0.0
      %506 = vmatpush1.xpose.msra.mxu0 0.0
      %507 = vmatprep.subr.mxu0 0.0
      %508 = vmatpush1.xpose.msra.mxu0 0.0
      %509 = vmatprep.subr.mxu0 0.0
      %510 = vmatpush1.xpose.msra.mxu0 0.0
      %511 = vmatprep.subr.mxu0 0.0
      %512 = vmatpush1.xpose.msra.mxu0 0.0
      %513 = vmatprep.subr.mxu0 0.0
      %514 = vmatpush1.xpose.msra.mxu0 0.0
      %515 = vmatprep.subr.mxu0 0.0
      %516 = vmatpush1.xpose.msra.mxu0 0.0
      %517 = vmatprep.subr.mxu0 0.0
      %518 = vmatpush1.xpose.msra.mxu0 0.0
      %519 = vmatprep.subr.mxu0 0.0
      %520 = vmatpush1.xpose.msra.mxu0 0.0
      %521 = vmatprep.subr.mxu0 0.0
      %522 = vmatpush1.xpose.msra.mxu0 0.0
      %523 = vmatprep.subr.mxu0 0.0
      %524 = vmatpush1.xpose.msra.mxu0 0.0
      %525 = vmatprep.subr.mxu0 0.0
      %526 = vmatpush1.xpose.msra.mxu0 %v495
      %527 = vmatprep.subr.mxu0 0.0
      %528 = vmatpush1.xpose.msra.mxu0 %v492
      %529 = vmatprep.subr.mxu0 0.0
      %530 = vmatpush2.xpose.msra.mxu0 0.0
      %531 = vmatprep.subr.mxu0 0.0
      %532 = vmatpush2.xpose.msra.mxu0 0.0
      %533 = vmatprep.subr.mxu0 0.0
      %534 = vmatpush2.xpose.msra.mxu0 0.0
      %535 = vmatprep.subr.mxu0 0.0
      %536 = vmatpush2.xpose.msra.mxu0 0.0
      %537 = vmatprep.subr.mxu0 0.0
      %538 = vmatpush2.xpose.msra.mxu0 0.0
      %539 = vmatprep.subr.mxu0 0.0
      %540 = vmatpush2.xpose.msra.mxu0 0.0
      %541 = vmatprep.subr.mxu0 0.0
      %542 = vmatpush2.xpose.msra.mxu0 0.0
      %543 = vmatprep.subr.mxu0 0.0
      %544 = vmatpush2.xpose.msra.mxu0 0.0
      %545 = vmatprep.subr.mxu0 0.0
      %546 = vmatpush2.xpose.msra.mxu0 0.0
      %547 = vmatprep.subr.mxu0 0.0
      %548 = vmatpush2.xpose.msra.mxu0 0.0
      %549 = vmatprep.subr.mxu0 0.0
      %550 = vmatpush2.xpose.msra.mxu0 0.0
      %551 = vmatprep.subr.mxu0 0.0
      %552 = vmatpush2.xpose.msra.mxu0 0.0
      %553 = vmatprep.subr.mxu0 0.0
      %554 = vmatpush2.xpose.msra.mxu0 0.0
      %555 = vmatprep.subr.mxu0 0.0
      %556 = vmatpush2.xpose.msra.mxu0 0.0
      %557 = vmatprep.subr.mxu0 0.0
      %558 = vmatpush2.xpose.msra.mxu0 0.0
      %559 = vmatprep.subr.mxu0 0.0
      %560 = vmatpush2.xpose.msra.mxu0 0.0
      %561 = vmatprep.mubr.f32.mxu0 0.0
      %562 = vmatmul.mubr.f32.gmra.mxu0 %v486
      %v563 = vpop.f32.mrf.mxu0
      %v564 = vadd.f32 0.0, %v563
      %v565 = vpop.f32.mrf.mxu0
      %566 = vmatprep.mubr.f32.mxu0 0.0
      %567 = vmatmul.mubr.f32.gmra.mxu0 %v489
      %v568 = vpop.f32.mrf.mxu0
      %v569 = vadd.f32 0.0, %v568
      %v570 = vpop.f32.mrf.mxu0
      %571 = vdwg.mxu0
      %v572 = vmul.f32 %v564, 0.35355338
      %v573 = vmul.f32 %v569, 0.35355338
      %vm574 = vcmask 130048
      %v575 = vsel %vm574, %v572, -inf
      %576 = vmax.xlane.f32.xlu0 %v575
      %v577 = vpop.xlane.xlu0 %576
      %v578 = vsel %vm574, %v573, -inf
      %579 = vmax.xlane.f32.xlu0 %v578
      %v580 = vpop.xlane.xlu0 %579
      %v581 = vsub.f32 %v572, %v577
      %v582 = vsub.f32 %v573, %v580
      %v583 = vmul.f32 %v581, 1.442695
      %v584 = vpow.pop %v583
      %v585 = vmul.f32 %v582, 1.442695
      %v586 = vpow.pop %v585
      %v587 = vsel %vm574, %v584, 0.0
      %588 = vadd.xlane.f32.xlu0 %v587
      %v589 = vpop.xlane.xlu0 %588
      %v590 = vsel %vm574, %v586, 0.0
      %591 = vadd.xlane.f32.xlu0 %v590
      %v592 = vpop.xlane.xlu0 %591
      %v593 = vrcp.pop %v589
      %v594 = vrcp.pop %v592
      %v595 = vmul.f32 %v584, %v593
      %v596 = vmul.f32 %v586, %v594
      %v598 = vsel %vm574, %v595, 0
      %v601 = vsel %vm574, %v596, 0
      %603 = vmatprep.subr.mxu0 0.0
      %604 = vmatpush1.msra.mxu0 0.0
      %605 = vmatprep.subr.mxu0 0.0
      %606 = vmatpush1.msra.mxu0 0.0
      %607 = vmatprep.subr.mxu0 0.0
      %608 = vmatpush1.msra.mxu0 0.0
      %609 = vmatprep.subr.mxu0 0.0
      %610 = vmatpush1.msra.mxu0 0.0
      %611 = vmatprep.subr.mxu0 0.0
      %612 = vmatpush1.msra.mxu0 0.0
      %613 = vmatprep.subr.mxu0 0.0
      %614 = vmatpush1.msra.mxu0 0.0
      %615 = vmatprep.subr.mxu0 0.0
      %616 = vmatpush1.msra.mxu0 0.0
      %617 = vmatprep.subr.mxu0 0.0
      %618 = vmatpush1.msra.mxu0 0.0
      %619 = vmatprep.subr.mxu0 0.0
      %620 = vmatpush1.msra.mxu0 0.0
      %621 = vmatprep.subr.mxu0 0.0
      %622 = vmatpush1.msra.mxu0 0.0
      %623 = vmatprep.subr.mxu0 0.0
      %624 = vmatpush1.msra.mxu0 0.0
      %625 = vmatprep.subr.mxu0 0.0
      %626 = vmatpush1.msra.mxu0 0.0
      %627 = vmatprep.subr.mxu0 0.0
      %628 = vmatpush1.msra.mxu0 0.0
      %629 = vmatprep.subr.mxu0 0.0
      %630 = vmatpush1.msra.mxu0 0.0
      %631 = vmatprep.subr.mxu0 0.0
      %632 = vmatpush1.msra.mxu0 %v479
      %633 = vmatprep.subr.mxu0 0.0
      %634 = vmatpush1.msra.mxu0 %v478
      %635 = vmatprep.subr.mxu0 0.0
      %636 = vmatpush2.msra.mxu0 0.0
      %637 = vmatprep.subr.mxu0 0.0
      %638 = vmatpush2.msra.mxu0 0.0
      %639 = vmatprep.subr.mxu0 0.0
      %640 = vmatpush2.msra.mxu0 0.0
      %641 = vmatprep.subr.mxu0 0.0
      %642 = vmatpush2.msra.mxu0 0.0
      %643 = vmatprep.subr.mxu0 0.0
      %644 = vmatpush2.msra.mxu0 0.0
      %645 = vmatprep.subr.mxu0 0.0
      %646 = vmatpush2.msra.mxu0 0.0
      %647 = vmatprep.subr.mxu0 0.0
      %648 = vmatpush2.msra.mxu0 0.0
      %649 = vmatprep.subr.mxu0 0.0
      %650 = vmatpush2.msra.mxu0 0.0
      %651 = vmatprep.subr.mxu0 0.0
      %652 = vmatpush2.msra.mxu0 0.0
      %653 = vmatprep.subr.mxu0 0.0
      %654 = vmatpush2.msra.mxu0 0.0
      %655 = vmatprep.subr.mxu0 0.0
      %656 = vmatpush2.msra.mxu0 0.0
      %657 = vmatprep.subr.mxu0 0.0
      %658 = vmatpush2.msra.mxu0 0.0
      %659 = vmatprep.subr.mxu0 0.0
      %660 = vmatpush2.msra.mxu0 0.0
      %661 = vmatprep.subr.mxu0 0.0
      %662 = vmatpush2.msra.mxu0 0.0
      %663 = vmatprep.subr.mxu0 0.0
      %664 = vmatpush2.msra.mxu0 0.0
      %665 = vmatprep.subr.mxu0 0.0
      %666 = vmatpush2.msra.mxu0 0.0
      %667 = vmatprep.mubr.f32.mxu0 0.0
      %668 = vmatmul.mubr.f32.gmra.mxu0 %v598
      %v669 = vpop.f32.mrf.mxu0
      %v670 = vadd.f32 0.0, %v669
      %v671 = vpop.f32.mrf.mxu0
      %672 = vmatprep.mubr.f32.mxu0 0.0
      %673 = vmatmul.mubr.f32.gmra.mxu0 %v601
      %v674 = vpop.f32.mrf.mxu0
      %v675 = vadd.f32 0.0, %v674
      %v676 = vpop.f32.mrf.mxu0
      %677 = vdwg.mxu0
      %678 = vrot.lane.b32.xlu0 %v474, 120
      %v679 = vpop.permute.xlu0 %678
      %680 = vrot.lane.b32.xlu0 %v475, 120
      %v681 = vpop.permute.xlu0 %680
      %682 = vrot.lane.b32.xlu0 %v476, 120
      %v683 = vpop.permute.xlu0 %682
      %684 = vrot.lane.b32.xlu0 %v477, 120
      %v685 = vpop.permute.xlu0 %684
      %v686 = vsel %vm484, %v679, 0
      %v688 = vsel %vm484, %v681, 0
      %v690 = vsel %vm484, %v683, 0
      %v692 = vsel %vm484, %v685, 0
      %694 = vmatprep.subr.mxu0 0.0
      %695 = vmatpush1.xpose.msra.mxu0 0.0
      %696 = vmatprep.subr.mxu0 0.0
      %697 = vmatpush1.xpose.msra.mxu0 0.0
      %698 = vmatprep.subr.mxu0 0.0
      %699 = vmatpush1.xpose.msra.mxu0 0.0
      %700 = vmatprep.subr.mxu0 0.0
      %701 = vmatpush1.xpose.msra.mxu0 0.0
      %702 = vmatprep.subr.mxu0 0.0
      %703 = vmatpush1.xpose.msra.mxu0 0.0
      %704 = vmatprep.subr.mxu0 0.0
      %705 = vmatpush1.xpose.msra.mxu0 0.0
      %706 = vmatprep.subr.mxu0 0.0
      %707 = vmatpush1.xpose.msra.mxu0 0.0
      %708 = vmatprep.subr.mxu0 0.0
      %709 = vmatpush1.xpose.msra.mxu0 0.0
      %710 = vmatprep.subr.mxu0 0.0
      %711 = vmatpush1.xpose.msra.mxu0 0.0
      %712 = vmatprep.subr.mxu0 0.0
      %713 = vmatpush1.xpose.msra.mxu0 0.0
      %714 = vmatprep.subr.mxu0 0.0
      %715 = vmatpush1.xpose.msra.mxu0 0.0
      %716 = vmatprep.subr.mxu0 0.0
      %717 = vmatpush1.xpose.msra.mxu0 0.0
      %718 = vmatprep.subr.mxu0 0.0
      %719 = vmatpush1.xpose.msra.mxu0 0.0
      %720 = vmatprep.subr.mxu0 0.0
      %721 = vmatpush1.xpose.msra.mxu0 0.0
      %722 = vmatprep.subr.mxu0 0.0
      %723 = vmatpush1.xpose.msra.mxu0 %v692
      %724 = vmatprep.subr.mxu0 0.0
      %725 = vmatpush1.xpose.msra.mxu0 %v690
      %726 = vmatprep.subr.mxu0 0.0
      %727 = vmatpush2.xpose.msra.mxu0 0.0
      %728 = vmatprep.subr.mxu0 0.0
      %729 = vmatpush2.xpose.msra.mxu0 0.0
      %730 = vmatprep.subr.mxu0 0.0
      %731 = vmatpush2.xpose.msra.mxu0 0.0
      %732 = vmatprep.subr.mxu0 0.0
      %733 = vmatpush2.xpose.msra.mxu0 0.0
      %734 = vmatprep.subr.mxu0 0.0
      %735 = vmatpush2.xpose.msra.mxu0 0.0
      %736 = vmatprep.subr.mxu0 0.0
      %737 = vmatpush2.xpose.msra.mxu0 0.0
      %738 = vmatprep.subr.mxu0 0.0
      %739 = vmatpush2.xpose.msra.mxu0 0.0
      %740 = vmatprep.subr.mxu0 0.0
      %741 = vmatpush2.xpose.msra.mxu0 0.0
      %742 = vmatprep.subr.mxu0 0.0
      %743 = vmatpush2.xpose.msra.mxu0 0.0
      %744 = vmatprep.subr.mxu0 0.0
      %745 = vmatpush2.xpose.msra.mxu0 0.0
      %746 = vmatprep.subr.mxu0 0.0
      %747 = vmatpush2.xpose.msra.mxu0 0.0
      %748 = vmatprep.subr.mxu0 0.0
      %749 = vmatpush2.xpose.msra.mxu0 0.0
      %750 = vmatprep.subr.mxu0 0.0
      %751 = vmatpush2.xpose.msra.mxu0 0.0
      %752 = vmatprep.subr.mxu0 0.0
      %753 = vmatpush2.xpose.msra.mxu0 0.0
      %754 = vmatprep.subr.mxu0 0.0
      %755 = vmatpush2.xpose.msra.mxu0 0.0
      %756 = vmatprep.subr.mxu0 0.0
      %757 = vmatpush2.xpose.msra.mxu0 0.0
      %758 = vmatprep.mubr.f32.mxu0 0.0
      %759 = vmatmul.mubr.f32.gmra.mxu0 %v686
      %v760 = vpop.f32.mrf.mxu0
      %v761 = vadd.f32 0.0, %v760
      %v762 = vpop.f32.mrf.mxu0
      %763 = vmatprep.mubr.f32.mxu0 0.0
      %764 = vmatmul.mubr.f32.gmra.mxu0 %v688
      %v765 = vpop.f32.mrf.mxu0
      %v766 = vadd.f32 0.0, %v765
      %v767 = vpop.f32.mrf.mxu0
      %768 = vdwg.mxu0
      %v769 = vmul.f32 %v761, 0.35355338
      %v770 = vmul.f32 %v766, 0.35355338
      %v771 = vsel %vm574, %v769, -inf
      %772 = vmax.xlane.f32.xlu0 %v771
      %v773 = vpop.xlane.xlu0 %772
      %v774 = vsel %vm574, %v770, -inf
      %775 = vmax.xlane.f32.xlu0 %v774
      %v776 = vpop.xlane.xlu0 %775
      %v777 = vsub.f32 %v769, %v773
      %v778 = vsub.f32 %v770, %v776
      %v779 = vmul.f32 %v777, 1.442695
      %v780 = vpow.pop %v779
      %v781 = vmul.f32 %v778, 1.442695
      %v782 = vpow.pop %v781
      %v783 = vsel %vm574, %v780, 0.0
      %784 = vadd.xlane.f32.xlu0 %v783
      %v785 = vpop.xlane.xlu0 %784
      %v786 = vsel %vm574, %v782, 0.0
      %787 = vadd.xlane.f32.xlu0 %v786
      %v788 = vpop.xlane.xlu0 %787
      %v789 = vrcp.pop %v785
      %v790 = vrcp.pop %v788
      %v791 = vmul.f32 %v780, %v789
      %v792 = vmul.f32 %v782, %v790
      %795 = vrot.lane.b32.xlu0 %v478, 120
      %v796 = vpop.permute.xlu0 %795
      %797 = vrot.lane.b32.xlu0 %v479, 120
      %v798 = vpop.permute.xlu0 %797
      %v802 = vsel %vm574, %v791, 0
      %v805 = vsel %vm574, %v792, 0
      %807 = vmatprep.subr.mxu0 0.0
      %808 = vmatpush1.msra.mxu0 0.0
      %809 = vmatprep.subr.mxu0 0.0
      %810 = vmatpush1.msra.mxu0 0.0
      %811 = vmatprep.subr.mxu0 0.0
      %812 = vmatpush1.msra.mxu0 0.0
      %813 = vmatprep.subr.mxu0 0.0
      %814 = vmatpush1.msra.mxu0 0.0
      %815 = vmatprep.subr.mxu0 0.0
      %816 = vmatpush1.msra.mxu0 0.0
      %817 = vmatprep.subr.mxu0 0.0
      %818 = vmatpush1.msra.mxu0 0.0
      %819 = vmatprep.subr.mxu0 0.0
      %820 = vmatpush1.msra.mxu0 0.0
      %821 = vmatprep.subr.mxu0 0.0
      %822 = vmatpush1.msra.mxu0 0.0
      %823 = vmatprep.subr.mxu0 0.0
      %824 = vmatpush1.msra.mxu0 0.0
      %825 = vmatprep.subr.mxu0 0.0
      %826 = vmatpush1.msra.mxu0 0.0
      %827 = vmatprep.subr.mxu0 0.0
      %828 = vmatpush1.msra.mxu0 0.0
      %829 = vmatprep.subr.mxu0 0.0
      %830 = vmatpush1.msra.mxu0 0.0
      %831 = vmatprep.subr.mxu0 0.0
      %832 = vmatpush1.msra.mxu0 0.0
      %833 = vmatprep.subr.mxu0 0.0
      %834 = vmatpush1.msra.mxu0 0.0
      %835 = vmatprep.subr.mxu0 0.0
      %836 = vmatpush1.msra.mxu0 %v798
      %837 = vmatprep.subr.mxu0 0.0
      %838 = vmatpush1.msra.mxu0 %v796
      %839 = vmatprep.subr.mxu0 0.0
      %840 = vmatpush2.msra.mxu0 0.0
      %841 = vmatprep.subr.mxu0 0.0
      %842 = vmatpush2.msra.mxu0 0.0
      %843 = vmatprep.subr.mxu0 0.0
      %844 = vmatpush2.msra.mxu0 0.0
      %845 = vmatprep.subr.mxu0 0.0
      %846 = vmatpush2.msra.mxu0 0.0
      %847 = vmatprep.subr.mxu0 0.0
      %848 = vmatpush2.msra.mxu0 0.0
      %849 = vmatprep.subr.mxu0 0.0
      %850 = vmatpush2.msra.mxu0 0.0
      %851 = vmatprep.subr.mxu0 0.0
      %852 = vmatpush2.msra.mxu0 0.0
      %853 = vmatprep.subr.mxu0 0.0
      %854 = vmatpush2.msra.mxu0 0.0
      %855 = vmatprep.subr.mxu0 0.0
      %856 = vmatpush2.msra.mxu0 0.0
      %857 = vmatprep.subr.mxu0 0.0
      %858 = vmatpush2.msra.mxu0 0.0
      %859 = vmatprep.subr.mxu0 0.0
      %860 = vmatpush2.msra.mxu0 0.0
      %861 = vmatprep.subr.mxu0 0.0
      %862 = vmatpush2.msra.mxu0 0.0
      %863 = vmatprep.subr.mxu0 0.0
      %864 = vmatpush2.msra.mxu0 0.0
      %865 = vmatprep.subr.mxu0 0.0
      %866 = vmatpush2.msra.mxu0 0.0
      %867 = vmatprep.subr.mxu0 0.0
      %868 = vmatpush2.msra.mxu0 0.0
      %869 = vmatprep.subr.mxu0 0.0
      %870 = vmatpush2.msra.mxu0 0.0
      %871 = vmatprep.mubr.f32.mxu0 0.0
      %872 = vmatmul.mubr.f32.gmra.mxu0 %v802
      %v873 = vpop.f32.mrf.mxu0
      %v874 = vadd.f32 0.0, %v873
      %v875 = vpop.f32.mrf.mxu0
      %876 = vmatprep.mubr.f32.mxu0 0.0
      %877 = vmatmul.mubr.f32.gmra.mxu0 %v805
      %v878 = vpop.f32.mrf.mxu0
      %v879 = vadd.f32 0.0, %v878
      %v880 = vpop.f32.mrf.mxu0
      %881 = vdwg.mxu0
      %v883 = vsel %vm484, %v874, 0
      %v886 = vsel %vm484, %v879, 0
      %888 = vmatprep.subr.mxu0 0.0
      %889 = vmatpush1.msra.mxu0 0.0
      %890 = vmatprep.subr.mxu0 0.0
      %891 = vmatpush1.msra.mxu0 0.0
      %892 = vmatprep.subr.mxu0 0.0
      %893 = vmatpush1.msra.mxu0 0.0
      %894 = vmatprep.subr.mxu0 0.0
      %895 = vmatpush1.msra.mxu0 0.0
      %896 = vmatprep.subr.mxu0 0.0
      %897 = vmatpush1.msra.mxu0 0.0
      %898 = vmatprep.subr.mxu0 0.0
      %899 = vmatpush1.msra.mxu0 0.0
      %900 = vmatprep.subr.mxu0 0.0
      %901 = vmatpush1.msra.mxu0 0.0
      %902 = vmatprep.subr.mxu0 0.0
      %903 = vmatpush1.msra.mxu0 0.0
      %904 = vmatprep.subr.mxu0 0.0
      %905 = vmatpush1.msra.mxu0 0.0
      %906 = vmatprep.subr.mxu0 0.0
      %907 = vmatpush1.msra.mxu0 0.0
      %908 = vmatprep.subr.mxu0 0.0
      %909 = vmatpush1.msra.mxu0 0.0
      %910 = vmatprep.subr.mxu0 0.0
      %911 = vmatpush1.msra.mxu0 0.0
      %912 = vmatprep.subr.mxu0 0.0
      %913 = vmatpush1.msra.mxu0 0.0
      %914 = vmatprep.subr.mxu0 0.0
      %915 = vmatpush1.msra.mxu0 0.0
      %916 = vmatprep.subr.mxu0 0.0
      %917 = vmatpush1.msra.mxu0 0.0
      %918 = vmatprep.subr.mxu0 0.0
      %919 = vmatpush1.msra.mxu0 %v481
      %920 = vmatprep.subr.mxu0 0.0
      %921 = vmatpush2.msra.mxu0 0.0
      %922 = vmatprep.subr.mxu0 0.0
      %923 = vmatpush2.msra.mxu0 0.0
      %924 = vmatprep.subr.mxu0 0.0
      %925 = vmatpush2.msra.mxu0 0.0
      %926 = vmatprep.subr.mxu0 0.0
      %927 = vmatpush2.msra.mxu0 0.0
      %928 = vmatprep.subr.mxu0 0.0
      %929 = vmatpush2.msra.mxu0 0.0
      %930 = vmatprep.subr.mxu0 0.0
      %931 = vmatpush2.msra.mxu0 0.0
      %932 = vmatprep.subr.mxu0 0.0
      %933 = vmatpush2.msra.mxu0 0.0
      %934 = vmatprep.subr.mxu0 0.0
      %935 = vmatpush2.msra.mxu0 0.0
      %936 = vmatprep.subr.mxu0 0.0
      %937 = vmatpush2.msra.mxu0 0.0
      %938 = vmatprep.subr.mxu0 0.0
      %939 = vmatpush2.msra.mxu0 0.0
      %940 = vmatprep.subr.mxu0 0.0
      %941 = vmatpush2.msra.mxu0 0.0
      %942 = vmatprep.subr.mxu0 0.0
      %943 = vmatpush2.msra.mxu0 0.0
      %944 = vmatprep.subr.mxu0 0.0
      %945 = vmatpush2.msra.mxu0 0.0
      %946 = vmatprep.subr.mxu0 0.0
      %947 = vmatpush2.msra.mxu0 0.0
      %948 = vmatprep.subr.mxu0 0.0
      %949 = vmatpush2.msra.mxu0 0.0
      %950 = vmatprep.subr.mxu0 0.0
      %951 = vmatpush2.msra.mxu0 0.0
      %952 = vmatprep.mubr.f32.mxu0 0.0
      %953 = vmatmul.mubr.f32.gmra.mxu0 %v883
      %v954 = vpop.f32.mrf.mxu0
      %v955 = vadd.f32 0.0, %v954
      %v956 = vpop.f32.mrf.mxu0
      %957 = vmatprep.mubr.f32.mxu0 0.0
      %958 = vmatmul.mubr.f32.gmra.mxu0 %v886
      %v959 = vpop.f32.mrf.mxu0
      %v960 = vadd.f32 0.0, %v959
      %v961 = vpop.f32.mrf.mxu0
      %962 = vdwg.mxu0
      %v964 = vsel %vm484, %v670, 0
      %v967 = vsel %vm484, %v675, 0
      %969 = vmatprep.subr.mxu0 0.0
      %970 = vmatpush1.msra.mxu0 0.0
      %971 = vmatprep.subr.mxu0 0.0
      %972 = vmatpush1.msra.mxu0 0.0
      %973 = vmatprep.subr.mxu0 0.0
      %974 = vmatpush1.msra.mxu0 0.0
      %975 = vmatprep.subr.mxu0 0.0
      %976 = vmatpush1.msra.mxu0 0.0
      %977 = vmatprep.subr.mxu0 0.0
      %978 = vmatpush1.msra.mxu0 0.0
      %979 = vmatprep.subr.mxu0 0.0
      %980 = vmatpush1.msra.mxu0 0.0
      %981 = vmatprep.subr.mxu0 0.0
      %982 = vmatpush1.msra.mxu0 0.0
      %983 = vmatprep.subr.mxu0 0.0
      %984 = vmatpush1.msra.mxu0 0.0
      %985 = vmatprep.subr.mxu0 0.0
      %986 = vmatpush1.msra.mxu0 0.0
      %987 = vmatprep.subr.mxu0 0.0
      %988 = vmatpush1.msra.mxu0 0.0
      %989 = vmatprep.subr.mxu0 0.0
      %990 = vmatpush1.msra.mxu0 0.0
      %991 = vmatprep.subr.mxu0 0.0
      %992 = vmatpush1.msra.mxu0 0.0
      %993 = vmatprep.subr.mxu0 0.0
      %994 = vmatpush1.msra.mxu0 0.0
      %995 = vmatprep.subr.mxu0 0.0
      %996 = vmatpush1.msra.mxu0 0.0
      %997 = vmatprep.subr.mxu0 0.0
      %998 = vmatpush1.msra.mxu0 0.0
      %999 = vmatprep.subr.mxu0 0.0
      %1000 = vmatpush1.msra.mxu0 %v480
      %1001 = vmatprep.subr.mxu0 0.0
      %1002 = vmatpush2.msra.mxu0 0.0
      %1003 = vmatprep.subr.mxu0 0.0
      %1004 = vmatpush2.msra.mxu0 0.0
      %1005 = vmatprep.subr.mxu0 0.0
      %1006 = vmatpush2.msra.mxu0 0.0
      %1007 = vmatprep.subr.mxu0 0.0
      %1008 = vmatpush2.msra.mxu0 0.0
      %1009 = vmatprep.subr.mxu0 0.0
      %1010 = vmatpush2.msra.mxu0 0.0
      %1011 = vmatprep.subr.mxu0 0.0
      %1012 = vmatpush2.msra.mxu0 0.0
      %1013 = vmatprep.subr.mxu0 0.0
      %1014 = vmatpush2.msra.mxu0 0.0
      %1015 = vmatprep.subr.mxu0 0.0
      %1016 = vmatpush2.msra.mxu0 0.0
      %1017 = vmatprep.subr.mxu0 0.0
      %1018 = vmatpush2.msra.mxu0 0.0
      %1019 = vmatprep.subr.mxu0 0.0
      %1020 = vmatpush2.msra.mxu0 0.0
      %1021 = vmatprep.subr.mxu0 0.0
      %1022 = vmatpush2.msra.mxu0 0.0
      %1023 = vmatprep.subr.mxu0 0.0
      %1024 = vmatpush2.msra.mxu0 0.0
      %1025 = vmatprep.subr.mxu0 0.0
      %1026 = vmatpush2.msra.mxu0 0.0
      %1027 = vmatprep.subr.mxu0 0.0
      %1028 = vmatpush2.msra.mxu0 0.0
      %1029 = vmatprep.subr.mxu0 0.0
      %1030 = vmatpush2.msra.mxu0 0.0
      %1031 = vmatprep.subr.mxu0 0.0
      %1032 = vmatpush2.msra.mxu0 0.0
      %1033 = vmatprep.mubr.f32.mxu0 0.0
      %1034 = vmatmul.mubr.f32.gmra.mxu0 %v964
      %v1035 = vpop.f32.mrf.mxu0
      %v1036 = vadd.f32 %v955, %v1035
      %v1037 = vpop.f32.mrf.mxu0
      %1038 = vmatprep.mubr.f32.mxu0 0.0
      %1039 = vmatmul.mubr.f32.gmra.mxu0 %v967
      %v1040 = vpop.f32.mrf.mxu0
      %v1041 = vadd.f32 %v960, %v1040
      %v1042 = vpop.f32.mrf.mxu0
      %1043 = vdwg.mxu0
      %1044 = vrot.lane.b32.xlu0 %v474, 112
      %v1045 = vpop.permute.xlu0 %1044
      %1046 = vrot.lane.b32.xlu0 %v475, 112
      %v1047 = vpop.permute.xlu0 %1046
      %1048 = vrot.lane.b32.xlu0 %v476, 112
      %v1049 = vpop.permute.xlu0 %1048
      %1050 = vrot.lane.b32.xlu0 %v477, 112
      %v1051 = vpop.permute.xlu0 %1050
      %v1052 = vsel %vm484, %v1045, 0
      %v1054 = vsel %vm484, %v1047, 0
      %v1056 = vsel %vm484, %v1049, 0
      %v1058 = vsel %vm484, %v1051, 0
      %1060 = vmatprep.subr.mxu0 0.0
      %1061 = vmatpush1.xpose.msra.mxu0 0.0
      %1062 = vmatprep.subr.mxu0 0.0
      %1063 = vmatpush1.xpose.msra.mxu0 0.0
      %1064 = vmatprep.subr.mxu0 0.0
      %1065 = vmatpush1.xpose.msra.mxu0 0.0
      %1066 = vmatprep.subr.mxu0 0.0
      %1067 = vmatpush1.xpose.msra.mxu0 0.0
      %1068 = vmatprep.subr.mxu0 0.0
      %1069 = vmatpush1.xpose.msra.mxu0 0.0
      %1070 = vmatprep.subr.mxu0 0.0
      %1071 = vmatpush1.xpose.msra.mxu0 0.0
      %1072 = vmatprep.subr.mxu0 0.0
      %1073 = vmatpush1.xpose.msra.mxu0 0.0
      %1074 = vmatprep.subr.mxu0 0.0
      %1075 = vmatpush1.xpose.msra.mxu0 0.0
      %1076 = vmatprep.subr.mxu0 0.0
      %1077 = vmatpush1.xpose.msra.mxu0 0.0
      %1078 = vmatprep.subr.mxu0 0.0
      %1079 = vmatpush1.xpose.msra.mxu0 0.0
      %1080 = vmatprep.subr.mxu0 0.0
      %1081 = vmatpush1.xpose.msra.mxu0 0.0
      %1082 = vmatprep.subr.mxu0 0.0
      %1083 = vmatpush1.xpose.msra.mxu0 0.0
      %1084 = vmatprep.subr.mxu0 0.0
      %1085 = vmatpush1.xpose.msra.mxu0 0.0
      %1086 = vmatprep.subr.mxu0 0.0
      %1087 = vmatpush1.xpose.msra.mxu0 0.0
      %1088 = vmatprep.subr.mxu0 0.0
      %1089 = vmatpush1.xpose.msra.mxu0 %v1058
      %1090 = vmatprep.subr.mxu0 0.0
      %1091 = vmatpush1.xpose.msra.mxu0 %v1056
      %1092 = vmatprep.subr.mxu0 0.0
      %1093 = vmatpush2.xpose.msra.mxu0 0.0
      %1094 = vmatprep.subr.mxu0 0.0
      %1095 = vmatpush2.xpose.msra.mxu0 0.0
      %1096 = vmatprep.subr.mxu0 0.0
      %1097 = vmatpush2.xpose.msra.mxu0 0.0
      %1098 = vmatprep.subr.mxu0 0.0
      %1099 = vmatpush2.xpose.msra.mxu0 0.0
      %1100 = vmatprep.subr.mxu0 0.0
      %1101 = vmatpush2.xpose.msra.mxu0 0.0
      %1102 = vmatprep.subr.mxu0 0.0
      %1103 = vmatpush2.xpose.msra.mxu0 0.0
      %1104 = vmatprep.subr.mxu0 0.0
      %1105 = vmatpush2.xpose.msra.mxu0 0.0
      %1106 = vmatprep.subr.mxu0 0.0
      %1107 = vmatpush2.xpose.msra.mxu0 0.0
      %1108 = vmatprep.subr.mxu0 0.0
      %1109 = vmatpush2.xpose.msra.mxu0 0.0
      %1110 = vmatprep.subr.mxu0 0.0
      %1111 = vmatpush2.xpose.msra.mxu0 0.0
      %1112 = vmatprep.subr.mxu0 0.0
      %1113 = vmatpush2.xpose.msra.mxu0 0.0
      %1114 = vmatprep.subr.mxu0 0.0
      %1115 = vmatpush2.xpose.msra.mxu0 0.0
      %1116 = vmatprep.subr.mxu0 0.0
      %1117 = vmatpush2.xpose.msra.mxu0 0.0
      %1118 = vmatprep.subr.mxu0 0.0
      %1119 = vmatpush2.xpose.msra.mxu0 0.0
      %1120 = vmatprep.subr.mxu0 0.0
      %1121 = vmatpush2.xpose.msra.mxu0 0.0
      %1122 = vmatprep.subr.mxu0 0.0
      %1123 = vmatpush2.xpose.msra.mxu0 0.0
      %1124 = vmatprep.mubr.f32.mxu0 0.0
      %1125 = vmatmul.mubr.f32.gmra.mxu0 %v1052
      %v1126 = vpop.f32.mrf.mxu0
      %v1127 = vadd.f32 0.0, %v1126
      %v1128 = vpop.f32.mrf.mxu0
      %1129 = vmatprep.mubr.f32.mxu0 0.0
      %1130 = vmatmul.mubr.f32.gmra.mxu0 %v1054
      %v1131 = vpop.f32.mrf.mxu0
      %v1132 = vadd.f32 0.0, %v1131
      %v1133 = vpop.f32.mrf.mxu0
      %1134 = vdwg.mxu0
      %v1135 = vmul.f32 %v1127, 0.35355338
      %v1136 = vmul.f32 %v1132, 0.35355338
      %v1137 = vsel %vm574, %v1135, -inf
      %1138 = vmax.xlane.f32.xlu0 %v1137
      %v1139 = vpop.xlane.xlu0 %1138
      %v1140 = vsel %vm574, %v1136, -inf
      %1141 = vmax.xlane.f32.xlu0 %v1140
      %v1142 = vpop.xlane.xlu0 %1141
      %v1143 = vsub.f32 %v1135, %v1139
      %v1144 = vsub.f32 %v1136, %v1142
      %v1145 = vmul.f32 %v1143, 1.442695
      %v1146 = vpow.pop %v1145
      %v1147 = vmul.f32 %v1144, 1.442695
      %v1148 = vpow.pop %v1147
      %v1149 = vsel %vm574, %v1146, 0.0
      %1150 = vadd.xlane.f32.xlu0 %v1149
      %v1151 = vpop.xlane.xlu0 %1150
      %v1152 = vsel %vm574, %v1148, 0.0
      %1153 = vadd.xlane.f32.xlu0 %v1152
      %v1154 = vpop.xlane.xlu0 %1153
      %v1155 = vrcp.pop %v1151
      %v1156 = vrcp.pop %v1154
      %v1157 = vmul.f32 %v1146, %v1155
      %v1158 = vmul.f32 %v1148, %v1156
      %1159 = vrot.lane.b32.xlu0 %v478, 112
      %v1160 = vpop.permute.xlu0 %1159
      %1161 = vrot.lane.b32.xlu0 %v479, 112
      %v1162 = vpop.permute.xlu0 %1161
      %v1166 = vsel %vm574, %v1157, 0
      %v1169 = vsel %vm574, %v1158, 0
      %1171 = vmatprep.subr.mxu0 0.0
      %1172 = vmatpush1.msra.mxu0 0.0
      %1173 = vmatprep.subr.mxu0 0.0
      %1174 = vmatpush1.msra.mxu0 0.0
      %1175 = vmatprep.subr.mxu0 0.0
      %1176 = vmatpush1.msra.mxu0 0.0
      %1177 = vmatprep.subr.mxu0 0.0
      %1178 = vmatpush1.msra.mxu0 0.0
      %1179 = vmatprep.subr.mxu0 0.0
      %1180 = vmatpush1.msra.mxu0 0.0
      %1181 = vmatprep.subr.mxu0 0.0
      %1182 = vmatpush1.msra.mxu0 0.0
      %1183 = vmatprep.subr.mxu0 0.0
      %1184 = vmatpush1.msra.mxu0 0.0
      %1185 = vmatprep.subr.mxu0 0.0
      %1186 = vmatpush1.msra.mxu0 0.0
      %1187 = vmatprep.subr.mxu0 0.0
      %1188 = vmatpush1.msra.mxu0 0.0
      %1189 = vmatprep.subr.mxu0 0.0
      %1190 = vmatpush1.msra.mxu0 0.0
      %1191 = vmatprep.subr.mxu0 0.0
      %1192 = vmatpush1.msra.mxu0 0.0
      %1193 = vmatprep.subr.mxu0 0.0
      %1194 = vmatpush1.msra.mxu0 0.0
      %1195 = vmatprep.subr.mxu0 0.0
      %1196 = vmatpush1.msra.mxu0 0.0
      %1197 = vmatprep.subr.mxu0 0.0
      %1198 = vmatpush1.msra.mxu0 0.0
      %1199 = vmatprep.subr.mxu0 0.0
      %1200 = vmatpush1.msra.mxu0 %v1162
      %1201 = vmatprep.subr.mxu0 0.0
      %1202 = vmatpush1.msra.mxu0 %v1160
      %1203 = vmatprep.subr.mxu0 0.0
      %1204 = vmatpush2.msra.mxu0 0.0
      %1205 = vmatprep.subr.mxu0 0.0
      %1206 = vmatpush2.msra.mxu0 0.0
      %1207 = vmatprep.subr.mxu0 0.0
      %1208 = vmatpush2.msra.mxu0 0.0
      %1209 = vmatprep.subr.mxu0 0.0
      %1210 = vmatpush2.msra.mxu0 0.0
      %1211 = vmatprep.subr.mxu0 0.0
      %1212 = vmatpush2.msra.mxu0 0.0
      %1213 = vmatprep.subr.mxu0 0.0
      %1214 = vmatpush2.msra.mxu0 0.0
      %1215 = vmatprep.subr.mxu0 0.0
      %1216 = vmatpush2.msra.mxu0 0.0
      %1217 = vmatprep.subr.mxu0 0.0
      %1218 = vmatpush2.msra.mxu0 0.0
      %1219 = vmatprep.subr.mxu0 0.0
      %1220 = vmatpush2.msra.mxu0 0.0
      %1221 = vmatprep.subr.mxu0 0.0
      %1222 = vmatpush2.msra.mxu0 0.0
      %1223 = vmatprep.subr.mxu0 0.0
      %1224 = vmatpush2.msra.mxu0 0.0
      %1225 = vmatprep.subr.mxu0 0.0
      %1226 = vmatpush2.msra.mxu0 0.0
      %1227 = vmatprep.subr.mxu0 0.0
      %1228 = vmatpush2.msra.mxu0 0.0
      %1229 = vmatprep.subr.mxu0 0.0
      %1230 = vmatpush2.msra.mxu0 0.0
      %1231 = vmatprep.subr.mxu0 0.0
      %1232 = vmatpush2.msra.mxu0 0.0
      %1233 = vmatprep.subr.mxu0 0.0
      %1234 = vmatpush2.msra.mxu0 0.0
      %1235 = vmatprep.mubr.f32.mxu0 0.0
      %1236 = vmatmul.mubr.f32.gmra.mxu0 %v1166
      %v1237 = vpop.f32.mrf.mxu0
      %v1238 = vadd.f32 0.0, %v1237
      %v1239 = vpop.f32.mrf.mxu0
      %1240 = vmatprep.mubr.f32.mxu0 0.0
      %1241 = vmatmul.mubr.f32.gmra.mxu0 %v1169
      %v1242 = vpop.f32.mrf.mxu0
      %v1243 = vadd.f32 0.0, %v1242
      %v1244 = vpop.f32.mrf.mxu0
      %1245 = vdwg.mxu0
      %v1247 = vsel %vm484, %v1238, 0
      %v1250 = vsel %vm484, %v1243, 0
      %1252 = vmatprep.subr.mxu0 0.0
      %1253 = vmatpush1.msra.mxu0 0.0
      %1254 = vmatprep.subr.mxu0 0.0
      %1255 = vmatpush1.msra.mxu0 0.0
      %1256 = vmatprep.subr.mxu0 0.0
      %1257 = vmatpush1.msra.mxu0 0.0
      %1258 = vmatprep.subr.mxu0 0.0
      %1259 = vmatpush1.msra.mxu0 0.0
      %1260 = vmatprep.subr.mxu0 0.0
      %1261 = vmatpush1.msra.mxu0 0.0
      %1262 = vmatprep.subr.mxu0 0.0
      %1263 = vmatpush1.msra.mxu0 0.0
      %1264 = vmatprep.subr.mxu0 0.0
      %1265 = vmatpush1.msra.mxu0 0.0
      %1266 = vmatprep.subr.mxu0 0.0
      %1267 = vmatpush1.msra.mxu0 0.0
      %1268 = vmatprep.subr.mxu0 0.0
      %1269 = vmatpush1.msra.mxu0 0.0
      %1270 = vmatprep.subr.mxu0 0.0
      %1271 = vmatpush1.msra.mxu0 0.0
      %1272 = vmatprep.subr.mxu0 0.0
      %1273 = vmatpush1.msra.mxu0 0.0
      %1274 = vmatprep.subr.mxu0 0.0
      %1275 = vmatpush1.msra.mxu0 0.0
      %1276 = vmatprep.subr.mxu0 0.0
      %1277 = vmatpush1.msra.mxu0 0.0
      %1278 = vmatprep.subr.mxu0 0.0
      %1279 = vmatpush1.msra.mxu0 0.0
      %1280 = vmatprep.subr.mxu0 0.0
      %1281 = vmatpush1.msra.mxu0 0.0
      %1282 = vmatprep.subr.mxu0 0.0
      %1283 = vmatpush1.msra.mxu0 %v482
      %1284 = vmatprep.subr.mxu0 0.0
      %1285 = vmatpush2.msra.mxu0 0.0
      %1286 = vmatprep.subr.mxu0 0.0
      %1287 = vmatpush2.msra.mxu0 0.0
      %1288 = vmatprep.subr.mxu0 0.0
      %1289 = vmatpush2.msra.mxu0 0.0
      %1290 = vmatprep.subr.mxu0 0.0
      %1291 = vmatpush2.msra.mxu0 0.0
      %1292 = vmatprep.subr.mxu0 0.0
      %1293 = vmatpush2.msra.mxu0 0.0
      %1294 = vmatprep.subr.mxu0 0.0
      %1295 = vmatpush2.msra.mxu0 0.0
      %1296 = vmatprep.subr.mxu0 0.0
      %1297 = vmatpush2.msra.mxu0 0.0
      %1298 = vmatprep.subr.mxu0 0.0
      %1299 = vmatpush2.msra.mxu0 0.0
      %1300 = vmatprep.subr.mxu0 0.0
      %1301 = vmatpush2.msra.mxu0 0.0
      %1302 = vmatprep.subr.mxu0 0.0
      %1303 = vmatpush2.msra.mxu0 0.0
      %1304 = vmatprep.subr.mxu0 0.0
      %1305 = vmatpush2.msra.mxu0 0.0
      %1306 = vmatprep.subr.mxu0 0.0
      %1307 = vmatpush2.msra.mxu0 0.0
      %1308 = vmatprep.subr.mxu0 0.0
      %1309 = vmatpush2.msra.mxu0 0.0
      %1310 = vmatprep.subr.mxu0 0.0
      %1311 = vmatpush2.msra.mxu0 0.0
      %1312 = vmatprep.subr.mxu0 0.0
      %1313 = vmatpush2.msra.mxu0 0.0
      %1314 = vmatprep.subr.mxu0 0.0
      %1315 = vmatpush2.msra.mxu0 0.0
      %1316 = vmatprep.mubr.f32.mxu0 0.0
      %1317 = vmatmul.mubr.f32.gmra.mxu0 %v1247
      %v1318 = vpop.f32.mrf.mxu0
      %v1319 = vadd.f32 0.0, %v1318
      %v1320 = vpop.f32.mrf.mxu0
      %1321 = vmatprep.mubr.f32.mxu0 0.0
      %1322 = vmatmul.mubr.f32.gmra.mxu0 %v1250
      %v1323 = vpop.f32.mrf.mxu0
      %v1324 = vadd.f32 0.0, %v1323
      %v1325 = vpop.f32.mrf.mxu0
      %1326 = vdwg.mxu0
      %v1327 = vadd.f32 %v1036, %v1319
      %v1328 = vadd.f32 %v1041, %v1324
      %1329 = vrot.lane.b32.xlu0 %v474, 104
      %v1330 = vpop.permute.xlu0 %1329
      %1331 = vrot.lane.b32.xlu0 %v475, 104
      %v1332 = vpop.permute.xlu0 %1331
      %1333 = vrot.lane.b32.xlu0 %v476, 104
      %v1334 = vpop.permute.xlu0 %1333
      %1335 = vrot.lane.b32.xlu0 %v477, 104
      %v1336 = vpop.permute.xlu0 %1335
      %v1337 = vsel %vm484, %v1330, 0
      %v1339 = vsel %vm484, %v1332, 0
      %v1341 = vsel %vm484, %v1334, 0
      %v1343 = vsel %vm484, %v1336, 0
      %1345 = vmatprep.subr.mxu0 0.0
      %1346 = vmatpush1.xpose.msra.mxu0 0.0
      %1347 = vmatprep.subr.mxu0 0.0
      %1348 = vmatpush1.xpose.msra.mxu0 0.0
      %1349 = vmatprep.subr.mxu0 0.0
      %1350 = vmatpush1.xpose.msra.mxu0 0.0
      %1351 = vmatprep.subr.mxu0 0.0
      %1352 = vmatpush1.xpose.msra.mxu0 0.0
      %1353 = vmatprep.subr.mxu0 0.0
      %1354 = vmatpush1.xpose.msra.mxu0 0.0
      %1355 = vmatprep.subr.mxu0 0.0
      %1356 = vmatpush1.xpose.msra.mxu0 0.0
      %1357 = vmatprep.subr.mxu0 0.0
      %1358 = vmatpush1.xpose.msra.mxu0 0.0
      %1359 = vmatprep.subr.mxu0 0.0
      %1360 = vmatpush1.xpose.msra.mxu0 0.0
      %1361 = vmatprep.subr.mxu0 0.0
      %1362 = vmatpush1.xpose.msra.mxu0 0.0
      %1363 = vmatprep.subr.mxu0 0.0
      %1364 = vmatpush1.xpose.msra.mxu0 0.0
      %1365 = vmatprep.subr.mxu0 0.0
      %1366 = vmatpush1.xpose.msra.mxu0 0.0
      %1367 = vmatprep.subr.mxu0 0.0
      %1368 = vmatpush1.xpose.msra.mxu0 0.0
      %1369 = vmatprep.subr.mxu0 0.0
      %1370 = vmatpush1.xpose.msra.mxu0 0.0
      %1371 = vmatprep.subr.mxu0 0.0
      %1372 = vmatpush1.xpose.msra.mxu0 0.0
      %1373 = vmatprep.subr.mxu0 0.0
      %1374 = vmatpush1.xpose.msra.mxu0 %v1343
      %1375 = vmatprep.subr.mxu0 0.0
      %1376 = vmatpush1.xpose.msra.mxu0 %v1341
      %1377 = vmatprep.subr.mxu0 0.0
      %1378 = vmatpush2.xpose.msra.mxu0 0.0
      %1379 = vmatprep.subr.mxu0 0.0
      %1380 = vmatpush2.xpose.msra.mxu0 0.0
      %1381 = vmatprep.subr.mxu0 0.0
      %1382 = vmatpush2.xpose.msra.mxu0 0.0
      %1383 = vmatprep.subr.mxu0 0.0
      %1384 = vmatpush2.xpose.msra.mxu0 0.0
      %1385 = vmatprep.subr.mxu0 0.0
      %1386 = vmatpush2.xpose.msra.mxu0 0.0
      %1387 = vmatprep.subr.mxu0 0.0
      %1388 = vmatpush2.xpose.msra.mxu0 0.0
      %1389 = vmatprep.subr.mxu0 0.0
      %1390 = vmatpush2.xpose.msra.mxu0 0.0
      %1391 = vmatprep.subr.mxu0 0.0
      %1392 = vmatpush2.xpose.msra.mxu0 0.0
      %1393 = vmatprep.subr.mxu0 0.0
      %1394 = vmatpush2.xpose.msra.mxu0 0.0
      %1395 = vmatprep.subr.mxu0 0.0
      %1396 = vmatpush2.xpose.msra.mxu0 0.0
      %1397 = vmatprep.subr.mxu0 0.0
      %1398 = vmatpush2.xpose.msra.mxu0 0.0
      %1399 = vmatprep.subr.mxu0 0.0
      %1400 = vmatpush2.xpose.msra.mxu0 0.0
      %1401 = vmatprep.subr.mxu0 0.0
      %1402 = vmatpush2.xpose.msra.mxu0 0.0
      %1403 = vmatprep.subr.mxu0 0.0
      %1404 = vmatpush2.xpose.msra.mxu0 0.0
      %1405 = vmatprep.subr.mxu0 0.0
      %1406 = vmatpush2.xpose.msra.mxu0 0.0
      %1407 = vmatprep.subr.mxu0 0.0
      %1408 = vmatpush2.xpose.msra.mxu0 0.0
      %1409 = vmatprep.mubr.f32.mxu0 0.0
      %1410 = vmatmul.mubr.f32.gmra.mxu0 %v1337
      %v1411 = vpop.f32.mrf.mxu0
      %v1412 = vadd.f32 0.0, %v1411
      %v1413 = vpop.f32.mrf.mxu0
      %1414 = vmatprep.mubr.f32.mxu0 0.0
      %1415 = vmatmul.mubr.f32.gmra.mxu0 %v1339
      %v1416 = vpop.f32.mrf.mxu0
      %v1417 = vadd.f32 0.0, %v1416
      %v1418 = vpop.f32.mrf.mxu0
      %1419 = vdwg.mxu0
      %v1420 = vmul.f32 %v1412, 0.35355338
      %v1421 = vmul.f32 %v1417, 0.35355338
      %v1422 = vsel %vm574, %v1420, -inf
      %1423 = vmax.xlane.f32.xlu0 %v1422
      %v1424 = vpop.xlane.xlu0 %1423
      %v1425 = vsel %vm574, %v1421, -inf
      %1426 = vmax.xlane.f32.xlu0 %v1425
      %v1427 = vpop.xlane.xlu0 %1426
      %v1428 = vsub.f32 %v1420, %v1424
      %v1429 = vsub.f32 %v1421, %v1427
      %v1430 = vmul.f32 %v1428, 1.442695
      %v1431 = vpow.pop %v1430
      %v1432 = vmul.f32 %v1429, 1.442695
      %v1433 = vpow.pop %v1432
      %v1434 = vsel %vm574, %v1431, 0.0
      %1435 = vadd.xlane.f32.xlu0 %v1434
      %v1436 = vpop.xlane.xlu0 %1435
      %v1437 = vsel %vm574, %v1433, 0.0
      %1438 = vadd.xlane.f32.xlu0 %v1437
      %v1439 = vpop.xlane.xlu0 %1438
      %v1440 = vrcp.pop %v1436
      %v1441 = vrcp.pop %v1439
      %v1442 = vmul.f32 %v1431, %v1440
      %v1443 = vmul.f32 %v1433, %v1441
      %1444 = vrot.lane.b32.xlu0 %v478, 104
      %v1445 = vpop.permute.xlu0 %1444
      %1446 = vrot.lane.b32.xlu0 %v479, 104
      %v1447 = vpop.permute.xlu0 %1446
      %v1451 = vsel %vm574, %v1442, 0
      %v1454 = vsel %vm574, %v1443, 0
      %1456 = vmatprep.subr.mxu0 0.0
      %1457 = vmatpush1.msra.mxu0 0.0
      %1458 = vmatprep.subr.mxu0 0.0
      %1459 = vmatpush1.msra.mxu0 0.0
      %1460 = vmatprep.subr.mxu0 0.0
      %1461 = vmatpush1.msra.mxu0 0.0
      %1462 = vmatprep.subr.mxu0 0.0
      %1463 = vmatpush1.msra.mxu0 0.0
      %1464 = vmatprep.subr.mxu0 0.0
      %1465 = vmatpush1.msra.mxu0 0.0
      %1466 = vmatprep.subr.mxu0 0.0
      %1467 = vmatpush1.msra.mxu0 0.0
      %1468 = vmatprep.subr.mxu0 0.0
      %1469 = vmatpush1.msra.mxu0 0.0
      %1470 = vmatprep.subr.mxu0 0.0
      %1471 = vmatpush1.msra.mxu0 0.0
      %1472 = vmatprep.subr.mxu0 0.0
      %1473 = vmatpush1.msra.mxu0 0.0
      %1474 = vmatprep.subr.mxu0 0.0
      %1475 = vmatpush1.msra.mxu0 0.0
      %1476 = vmatprep.subr.mxu0 0.0
      %1477 = vmatpush1.msra.mxu0 0.0
      %1478 = vmatprep.subr.mxu0 0.0
      %1479 = vmatpush1.msra.mxu0 0.0
      %1480 = vmatprep.subr.mxu0 0.0
      %1481 = vmatpush1.msra.mxu0 0.0
      %1482 = vmatprep.subr.mxu0 0.0
      %1483 = vmatpush1.msra.mxu0 0.0
      %1484 = vmatprep.subr.mxu0 0.0
      %1485 = vmatpush1.msra.mxu0 %v1447
      %1486 = vmatprep.subr.mxu0 0.0
      %1487 = vmatpush1.msra.mxu0 %v1445
      %1488 = vmatprep.subr.mxu0 0.0
      %1489 = vmatpush2.msra.mxu0 0.0
      %1490 = vmatprep.subr.mxu0 0.0
      %1491 = vmatpush2.msra.mxu0 0.0
      %1492 = vmatprep.subr.mxu0 0.0
      %1493 = vmatpush2.msra.mxu0 0.0
      %1494 = vmatprep.subr.mxu0 0.0
      %1495 = vmatpush2.msra.mxu0 0.0
      %1496 = vmatprep.subr.mxu0 0.0
      %1497 = vmatpush2.msra.mxu0 0.0
      %1498 = vmatprep.subr.mxu0 0.0
      %1499 = vmatpush2.msra.mxu0 0.0
      %1500 = vmatprep.subr.mxu0 0.0
      %1501 = vmatpush2.msra.mxu0 0.0
      %1502 = vmatprep.subr.mxu0 0.0
      %1503 = vmatpush2.msra.mxu0 0.0
      %1504 = vmatprep.subr.mxu0 0.0
      %1505 = vmatpush2.msra.mxu0 0.0
      %1506 = vmatprep.subr.mxu0 0.0
      %1507 = vmatpush2.msra.mxu0 0.0
      %1508 = vmatprep.subr.mxu0 0.0
      %1509 = vmatpush2.msra.mxu0 0.0
      %1510 = vmatprep.subr.mxu0 0.0
      %1511 = vmatpush2.msra.mxu0 0.0
      %1512 = vmatprep.subr.mxu0 0.0
      %1513 = vmatpush2.msra.mxu0 0.0
      %1514 = vmatprep.subr.mxu0 0.0
      %1515 = vmatpush2.msra.mxu0 0.0
      %1516 = vmatprep.subr.mxu0 0.0
      %1517 = vmatpush2.msra.mxu0 0.0
      %1518 = vmatprep.subr.mxu0 0.0
      %1519 = vmatpush2.msra.mxu0 0.0
      %1520 = vmatprep.mubr.f32.mxu0 0.0
      %1521 = vmatmul.mubr.f32.gmra.mxu0 %v1451
      %v1522 = vpop.f32.mrf.mxu0
      %v1523 = vadd.f32 0.0, %v1522
      %v1524 = vpop.f32.mrf.mxu0
      %1525 = vmatprep.mubr.f32.mxu0 0.0
      %1526 = vmatmul.mubr.f32.gmra.mxu0 %v1454
      %v1527 = vpop.f32.mrf.mxu0
      %v1528 = vadd.f32 0.0, %v1527
      %v1529 = vpop.f32.mrf.mxu0
      %1530 = vdwg.mxu0
      %v1532 = vsel %vm484, %v1523, 0
      %v1535 = vsel %vm484, %v1528, 0
      %1537 = vmatprep.subr.mxu0 0.0
      %1538 = vmatpush1.msra.mxu0 0.0
      %1539 = vmatprep.subr.mxu0 0.0
      %1540 = vmatpush1.msra.mxu0 0.0
      %1541 = vmatprep.subr.mxu0 0.0
      %1542 = vmatpush1.msra.mxu0 0.0
      %1543 = vmatprep.subr.mxu0 0.0
      %1544 = vmatpush1.msra.mxu0 0.0
      %1545 = vmatprep.subr.mxu0 0.0
      %1546 = vmatpush1.msra.mxu0 0.0
      %1547 = vmatprep.subr.mxu0 0.0
      %1548 = vmatpush1.msra.mxu0 0.0
      %1549 = vmatprep.subr.mxu0 0.0
      %1550 = vmatpush1.msra.mxu0 0.0
      %1551 = vmatprep.subr.mxu0 0.0
      %1552 = vmatpush1.msra.mxu0 0.0
      %1553 = vmatprep.subr.mxu0 0.0
      %1554 = vmatpush1.msra.mxu0 0.0
      %1555 = vmatprep.subr.mxu0 0.0
      %1556 = vmatpush1.msra.mxu0 0.0
      %1557 = vmatprep.subr.mxu0 0.0
      %1558 = vmatpush1.msra.mxu0 0.0
      %1559 = vmatprep.subr.mxu0 0.0
      %1560 = vmatpush1.msra.mxu0 0.0
      %1561 = vmatprep.subr.mxu0 0.0
      %1562 = vmatpush1.msra.mxu0 0.0
      %1563 = vmatprep.subr.mxu0 0.0
      %1564 = vmatpush1.msra.mxu0 0.0
      %1565 = vmatprep.subr.mxu0 0.0
      %1566 = vmatpush1.msra.mxu0 0.0
      %1567 = vmatprep.subr.mxu0 0.0
      %1568 = vmatpush1.msra.mxu0 %v483
      %1569 = vmatprep.subr.mxu0 0.0
      %1570 = vmatpush2.msra.mxu0 0.0
      %1571 = vmatprep.subr.mxu0 0.0
      %1572 = vmatpush2.msra.mxu0 0.0
      %1573 = vmatprep.subr.mxu0 0.0
      %1574 = vmatpush2.msra.mxu0 0.0
      %1575 = vmatprep.subr.mxu0 0.0
      %1576 = vmatpush2.msra.mxu0 0.0
      %1577 = vmatprep.subr.mxu0 0.0
      %1578 = vmatpush2.msra.mxu0 0.0
      %1579 = vmatprep.subr.mxu0 0.0
      %1580 = vmatpush2.msra.mxu0 0.0
      %1581 = vmatprep.subr.mxu0 0.0
      %1582 = vmatpush2.msra.mxu0 0.0
      %1583 = vmatprep.subr.mxu0 0.0
      %1584 = vmatpush2.msra.mxu0 0.0
      %1585 = vmatprep.subr.mxu0 0.0
      %1586 = vmatpush2.msra.mxu0 0.0
      %1587 = vmatprep.subr.mxu0 0.0
      %1588 = vmatpush2.msra.mxu0 0.0
      %1589 = vmatprep.subr.mxu0 0.0
      %1590 = vmatpush2.msra.mxu0 0.0
      %1591 = vmatprep.subr.mxu0 0.0
      %1592 = vmatpush2.msra.mxu0 0.0
      %1593 = vmatprep.subr.mxu0 0.0
      %1594 = vmatpush2.msra.mxu0 0.0
      %1595 = vmatprep.subr.mxu0 0.0
      %1596 = vmatpush2.msra.mxu0 0.0
      %1597 = vmatprep.subr.mxu0 0.0
      %1598 = vmatpush2.msra.mxu0 0.0
      %1599 = vmatprep.subr.mxu0 0.0
      %1600 = vmatpush2.msra.mxu0 0.0
      %1601 = vmatprep.mubr.f32.mxu0 0.0
      %1602 = vmatmul.mubr.f32.gmra.mxu0 %v1532
      %v1603 = vpop.f32.mrf.mxu0
      %v1604 = vadd.f32 0.0, %v1603
      %v1605 = vpop.f32.mrf.mxu0
      %1606 = vmatprep.mubr.f32.mxu0 0.0
      %1607 = vmatmul.mubr.f32.gmra.mxu0 %v1535
      %v1608 = vpop.f32.mrf.mxu0
      %v1609 = vadd.f32 0.0, %v1608
      %v1610 = vpop.f32.mrf.mxu0
      %1611 = vdwg.mxu0
      %v1612 = vadd.f32 %v1327, %v1604
      %v1613 = vadd.f32 %v1328, %v1609
      %v1614 = vld [vmem:[%s5] sm:$0x1]
      %v1616 = vlaneseq
      %v1617 = vshrl.u32 %v1616, 7
      %v1618 = vsub.s32 0, %v1617
      %v1619 = vrot.slane %v1614, %v1618
      %v1621 = vadd.f32 %v1612, %v1619
      %v1622 = vadd.f32 %v1613, %v1619
      %v1623 = vld [vmem:[%s468] sm:$0xff]
      %v1624 = vld [vmem:[%s468 + $0x8] sm:$0xff]
      %v1625 = vadd.f32 %v1621, %v1623
      %v1626 = vadd.f32 %v1622, %v1624
      %v1627 = vld [vmem:[%s6] sm:$0x1]
      %v1628 = vld [vmem:[%s7] sm:$0x1]
      %vm1629 = vcmask 261120
      %v1630 = vsel %vm1629, %v1625, 0.0
      %1631 = vadd.xlane.f32.xlu0 %v1630
      %v1632 = vpop.xlane.xlu0 %1631
      %v1633 = vsel %vm1629, %v1626, 0.0
      %1634 = vadd.xlane.f32.xlu0 %v1633
      %v1635 = vpop.xlane.xlu0 %1634
      %v1636 = vrcp.pop 32.0
      %v1637 = vmul.f32 %v1632, %v1636
      %v1638 = vmul.f32 %v1635, %v1636
      %v1639 = vsub.f32 %v1625, %v1637
      %v1640 = vsub.f32 %v1626, %v1638
      %v1641 = vmul.f32 %v1639, %v1639
      %v1642 = vmul.f32 %v1640, %v1640
      %v1643 = vsel %vm1629, %v1641, 0.0
      %1644 = vadd.xlane.f32.xlu0 %v1643
      %v1645 = vpop.xlane.xlu0 %1644
      %v1646 = vsel %vm1629, %v1642, 0.0
      %1647 = vadd.xlane.f32.xlu0 %v1646
      %v1648 = vpop.xlane.xlu0 %1647
      %v1649 = vmul.f32 %v1645, %v1636
      %v1650 = vmul.f32 %v1648, %v1636
      %v1651 = vadd.f32 %v1649, 1e-05
      %v1652 = vadd.f32 %v1650, 1e-05
      %v1653 = vrsqrt.pop %v1651
      %v1654 = vrsqrt.pop %v1652
      %v1655 = vmul.f32 %v1639, %v1653
      %v1656 = vmul.f32 %v1640, %v1654
      %v1658 = vlaneseq
      %v1659 = vshrl.u32 %v1658, 7
      %v1660 = vsub.s32 0, %v1659
      %v1661 = vrot.slane %v1627, %v1660
      %v1663 = vmul.f32 %v1655, %v1661
      %v1664 = vmul.f32 %v1656, %v1661
      %v1666 = vlaneseq
      %v1667 = vshrl.u32 %v1666, 7
      %v1668 = vsub.s32 0, %v1667
      %v1669 = vrot.slane %v1628, %v1668
      %v1671 = vadd.f32 %v1663, %v1669
      %v1672 = vadd.f32 %v1664, %v1669
      %v1673 = vld [vmem:[%s8] sm:$0xff]
      %v1674 = vld [vmem:[%s8 + $0x8] sm:$0xff]
      %v1675 = vld [vmem:[%s8 + $0x10] sm:$0xff]
      %v1676 = vld [vmem:[%s8 + $0x18] sm:$0xff]
      %v1677 = vld [vmem:[%s9] sm:$0x1]
      %v1679 = vlaneseq
      %v1680 = vshrl.u32 %v1679, 7
      %v1681 = vsub.s32 0, %v1680
      %v1682 = vrot.slane %v1677, %v1681
      %v1685 = vsel %vm1629, %v1671, 0
      %v1688 = vsel %vm1629, %v1672, 0
      %1690 = vmatprep.subr.mxu0 0.0
      %1691 = vmatpush1.msra.mxu0 0.0
      %1692 = vmatprep.subr.mxu0 0.0
      %1693 = vmatpush1.msra.mxu0 0.0
      %1694 = vmatprep.subr.mxu0 0.0
      %1695 = vmatpush1.msra.mxu0 0.0
      %1696 = vmatprep.subr.mxu0 0.0
      %1697 = vmatpush1.msra.mxu0 0.0
      %1698 = vmatprep.subr.mxu0 0.0
      %1699 = vmatpush1.msra.mxu0 0.0
      %1700 = vmatprep.subr.mxu0 0.0
      %1701 = vmatpush1.msra.mxu0 0.0
      %1702 = vmatprep.subr.mxu0 0.0
      %1703 = vmatpush1.msra.mxu0 0.0
      %1704 = vmatprep.subr.mxu0 0.0
      %1705 = vmatpush1.msra.mxu0 0.0
      %1706 = vmatprep.subr.mxu0 0.0
      %1707 = vmatpush1.msra.mxu0 0.0
      %1708 = vmatprep.subr.mxu0 0.0
      %1709 = vmatpush1.msra.mxu0 0.0
      %1710 = vmatprep.subr.mxu0 0.0
      %1711 = vmatpush1.msra.mxu0 0.0
      %1712 = vmatprep.subr.mxu0 0.0
      %1713 = vmatpush1.msra.mxu0 0.0
      %1714 = vmatprep.subr.mxu0 0.0
      %1715 = vmatpush1.msra.mxu0 %v1676
      %1716 = vmatprep.subr.mxu0 0.0
      %1717 = vmatpush1.msra.mxu0 %v1675
      %1718 = vmatprep.subr.mxu0 0.0
      %1719 = vmatpush1.msra.mxu0 %v1674
      %1720 = vmatprep.subr.mxu0 0.0
      %1721 = vmatpush1.msra.mxu0 %v1673
      %1722 = vmatprep.subr.mxu0 0.0
      %1723 = vmatpush2.msra.mxu0 0.0
      %1724 = vmatprep.subr.mxu0 0.0
      %1725 = vmatpush2.msra.mxu0 0.0
      %1726 = vmatprep.subr.mxu0 0.0
      %1727 = vmatpush2.msra.mxu0 0.0
      %1728 = vmatprep.subr.mxu0 0.0
      %1729 = vmatpush2.msra.mxu0 0.0
      %1730 = vmatprep.subr.mxu0 0.0
      %1731 = vmatpush2.msra.mxu0 0.0
      %1732 = vmatprep.subr.mxu0 0.0
      %1733 = vmatpush2.msra.mxu0 0.0
      %1734 = vmatprep.subr.mxu0 0.0
      %1735 = vmatpush2.msra.mxu0 0.0
      %1736 = vmatprep.subr.mxu0 0.0
      %1737 = vmatpush2.msra.mxu0 0.0
      %1738 = vmatprep.subr.mxu0 0.0
      %1739 = vmatpush2.msra.mxu0 0.0
      %1740 = vmatprep.subr.mxu0 0.0
      %1741 = vmatpush2.msra.mxu0 0.0
      %1742 = vmatprep.subr.mxu0 0.0
      %1743 = vmatpush2.msra.mxu0 0.0
      %1744 = vmatprep.subr.mxu0 0.0
      %1745 = vmatpush2.msra.mxu0 0.0
      %1746 = vmatprep.subr.mxu0 0.0
      %1747 = vmatpush2.msra.mxu0 0.0
      %1748 = vmatprep.subr.mxu0 0.0
      %1749 = vmatpush2.msra.mxu0 0.0
      %1750 = vmatprep.subr.mxu0 0.0
      %1751 = vmatpush2.msra.mxu0 0.0
      %1752 = vmatprep.subr.mxu0 0.0
      %1753 = vmatpush2.msra.mxu0 0.0
      %1754 = vmatprep.mubr.f32.mxu0 0.0
      %1755 = vmatmul.mubr.f32.gmra.mxu0 %v1685
      %v1756 = vpop.f32.mrf.mxu0
      %v1757 = vadd.f32 %v1682, %v1756
      %v1758 = vpop.f32.mrf.mxu0
      %1759 = vmatprep.mubr.f32.mxu0 0.0
      %1760 = vmatmul.mubr.f32.gmra.mxu0 %v1688
      %v1761 = vpop.f32.mrf.mxu0
      %v1762 = vadd.f32 %v1682, %v1761
      %v1763 = vpop.f32.mrf.mxu0
      %1764 = vdwg.mxu0
      %v1765 = vmax.f32 %v1757, 0.0
      %v1766 = vmax.f32 %v1762, 0.0
      %v1767 = vld [vmem:[%s10] sm:$0xff]
      %v1768 = vld [vmem:[%s10 + $0x8] sm:$0xff]
      %v1769 = vld [vmem:[%s10 + $0x10] sm:$0xff]
      %v1770 = vld [vmem:[%s10 + $0x18] sm:$0xff]
      %v1771 = vld [vmem:[%s10 + $0x20] sm:$0xff]
      %v1772 = vld [vmem:[%s10 + $0x28] sm:$0xff]
      %v1773 = vld [vmem:[%s10 + $0x30] sm:$0xff]
      %v1774 = vld [vmem:[%s10 + $0x38] sm:$0xff]
      %v1775 = vld [vmem:[%s11] sm:$0x1]
      %v1777 = vlaneseq
      %v1778 = vshrl.u32 %v1777, 7
      %v1779 = vsub.s32 0, %v1778
      %v1780 = vrot.slane %v1775, %v1779
      %vm1782 = vcmask 523264
      %v1784 = vsel %vm1782, %v1765, 0
      %v1787 = vsel %vm1782, %v1766, 0
      %1789 = vmatprep.subr.mxu0 0.0
      %1790 = vmatpush1.msra.mxu0 0.0
      %1791 = vmatprep.subr.mxu0 0.0
      %1792 = vmatpush1.msra.mxu0 0.0
      %1793 = vmatprep.subr.mxu0 0.0
      %1794 = vmatpush1.msra.mxu0 0.0
      %1795 = vmatprep.subr.mxu0 0.0
      %1796 = vmatpush1.msra.mxu0 0.0
      %1797 = vmatprep.subr.mxu0 0.0
      %1798 = vmatpush1.msra.mxu0 0.0
      %1799 = vmatprep.subr.mxu0 0.0
      %1800 = vmatpush1.msra.mxu0 0.0
      %1801 = vmatprep.subr.mxu0 0.0
      %1802 = vmatpush1.msra.mxu0 0.0
      %1803 = vmatprep.subr.mxu0 0.0
      %1804 = vmatpush1.msra.mxu0 0.0
      %1805 = vmatprep.subr.mxu0 0.0
      %1806 = vmatpush1.msra.mxu0 %v1774
      %1807 = vmatprep.subr.mxu0 0.0
      %1808 = vmatpush1.msra.mxu0 %v1773
      %1809 = vmatprep.subr.mxu0 0.0
      %1810 = vmatpush1.msra.mxu0 %v1772
      %1811 = vmatprep.subr.mxu0 0.0
      %1812 = vmatpush1.msra.mxu0 %v1771
      %1813 = vmatprep.subr.mxu0 0.0
      %1814 = vmatpush1.msra.mxu0 %v1770
      %1815 = vmatprep.subr.mxu0 0.0
      %1816 = vmatpush1.msra.mxu0 %v1769
      %1817 = vmatprep.subr.mxu0 0.0
      %1818 = vmatpush1.msra.mxu0 %v1768
      %1819 = vmatprep.subr.mxu0 0.0
      %1820 = vmatpush1.msra.mxu0 %v1767
      %1821 = vmatprep.subr.mxu0 0.0
      %1822 = vmatpush2.msra.mxu0 0.0
      %1823 = vmatprep.subr.mxu0 0.0
      %1824 = vmatpush2.msra.mxu0 0.0
      %1825 = vmatprep.subr.mxu0 0.0
      %1826 = vmatpush2.msra.mxu0 0.0
      %1827 = vmatprep.subr.mxu0 0.0
      %1828 = vmatpush2.msra.mxu0 0.0
      %1829 = vmatprep.subr.mxu0 0.0
      %1830 = vmatpush2.msra.mxu0 0.0
      %1831 = vmatprep.subr.mxu0 0.0
      %1832 = vmatpush2.msra.mxu0 0.0
      %1833 = vmatprep.subr.mxu0 0.0
      %1834 = vmatpush2.msra.mxu0 0.0
      %1835 = vmatprep.subr.mxu0 0.0
      %1836 = vmatpush2.msra.mxu0 0.0
      %1837 = vmatprep.subr.mxu0 0.0
      %1838 = vmatpush2.msra.mxu0 0.0
      %1839 = vmatprep.subr.mxu0 0.0
      %1840 = vmatpush2.msra.mxu0 0.0
      %1841 = vmatprep.subr.mxu0 0.0
      %1842 = vmatpush2.msra.mxu0 0.0
      %1843 = vmatprep.subr.mxu0 0.0
      %1844 = vmatpush2.msra.mxu0 0.0
      %1845 = vmatprep.subr.mxu0 0.0
      %1846 = vmatpush2.msra.mxu0 0.0
      %1847 = vmatprep.subr.mxu0 0.0
      %1848 = vmatpush2.msra.mxu0 0.0
      %1849 = vmatprep.subr.mxu0 0.0
      %1850 = vmatpush2.msra.mxu0 0.0
      %1851 = vmatprep.subr.mxu0 0.0
      %1852 = vmatpush2.msra.mxu0 0.0
      %1853 = vmatprep.mubr.f32.mxu0 0.0
      %1854 = vmatmul.mubr.f32.gmra.mxu0 %v1784
      %v1855 = vpop.f32.mrf.mxu0
      %v1856 = vadd.f32 %v1780, %v1855
      %v1857 = vpop.f32.mrf.mxu0
      %1858 = vmatprep.mubr.f32.mxu0 0.0
      %1859 = vmatmul.mubr.f32.gmra.mxu0 %v1787
      %v1860 = vpop.f32.mrf.mxu0
      %v1861 = vadd.f32 %v1780, %v1860
      %v1862 = vpop.f32.mrf.mxu0
      %1863 = vdwg.mxu0
      %v1864 = vadd.f32 %v1671, %v1856
      %v1865 = vadd.f32 %v1672, %v1861
      %1866 = vst.msk [vmem:[%s473] sm:$0xff] %vm1629, %v1864
      %1867 = vst.msk [vmem:[%s473 + $0x8] sm:$0xff] %vm1629, %v1865
      %p1868 = scmp.lt.s32.totalorder %s23, 1
      %s1869 = scalar_select %p1868, %s23, 1
      %s1870 = smul.addr %s1869, 2
      %s1871 = smul.addr %s1870, 8
      %s1872 = scalar_lea.vmem %s12, %s1871
      // Predicated region
      $region69: #{transformer_forward.15} parent=67 // pred_check
        %p1873 = pneg %p313
      $region70: #{transformer_forward.15} parent=67 // pred_check_branch
        %1875 = sbr.rel (%p1873) target = $region72
      $region71: #{transformer_forward.15} parent=67 // pred_region
        _
      $region72: #{transformer_forward.15} parent=67 // pred_fallthru
        _
    $region68: #{transformer_forward.15} parent=5 // pred_fallthru
      _
    %p1876 = scmp.le.s32.totalorder 2, %s18
    // Predicated region
    $region73: #{transformer_forward.15} parent=5 // pred_check
      %p1877 = pneg %p1876
    $region74: #{transformer_forward.15} parent=5 // pred_check_branch
      %1879 = sbr.rel (%p1877) target = $region76
    $region75: #{transformer_forward.15} parent=5 // pred_region
      %s1880 = ssub.s32 %s18, 2
      // Predicated region
      $region77: #{transformer_forward.15} parent=75 // pred_check
        %p1881 = pneg %p319
      $region78: #{transformer_forward.15} parent=75 // pred_check_branch
        %1883 = sbr.rel (%p1881) target = $region80
      $region79: #{transformer_forward.15} parent=75 // pred_region
        %p1884 = scmp.lt.s32.totalorder %s24, 1
        %s1885 = scalar_select %p1884, %s24, 1
        %s1886 = smul.addr %s1885, 2
        %s1887 = smul.addr %s1886, 8
        %s1888 = scalar_lea.vmem %s12, %s1887
      $region80: #{transformer_forward.15} parent=75 // pred_fallthru
        _
    $region76: #{transformer_forward.15} parent=5 // pred_fallthru
      _
  $region6: #{transformer_forward.15} parent=0 // loop_footer
    %s22 = sadd.s32 1, %s18
  $region7: #{transformer_forward.15} parent=0 // loop_footer_branch
    %17 = sbr.rel target = $region3
  $region8: #{transformer_forward.15} parent=0 // loop_exit
    _

// kernel: transformer_forward.19
$region0: #{transformer_forward.19}
  #allocation0 [shape = 'u32[]', space=smem, size = 0x4, offset = 0x4, fixed_abs, tag = 'smem constant byte address 0x4 - core index']
  #allocation1 [shape = 'u32[144,128]{1,0:T(1,128)}', space=vmem, size = 0x12000, scoped, tag = 'internal scratch']
  %s0 = inlined_call_operand.vmem [shape: f32[16,32], index: 0, kind: input, shape index: {}]
  %s1 = inlined_call_operand.vmem [shape: f32[16,32], index: 1, kind: input, shape index: {}]
  %s2 = inlined_call_operand.vmem [shape: f32[1,32], index: 2, kind: input, shape index: {}]
  %s3 = inlined_call_operand.vmem [shape: f32[1,32], index: 3, kind: input, shape index: {}]
  %s4 = inlined_call_operand.vmem [shape: f32[32,64], index: 4, kind: input, shape index: {}]
  %s5 = inlined_call_operand.vmem [shape: f32[32,32], index: 5, kind: input, shape index: {}]
  %s6 = inlined_call_operand.vmem [shape: f32[1,64], index: 6, kind: input, shape index: {}]
  %s7 = inlined_call_operand.vmem [shape: f32[1,32], index: 7, kind: input, shape index: {}]
  %s8 = inlined_call_operand.vmem [shape: f32[16,32], index: 8, kind: output, shape index: {0}]
  %s9 = inlined_call_operand.vmem [shape: f32[16,32], index: 9, kind: output, shape index: {1}]
  %s10 = inlined_call_operand.vmem [shape: f32[16,32], index: 10, kind: output, shape index: {2}]
  %s11 = inlined_call_operand.vmem [shape: f32[16,32], index: 11, kind: output, shape index: {3}]
  %12 = xla_tuple %s8, %s9, %s10, %s11
  %s13 = sld [smem:[#allocation0]]
  $region66: #{transformer_forward.19} parent=0
    _
  %s15 = ssub.s32 1, %s13
  %s16 = scalar_select 0, %s15, %s13
  // Predicated region
  $region2: #{transformer_forward.19} parent=0 // pred_check
    _
  $region3: #{transformer_forward.19} parent=0 // pred_check_branch
    %18 = sbr.rel (0) target = $region5
  $region4: #{transformer_forward.19} parent=0 // pred_region
    _
  $region5: #{transformer_forward.19} parent=0 // pred_fallthru
    _
  // Predicated region
  $region6: #{transformer_forward.19} parent=0 // pred_check
    _
  $region7: #{transformer_forward.19} parent=0 // pred_check_branch
    %20 = sbr.rel (0) target = $region9
  $region8: #{transformer_forward.19} parent=0 // pred_region
    _
  $region9: #{transformer_forward.19} parent=0 // pred_fallthru
    _
  // Predicated region
  $region10: #{transformer_forward.19} parent=0 // pred_check
    _
  $region11: #{transformer_forward.19} parent=0 // pred_check_branch
    %22 = sbr.rel (0) target = $region13
  $region12: #{transformer_forward.19} parent=0 // pred_region
    _
  $region13: #{transformer_forward.19} parent=0 // pred_fallthru
    _
  // Predicated region
  $region14: #{transformer_forward.19} parent=0 // pred_check
    _
  $region15: #{transformer_forward.19} parent=0 // pred_check_branch
    %24 = sbr.rel (0) target = $region17
  $region16: #{transformer_forward.19} parent=0 // pred_region
    _
  $region17: #{transformer_forward.19} parent=0 // pred_fallthru
    _
  // Predicated region
  $region18: #{transformer_forward.19} parent=0 // pred_check
    _
  $region19: #{transformer_forward.19} parent=0 // pred_check_branch
    %26 = sbr.rel (0) target = $region21
  $region20: #{transformer_forward.19} parent=0 // pred_region
    _
  $region21: #{transformer_forward.19} parent=0 // pred_fallthru
    _
  // Predicated region
  $region22: #{transformer_forward.19} parent=0 // pred_check
    _
  $region23: #{transformer_forward.19} parent=0 // pred_check_branch
    %28 = sbr.rel (0) target = $region25
  $region24: #{transformer_forward.19} parent=0 // pred_region
    _
  $region25: #{transformer_forward.19} parent=0 // pred_fallthru
    _
  // Predicated region
  $region26: #{transformer_forward.19} parent=0 // pred_check
    _
  $region27: #{transformer_forward.19} parent=0 // pred_check_branch
    %30 = sbr.rel (0) target = $region29
  $region28: #{transformer_forward.19} parent=0 // pred_region
    _
  $region29: #{transformer_forward.19} parent=0 // pred_fallthru
    _
  // Predicated region
  $region30: #{transformer_forward.19} parent=0 // pred_check
    _
  $region31: #{transformer_forward.19} parent=0 // pred_check_branch
    %32 = sbr.rel (0) target = $region33
  $region32: #{transformer_forward.19} parent=0 // pred_region
    _
  $region33: #{transformer_forward.19} parent=0 // pred_fallthru
    _
  %v33 = vld [vmem:[%s0] sm:$0xff]
  %v34 = vld [vmem:[%s0 + $0x8] sm:$0xff]
  %v35 = vld [vmem:[%s2] sm:$0x1]
  %v36 = vld [vmem:[%s3] sm:$0x1]
  %vm37 = vcmask 261120
  %v38 = vsel %vm37, %v33, 0.0
  %39 = vadd.xlane.f32.xlu0 %v38
  %v40 = vpop.xlane.xlu0 %39
  %v41 = vsel %vm37, %v34, 0.0
  %42 = vadd.xlane.f32.xlu0 %v41
  %v43 = vpop.xlane.xlu0 %42
  %v44 = vrcp.pop 32.0
  %v45 = vmul.f32 %v40, %v44
  %v46 = vmul.f32 %v43, %v44
  %v47 = vsub.f32 %v33, %v45
  %v48 = vsub.f32 %v34, %v46
  %v49 = vmul.f32 %v47, %v47
  %v50 = vmul.f32 %v48, %v48
  %v51 = vsel %vm37, %v49, 0.0
  %52 = vadd.xlane.f32.xlu0 %v51
  %v53 = vpop.xlane.xlu0 %52
  %v54 = vsel %vm37, %v50, 0.0
  %55 = vadd.xlane.f32.xlu0 %v54
  %v56 = vpop.xlane.xlu0 %55
  %v57 = vmul.f32 %v53, %v44
  %v58 = vmul.f32 %v56, %v44
  %v59 = vadd.f32 %v57, 1e-05
  %v60 = vadd.f32 %v58, 1e-05
  %v61 = vrsqrt.pop %v59
  %v62 = vrsqrt.pop %v60
  %v63 = vmul.f32 %v47, %v61
  %v64 = vmul.f32 %v48, %v62
  %v66 = vlaneseq
  %v67 = vshrl.u32 %v66, 7
  %v68 = vsub.s32 0, %v67
  %v69 = vrot.slane %v35, %v68
  %v71 = vmul.f32 %v63, %v69
  %v72 = vmul.f32 %v64, %v69
  %v74 = vlaneseq
  %v75 = vshrl.u32 %v74, 7
  %v76 = vsub.s32 0, %v75
  %v77 = vrot.slane %v36, %v76
  %v79 = vadd.f32 %v71, %v77
  %v80 = vadd.f32 %v72, %v77
  %v81 = vld [vmem:[%s1] sm:$0xff]
  %v82 = vld [vmem:[%s1 + $0x8] sm:$0xff]
  %v83 = vadd.f32 %v79, %v81
  %v84 = vadd.f32 %v80, %v82
  %v85 = vld [vmem:[%s4] sm:$0xff]
  %v86 = vld [vmem:[%s4 + $0x8] sm:$0xff]
  %v87 = vld [vmem:[%s4 + $0x10] sm:$0xff]
  %v88 = vld [vmem:[%s4 + $0x18] sm:$0xff]
  %v89 = vld [vmem:[%s6] sm:$0x1]
  %v91 = vlaneseq
  %v92 = vshrl.u32 %v91, 7
  %v93 = vsub.s32 0, %v92
  %v94 = vrot.slane %v89, %v93
  %v97 = vsel %vm37, %v83, 0
  %v100 = vsel %vm37, %v84, 0
  %102 = vmatprep.subr.mxu0 0.0
  %103 = vmatpush1.msra.mxu0 0.0
  %104 = vmatprep.subr.mxu0 0.0
  %105 = vmatpush1.msra.mxu0 0.0
  %106 = vmatprep.subr.mxu0 0.0
  %107 = vmatpush1.msra.mxu0 0.0
  %108 = vmatprep.subr.mxu0 0.0
  %109 = vmatpush1.msra.mxu0 0.0
  %110 = vmatprep.subr.mxu0 0.0
  %111 = vmatpush1.msra.mxu0 0.0
  %112 = vmatprep.subr.mxu0 0.0
  %113 = vmatpush1.msra.mxu0 0.0
  %114 = vmatprep.subr.mxu0 0.0
  %115 = vmatpush1.msra.mxu0 0.0
  %116 = vmatprep.subr.mxu0 0.0
  %117 = vmatpush1.msra.mxu0 0.0
  %118 = vmatprep.subr.mxu0 0.0
  %119 = vmatpush1.msra.mxu0 0.0
  %120 = vmatprep.subr.mxu0 0.0
  %121 = vmatpush1.msra.mxu0 0.0
  %122 = vmatprep.subr.mxu0 0.0
  %123 = vmatpush1.msra.mxu0 0.0
  %124 = vmatprep.subr.mxu0 0.0
  %125 = vmatpush1.msra.mxu0 0.0
  %126 = vmatprep.subr.mxu0 0.0
  %127 = vmatpush1.msra.mxu0 %v88
  %128 = vmatprep.subr.mxu0 0.0
  %129 = vmatpush1.msra.mxu0 %v87
  %130 = vmatprep.subr.mxu0 0.0
  %131 = vmatpush1.msra.mxu0 %v86
  %132 = vmatprep.subr.mxu0 0.0
  %133 = vmatpush1.msra.mxu0 %v85
  %134 = vmatprep.subr.mxu0 0.0
  %135 = vmatpush2.msra.mxu0 0.0
  %136 = vmatprep.subr.mxu0 0.0
  %137 = vmatpush2.msra.mxu0 0.0
  %138 = vmatprep.subr.mxu0 0.0
  %139 = vmatpush2.msra.mxu0 0.0
  %140 = vmatprep.subr.mxu0 0.0
  %141 = vmatpush2.msra.mxu0 0.0
  %142 = vmatprep.subr.mxu0 0.0
  %143 = vmatpush2.msra.mxu0 0.0
  %144 = vmatprep.subr.mxu0 0.0
  %145 = vmatpush2.msra.mxu0 0.0
  %146 = vmatprep.subr.mxu0 0.0
  %147 = vmatpush2.msra.mxu0 0.0
  %148 = vmatprep.subr.mxu0 0.0
  %149 = vmatpush2.msra.mxu0 0.0
  %150 = vmatprep.subr.mxu0 0.0
  %151 = vmatpush2.msra.mxu0 0.0
  %152 = vmatprep.subr.mxu0 0.0
  %153 = vmatpush2.msra.mxu0 0.0
  %154 = vmatprep.subr.mxu0 0.0
  %155 = vmatpush2.msra.mxu0 0.0
  %156 = vmatprep.subr.mxu0 0.0
  %157 = vmatpush2.msra.mxu0 0.0
  %158 = vmatprep.subr.mxu0 0.0
  %159 = vmatpush2.msra.mxu0 0.0
  %160 = vmatprep.subr.mxu0 0.0
  %161 = vmatpush2.msra.mxu0 0.0
  %162 = vmatprep.subr.mxu0 0.0
  %163 = vmatpush2.msra.mxu0 0.0
  %164 = vmatprep.subr.mxu0 0.0
  %165 = vmatpush2.msra.mxu0 0.0
  %166 = vmatprep.mubr.f32.mxu0 0.0
  %167 = vmatmul.mubr.f32.gmra.mxu0 %v97
  %v168 = vpop.f32.mrf.mxu0
  %v169 = vadd.f32 %v94, %v168
  %v170 = vpop.f32.mrf.mxu0
  %171 = vmatprep.mubr.f32.mxu0 0.0
  %172 = vmatmul.mubr.f32.gmra.mxu0 %v100
  %v173 = vpop.f32.mrf.mxu0
  %v174 = vadd.f32 %v94, %v173
  %v175 = vpop.f32.mrf.mxu0
  %176 = vdwg.mxu0
  %v177 = vld [vmem:[%s5] sm:$0xff]
  %v178 = vld [vmem:[%s5 + $0x8] sm:$0xff]
  %v179 = vld [vmem:[%s5 + $0x10] sm:$0xff]
  %v180 = vld [vmem:[%s5 + $0x18] sm:$0xff]
  %v181 = vld [vmem:[%s7] sm:$0x1]
  %v183 = vlaneseq
  %v184 = vshrl.u32 %v183, 7
  %v185 = vsub.s32 0, %v184
  %v186 = vrot.slane %v181, %v185
  %v189 = vsel %vm37, %v79, 0
  %v192 = vsel %vm37, %v80, 0
  %194 = vmatprep.subr.mxu0 0.0
  %195 = vmatpush1.msra.mxu0 0.0
  %196 = vmatprep.subr.mxu0 0.0
  %197 = vmatpush1.msra.mxu0 0.0
  %198 = vmatprep.subr.mxu0 0.0
  %199 = vmatpush1.msra.mxu0 0.0
  %200 = vmatprep.subr.mxu0 0.0
  %201 = vmatpush1.msra.mxu0 0.0
  %202 = vmatprep.subr.mxu0 0.0
  %203 = vmatpush1.msra.mxu0 0.0
  %204 = vmatprep.subr.mxu0 0.0
  %205 = vmatpush1.msra.mxu0 0.0
  %206 = vmatprep.subr.mxu0 0.0
  %207 = vmatpush1.msra.mxu0 0.0
  %208 = vmatprep.subr.mxu0 0.0
  %209 = vmatpush1.msra.mxu0 0.0
  %210 = vmatprep.subr.mxu0 0.0
  %211 = vmatpush1.msra.mxu0 0.0
  %212 = vmatprep.subr.mxu0 0.0
  %213 = vmatpush1.msra.mxu0 0.0
  %214 = vmatprep.subr.mxu0 0.0
  %215 = vmatpush1.msra.mxu0 0.0
  %216 = vmatprep.subr.mxu0 0.0
  %217 = vmatpush1.msra.mxu0 0.0
  %218 = vmatprep.subr.mxu0 0.0
  %219 = vmatpush1.msra.mxu0 %v180
  %220 = vmatprep.subr.mxu0 0.0
  %221 = vmatpush1.msra.mxu0 %v179
  %222 = vmatprep.subr.mxu0 0.0
  %223 = vmatpush1.msra.mxu0 %v178
  %224 = vmatprep.subr.mxu0 0.0
  %225 = vmatpush1.msra.mxu0 %v177
  %226 = vmatprep.subr.mxu0 0.0
  %227 = vmatpush2.msra.mxu0 0.0
  %228 = vmatprep.subr.mxu0 0.0
  %229 = vmatpush2.msra.mxu0 0.0
  %230 = vmatprep.subr.mxu0 0.0
  %231 = vmatpush2.msra.mxu0 0.0
  %232 = vmatprep.subr.mxu0 0.0
  %233 = vmatpush2.msra.mxu0 0.0
  %234 = vmatprep.subr.mxu0 0.0
  %235 = vmatpush2.msra.mxu0 0.0
  %236 = vmatprep.subr.mxu0 0.0
  %237 = vmatpush2.msra.mxu0 0.0
  %238 = vmatprep.subr.mxu0 0.0
  %239 = vmatpush2.msra.mxu0 0.0
  %240 = vmatprep.subr.mxu0 0.0
  %241 = vmatpush2.msra.mxu0 0.0
  %242 = vmatprep.subr.mxu0 0.0
  %243 = vmatpush2.msra.mxu0 0.0
  %244 = vmatprep.subr.mxu0 0.0
  %245 = vmatpush2.msra.mxu0 0.0
  %246 = vmatprep.subr.mxu0 0.0
  %247 = vmatpush2.msra.mxu0 0.0
  %248 = vmatprep.subr.mxu0 0.0
  %249 = vmatpush2.msra.mxu0 0.0
  %250 = vmatprep.subr.mxu0 0.0
  %251 = vmatpush2.msra.mxu0 0.0
  %252 = vmatprep.subr.mxu0 0.0
  %253 = vmatpush2.msra.mxu0 0.0
  %254 = vmatprep.subr.mxu0 0.0
  %255 = vmatpush2.msra.mxu0 0.0
  %256 = vmatprep.subr.mxu0 0.0
  %257 = vmatpush2.msra.mxu0 0.0
  %258 = vmatprep.mubr.f32.mxu0 0.0
  %259 = vmatmul.mubr.f32.gmra.mxu0 %v189
  %v260 = vpop.f32.mrf.mxu0
  %v261 = vadd.f32 %v186, %v260
  %v262 = vpop.f32.mrf.mxu0
  %263 = vmatprep.mubr.f32.mxu0 0.0
  %264 = vmatmul.mubr.f32.gmra.mxu0 %v192
  %v265 = vpop.f32.mrf.mxu0
  %v266 = vadd.f32 %v186, %v265
  %v267 = vpop.f32.mrf.mxu0
  %268 = vdwg.mxu0
  %269 = vst.msk [vmem:[%s8] sm:$0xff] %vm37, %v79
  %270 = vst.msk [vmem:[%s8 + $0x8] sm:$0xff] %vm37, %v80
  %271 = vst.msk [vmem:[%s9] sm:$0xff] %vm37, %v169
  %272 = vst.msk [vmem:[%s9 + $0x8] sm:$0xff] %vm37, %v174
  %275 = vrot.lane.b32.xlu0 %v169, 96
  %v276 = vpop.permute.xlu0 %275
  %277 = vrot.lane.b32.xlu0 %v174, 96
  %v278 = vpop.permute.xlu0 %277
  %281 = vst.msk [vmem:[%s10] sm:$0xff] %vm37, %v276
  %282 = vst.msk [vmem:[%s10 + $0x8] sm:$0xff] %vm37, %v278
  %283 = vst.msk [vmem:[%s11] sm:$0xff] %vm37, %v261
  %284 = vst.msk [vmem:[%s11 + $0x8] sm:$0xff] %vm37, %v266
  // Predicated region
  $region34: #{transformer_forward.19} parent=0 // pred_check
    _
  $region35: #{transformer_forward.19} parent=0 // pred_check_branch
    %286 = sbr.rel (0) target = $region37
  $region36: #{transformer_forward.19} parent=0 // pred_region
    _
  $region37: #{transformer_forward.19} parent=0 // pred_fallthru
    _
  // Predicated region
  $region38: #{transformer_forward.19} parent=0 // pred_check
    _
  $region39: #{transformer_forward.19} parent=0 // pred_check_branch
    %288 = sbr.rel (0) target = $region41
  $region40: #{transformer_forward.19} parent=0 // pred_region
    _
  $region41: #{transformer_forward.19} parent=0 // pred_fallthru
    _
  // Predicated region
  $region42: #{transformer_forward.19} parent=0 // pred_check
    _
  $region43: #{transformer_forward.19} parent=0 // pred_check_branch
    %290 = sbr.rel (0) target = $region45
  $region44: #{transformer_forward.19} parent=0 // pred_region
    _
  $region45: #{transformer_forward.19} parent=0 // pred_fallthru
    _
  // Predicated region
  $region46: #{transformer_forward.19} parent=0 // pred_check
    _
  $region47: #{transformer_forward.19} parent=0 // pred_check_branch
    %292 = sbr.rel (0) target = $region49
  $region48: #{transformer_forward.19} parent=0 // pred_region
    _
  $region49: #{transformer_forward.19} parent=0 // pred_fallthru
    _
  // Predicated region
  $region50: #{transformer_forward.19} parent=0 // pred_check
    _
  $region51: #{transformer_forward.19} parent=0 // pred_check_branch
    %294 = sbr.rel (0) target = $region53
  $region52: #{transformer_forward.19} parent=0 // pred_region
    _
  $region53: #{transformer_forward.19} parent=0 // pred_fallthru
    _
  // Predicated region
  $region54: #{transformer_forward.19} parent=0 // pred_check
    _
  $region55: #{transformer_forward.19} parent=0 // pred_check_branch
    %296 = sbr.rel (0) target = $region57
  $region56: #{transformer_forward.19} parent=0 // pred_region
    _
  $region57: #{transformer_forward.19} parent=0 // pred_fallthru
    _
  // Predicated region
  $region58: #{transformer_forward.19} parent=0 // pred_check
    _
  $region59: #{transformer_forward.19} parent=0 // pred_check_branch
    %298 = sbr.rel (0) target = $region61
  $region60: #{transformer_forward.19} parent=0 // pred_region
    _
  $region61: #{transformer_forward.19} parent=0 // pred_fallthru
    _
  // Predicated region
  $region62: #{transformer_forward.19} parent=0 // pred_check
    _
  $region63: #{transformer_forward.19} parent=0 // pred_check_branch
    %300 = sbr.rel (0) target = $region65
  $region64: #{transformer_forward.19} parent=0 // pred_region
    _
  $region65: #{transformer_forward.19} parent=0 // pred_fallthru
    _

// kernel: transformer_forward.27
$region0: #{transformer_forward.27}
  #allocation0 [shape = 'u32[]', space=smem, size = 0x4, offset = 0x4, fixed_abs, tag = 'smem constant byte address 0x4 - core index']
  #allocation1 [shape = 'u32[144,128]{1,0:T(1,128)}', space=vmem, size = 0x12000, scoped, tag = 'internal scratch']
  %s0 = inlined_call_operand.vmem [shape: f32[16,32], index: 0, kind: input, shape index: {}]
  %s1 = inlined_call_operand.vmem [shape: f32[1,32], index: 1, kind: input, shape index: {}]
  %s2 = inlined_call_operand.vmem [shape: f32[1,32], index: 2, kind: input, shape index: {}]
  %s3 = inlined_call_operand.hbm [shape: f32[16,32], index: 3, kind: output, shape index: {}]
  %s4 = sld [smem:[#allocation0]]
  $region22: #{transformer_forward.27} parent=0
    _
  %s6 = ssub.s32 1, %s4
  %s7 = scalar_select 0, %s6, %s4
  $region1: #{transformer_forward.27} parent=0
    #allocation2 [shape = 'u8[8192]{0}', space=vmem, size = 0x2000, scoped, tag = 'output window, operand 0, single buffered']
    #allocation3 [shape = 's32[1]{0}', space=sflag, size = 0x4, scoped, tag = 'scoped memory for transformer_forward.27']
    %8 = vsyncpa [#allocation3], 0
    // Predicated region
    $region2: #{transformer_forward.27} parent=1 // pred_check
      _
    $region3: #{transformer_forward.27} parent=1 // pred_check_branch
      %10 = sbr.rel (0) target = $region5
    $region4: #{transformer_forward.27} parent=1 // pred_region
      _
    $region5: #{transformer_forward.27} parent=1 // pred_fallthru
      _
    // Predicated region
    $region6: #{transformer_forward.27} parent=1 // pred_check
      _
    $region7: #{transformer_forward.27} parent=1 // pred_check_branch
      %12 = sbr.rel (0) target = $region9
    $region8: #{transformer_forward.27} parent=1 // pred_region
      _
    $region9: #{transformer_forward.27} parent=1 // pred_fallthru
      _
    // Predicated region
    $region10: #{transformer_forward.27} parent=1 // pred_check
      _
    $region11: #{transformer_forward.27} parent=1 // pred_check_branch
      %14 = sbr.rel (0) target = $region13
    $region12: #{transformer_forward.27} parent=1 // pred_region
      _
    $region13: #{transformer_forward.27} parent=1 // pred_fallthru
      _
    %v15 = vld [vmem:[%s0] sm:$0xff]
    %v16 = vld [vmem:[%s0 + $0x8] sm:$0xff]
    %v17 = vld [vmem:[%s1] sm:$0x1]
    %v18 = vld [vmem:[%s2] sm:$0x1]
    %vm19 = vcmask 261120
    %v20 = vsel %vm19, %v15, 0.0
    %21 = vadd.xlane.f32.xlu0 %v20
    %v22 = vpop.xlane.xlu0 %21
    %v23 = vsel %vm19, %v16, 0.0
    %24 = vadd.xlane.f32.xlu0 %v23
    %v25 = vpop.xlane.xlu0 %24
    %v26 = vrcp.pop 32.0
    %v27 = vmul.f32 %v22, %v26
    %v28 = vmul.f32 %v25, %v26
    %v29 = vsub.f32 %v15, %v27
    %v30 = vsub.f32 %v16, %v28
    %v31 = vmul.f32 %v29, %v29
    %v32 = vmul.f32 %v30, %v30
    %v33 = vsel %vm19, %v31, 0.0
    %34 = vadd.xlane.f32.xlu0 %v33
    %v35 = vpop.xlane.xlu0 %34
    %v36 = vsel %vm19, %v32, 0.0
    %37 = vadd.xlane.f32.xlu0 %v36
    %v38 = vpop.xlane.xlu0 %37
    %v39 = vmul.f32 %v35, %v26
    %v40 = vmul.f32 %v38, %v26
    %v41 = vadd.f32 %v39, 1e-05
    %v42 = vadd.f32 %v40, 1e-05
    %v43 = vrsqrt.pop %v41
    %v44 = vrsqrt.pop %v42
    %v45 = vmul.f32 %v29, %v43
    %v46 = vmul.f32 %v30, %v44
    %v48 = vlaneseq
    %v49 = vshrl.u32 %v48, 7
    %v50 = vsub.s32 0, %v49
    %v51 = vrot.slane %v17, %v50
    %v53 = vmul.f32 %v45, %v51
    %v54 = vmul.f32 %v46, %v51
    %v56 = vlaneseq
    %v57 = vshrl.u32 %v56, 7
    %v58 = vsub.s32 0, %v57
    %v59 = vrot.slane %v18, %v58
    %v61 = vadd.f32 %v53, %v59
    %v62 = vadd.f32 %v54, %v59
    %63 = vst.msk [vmem:[#allocation2] sm:$0xff] %vm19, %v61
    %64 = vst.msk [vmem:[#allocation2 + $0x8] sm:$0xff] %vm19, %v62
    // Predicated region
    $region14: #{transformer_forward.27} parent=1 // pred_check
      _
    $region15: #{transformer_forward.27} parent=1 // pred_check_branch
      %66 = sbr.rel (0) target = $region17
    $region16: #{transformer_forward.27} parent=1 // pred_region
      %s68 = ssub.s32 256, 256
      %69 = vsyncadd [#allocation3], %s68
      %s70 = sshll.u32 [#allocation2], 4
      %s71 = int_to_ptr.vmem [resolvable:$true] %s70
      %76 = dma.vmem_to_hbm [thread:$0]  %s71, 256, %s3, [#allocation3], 128, 128, 8
    $region17: #{transformer_forward.27} parent=1 // pred_fallthru
      _
    // Predicated region
    $region18: #{transformer_forward.27} parent=1 // pred_check
      _
    $region19: #{transformer_forward.27} parent=1 // pred_check_branch
      %78 = sbr.rel (0) target = $region21
    $region20: #{transformer_forward.27} parent=1 // pred_region
      %79 = dma.done [#allocation3], 256
    $region21: #{transformer_forward.27} parent=1 // pred_fallthru
      _
    %80 = vsyncpa [#allocation3], 1

// kernel: transformer_forward.20
$region0: #{transformer_forward.20}
  #allocation0 [shape = 'u32[]', space=smem, size = 0x4, offset = 0x4, fixed_abs, tag = 'smem constant byte address 0x4 - core index']
  #allocation1 [shape = 'u32[144,128]{1,0:T(1,128)}', space=vmem, size = 0x12000, scoped, tag = 'internal scratch']
  %s0 = inlined_call_operand.vmem [shape: f32[2,8,32], index: 0, kind: input, shape index: {}]
  %s1 = inlined_call_operand.vmem [shape: f32[2,8,32], index: 1, kind: input, shape index: {}]
  %s2 = inlined_call_operand.vmem [shape: f32[2,8,32], index: 2, kind: input, shape index: {}]
  %s3 = inlined_call_operand.vmem [shape: f32[2,8,32], index: 3, kind: input, shape index: {}]
  %s4 = inlined_call_operand.vmem [shape: f32[32,32], index: 4, kind: input, shape index: {}]
  %s5 = inlined_call_operand.vmem [shape: f32[1,32], index: 5, kind: input, shape index: {}]
  %s6 = inlined_call_operand.vmem [shape: f32[1,32], index: 6, kind: input, shape index: {}]
  %s7 = inlined_call_operand.vmem [shape: f32[1,32], index: 7, kind: input, shape index: {}]
  %s8 = inlined_call_operand.vmem [shape: f32[2,8,32], index: 8, kind: input, shape index: {}]
  %s9 = inlined_call_operand.vmem [shape: f32[32,32], index: 9, kind: input, shape index: {}]
  %s10 = inlined_call_operand.vmem [shape: f32[1,32], index: 10, kind: input, shape index: {}]
  %s11 = inlined_call_operand.vmem [shape: f32[2,8,32], index: 11, kind: output, shape index: {0}]
  %s12 = inlined_call_operand.vmem [shape: f32[2,8,32], index: 12, kind: output, shape index: {1}]
  %13 = xla_tuple %s11, %s12
  %s14 = sld [smem:[#allocation0]]
  $region85: #{transformer_forward.20} parent=0
    _
  %s16 = ssub.s32 1, %s14
  %s17 = scalar_select 0, %s16, %s14
  loop: start=0, step=1, limit=4
  $region2: #{transformer_forward.20} parent=0 // loop_pre_header
    _
  $region3: #{transformer_forward.20} parent=0 // loop_header
    %s19 = sphi 0, %s23
    %p20 = scmp.ge.s32.totalorder %s19, 4
    %s29 = sphi 0, %s31
    %s32 = sphi 0, %s29
    %s33 = sphi 0, %s32
    %s49 = sphi 0, %s33
    %s55 = sphi 0, %s57
    %s58 = sphi 0, %s55
    %s59 = sphi 0, %s58
    %s75 = sphi 0, %s59
    %s81 = sphi 0, %s83
    %s84 = sphi 0, %s81
    %s85 = sphi 0, %s84
    %s101 = sphi 0, %s85
    %s107 = sphi 0, %s109
    %s110 = sphi 0, %s107
    %s111 = sphi 0, %s110
    %s127 = sphi 0, %s111
    %s131 = sphi 0, %s131
    %s133 = sphi 0, %s131
    %s134 = sphi 0, %s133
    %s148 = sphi 0, %s134
    %s152 = sphi 0, %s152
    %s154 = sphi 0, %s152
    %s155 = sphi 0, %s154
    %s169 = sphi 0, %s155
    %s173 = sphi 0, %s173
    %s175 = sphi 0, %s173
    %s176 = sphi 0, %s175
    %s190 = sphi 0, %s176
    %s194 = sphi 0, %s194
    %s196 = sphi 0, %s194
    %s197 = sphi 0, %s196
    %s211 = sphi 0, %s197
    %s217 = sphi 0, %s219
    %s220 = sphi 0, %s217
    %s221 = sphi 0, %s220
    %s237 = sphi 0, %s221
    %s241 = sphi 0, %s241
    %s243 = sphi 0, %s241
    %s244 = sphi 0, %s243
    %s258 = sphi 0, %s244
    %s262 = sphi 0, %s262
    %s264 = sphi 0, %s262
    %s265 = sphi 0, %s264
    %s279 = sphi 0, %s265
    %s285 = sphi 0, %s287
    %s288 = sphi 0, %s285
    %s289 = sphi 0, %s288
    %s305 = sphi 0, %s289
    %s311 = sphi 0, %s313
    %s314 = sphi 0, %s311
    %s315 = sphi 0, %s314
    %s331 = sphi 0, %s315
  $region4: #{transformer_forward.20} parent=0 // loop_header_branch
    %22 = sbr.rel (%p20) target = $region8
  $region5: #{transformer_forward.20} parent=0 // loop_body
    %s24 = ssub.s32 %s19, 1
    %s25 = ssub.s32 %s19, 2
    %s26 = sadd.s32 %s19, 1
    %s27 = ssub.s32 %s19, %s26
    %p28 = scmp.eq.s32.totalorder %s27, 0
    %s30 = sadd.s32 %s29, 1
    %s31 = scalar_select %p28, %s29, %s30
    %p34 = pneg %p28
    %p35 = scmp.eq.s32.totalorder %s19, 1
    %p36 = por %p34, %p35
    %p37 = scmp.ne.s32.totalorder %s29, %s32
    %p38 = scmp.eq.s32.totalorder %s19, 0
    %p39 = por %p37, %p38
    %p40 = scmp.ne.s32.totalorder %s29, %s32
    %p41 = scmp.eq.s32.totalorder %s24, 1
    %p42 = por %p40, %p41
    %p43 = scmp.ne.s32.totalorder %s32, %s33
    %p44 = scmp.eq.s32.totalorder %s24, 0
    %p45 = por %p43, %p44
    %p46 = scmp.ne.s32.totalorder %s32, %s33
    %p47 = scmp.eq.s32.totalorder %s25, 1
    %p48 = por %p46, %p47
    %p50 = scmp.ne.s32.totalorder %s33, %s49
    %p51 = scmp.eq.s32.totalorder %s25, 0
    %p52 = por %p50, %p51
    %s53 = ssub.s32 %s19, %s26
    %p54 = scmp.eq.s32.totalorder %s53, 0
    %s56 = sadd.s32 %s55, 1
    %s57 = scalar_select %p54, %s55, %s56
    %p60 = pneg %p54
    %p61 = scmp.eq.s32.totalorder %s19, 1
    %p62 = por %p60, %p61
    %p63 = scmp.ne.s32.totalorder %s55, %s58
    %p64 = scmp.eq.s32.totalorder %s19, 0
    %p65 = por %p63, %p64
    %p66 = scmp.ne.s32.totalorder %s55, %s58
    %p67 = scmp.eq.s32.totalorder %s24, 1
    %p68 = por %p66, %p67
    %p69 = scmp.ne.s32.totalorder %s58, %s59
    %p70 = scmp.eq.s32.totalorder %s24, 0
    %p71 = por %p69, %p70
    %p72 = scmp.ne.s32.totalorder %s58, %s59
    %p73 = scmp.eq.s32.totalorder %s25, 1
    %p74 = por %p72, %p73
    %p76 = scmp.ne.s32.totalorder %s59, %s75
    %p77 = scmp.eq.s32.totalorder %s25, 0
    %p78 = por %p76, %p77
    %s79 = ssub.s32 %s19, %s26
    %p80 = scmp.eq.s32.totalorder %s79, 0
    %s82 = sadd.s32 %s81, 1
    %s83 = scalar_select %p80, %s81, %s82
    %p86 = pneg %p80
    %p87 = scmp.eq.s32.totalorder %s19, 1
    %p88 = por %p86, %p87
    %p89 = scmp.ne.s32.totalorder %s81, %s84
    %p90 = scmp.eq.s32.totalorder %s19, 0
    %p91 = por %p89, %p90
    %p92 = scmp.ne.s32.totalorder %s81, %s84
    %p93 = scmp.eq.s32.totalorder %s24, 1
    %p94 = por %p92, %p93
    %p95 = scmp.ne.s32.totalorder %s84, %s85
    %p96 = scmp.eq.s32.totalorder %s24, 0
    %p97 = por %p95, %p96
    %p98 = scmp.ne.s32.totalorder %s84, %s85
    %p99 = scmp.eq.s32.totalorder %s25, 1
    %p100 = por %p98, %p99
    %p102 = scmp.ne.s32.totalorder %s85, %s101
    %p103 = scmp.eq.s32.totalorder %s25, 0
    %p104 = por %p102, %p103
    %s105 = ssub.s32 %s19, %s26
    %p106 = scmp.eq.s32.totalorder %s105, 0
    %s108 = sadd.s32 %s107, 1
    %s109 = scalar_select %p106, %s107, %s108
    %p112 = pneg %p106
    %p113 = scmp.eq.s32.totalorder %s19, 1
    %p114 = por %p112, %p113
    %p115 = scmp.ne.s32.totalorder %s107, %s110
    %p116 = scmp.eq.s32.totalorder %s19, 0
    %p117 = por %p115, %p116
    %p118 = scmp.ne.s32.totalorder %s107, %s110
    %p119 = scmp.eq.s32.totalorder %s24, 1
    %p120 = por %p118, %p119
    %p121 = scmp.ne.s32.totalorder %s110, %s111
    %p122 = scmp.eq.s32.totalorder %s24, 0
    %p123 = por %p121, %p122
    %p124 = scmp.ne.s32.totalorder %s110, %s111
    %p125 = scmp.eq.s32.totalorder %s25, 1
    %p126 = por %p124, %p125
    %p128 = scmp.ne.s32.totalorder %s111, %s127
    %p129 = scmp.eq.s32.totalorder %s25, 0
    %p130 = por %p128, %p129
    %s132 = sadd.s32 %s131, 1
    %p135 = scmp.eq.s32.totalorder %s19, 1
    %p136 = scmp.ne.s32.totalorder %s131, %s133
    %p137 = scmp.eq.s32.totalorder %s19, 0
    %p138 = por %p136, %p137
    %p139 = scmp.ne.s32.totalorder %s131, %s133
    %p140 = scmp.eq.s32.totalorder %s24, 1
    %p141 = por %p139, %p140
    %p142 = scmp.ne.s32.totalorder %s133, %s134
    %p143 = scmp.eq.s32.totalorder %s24, 0
    %p144 = por %p142, %p143
    %p145 = scmp.ne.s32.totalorder %s133, %s134
    %p146 = scmp.eq.s32.totalorder %s25, 1
    %p147 = por %p145, %p146
    %p149 = scmp.ne.s32.totalorder %s134, %s148
    %p150 = scmp.eq.s32.totalorder %s25, 0
    %p151 = por %p149, %p150
    %s153 = sadd.s32 %s152, 1
    %p156 = scmp.eq.s32.totalorder %s19, 1
    %p157 = scmp.ne.s32.totalorder %s152, %s154
    %p158 = scmp.eq.s32.totalorder %s19, 0
    %p159 = por %p157, %p158
    %p160 = scmp.ne.s32.totalorder %s152, %s154
    %p161 = scmp.eq.s32.totalorder %s24, 1
    %p162 = por %p160, %p161
    %p163 = scmp.ne.s32.totalorder %s154, %s155
    %p164 = scmp.eq.s32.totalorder %s24, 0
    %p165 = por %p163, %p164
    %p166 = scmp.ne.s32.totalorder %s154, %s155
    %p167 = scmp.eq.s32.totalorder %s25, 1
    %p168 = por %p166, %p167
    %p170 = scmp.ne.s32.totalorder %s155, %s169
    %p171 = scmp.eq.s32.totalorder %s25, 0
    %p172 = por %p170, %p171
    %s174 = sadd.s32 %s173, 1
    %p177 = scmp.eq.s32.totalorder %s19, 1
    %p178 = scmp.ne.s32.totalorder %s173, %s175
    %p179 = scmp.eq.s32.totalorder %s19, 0
    %p180 = por %p178, %p179
    %p181 = scmp.ne.s32.totalorder %s173, %s175
    %p182 = scmp.eq.s32.totalorder %s24, 1
    %p183 = por %p181, %p182
    %p184 = scmp.ne.s32.totalorder %s175, %s176
    %p185 = scmp.eq.s32.totalorder %s24, 0
    %p186 = por %p184, %p185
    %p187 = scmp.ne.s32.totalorder %s175, %s176
    %p188 = scmp.eq.s32.totalorder %s25, 1
    %p189 = por %p187, %p188
    %p191 = scmp.ne.s32.totalorder %s176, %s190
    %p192 = scmp.eq.s32.totalorder %s25, 0
    %p193 = por %p191, %p192
    %s195 = sadd.s32 %s194, 1
    %p198 = scmp.eq.s32.totalorder %s19, 1
    %p199 = scmp.ne.s32.totalorder %s194, %s196
    %p200 = scmp.eq.s32.totalorder %s19, 0
    %p201 = por %p199, %p200
    %p202 = scmp.ne.s32.totalorder %s194, %s196
    %p203 = scmp.eq.s32.totalorder %s24, 1
    %p204 = por %p202, %p203
    %p205 = scmp.ne.s32.totalorder %s196, %s197
    %p206 = scmp.eq.s32.totalorder %s24, 0
    %p207 = por %p205, %p206
    %p208 = scmp.ne.s32.totalorder %s196, %s197
    %p209 = scmp.eq.s32.totalorder %s25, 1
    %p210 = por %p208, %p209
    %p212 = scmp.ne.s32.totalorder %s197, %s211
    %p213 = scmp.eq.s32.totalorder %s25, 0
    %p214 = por %p212, %p213
    %s215 = ssub.s32 %s19, %s26
    %p216 = scmp.eq.s32.totalorder %s215, 0
    %s218 = sadd.s32 %s217, 1
    %s219 = scalar_select %p216, %s217, %s218
    %p222 = pneg %p216
    %p223 = scmp.eq.s32.totalorder %s19, 1
    %p224 = por %p222, %p223
    %p225 = scmp.ne.s32.totalorder %s217, %s220
    %p226 = scmp.eq.s32.totalorder %s19, 0
    %p227 = por %p225, %p226
    %p228 = scmp.ne.s32.totalorder %s217, %s220
    %p229 = scmp.eq.s32.totalorder %s24, 1
    %p230 = por %p228, %p229
    %p231 = scmp.ne.s32.totalorder %s220, %s221
    %p232 = scmp.eq.s32.totalorder %s24, 0
    %p233 = por %p231, %p232
    %p234 = scmp.ne.s32.totalorder %s220, %s221
    %p235 = scmp.eq.s32.totalorder %s25, 1
    %p236 = por %p234, %p235
    %p238 = scmp.ne.s32.totalorder %s221, %s237
    %p239 = scmp.eq.s32.totalorder %s25, 0
    %p240 = por %p238, %p239
    %s242 = sadd.s32 %s241, 1
    %p245 = scmp.eq.s32.totalorder %s19, 1
    %p246 = scmp.ne.s32.totalorder %s241, %s243
    %p247 = scmp.eq.s32.totalorder %s19, 0
    %p248 = por %p246, %p247
    %p249 = scmp.ne.s32.totalorder %s241, %s243
    %p250 = scmp.eq.s32.totalorder %s24, 1
    %p251 = por %p249, %p250
    %p252 = scmp.ne.s32.totalorder %s243, %s244
    %p253 = scmp.eq.s32.totalorder %s24, 0
    %p254 = por %p252, %p253
    %p255 = scmp.ne.s32.totalorder %s243, %s244
    %p256 = scmp.eq.s32.totalorder %s25, 1
    %p257 = por %p255, %p256
    %p259 = scmp.ne.s32.totalorder %s244, %s258
    %p260 = scmp.eq.s32.totalorder %s25, 0
    %p261 = por %p259, %p260
    %s263 = sadd.s32 %s262, 1
    %p266 = scmp.eq.s32.totalorder %s19, 1
    %p267 = scmp.ne.s32.totalorder %s262, %s264
    %p268 = scmp.eq.s32.totalorder %s19, 0
    %p269 = por %p267, %p268
    %p270 = scmp.ne.s32.totalorder %s262, %s264
    %p271 = scmp.eq.s32.totalorder %s24, 1
    %p272 = por %p270, %p271
    %p273 = scmp.ne.s32.totalorder %s264, %s265
    %p274 = scmp.eq.s32.totalorder %s24, 0
    %p275 = por %p273, %p274
    %p276 = scmp.ne.s32.totalorder %s264, %s265
    %p277 = scmp.eq.s32.totalorder %s25, 1
    %p278 = por %p276, %p277
    %p280 = scmp.ne.s32.totalorder %s265, %s279
    %p281 = scmp.eq.s32.totalorder %s25, 0
    %p282 = por %p280, %p281
    %s283 = ssub.s32 %s19, %s26
    %p284 = scmp.eq.s32.totalorder %s283, 0
    %s286 = sadd.s32 %s285, 1
    %s287 = scalar_select %p284, %s285, %s286
    %p290 = pneg %p284
    %p291 = scmp.eq.s32.totalorder %s19, 1
    %p292 = por %p290, %p291
    %p293 = scmp.ne.s32.totalorder %s285, %s288
    %p294 = scmp.eq.s32.totalorder %s19, 0
    %p295 = por %p293, %p294
    %p296 = scmp.ne.s32.totalorder %s285, %s288
    %p297 = scmp.eq.s32.totalorder %s24, 1
    %p298 = por %p296, %p297
    %p299 = scmp.ne.s32.totalorder %s288, %s289
    %p300 = scmp.eq.s32.totalorder %s24, 0
    %p301 = por %p299, %p300
    %p302 = scmp.ne.s32.totalorder %s288, %s289
    %p303 = scmp.eq.s32.totalorder %s25, 1
    %p304 = por %p302, %p303
    %p306 = scmp.ne.s32.totalorder %s289, %s305
    %p307 = scmp.eq.s32.totalorder %s25, 0
    %p308 = por %p306, %p307
    %s309 = ssub.s32 %s19, %s26
    %p310 = scmp.eq.s32.totalorder %s309, 0
    %s312 = sadd.s32 %s311, 1
    %s313 = scalar_select %p310, %s311, %s312
    %p316 = pneg %p310
    %p317 = scmp.eq.s32.totalorder %s19, 1
    %p318 = por %p316, %p317
    %p319 = scmp.ne.s32.totalorder %s311, %s314
    %p320 = scmp.eq.s32.totalorder %s19, 0
    %p321 = por %p319, %p320
    %p322 = scmp.ne.s32.totalorder %s311, %s314
    %p323 = scmp.eq.s32.totalorder %s24, 1
    %p324 = por %p322, %p323
    %p325 = scmp.ne.s32.totalorder %s314, %s315
    %p326 = scmp.eq.s32.totalorder %s24, 0
    %p327 = por %p325, %p326
    %p328 = scmp.ne.s32.totalorder %s314, %s315
    %p329 = scmp.eq.s32.totalorder %s25, 1
    %p330 = por %p328, %p329
    %p332 = scmp.ne.s32.totalorder %s315, %s331
    %p333 = scmp.eq.s32.totalorder %s25, 0
    %p334 = por %p332, %p333
    %p335 = scmp.le.s32.totalorder 1, %s19
    %p336 = scmp.lt.s32.totalorder %s19, 3
    %p337 = pnand %p335, %p336
    %p338 = pneg %p337
    // Predicated region
    $region9: #{transformer_forward.20} parent=5 // pred_check
      _
    $region10: #{transformer_forward.20} parent=5 // pred_check_branch
      %340 = sbr.rel (%p337) target = $region12
    $region11: #{transformer_forward.20} parent=5 // pred_region
      %s341 = ssub.s32 %s19, 1
      // Predicated region
      $region13: #{transformer_forward.20} parent=11 // pred_check
        %p342 = pneg %p144
      $region14: #{transformer_forward.20} parent=11 // pred_check_branch
        %344 = sbr.rel (%p342) target = $region16
      $region15: #{transformer_forward.20} parent=11 // pred_region
        _
      $region16: #{transformer_forward.20} parent=11 // pred_fallthru
        _
      // Predicated region
      $region17: #{transformer_forward.20} parent=11 // pred_check
        %p345 = pneg %p165
      $region18: #{transformer_forward.20} parent=11 // pred_check_branch
        %347 = sbr.rel (%p345) target = $region20
      $region19: #{transformer_forward.20} parent=11 // pred_region
        _
      $region20: #{transformer_forward.20} parent=11 // pred_fallthru
        _
      // Predicated region
      $region21: #{transformer_forward.20} parent=11 // pred_check
        %p348 = pneg %p186
      $region22: #{transformer_forward.20} parent=11 // pred_check_branch
        %350 = sbr.rel (%p348) target = $region24
      $region23: #{transformer_forward.20} parent=11 // pred_region
        _
      $region24: #{transformer_forward.20} parent=11 // pred_fallthru
        _
      // Predicated region
      $region25: #{transformer_forward.20} parent=11 // pred_check
        %p351 = pneg %p207
      $region26: #{transformer_forward.20} parent=11 // pred_check_branch
        %353 = sbr.rel (%p351) target = $region28
      $region27: #{transformer_forward.20} parent=11 // pred_region
        _
      $region28: #{transformer_forward.20} parent=11 // pred_fallthru
        _
      // Predicated region
      $region29: #{transformer_forward.20} parent=11 // pred_check
        %p354 = pneg %p254
      $region30: #{transformer_forward.20} parent=11 // pred_check_branch
        %356 = sbr.rel (%p354) target = $region32
      $region31: #{transformer_forward.20} parent=11 // pred_region
        _
      $region32: #{transformer_forward.20} parent=11 // pred_fallthru
        _
      // Predicated region
      $region33: #{transformer_forward.20} parent=11 // pred_check
        %p357 = pneg %p275
      $region34: #{transformer_forward.20} parent=11 // pred_check_branch
        %359 = sbr.rel (%p357) target = $region36
      $region35: #{transformer_forward.20} parent=11 // pred_region
        _
      $region36: #{transformer_forward.20} parent=11 // pred_fallthru
        _
    $region12: #{transformer_forward.20} parent=5 // pred_fallthru
      _
    %p360 = scmp.lt.s32.totalorder %s19, 2
    // Predicated region
    $region37: #{transformer_forward.20} parent=5 // pred_check
      %p361 = pneg %p360
    $region38: #{transformer_forward.20} parent=5 // pred_check_branch
      %363 = sbr.rel (%p361) target = $region40
    $region39: #{transformer_forward.20} parent=5 // pred_region
      // Predicated region
      $region41: #{transformer_forward.20} parent=39 // pred_check
        %p364 = pneg %p39
      $region42: #{transformer_forward.20} parent=39 // pred_check_branch
        %366 = sbr.rel (%p364) target = $region44
      $region43: #{transformer_forward.20} parent=39 // pred_region
        %p367 = scmp.lt.s32.totalorder %s19, 1
        %s368 = scalar_select %p367, %s19, 1
        %s369 = smul.addr %s368, 8
        %s370 = scalar_lea.vmem %s0, %s369
      $region44: #{transformer_forward.20} parent=39 // pred_fallthru
        _
      // Predicated region
      $region45: #{transformer_forward.20} parent=39 // pred_check
        %p371 = pneg %p65
      $region46: #{transformer_forward.20} parent=39 // pred_check_branch
        %373 = sbr.rel (%p371) target = $region48
      $region47: #{transformer_forward.20} parent=39 // pred_region
        %p374 = scmp.lt.s32.totalorder %s19, 1
        %s375 = scalar_select %p374, %s19, 1
        %s376 = smul.addr %s375, 8
        %s377 = scalar_lea.vmem %s1, %s376
      $region48: #{transformer_forward.20} parent=39 // pred_fallthru
        _
      // Predicated region
      $region49: #{transformer_forward.20} parent=39 // pred_check
        %p378 = pneg %p91
      $region50: #{transformer_forward.20} parent=39 // pred_check_branch
        %380 = sbr.rel (%p378) target = $region52
      $region51: #{transformer_forward.20} parent=39 // pred_region
        %p381 = scmp.lt.s32.totalorder %s19, 1
        %s382 = scalar_select %p381, %s19, 1
        %s383 = smul.addr %s382, 8
        %s384 = scalar_lea.vmem %s2, %s383
      $region52: #{transformer_forward.20} parent=39 // pred_fallthru
        _
      // Predicated region
      $region53: #{transformer_forward.20} parent=39 // pred_check
        %p385 = pneg %p117
      $region54: #{transformer_forward.20} parent=39 // pred_check_branch
        %387 = sbr.rel (%p385) target = $region56
      $region55: #{transformer_forward.20} parent=39 // pred_region
        %p388 = scmp.lt.s32.totalorder %s19, 1
        %s389 = scalar_select %p388, %s19, 1
        %s390 = smul.addr %s389, 8
        %s391 = scalar_lea.vmem %s3, %s390
      $region56: #{transformer_forward.20} parent=39 // pred_fallthru
        _
      // Predicated region
      $region57: #{transformer_forward.20} parent=39 // pred_check
        %p392 = pneg %p227
      $region58: #{transformer_forward.20} parent=39 // pred_check_branch
        %394 = sbr.rel (%p392) target = $region60
      $region59: #{transformer_forward.20} parent=39 // pred_region
        %p395 = scmp.lt.s32.totalorder %s19, 1
        %s396 = scalar_select %p395, %s19, 1
        %s397 = smul.addr %s396, 8
        %s398 = scalar_lea.vmem %s8, %s397
      $region60: #{transformer_forward.20} parent=39 // pred_fallthru
        _
    $region40: #{transformer_forward.20} parent=5 // pred_fallthru
      _
    %p399 = scmp.le.s32.totalorder 1, %s19
    %p400 = scmp.lt.s32.totalorder %s19, 3
    %p401 = pnand %p399, %p400
    %p402 = pneg %p401
    // Predicated region
    $region61: #{transformer_forward.20} parent=5 // pred_check
      _
    $region62: #{transformer_forward.20} parent=5 // pred_check_branch
      %404 = sbr.rel (%p401) target = $region64
    $region63: #{transformer_forward.20} parent=5 // pred_region
      %s405 = ssub.s32 %s19, 1
      %p406 = scmp.lt.s32.totalorder %s24, 1
      %s407 = scalar_select %p406, %s24, 1
      %s408 = smul.addr %s407, 8
      %s409 = scalar_lea.vmem %s0, %s408
      %p410 = pneg %p45
      %p411 = pneg %p42
      %p412 = scmp.lt.s32.totalorder %s24, 1
      %s413 = scalar_select %p412, %s24, 1
      %s414 = smul.addr %s413, 8
      %s415 = scalar_lea.vmem %s1, %s414
      %p416 = pneg %p71
      %p417 = pneg %p68
      %p418 = scmp.lt.s32.totalorder %s24, 1
      %s419 = scalar_select %p418, %s24, 1
      %s420 = smul.addr %s419, 8
      %s421 = scalar_lea.vmem %s2, %s420
      %p422 = pneg %p97
      %p423 = pneg %p94
      %p424 = scmp.lt.s32.totalorder %s24, 1
      %s425 = scalar_select %p424, %s24, 1
      %s426 = smul.addr %s425, 8
      %s427 = scalar_lea.vmem %s3, %s426
      %p428 = pneg %p123
      %p429 = pneg %p120
      %p430 = pneg %p144
      %p431 = pneg %p141
      %p432 = pneg %p165
      %p433 = pneg %p162
      %p434 = pneg %p186
      %p435 = pneg %p183
      %p436 = pneg %p207
      %p437 = pneg %p204
      %p438 = scmp.lt.s32.totalorder %s24, 1
      %s439 = scalar_select %p438, %s24, 1
      %s440 = smul.addr %s439, 8
      %s441 = scalar_lea.vmem %s8, %s440
      %p442 = pneg %p233
      %p443 = pneg %p230
      %p444 = pneg %p254
      %p445 = pneg %p251
      %p446 = pneg %p275
      %p447 = pneg %p272
      %p448 = pneg %p301
      %p449 = pneg %p298
      %p450 = scmp.lt.s32.totalorder %s24, 1
      %s451 = scalar_select %p450, %s24, 1
      %s452 = smul.addr %s451, 8
      %s453 = scalar_lea.vmem %s11, %s452
      %p454 = pneg %p327
      %p455 = pneg %p324
      %p456 = scmp.lt.s32.totalorder %s24, 1
      %s457 = scalar_select %p456, %s24, 1
      %s458 = smul.addr %s457, 8
      %s459 = scalar_lea.vmem %s12, %s458
      %p460 = scmp.lt.s32.totalorder %s24, 1
      %s461 = scalar_select %p460, %s24, 1
      %s462 = smul.addr %s461, 8
      %s463 = scalar_lea.vmem %s0, %s462
      %p464 = scmp.lt.s32.totalorder %s24, 1
      %s465 = scalar_select %p464, %s24, 1
      %s466 = smul.addr %s465, 8
      %s467 = scalar_lea.vmem %s1, %s466
      %p468 = scmp.lt.s32.totalorder %s24, 1
      %s469 = scalar_select %p468, %s24, 1
      %s470 = smul.addr %s469, 8
      %s471 = scalar_lea.vmem %s2, %s470
      %p472 = scmp.lt.s32.totalorder %s24, 1
      %s473 = scalar_select %p472, %s24, 1
      %s474 = smul.addr %s473, 8
      %s475 = scalar_lea.vmem %s3, %s474
      %p476 = scmp.lt.s32.totalorder %s24, 1
      %s477 = scalar_select %p476, %s24, 1
      %s478 = smul.addr %s477, 8
      %s479 = scalar_lea.vmem %s8, %s478
      %p480 = scmp.lt.s32.totalorder %s24, 1
      %s481 = scalar_select %p480, %s24, 1
      %s482 = smul.addr %s481, 8
      %s483 = scalar_lea.vmem %s11, %s482
      %p484 = scmp.lt.s32.totalorder %s24, 1
      %s485 = scalar_select %p484, %s24, 1
      %s486 = smul.addr %s485, 8
      %s487 = scalar_lea.vmem %s12, %s486
      %v488 = vld [vmem:[%s463] sm:$0xff]
      %v489 = vld [vmem:[%s467] sm:$0xff]
      %v490 = vld [vmem:[%s471] sm:$0xff]
      %v491 = vld [vmem:[%s4] sm:$0xff]
      %v492 = vld [vmem:[%s4 + $0x8] sm:$0xff]
      %v493 = vld [vmem:[%s4 + $0x10] sm:$0xff]
      %v494 = vld [vmem:[%s4 + $0x18] sm:$0xff]
      %vm495 = vcmask 64512
      %v497 = vsel %vm495, %v488, 0
      %v500 = vsel %vm495, %v489, 0
      %502 = vmatprep.subr.mxu0 0.0
      %503 = vmatpush1.xpose.msra.mxu0 0.0
      %504 = vmatprep.subr.mxu0 0.0
      %505 = vmatpush1.xpose.msra.mxu0 0.0
      %506 = vmatprep.subr.mxu0 0.0
      %507 = vmatpush1.xpose.msra.mxu0 0.0
      %508 = vmatprep.subr.mxu0 0.0
      %509 = vmatpush1.xpose.msra.mxu0 0.0
      %510 = vmatprep.subr.mxu0 0.0
      %511 = vmatpush1.xpose.msra.mxu0 0.0
      %512 = vmatprep.subr.mxu0 0.0
      %513 = vmatpush1.xpose.msra.mxu0 0.0
      %514 = vmatprep.subr.mxu0 0.0
      %515 = vmatpush1.xpose.msra.mxu0 0.0
      %516 = vmatprep.subr.mxu0 0.0
      %517 = vmatpush1.xpose.msra.mxu0 0.0
      %518 = vmatprep.subr.mxu0 0.0
      %519 = vmatpush1.xpose.msra.mxu0 0.0
      %520 = vmatprep.subr.mxu0 0.0
      %521 = vmatpush1.xpose.msra.mxu0 0.0
      %522 = vmatprep.subr.mxu0 0.0
      %523 = vmatpush1.xpose.msra.mxu0 0.0
      %524 = vmatprep.subr.mxu0 0.0
      %525 = vmatpush1.xpose.msra.mxu0 0.0
      %526 = vmatprep.subr.mxu0 0.0
      %527 = vmatpush1.xpose.msra.mxu0 0.0
      %528 = vmatprep.subr.mxu0 0.0
      %529 = vmatpush1.xpose.msra.mxu0 0.0
      %530 = vmatprep.subr.mxu0 0.0
      %531 = vmatpush1.xpose.msra.mxu0 0.0
      %532 = vmatprep.subr.mxu0 0.0
      %533 = vmatpush1.xpose.msra.mxu0 %v500
      %534 = vmatprep.subr.mxu0 0.0
      %535 = vmatpush2.xpose.msra.mxu0 0.0
      %536 = vmatprep.subr.mxu0 0.0
      %537 = vmatpush2.xpose.msra.mxu0 0.0
      %538 = vmatprep.subr.mxu0 0.0
      %539 = vmatpush2.xpose.msra.mxu0 0.0
      %540 = vmatprep.subr.mxu0 0.0
      %541 = vmatpush2.xpose.msra.mxu0 0.0
      %542 = vmatprep.subr.mxu0 0.0
      %543 = vmatpush2.xpose.msra.mxu0 0.0
      %544 = vmatprep.subr.mxu0 0.0
      %545 = vmatpush2.xpose.msra.mxu0 0.0
      %546 = vmatprep.subr.mxu0 0.0
      %547 = vmatpush2.xpose.msra.mxu0 0.0
      %548 = vmatprep.subr.mxu0 0.0
      %549 = vmatpush2.xpose.msra.mxu0 0.0
      %550 = vmatprep.subr.mxu0 0.0
      %551 = vmatpush2.xpose.msra.mxu0 0.0
      %552 = vmatprep.subr.mxu0 0.0
      %553 = vmatpush2.xpose.msra.mxu0 0.0
      %554 = vmatprep.subr.mxu0 0.0
      %555 = vmatpush2.xpose.msra.mxu0 0.0
      %556 = vmatprep.subr.mxu0 0.0
      %557 = vmatpush2.xpose.msra.mxu0 0.0
      %558 = vmatprep.subr.mxu0 0.0
      %559 = vmatpush2.xpose.msra.mxu0 0.0
      %560 = vmatprep.subr.mxu0 0.0
      %561 = vmatpush2.xpose.msra.mxu0 0.0
      %562 = vmatprep.subr.mxu0 0.0
      %563 = vmatpush2.xpose.msra.mxu0 0.0
      %564 = vmatprep.subr.mxu0 0.0
      %565 = vmatpush2.xpose.msra.mxu0 0.0
      %566 = vmatprep.mubr.f32.mxu0 0.0
      %567 = vmatmul.mubr.f32.gmra.mxu0 %v497
      %v568 = vpop.f32.mrf.mxu0
      %v569 = vadd.f32 0.0, %v568
      %v570 = vpop.f32.mrf.mxu0
      %571 = vdwg.mxu0
      %v572 = vmul.f32 %v569, 0.35355338
      %v573 = vsel %vm495, %v572, -inf
      %574 = vmax.xlane.f32.xlu0 %v573
      %v575 = vpop.xlane.xlu0 %574
      %v576 = vsub.f32 %v572, %v575
      %v577 = vmul.f32 %v576, 1.442695
      %v578 = vpow.pop %v577
      %v579 = vsel %vm495, %v578, 0.0
      %580 = vadd.xlane.f32.xlu0 %v579
      %v581 = vpop.xlane.xlu0 %580
      %v582 = vrcp.pop %v581
      %v583 = vmul.f32 %v578, %v582
      %v585 = vsel %vm495, %v583, 0
      %587 = vmatprep.subr.mxu0 0.0
      %588 = vmatpush1.msra.mxu0 0.0
      %589 = vmatprep.subr.mxu0 0.0
      %590 = vmatpush1.msra.mxu0 0.0
      %591 = vmatprep.subr.mxu0 0.0
      %592 = vmatpush1.msra.mxu0 0.0
      %593 = vmatprep.subr.mxu0 0.0
      %594 = vmatpush1.msra.mxu0 0.0
      %595 = vmatprep.subr.mxu0 0.0
      %596 = vmatpush1.msra.mxu0 0.0
      %597 = vmatprep.subr.mxu0 0.0
      %598 = vmatpush1.msra.mxu0 0.0
      %599 = vmatprep.subr.mxu0 0.0
      %600 = vmatpush1.msra.mxu0 0.0
      %601 = vmatprep.subr.mxu0 0.0
      %602 = vmatpush1.msra.mxu0 0.0
      %603 = vmatprep.subr.mxu0 0.0
      %604 = vmatpush1.msra.mxu0 0.0
      %605 = vmatprep.subr.mxu0 0.0
      %606 = vmatpush1.msra.mxu0 0.0
      %607 = vmatprep.subr.mxu0 0.0
      %608 = vmatpush1.msra.mxu0 0.0
      %609 = vmatprep.subr.mxu0 0.0
      %610 = vmatpush1.msra.mxu0 0.0
      %611 = vmatprep.subr.mxu0 0.0
      %612 = vmatpush1.msra.mxu0 0.0
      %613 = vmatprep.subr.mxu0 0.0
      %614 = vmatpush1.msra.mxu0 0.0
      %615 = vmatprep.subr.mxu0 0.0
      %616 = vmatpush1.msra.mxu0 0.0
      %617 = vmatprep.subr.mxu0 0.0
      %618 = vmatpush1.msra.mxu0 %v490
      %619 = vmatprep.subr.mxu0 0.0
      %620 = vmatpush2.msra.mxu0 0.0
      %621 = vmatprep.subr.mxu0 0.0
      %622 = vmatpush2.msra.mxu0 0.0
      %623 = vmatprep.subr.mxu0 0.0
      %624 = vmatpush2.msra.mxu0 0.0
      %625 = vmatprep.subr.mxu0 0.0
      %626 = vmatpush2.msra.mxu0 0.0
      %627 = vmatprep.subr.mxu0 0.0
      %628 = vmatpush2.msra.mxu0 0.0
      %629 = vmatprep.subr.mxu0 0.0
      %630 = vmatpush2.msra.mxu0 0.0
      %631 = vmatprep.subr.mxu0 0.0
      %632 = vmatpush2.msra.mxu0 0.0
      %633 = vmatprep.subr.mxu0 0.0
      %634 = vmatpush2.msra.mxu0 0.0
      %635 = vmatprep.subr.mxu0 0.0
      %636 = vmatpush2.msra.mxu0 0.0
      %637 = vmatprep.subr.mxu0 0.0
      %638 = vmatpush2.msra.mxu0 0.0
      %639 = vmatprep.subr.mxu0 0.0
      %640 = vmatpush2.msra.mxu0 0.0
      %641 = vmatprep.subr.mxu0 0.0
      %642 = vmatpush2.msra.mxu0 0.0
      %643 = vmatprep.subr.mxu0 0.0
      %644 = vmatpush2.msra.mxu0 0.0
      %645 = vmatprep.subr.mxu0 0.0
      %646 = vmatpush2.msra.mxu0 0.0
      %647 = vmatprep.subr.mxu0 0.0
      %648 = vmatpush2.msra.mxu0 0.0
      %649 = vmatprep.subr.mxu0 0.0
      %650 = vmatpush2.msra.mxu0 0.0
      %651 = vmatprep.mubr.f32.mxu0 0.0
      %652 = vmatmul.mubr.f32.gmra.mxu0 %v585
      %v653 = vpop.f32.mrf.mxu0
      %v654 = vadd.f32 0.0, %v653
      %v655 = vpop.f32.mrf.mxu0
      %656 = vdwg.mxu0
      %657 = vrot.lane.b32.xlu0 %v488, 120
      %v658 = vpop.permute.xlu0 %657
      %659 = vrot.lane.b32.xlu0 %v489, 120
      %v660 = vpop.permute.xlu0 %659
      %v661 = vsel %vm495, %v658, 0
      %v663 = vsel %vm495, %v660, 0
      %665 = vmatprep.subr.mxu0 0.0
      %666 = vmatpush1.xpose.msra.mxu0 0.0
      %667 = vmatprep.subr.mxu0 0.0
      %668 = vmatpush1.xpose.msra.mxu0 0.0
      %669 = vmatprep.subr.mxu0 0.0
      %670 = vmatpush1.xpose.msra.mxu0 0.0
      %671 = vmatprep.subr.mxu0 0.0
      %672 = vmatpush1.xpose.msra.mxu0 0.0
      %673 = vmatprep.subr.mxu0 0.0
      %674 = vmatpush1.xpose.msra.mxu0 0.0
      %675 = vmatprep.subr.mxu0 0.0
      %676 = vmatpush1.xpose.msra.mxu0 0.0
      %677 = vmatprep.subr.mxu0 0.0
      %678 = vmatpush1.xpose.msra.mxu0 0.0
      %679 = vmatprep.subr.mxu0 0.0
      %680 = vmatpush1.xpose.msra.mxu0 0.0
      %681 = vmatprep.subr.mxu0 0.0
      %682 = vmatpush1.xpose.msra.mxu0 0.0
      %683 = vmatprep.subr.mxu0 0.0
      %684 = vmatpush1.xpose.msra.mxu0 0.0
      %685 = vmatprep.subr.mxu0 0.0
      %686 = vmatpush1.xpose.msra.mxu0 0.0
      %687 = vmatprep.subr.mxu0 0.0
      %688 = vmatpush1.xpose.msra.mxu0 0.0
      %689 = vmatprep.subr.mxu0 0.0
      %690 = vmatpush1.xpose.msra.mxu0 0.0
      %691 = vmatprep.subr.mxu0 0.0
      %692 = vmatpush1.xpose.msra.mxu0 0.0
      %693 = vmatprep.subr.mxu0 0.0
      %694 = vmatpush1.xpose.msra.mxu0 0.0
      %695 = vmatprep.subr.mxu0 0.0
      %696 = vmatpush1.xpose.msra.mxu0 %v663
      %697 = vmatprep.subr.mxu0 0.0
      %698 = vmatpush2.xpose.msra.mxu0 0.0
      %699 = vmatprep.subr.mxu0 0.0
      %700 = vmatpush2.xpose.msra.mxu0 0.0
      %701 = vmatprep.subr.mxu0 0.0
      %702 = vmatpush2.xpose.msra.mxu0 0.0
      %703 = vmatprep.subr.mxu0 0.0
      %704 = vmatpush2.xpose.msra.mxu0 0.0
      %705 = vmatprep.subr.mxu0 0.0
      %706 = vmatpush2.xpose.msra.mxu0 0.0
      %707 = vmatprep.subr.mxu0 0.0
      %708 = vmatpush2.xpose.msra.mxu0 0.0
      %709 = vmatprep.subr.mxu0 0.0
      %710 = vmatpush2.xpose.msra.mxu0 0.0
      %711 = vmatprep.subr.mxu0 0.0
      %712 = vmatpush2.xpose.msra.mxu0 0.0
      %713 = vmatprep.subr.mxu0 0.0
      %714 = vmatpush2.xpose.msra.mxu0 0.0
      %715 = vmatprep.subr.mxu0 0.0
      %716 = vmatpush2.xpose.msra.mxu0 0.0
      %717 = vmatprep.subr.mxu0 0.0
      %718 = vmatpush2.xpose.msra.mxu0 0.0
      %719 = vmatprep.subr.mxu0 0.0
      %720 = vmatpush2.xpose.msra.mxu0 0.0
      %721 = vmatprep.subr.mxu0 0.0
      %722 = vmatpush2.xpose.msra.mxu0 0.0
      %723 = vmatprep.subr.mxu0 0.0
      %724 = vmatpush2.xpose.msra.mxu0 0.0
      %725 = vmatprep.subr.mxu0 0.0
      %726 = vmatpush2.xpose.msra.mxu0 0.0
      %727 = vmatprep.subr.mxu0 0.0
      %728 = vmatpush2.xpose.msra.mxu0 0.0
      %729 = vmatprep.mubr.f32.mxu0 0.0
      %730 = vmatmul.mubr.f32.gmra.mxu0 %v661
      %v731 = vpop.f32.mrf.mxu0
      %v732 = vadd.f32 0.0, %v731
      %v733 = vpop.f32.mrf.mxu0
      %734 = vdwg.mxu0
      %v735 = vmul.f32 %v732, 0.35355338
      %v736 = vsel %vm495, %v735, -inf
      %737 = vmax.xlane.f32.xlu0 %v736
      %v738 = vpop.xlane.xlu0 %737
      %v739 = vsub.f32 %v735, %v738
      %v740 = vmul.f32 %v739, 1.442695
      %v741 = vpow.pop %v740
      %v742 = vsel %vm495, %v741, 0.0
      %743 = vadd.xlane.f32.xlu0 %v742
      %v744 = vpop.xlane.xlu0 %743
      %v745 = vrcp.pop %v744
      %v746 = vmul.f32 %v741, %v745
      %748 = vrot.lane.b32.xlu0 %v490, 120
      %v749 = vpop.permute.xlu0 %748
      %v752 = vsel %vm495, %v746, 0
      %754 = vmatprep.subr.mxu0 0.0
      %755 = vmatpush1.msra.mxu0 0.0
      %756 = vmatprep.subr.mxu0 0.0
      %757 = vmatpush1.msra.mxu0 0.0
      %758 = vmatprep.subr.mxu0 0.0
      %759 = vmatpush1.msra.mxu0 0.0
      %760 = vmatprep.subr.mxu0 0.0
      %761 = vmatpush1.msra.mxu0 0.0
      %762 = vmatprep.subr.mxu0 0.0
      %763 = vmatpush1.msra.mxu0 0.0
      %764 = vmatprep.subr.mxu0 0.0
      %765 = vmatpush1.msra.mxu0 0.0
      %766 = vmatprep.subr.mxu0 0.0
      %767 = vmatpush1.msra.mxu0 0.0
      %768 = vmatprep.subr.mxu0 0.0
      %769 = vmatpush1.msra.mxu0 0.0
      %770 = vmatprep.subr.mxu0 0.0
      %771 = vmatpush1.msra.mxu0 0.0
      %772 = vmatprep.subr.mxu0 0.0
      %773 = vmatpush1.msra.mxu0 0.0
      %774 = vmatprep.subr.mxu0 0.0
      %775 = vmatpush1.msra.mxu0 0.0
      %776 = vmatprep.subr.mxu0 0.0
      %777 = vmatpush1.msra.mxu0 0.0
      %778 = vmatprep.subr.mxu0 0.0
      %779 = vmatpush1.msra.mxu0 0.0
      %780 = vmatprep.subr.mxu0 0.0
      %781 = vmatpush1.msra.mxu0 0.0
      %782 = vmatprep.subr.mxu0 0.0
      %783 = vmatpush1.msra.mxu0 0.0
      %784 = vmatprep.subr.mxu0 0.0
      %785 = vmatpush1.msra.mxu0 %v749
      %786 = vmatprep.subr.mxu0 0.0
      %787 = vmatpush2.msra.mxu0 0.0
      %788 = vmatprep.subr.mxu0 0.0
      %789 = vmatpush2.msra.mxu0 0.0
      %790 = vmatprep.subr.mxu0 0.0
      %791 = vmatpush2.msra.mxu0 0.0
      %792 = vmatprep.subr.mxu0 0.0
      %793 = vmatpush2.msra.mxu0 0.0
      %794 = vmatprep.subr.mxu0 0.0
      %795 = vmatpush2.msra.mxu0 0.0
      %796 = vmatprep.subr.mxu0 0.0
      %797 = vmatpush2.msra.mxu0 0.0
      %798 = vmatprep.subr.mxu0 0.0
      %799 = vmatpush2.msra.mxu0 0.0
      %800 = vmatprep.subr.mxu0 0.0
      %801 = vmatpush2.msra.mxu0 0.0
      %802 = vmatprep.subr.mxu0 0.0
      %803 = vmatpush2.msra.mxu0 0.0
      %804 = vmatprep.subr.mxu0 0.0
      %805 = vmatpush2.msra.mxu0 0.0
      %806 = vmatprep.subr.mxu0 0.0
      %807 = vmatpush2.msra.mxu0 0.0
      %808 = vmatprep.subr.mxu0 0.0
      %809 = vmatpush2.msra.mxu0 0.0
      %810 = vmatprep.subr.mxu0 0.0
      %811 = vmatpush2.msra.mxu0 0.0
      %812 = vmatprep.subr.mxu0 0.0
      %813 = vmatpush2.msra.mxu0 0.0
      %814 = vmatprep.subr.mxu0 0.0
      %815 = vmatpush2.msra.mxu0 0.0
      %816 = vmatprep.subr.mxu0 0.0
      %817 = vmatpush2.msra.mxu0 0.0
      %818 = vmatprep.mubr.f32.mxu0 0.0
      %819 = vmatmul.mubr.f32.gmra.mxu0 %v752
      %v820 = vpop.f32.mrf.mxu0
      %v821 = vadd.f32 0.0, %v820
      %v822 = vpop.f32.mrf.mxu0
      %823 = vdwg.mxu0
      %v825 = vsel %vm495, %v821, 0
      %827 = vmatprep.subr.mxu0 0.0
      %828 = vmatpush1.msra.mxu0 0.0
      %829 = vmatprep.subr.mxu0 0.0
      %830 = vmatpush1.msra.mxu0 0.0
      %831 = vmatprep.subr.mxu0 0.0
      %832 = vmatpush1.msra.mxu0 0.0
      %833 = vmatprep.subr.mxu0 0.0
      %834 = vmatpush1.msra.mxu0 0.0
      %835 = vmatprep.subr.mxu0 0.0
      %836 = vmatpush1.msra.mxu0 0.0
      %837 = vmatprep.subr.mxu0 0.0
      %838 = vmatpush1.msra.mxu0 0.0
      %839 = vmatprep.subr.mxu0 0.0
      %840 = vmatpush1.msra.mxu0 0.0
      %841 = vmatprep.subr.mxu0 0.0
      %842 = vmatpush1.msra.mxu0 0.0
      %843 = vmatprep.subr.mxu0 0.0
      %844 = vmatpush1.msra.mxu0 0.0
      %845 = vmatprep.subr.mxu0 0.0
      %846 = vmatpush1.msra.mxu0 0.0
      %847 = vmatprep.subr.mxu0 0.0
      %848 = vmatpush1.msra.mxu0 0.0
      %849 = vmatprep.subr.mxu0 0.0
      %850 = vmatpush1.msra.mxu0 0.0
      %851 = vmatprep.subr.mxu0 0.0
      %852 = vmatpush1.msra.mxu0 0.0
      %853 = vmatprep.subr.mxu0 0.0
      %854 = vmatpush1.msra.mxu0 0.0
      %855 = vmatprep.subr.mxu0 0.0
      %856 = vmatpush1.msra.mxu0 0.0
      %857 = vmatprep.subr.mxu0 0.0
      %858 = vmatpush1.msra.mxu0 %v492
      %859 = vmatprep.subr.mxu0 0.0
      %860 = vmatpush2.msra.mxu0 0.0
      %861 = vmatprep.subr.mxu0 0.0
      %862 = vmatpush2.msra.mxu0 0.0
      %863 = vmatprep.subr.mxu0 0.0
      %864 = vmatpush2.msra.mxu0 0.0
      %865 = vmatprep.subr.mxu0 0.0
      %866 = vmatpush2.msra.mxu0 0.0
      %867 = vmatprep.subr.mxu0 0.0
      %868 = vmatpush2.msra.mxu0 0.0
      %869 = vmatprep.subr.mxu0 0.0
      %870 = vmatpush2.msra.mxu0 0.0
      %871 = vmatprep.subr.mxu0 0.0
      %872 = vmatpush2.msra.mxu0 0.0
      %873 = vmatprep.subr.mxu0 0.0
      %874 = vmatpush2.msra.mxu0 0.0
      %875 = vmatprep.subr.mxu0 0.0
      %876 = vmatpush2.msra.mxu0 0.0
      %877 = vmatprep.subr.mxu0 0.0
      %878 = vmatpush2.msra.mxu0 0.0
      %879 = vmatprep.subr.mxu0 0.0
      %880 = vmatpush2.msra.mxu0 0.0
      %881 = vmatprep.subr.mxu0 0.0
      %882 = vmatpush2.msra.mxu0 0.0
      %883 = vmatprep.subr.mxu0 0.0
      %884 = vmatpush2.msra.mxu0 0.0
      %885 = vmatprep.subr.mxu0 0.0
      %886 = vmatpush2.msra.mxu0 0.0
      %887 = vmatprep.subr.mxu0 0.0
      %888 = vmatpush2.msra.mxu0 0.0
      %889 = vmatprep.subr.mxu0 0.0
      %890 = vmatpush2.msra.mxu0 0.0
      %891 = vmatprep.mubr.f32.mxu0 0.0
      %892 = vmatmul.mubr.f32.gmra.mxu0 %v825
      %v893 = vpop.f32.mrf.mxu0
      %v894 = vadd.f32 0.0, %v893
      %v895 = vpop.f32.mrf.mxu0
      %896 = vdwg.mxu0
      %v898 = vsel %vm495, %v654, 0
      %900 = vmatprep.subr.mxu0 0.0
      %901 = vmatpush1.msra.mxu0 0.0
      %902 = vmatprep.subr.mxu0 0.0
      %903 = vmatpush1.msra.mxu0 0.0
      %904 = vmatprep.subr.mxu0 0.0
      %905 = vmatpush1.msra.mxu0 0.0
      %906 = vmatprep.subr.mxu0 0.0
      %907 = vmatpush1.msra.mxu0 0.0
      %908 = vmatprep.subr.mxu0 0.0
      %909 = vmatpush1.msra.mxu0 0.0
      %910 = vmatprep.subr.mxu0 0.0
      %911 = vmatpush1.msra.mxu0 0.0
      %912 = vmatprep.subr.mxu0 0.0
      %913 = vmatpush1.msra.mxu0 0.0
      %914 = vmatprep.subr.mxu0 0.0
      %915 = vmatpush1.msra.mxu0 0.0
      %916 = vmatprep.subr.mxu0 0.0
      %917 = vmatpush1.msra.mxu0 0.0
      %918 = vmatprep.subr.mxu0 0.0
      %919 = vmatpush1.msra.mxu0 0.0
      %920 = vmatprep.subr.mxu0 0.0
      %921 = vmatpush1.msra.mxu0 0.0
      %922 = vmatprep.subr.mxu0 0.0
      %923 = vmatpush1.msra.mxu0 0.0
      %924 = vmatprep.subr.mxu0 0.0
      %925 = vmatpush1.msra.mxu0 0.0
      %926 = vmatprep.subr.mxu0 0.0
      %927 = vmatpush1.msra.mxu0 0.0
      %928 = vmatprep.subr.mxu0 0.0
      %929 = vmatpush1.msra.mxu0 0.0
      %930 = vmatprep.subr.mxu0 0.0
      %931 = vmatpush1.msra.mxu0 %v491
      %932 = vmatprep.subr.mxu0 0.0
      %933 = vmatpush2.msra.mxu0 0.0
      %934 = vmatprep.subr.mxu0 0.0
      %935 = vmatpush2.msra.mxu0 0.0
      %936 = vmatprep.subr.mxu0 0.0
      %937 = vmatpush2.msra.mxu0 0.0
      %938 = vmatprep.subr.mxu0 0.0
      %939 = vmatpush2.msra.mxu0 0.0
      %940 = vmatprep.subr.mxu0 0.0
      %941 = vmatpush2.msra.mxu0 0.0
      %942 = vmatprep.subr.mxu0 0.0
      %943 = vmatpush2.msra.mxu0 0.0
      %944 = vmatprep.subr.mxu0 0.0
      %945 = vmatpush2.msra.mxu0 0.0
      %946 = vmatprep.subr.mxu0 0.0
      %947 = vmatpush2.msra.mxu0 0.0
      %948 = vmatprep.subr.mxu0 0.0
      %949 = vmatpush2.msra.mxu0 0.0
      %950 = vmatprep.subr.mxu0 0.0
      %951 = vmatpush2.msra.mxu0 0.0
      %952 = vmatprep.subr.mxu0 0.0
      %953 = vmatpush2.msra.mxu0 0.0
      %954 = vmatprep.subr.mxu0 0.0
      %955 = vmatpush2.msra.mxu0 0.0
      %956 = vmatprep.subr.mxu0 0.0
      %957 = vmatpush2.msra.mxu0 0.0
      %958 = vmatprep.subr.mxu0 0.0
      %959 = vmatpush2.msra.mxu0 0.0
      %960 = vmatprep.subr.mxu0 0.0
      %961 = vmatpush2.msra.mxu0 0.0
      %962 = vmatprep.subr.mxu0 0.0
      %963 = vmatpush2.msra.mxu0 0.0
      %964 = vmatprep.mubr.f32.mxu0 0.0
      %965 = vmatmul.mubr.f32.gmra.mxu0 %v898
      %v966 = vpop.f32.mrf.mxu0
      %v967 = vadd.f32 %v894, %v966
      %v968 = vpop.f32.mrf.mxu0
      %969 = vdwg.mxu0
      %970 = vrot.lane.b32.xlu0 %v488, 112
      %v971 = vpop.permute.xlu0 %970
      %972 = vrot.lane.b32.xlu0 %v489, 112
      %v973 = vpop.permute.xlu0 %972
      %v974 = vsel %vm495, %v971, 0
      %v976 = vsel %vm495, %v973, 0
      %978 = vmatprep.subr.mxu0 0.0
      %979 = vmatpush1.xpose.msra.mxu0 0.0
      %980 = vmatprep.subr.mxu0 0.0
      %981 = vmatpush1.xpose.msra.mxu0 0.0
      %982 = vmatprep.subr.mxu0 0.0
      %983 = vmatpush1.xpose.msra.mxu0 0.0
      %984 = vmatprep.subr.mxu0 0.0
      %985 = vmatpush1.xpose.msra.mxu0 0.0
      %986 = vmatprep.subr.mxu0 0.0
      %987 = vmatpush1.xpose.msra.mxu0 0.0
      %988 = vmatprep.subr.mxu0 0.0
      %989 = vmatpush1.xpose.msra.mxu0 0.0
      %990 = vmatprep.subr.mxu0 0.0
      %991 = vmatpush1.xpose.msra.mxu0 0.0
      %992 = vmatprep.subr.mxu0 0.0
      %993 = vmatpush1.xpose.msra.mxu0 0.0
      %994 = vmatprep.subr.mxu0 0.0
      %995 = vmatpush1.xpose.msra.mxu0 0.0
      %996 = vmatprep.subr.mxu0 0.0
      %997 = vmatpush1.xpose.msra.mxu0 0.0
      %998 = vmatprep.subr.mxu0 0.0
      %999 = vmatpush1.xpose.msra.mxu0 0.0
      %1000 = vmatprep.subr.mxu0 0.0
      %1001 = vmatpush1.xpose.msra.mxu0 0.0
      %1002 = vmatprep.subr.mxu0 0.0
      %1003 = vmatpush1.xpose.msra.mxu0 0.0
      %1004 = vmatprep.subr.mxu0 0.0
      %1005 = vmatpush1.xpose.msra.mxu0 0.0
      %1006 = vmatprep.subr.mxu0 0.0
      %1007 = vmatpush1.xpose.msra.mxu0 0.0
      %1008 = vmatprep.subr.mxu0 0.0
      %1009 = vmatpush1.xpose.msra.mxu0 %v976
      %1010 = vmatprep.subr.mxu0 0.0
      %1011 = vmatpush2.xpose.msra.mxu0 0.0
      %1012 = vmatprep.subr.mxu0 0.0
      %1013 = vmatpush2.xpose.msra.mxu0 0.0
      %1014 = vmatprep.subr.mxu0 0.0
      %1015 = vmatpush2.xpose.msra.mxu0 0.0
      %1016 = vmatprep.subr.mxu0 0.0
      %1017 = vmatpush2.xpose.msra.mxu0 0.0
      %1018 = vmatprep.subr.mxu0 0.0
      %1019 = vmatpush2.xpose.msra.mxu0 0.0
      %1020 = vmatprep.subr.mxu0 0.0
      %1021 = vmatpush2.xpose.msra.mxu0 0.0
      %1022 = vmatprep.subr.mxu0 0.0
      %1023 = vmatpush2.xpose.msra.mxu0 0.0
      %1024 = vmatprep.subr.mxu0 0.0
      %1025 = vmatpush2.xpose.msra.mxu0 0.0
      %1026 = vmatprep.subr.mxu0 0.0
      %1027 = vmatpush2.xpose.msra.mxu0 0.0
      %1028 = vmatprep.subr.mxu0 0.0
      %1029 = vmatpush2.xpose.msra.mxu0 0.0
      %1030 = vmatprep.subr.mxu0 0.0
      %1031 = vmatpush2.xpose.msra.mxu0 0.0
      %1032 = vmatprep.subr.mxu0 0.0
      %1033 = vmatpush2.xpose.msra.mxu0 0.0
      %1034 = vmatprep.subr.mxu0 0.0
      %1035 = vmatpush2.xpose.msra.mxu0 0.0
      %1036 = vmatprep.subr.mxu0 0.0
      %1037 = vmatpush2.xpose.msra.mxu0 0.0
      %1038 = vmatprep.subr.mxu0 0.0
      %1039 = vmatpush2.xpose.msra.mxu0 0.0
      %1040 = vmatprep.subr.mxu0 0.0
      %1041 = vmatpush2.xpose.msra.mxu0 0.0
      %1042 = vmatprep.mubr.f32.mxu0 0.0
      %1043 = vmatmul.mubr.f32.gmra.mxu0 %v974
      %v1044 = vpop.f32.mrf.mxu0
      %v1045 = vadd.f32 0.0, %v1044
      %v1046 = vpop.f32.mrf.mxu0
      %1047 = vdwg.mxu0
      %v1048 = vmul.f32 %v1045, 0.35355338
      %v1049 = vsel %vm495, %v1048, -inf
      %1050 = vmax.xlane.f32.xlu0 %v1049
      %v1051 = vpop.xlane.xlu0 %1050
      %v1052 = vsub.f32 %v1048, %v1051
      %v1053 = vmul.f32 %v1052, 1.442695
      %v1054 = vpow.pop %v1053
      %v1055 = vsel %vm495, %v1054, 0.0
      %1056 = vadd.xlane.f32.xlu0 %v1055
      %v1057 = vpop.xlane.xlu0 %1056
      %v1058 = vrcp.pop %v1057
      %v1059 = vmul.f32 %v1054, %v1058
      %1060 = vrot.lane.b32.xlu0 %v490, 112
      %v1061 = vpop.permute.xlu0 %1060
      %v1064 = vsel %vm495, %v1059, 0
      %1066 = vmatprep.subr.mxu0 0.0
      %1067 = vmatpush1.msra.mxu0 0.0
      %1068 = vmatprep.subr.mxu0 0.0
      %1069 = vmatpush1.msra.mxu0 0.0
      %1070 = vmatprep.subr.mxu0 0.0
      %1071 = vmatpush1.msra.mxu0 0.0
      %1072 = vmatprep.subr.mxu0 0.0
      %1073 = vmatpush1.msra.mxu0 0.0
      %1074 = vmatprep.subr.mxu0 0.0
      %1075 = vmatpush1.msra.mxu0 0.0
      %1076 = vmatprep.subr.mxu0 0.0
      %1077 = vmatpush1.msra.mxu0 0.0
      %1078 = vmatprep.subr.mxu0 0.0
      %1079 = vmatpush1.msra.mxu0 0.0
      %1080 = vmatprep.subr.mxu0 0.0
      %1081 = vmatpush1.msra.mxu0 0.0
      %1082 = vmatprep.subr.mxu0 0.0
      %1083 = vmatpush1.msra.mxu0 0.0
      %1084 = vmatprep.subr.mxu0 0.0
      %1085 = vmatpush1.msra.mxu0 0.0
      %1086 = vmatprep.subr.mxu0 0.0
      %1087 = vmatpush1.msra.mxu0 0.0
      %1088 = vmatprep.subr.mxu0 0.0
      %1089 = vmatpush1.msra.mxu0 0.0
      %1090 = vmatprep.subr.mxu0 0.0
      %1091 = vmatpush1.msra.mxu0 0.0
      %1092 = vmatprep.subr.mxu0 0.0
      %1093 = vmatpush1.msra.mxu0 0.0
      %1094 = vmatprep.subr.mxu0 0.0
      %1095 = vmatpush1.msra.mxu0 0.0
      %1096 = vmatprep.subr.mxu0 0.0
      %1097 = vmatpush1.msra.mxu0 %v1061
      %1098 = vmatprep.subr.mxu0 0.0
      %1099 = vmatpush2.msra.mxu0 0.0
      %1100 = vmatprep.subr.mxu0 0.0
      %1101 = vmatpush2.msra.mxu0 0.0
      %1102 = vmatprep.subr.mxu0 0.0
      %1103 = vmatpush2.msra.mxu0 0.0
      %1104 = vmatprep.subr.mxu0 0.0
      %1105 = vmatpush2.msra.mxu0 0.0
      %1106 = vmatprep.subr.mxu0 0.0
      %1107 = vmatpush2.msra.mxu0 0.0
      %1108 = vmatprep.subr.mxu0 0.0
      %1109 = vmatpush2.msra.mxu0 0.0
      %1110 = vmatprep.subr.mxu0 0.0
      %1111 = vmatpush2.msra.mxu0 0.0
      %1112 = vmatprep.subr.mxu0 0.0
      %1113 = vmatpush2.msra.mxu0 0.0
      %1114 = vmatprep.subr.mxu0 0.0
      %1115 = vmatpush2.msra.mxu0 0.0
      %1116 = vmatprep.subr.mxu0 0.0
      %1117 = vmatpush2.msra.mxu0 0.0
      %1118 = vmatprep.subr.mxu0 0.0
      %1119 = vmatpush2.msra.mxu0 0.0
      %1120 = vmatprep.subr.mxu0 0.0
      %1121 = vmatpush2.msra.mxu0 0.0
      %1122 = vmatprep.subr.mxu0 0.0
      %1123 = vmatpush2.msra.mxu0 0.0
      %1124 = vmatprep.subr.mxu0 0.0
      %1125 = vmatpush2.msra.mxu0 0.0
      %1126 = vmatprep.subr.mxu0 0.0
      %1127 = vmatpush2.msra.mxu0 0.0
      %1128 = vmatprep.subr.mxu0 0.0
      %1129 = vmatpush2.msra.mxu0 0.0
      %1130 = vmatprep.mubr.f32.mxu0 0.0
      %1131 = vmatmul.mubr.f32.gmra.mxu0 %v1064
      %v1132 = vpop.f32.mrf.mxu0
      %v1133 = vadd.f32 0.0, %v1132
      %v1134 = vpop.f32.mrf.mxu0
      %1135 = vdwg.mxu0
      %v1137 = vsel %vm495, %v1133, 0
      %1139 = vmatprep.subr.mxu0 0.0
      %1140 = vmatpush1.msra.mxu0 0.0
      %1141 = vmatprep.subr.mxu0 0.0
      %1142 = vmatpush1.msra.mxu0 0.0
      %1143 = vmatprep.subr.mxu0 0.0
      %1144 = vmatpush1.msra.mxu0 0.0
      %1145 = vmatprep.subr.mxu0 0.0
      %1146 = vmatpush1.msra.mxu0 0.0
      %1147 = vmatprep.subr.mxu0 0.0
      %1148 = vmatpush1.msra.mxu0 0.0
      %1149 = vmatprep.subr.mxu0 0.0
      %1150 = vmatpush1.msra.mxu0 0.0
      %1151 = vmatprep.subr.mxu0 0.0
      %1152 = vmatpush1.msra.mxu0 0.0
      %1153 = vmatprep.subr.mxu0 0.0
      %1154 = vmatpush1.msra.mxu0 0.0
      %1155 = vmatprep.subr.mxu0 0.0
      %1156 = vmatpush1.msra.mxu0 0.0
      %1157 = vmatprep.subr.mxu0 0.0
      %1158 = vmatpush1.msra.mxu0 0.0
      %1159 = vmatprep.subr.mxu0 0.0
      %1160 = vmatpush1.msra.mxu0 0.0
      %1161 = vmatprep.subr.mxu0 0.0
      %1162 = vmatpush1.msra.mxu0 0.0
      %1163 = vmatprep.subr.mxu0 0.0
      %1164 = vmatpush1.msra.mxu0 0.0
      %1165 = vmatprep.subr.mxu0 0.0
      %1166 = vmatpush1.msra.mxu0 0.0
      %1167 = vmatprep.subr.mxu0 0.0
      %1168 = vmatpush1.msra.mxu0 0.0
      %1169 = vmatprep.subr.mxu0 0.0
      %1170 = vmatpush1.msra.mxu0 %v493
      %1171 = vmatprep.subr.mxu0 0.0
      %1172 = vmatpush2.msra.mxu0 0.0
      %1173 = vmatprep.subr.mxu0 0.0
      %1174 = vmatpush2.msra.mxu0 0.0
      %1175 = vmatprep.subr.mxu0 0.0
      %1176 = vmatpush2.msra.mxu0 0.0
      %1177 = vmatprep.subr.mxu0 0.0
      %1178 = vmatpush2.msra.mxu0 0.0
      %1179 = vmatprep.subr.mxu0 0.0
      %1180 = vmatpush2.msra.mxu0 0.0
      %1181 = vmatprep.subr.mxu0 0.0
      %1182 = vmatpush2.msra.mxu0 0.0
      %1183 = vmatprep.subr.mxu0 0.0
      %1184 = vmatpush2.msra.mxu0 0.0
      %1185 = vmatprep.subr.mxu0 0.0
      %1186 = vmatpush2.msra.mxu0 0.0
      %1187 = vmatprep.subr.mxu0 0.0
      %1188 = vmatpush2.msra.mxu0 0.0
      %1189 = vmatprep.subr.mxu0 0.0
      %1190 = vmatpush2.msra.mxu0 0.0
      %1191 = vmatprep.subr.mxu0 0.0
      %1192 = vmatpush2.msra.mxu0 0.0
      %1193 = vmatprep.subr.mxu0 0.0
      %1194 = vmatpush2.msra.mxu0 0.0
      %1195 = vmatprep.subr.mxu0 0.0
      %1196 = vmatpush2.msra.mxu0 0.0
      %1197 = vmatprep.subr.mxu0 0.0
      %1198 = vmatpush2.msra.mxu0 0.0
      %1199 = vmatprep.subr.mxu0 0.0
      %1200 = vmatpush2.msra.mxu0 0.0
      %1201 = vmatprep.subr.mxu0 0.0
      %1202 = vmatpush2.msra.mxu0 0.0
      %1203 = vmatprep.mubr.f32.mxu0 0.0
      %1204 = vmatmul.mubr.f32.gmra.mxu0 %v1137
      %v1205 = vpop.f32.mrf.mxu0
      %v1206 = vadd.f32 0.0, %v1205
      %v1207 = vpop.f32.mrf.mxu0
      %1208 = vdwg.mxu0
      %v1209 = vadd.f32 %v967, %v1206
      %1210 = vrot.lane.b32.xlu0 %v488, 104
      %v1211 = vpop.permute.xlu0 %1210
      %1212 = vrot.lane.b32.xlu0 %v489, 104
      %v1213 = vpop.permute.xlu0 %1212
      %v1214 = vsel %vm495, %v1211, 0
      %v1216 = vsel %vm495, %v1213, 0
      %1218 = vmatprep.subr.mxu0 0.0
      %1219 = vmatpush1.xpose.msra.mxu0 0.0
      %1220 = vmatprep.subr.mxu0 0.0
      %1221 = vmatpush1.xpose.msra.mxu0 0.0
      %1222 = vmatprep.subr.mxu0 0.0
      %1223 = vmatpush1.xpose.msra.mxu0 0.0
      %1224 = vmatprep.subr.mxu0 0.0
      %1225 = vmatpush1.xpose.msra.mxu0 0.0
      %1226 = vmatprep.subr.mxu0 0.0
      %1227 = vmatpush1.xpose.msra.mxu0 0.0
      %1228 = vmatprep.subr.mxu0 0.0
      %1229 = vmatpush1.xpose.msra.mxu0 0.0
      %1230 = vmatprep.subr.mxu0 0.0
      %1231 = vmatpush1.xpose.msra.mxu0 0.0
      %1232 = vmatprep.subr.mxu0 0.0
      %1233 = vmatpush1.xpose.msra.mxu0 0.0
      %1234 = vmatprep.subr.mxu0 0.0
      %1235 = vmatpush1.xpose.msra.mxu0 0.0
      %1236 = vmatprep.subr.mxu0 0.0
      %1237 = vmatpush1.xpose.msra.mxu0 0.0
      %1238 = vmatprep.subr.mxu0 0.0
      %1239 = vmatpush1.xpose.msra.mxu0 0.0
      %1240 = vmatprep.subr.mxu0 0.0
      %1241 = vmatpush1.xpose.msra.mxu0 0.0
      %1242 = vmatprep.subr.mxu0 0.0
      %1243 = vmatpush1.xpose.msra.mxu0 0.0
      %1244 = vmatprep.subr.mxu0 0.0
      %1245 = vmatpush1.xpose.msra.mxu0 0.0
      %1246 = vmatprep.subr.mxu0 0.0
      %1247 = vmatpush1.xpose.msra.mxu0 0.0
      %1248 = vmatprep.subr.mxu0 0.0
      %1249 = vmatpush1.xpose.msra.mxu0 %v1216
      %1250 = vmatprep.subr.mxu0 0.0
      %1251 = vmatpush2.xpose.msra.mxu0 0.0
      %1252 = vmatprep.subr.mxu0 0.0
      %1253 = vmatpush2.xpose.msra.mxu0 0.0
      %1254 = vmatprep.subr.mxu0 0.0
      %1255 = vmatpush2.xpose.msra.mxu0 0.0
      %1256 = vmatprep.subr.mxu0 0.0
      %1257 = vmatpush2.xpose.msra.mxu0 0.0
      %1258 = vmatprep.subr.mxu0 0.0
      %1259 = vmatpush2.xpose.msra.mxu0 0.0
      %1260 = vmatprep.subr.mxu0 0.0
      %1261 = vmatpush2.xpose.msra.mxu0 0.0
      %1262 = vmatprep.subr.mxu0 0.0
      %1263 = vmatpush2.xpose.msra.mxu0 0.0
      %1264 = vmatprep.subr.mxu0 0.0
      %1265 = vmatpush2.xpose.msra.mxu0 0.0
      %1266 = vmatprep.subr.mxu0 0.0
      %1267 = vmatpush2.xpose.msra.mxu0 0.0
      %1268 = vmatprep.subr.mxu0 0.0
      %1269 = vmatpush2.xpose.msra.mxu0 0.0
      %1270 = vmatprep.subr.mxu0 0.0
      %1271 = vmatpush2.xpose.msra.mxu0 0.0
      %1272 = vmatprep.subr.mxu0 0.0
      %1273 = vmatpush2.xpose.msra.mxu0 0.0
      %1274 = vmatprep.subr.mxu0 0.0
      %1275 = vmatpush2.xpose.msra.mxu0 0.0
      %1276 = vmatprep.subr.mxu0 0.0
      %1277 = vmatpush2.xpose.msra.mxu0 0.0
      %1278 = vmatprep.subr.mxu0 0.0
      %1279 = vmatpush2.xpose.msra.mxu0 0.0
      %1280 = vmatprep.subr.mxu0 0.0
      %1281 = vmatpush2.xpose.msra.mxu0 0.0
      %1282 = vmatprep.mubr.f32.mxu0 0.0
      %1283 = vmatmul.mubr.f32.gmra.mxu0 %v1214
      %v1284 = vpop.f32.mrf.mxu0
      %v1285 = vadd.f32 0.0, %v1284
      %v1286 = vpop.f32.mrf.mxu0
      %1287 = vdwg.mxu0
      %v1288 = vmul.f32 %v1285, 0.35355338
      %v1289 = vsel %vm495, %v1288, -inf
      %1290 = vmax.xlane.f32.xlu0 %v1289
      %v1291 = vpop.xlane.xlu0 %1290
      %v1292 = vsub.f32 %v1288, %v1291
      %v1293 = vmul.f32 %v1292, 1.442695
      %v1294 = vpow.pop %v1293
      %v1295 = vsel %vm495, %v1294, 0.0
      %1296 = vadd.xlane.f32.xlu0 %v1295
      %v1297 = vpop.xlane.xlu0 %1296
      %v1298 = vrcp.pop %v1297
      %v1299 = vmul.f32 %v1294, %v1298
      %1300 = vrot.lane.b32.xlu0 %v490, 104
      %v1301 = vpop.permute.xlu0 %1300
      %v1304 = vsel %vm495, %v1299, 0
      %1306 = vmatprep.subr.mxu0 0.0
      %1307 = vmatpush1.msra.mxu0 0.0
      %1308 = vmatprep.subr.mxu0 0.0
      %1309 = vmatpush1.msra.mxu0 0.0
      %1310 = vmatprep.subr.mxu0 0.0
      %1311 = vmatpush1.msra.mxu0 0.0
      %1312 = vmatprep.subr.mxu0 0.0
      %1313 = vmatpush1.msra.mxu0 0.0
      %1314 = vmatprep.subr.mxu0 0.0
      %1315 = vmatpush1.msra.mxu0 0.0
      %1316 = vmatprep.subr.mxu0 0.0
      %1317 = vmatpush1.msra.mxu0 0.0
      %1318 = vmatprep.subr.mxu0 0.0
      %1319 = vmatpush1.msra.mxu0 0.0
      %1320 = vmatprep.subr.mxu0 0.0
      %1321 = vmatpush1.msra.mxu0 0.0
      %1322 = vmatprep.subr.mxu0 0.0
      %1323 = vmatpush1.msra.mxu0 0.0
      %1324 = vmatprep.subr.mxu0 0.0
      %1325 = vmatpush1.msra.mxu0 0.0
      %1326 = vmatprep.subr.mxu0 0.0
      %1327 = vmatpush1.msra.mxu0 0.0
      %1328 = vmatprep.subr.mxu0 0.0
      %1329 = vmatpush1.msra.mxu0 0.0
      %1330 = vmatprep.subr.mxu0 0.0
      %1331 = vmatpush1.msra.mxu0 0.0
      %1332 = vmatprep.subr.mxu0 0.0
      %1333 = vmatpush1.msra.mxu0 0.0
      %1334 = vmatprep.subr.mxu0 0.0
      %1335 = vmatpush1.msra.mxu0 0.0
      %1336 = vmatprep.subr.mxu0 0.0
      %1337 = vmatpush1.msra.mxu0 %v1301
      %1338 = vmatprep.subr.mxu0 0.0
      %1339 = vmatpush2.msra.mxu0 0.0
      %1340 = vmatprep.subr.mxu0 0.0
      %1341 = vmatpush2.msra.mxu0 0.0
      %1342 = vmatprep.subr.mxu0 0.0
      %1343 = vmatpush2.msra.mxu0 0.0
      %1344 = vmatprep.subr.mxu0 0.0
      %1345 = vmatpush2.msra.mxu0 0.0
      %1346 = vmatprep.subr.mxu0 0.0
      %1347 = vmatpush2.msra.mxu0 0.0
      %1348 = vmatprep.subr.mxu0 0.0
      %1349 = vmatpush2.msra.mxu0 0.0
      %1350 = vmatprep.subr.mxu0 0.0
      %1351 = vmatpush2.msra.mxu0 0.0
      %1352 = vmatprep.subr.mxu0 0.0
      %1353 = vmatpush2.msra.mxu0 0.0
      %1354 = vmatprep.subr.mxu0 0.0
      %1355 = vmatpush2.msra.mxu0 0.0
      %1356 = vmatprep.subr.mxu0 0.0
      %1357 = vmatpush2.msra.mxu0 0.0
      %1358 = vmatprep.subr.mxu0 0.0
      %1359 = vmatpush2.msra.mxu0 0.0
      %1360 = vmatprep.subr.mxu0 0.0
      %1361 = vmatpush2.msra.mxu0 0.0
      %1362 = vmatprep.subr.mxu0 0.0
      %1363 = vmatpush2.msra.mxu0 0.0
      %1364 = vmatprep.subr.mxu0 0.0
      %1365 = vmatpush2.msra.mxu0 0.0
      %1366 = vmatprep.subr.mxu0 0.0
      %1367 = vmatpush2.msra.mxu0 0.0
      %1368 = vmatprep.subr.mxu0 0.0
      %1369 = vmatpush2.msra.mxu0 0.0
      %1370 = vmatprep.mubr.f32.mxu0 0.0
      %1371 = vmatmul.mubr.f32.gmra.mxu0 %v1304
      %v1372 = vpop.f32.mrf.mxu0
      %v1373 = vadd.f32 0.0, %v1372
      %v1374 = vpop.f32.mrf.mxu0
      %1375 = vdwg.mxu0
      %v1377 = vsel %vm495, %v1373, 0
      %1379 = vmatprep.subr.mxu0 0.0
      %1380 = vmatpush1.msra.mxu0 0.0
      %1381 = vmatprep.subr.mxu0 0.0
      %1382 = vmatpush1.msra.mxu0 0.0
      %1383 = vmatprep.subr.mxu0 0.0
      %1384 = vmatpush1.msra.mxu0 0.0
      %1385 = vmatprep.subr.mxu0 0.0
      %1386 = vmatpush1.msra.mxu0 0.0
      %1387 = vmatprep.subr.mxu0 0.0
      %1388 = vmatpush1.msra.mxu0 0.0
      %1389 = vmatprep.subr.mxu0 0.0
      %1390 = vmatpush1.msra.mxu0 0.0
      %1391 = vmatprep.subr.mxu0 0.0
      %1392 = vmatpush1.msra.mxu0 0.0
      %1393 = vmatprep.subr.mxu0 0.0
      %1394 = vmatpush1.msra.mxu0 0.0
      %1395 = vmatprep.subr.mxu0 0.0
      %1396 = vmatpush1.msra.mxu0 0.0
      %1397 = vmatprep.subr.mxu0 0.0
      %1398 = vmatpush1.msra.mxu0 0.0
      %1399 = vmatprep.subr.mxu0 0.0
      %1400 = vmatpush1.msra.mxu0 0.0
      %1401 = vmatprep.subr.mxu0 0.0
      %1402 = vmatpush1.msra.mxu0 0.0
      %1403 = vmatprep.subr.mxu0 0.0
      %1404 = vmatpush1.msra.mxu0 0.0
      %1405 = vmatprep.subr.mxu0 0.0
      %1406 = vmatpush1.msra.mxu0 0.0
      %1407 = vmatprep.subr.mxu0 0.0
      %1408 = vmatpush1.msra.mxu0 0.0
      %1409 = vmatprep.subr.mxu0 0.0
      %1410 = vmatpush1.msra.mxu0 %v494
      %1411 = vmatprep.subr.mxu0 0.0
      %1412 = vmatpush2.msra.mxu0 0.0
      %1413 = vmatprep.subr.mxu0 0.0
      %1414 = vmatpush2.msra.mxu0 0.0
      %1415 = vmatprep.subr.mxu0 0.0
      %1416 = vmatpush2.msra.mxu0 0.0
      %1417 = vmatprep.subr.mxu0 0.0
      %1418 = vmatpush2.msra.mxu0 0.0
      %1419 = vmatprep.subr.mxu0 0.0
      %1420 = vmatpush2.msra.mxu0 0.0
      %1421 = vmatprep.subr.mxu0 0.0
      %1422 = vmatpush2.msra.mxu0 0.0
      %1423 = vmatprep.subr.mxu0 0.0
      %1424 = vmatpush2.msra.mxu0 0.0
      %1425 = vmatprep.subr.mxu0 0.0
      %1426 = vmatpush2.msra.mxu0 0.0
      %1427 = vmatprep.subr.mxu0 0.0
      %1428 = vmatpush2.msra.mxu0 0.0
      %1429 = vmatprep.subr.mxu0 0.0
      %1430 = vmatpush2.msra.mxu0 0.0
      %1431 = vmatprep.subr.mxu0 0.0
      %1432 = vmatpush2.msra.mxu0 0.0
      %1433 = vmatprep.subr.mxu0 0.0
      %1434 = vmatpush2.msra.mxu0 0.0
      %1435 = vmatprep.subr.mxu0 0.0
      %1436 = vmatpush2.msra.mxu0 0.0
      %1437 = vmatprep.subr.mxu0 0.0
      %1438 = vmatpush2.msra.mxu0 0.0
      %1439 = vmatprep.subr.mxu0 0.0
      %1440 = vmatpush2.msra.mxu0 0.0
      %1441 = vmatprep.subr.mxu0 0.0
      %1442 = vmatpush2.msra.mxu0 0.0
      %1443 = vmatprep.mubr.f32.mxu0 0.0
      %1444 = vmatmul.mubr.f32.gmra.mxu0 %v1377
      %v1445 = vpop.f32.mrf.mxu0
      %v1446 = vadd.f32 0.0, %v1445
      %v1447 = vpop.f32.mrf.mxu0
      %1448 = vdwg.mxu0
      %v1449 = vadd.f32 %v1209, %v1446
      %v1450 = vld [vmem:[%s5] sm:$0x1]
      %v1452 = vlaneseq
      %v1453 = vshrl.u32 %v1452, 7
      %v1454 = vsub.s32 0, %v1453
      %v1455 = vrot.slane %v1450, %v1454
      %v1457 = vadd.f32 %v1449, %v1455
      %v1458 = vld [vmem:[%s475] sm:$0xff]
      %v1459 = vadd.f32 %v1457, %v1458
      %v1460 = vld [vmem:[%s6] sm:$0x1]
      %v1461 = vld [vmem:[%s7] sm:$0x1]
      %vm1462 = vcmask 261120
      %v1463 = vsel %vm1462, %v1459, 0.0
      %1464 = vadd.xlane.f32.xlu0 %v1463
      %v1465 = vpop.xlane.xlu0 %1464
      %v1466 = vrcp.pop 32.0
      %v1467 = vmul.f32 %v1465, %v1466
      %v1468 = vsub.f32 %v1459, %v1467
      %v1469 = vmul.f32 %v1468, %v1468
      %v1470 = vsel %vm1462, %v1469, 0.0
      %1471 = vadd.xlane.f32.xlu0 %v1470
      %v1472 = vpop.xlane.xlu0 %1471
      %v1473 = vmul.f32 %v1472, %v1466
      %v1474 = vadd.f32 %v1473, 1e-05
      %v1475 = vrsqrt.pop %v1474
      %v1476 = vmul.f32 %v1468, %v1475
      %v1478 = vlaneseq
      %v1479 = vshrl.u32 %v1478, 7
      %v1480 = vsub.s32 0, %v1479
      %v1481 = vrot.slane %v1460, %v1480
      %v1483 = vmul.f32 %v1476, %v1481
      %v1485 = vlaneseq
      %v1486 = vshrl.u32 %v1485, 7
      %v1487 = vsub.s32 0, %v1486
      %v1488 = vrot.slane %v1461, %v1487
      %v1490 = vadd.f32 %v1483, %v1488
      %v1491 = vld [vmem:[%s479] sm:$0xff]
      %v1492 = vadd.f32 %v1490, %v1491
      %v1493 = vld [vmem:[%s9] sm:$0xff]
      %v1494 = vld [vmem:[%s9 + $0x8] sm:$0xff]
      %v1495 = vld [vmem:[%s9 + $0x10] sm:$0xff]
      %v1496 = vld [vmem:[%s9 + $0x18] sm:$0xff]
      %v1497 = vld [vmem:[%s10] sm:$0x1]
      %v1499 = vlaneseq
      %v1500 = vshrl.u32 %v1499, 7
      %v1501 = vsub.s32 0, %v1500
      %v1502 = vrot.slane %v1497, %v1501
      %v1505 = vsel %vm1462, %v1492, 0
      %1507 = vmatprep.subr.mxu0 0.0
      %1508 = vmatpush1.msra.mxu0 0.0
      %1509 = vmatprep.subr.mxu0 0.0
      %1510 = vmatpush1.msra.mxu0 0.0
      %1511 = vmatprep.subr.mxu0 0.0
      %1512 = vmatpush1.msra.mxu0 0.0
      %1513 = vmatprep.subr.mxu0 0.0
      %1514 = vmatpush1.msra.mxu0 0.0
      %1515 = vmatprep.subr.mxu0 0.0
      %1516 = vmatpush1.msra.mxu0 0.0
      %1517 = vmatprep.subr.mxu0 0.0
      %1518 = vmatpush1.msra.mxu0 0.0
      %1519 = vmatprep.subr.mxu0 0.0
      %1520 = vmatpush1.msra.mxu0 0.0
      %1521 = vmatprep.subr.mxu0 0.0
      %1522 = vmatpush1.msra.mxu0 0.0
      %1523 = vmatprep.subr.mxu0 0.0
      %1524 = vmatpush1.msra.mxu0 0.0
      %1525 = vmatprep.subr.mxu0 0.0
      %1526 = vmatpush1.msra.mxu0 0.0
      %1527 = vmatprep.subr.mxu0 0.0
      %1528 = vmatpush1.msra.mxu0 0.0
      %1529 = vmatprep.subr.mxu0 0.0
      %1530 = vmatpush1.msra.mxu0 0.0
      %1531 = vmatprep.subr.mxu0 0.0
      %1532 = vmatpush1.msra.mxu0 %v1496
      %1533 = vmatprep.subr.mxu0 0.0
      %1534 = vmatpush1.msra.mxu0 %v1495
      %1535 = vmatprep.subr.mxu0 0.0
      %1536 = vmatpush1.msra.mxu0 %v1494
      %1537 = vmatprep.subr.mxu0 0.0
      %1538 = vmatpush1.msra.mxu0 %v1493
      %1539 = vmatprep.subr.mxu0 0.0
      %1540 = vmatpush2.msra.mxu0 0.0
      %1541 = vmatprep.subr.mxu0 0.0
      %1542 = vmatpush2.msra.mxu0 0.0
      %1543 = vmatprep.subr.mxu0 0.0
      %1544 = vmatpush2.msra.mxu0 0.0
      %1545 = vmatprep.subr.mxu0 0.0
      %1546 = vmatpush2.msra.mxu0 0.0
      %1547 = vmatprep.subr.mxu0 0.0
      %1548 = vmatpush2.msra.mxu0 0.0
      %1549 = vmatprep.subr.mxu0 0.0
      %1550 = vmatpush2.msra.mxu0 0.0
      %1551 = vmatprep.subr.mxu0 0.0
      %1552 = vmatpush2.msra.mxu0 0.0
      %1553 = vmatprep.subr.mxu0 0.0
      %1554 = vmatpush2.msra.mxu0 0.0
      %1555 = vmatprep.subr.mxu0 0.0
      %1556 = vmatpush2.msra.mxu0 0.0
      %1557 = vmatprep.subr.mxu0 0.0
      %1558 = vmatpush2.msra.mxu0 0.0
      %1559 = vmatprep.subr.mxu0 0.0
      %1560 = vmatpush2.msra.mxu0 0.0
      %1561 = vmatprep.subr.mxu0 0.0
      %1562 = vmatpush2.msra.mxu0 0.0
      %1563 = vmatprep.subr.mxu0 0.0
      %1564 = vmatpush2.msra.mxu0 0.0
      %1565 = vmatprep.subr.mxu0 0.0
      %1566 = vmatpush2.msra.mxu0 0.0
      %1567 = vmatprep.subr.mxu0 0.0
      %1568 = vmatpush2.msra.mxu0 0.0
      %1569 = vmatprep.subr.mxu0 0.0
      %1570 = vmatpush2.msra.mxu0 0.0
      %1571 = vmatprep.mubr.f32.mxu0 0.0
      %1572 = vmatmul.mubr.f32.gmra.mxu0 %v1505
      %v1573 = vpop.f32.mrf.mxu0
      %v1574 = vadd.f32 %v1502, %v1573
      %v1575 = vpop.f32.mrf.mxu0
      %1576 = vdwg.mxu0
      %1577 = vst.msk [vmem:[%s483] sm:$0xff] %vm1462, %v1490
      %1578 = vst.msk [vmem:[%s487] sm:$0xff] %vm1462, %v1574
      %p1579 = scmp.lt.s32.totalorder %s24, 1
      %s1580 = scalar_select %p1579, %s24, 1
      %s1581 = smul.addr %s1580, 8
      %s1582 = scalar_lea.vmem %s11, %s1581
      %p1583 = scmp.lt.s32.totalorder %s24, 1
      %s1584 = scalar_select %p1583, %s24, 1
      %s1585 = smul.addr %s1584, 8
      %s1586 = scalar_lea.vmem %s12, %s1585
      // Predicated region
      $region65: #{transformer_forward.20} parent=63 // pred_check
        %p1587 = pneg %p298
      $region66: #{transformer_forward.20} parent=63 // pred_check_branch
        %1589 = sbr.rel (%p1587) target = $region68
      $region67: #{transformer_forward.20} parent=63 // pred_region
        _
      $region68: #{transformer_forward.20} parent=63 // pred_fallthru
        _
      // Predicated region
      $region69: #{transformer_forward.20} parent=63 // pred_check
        %p1590 = pneg %p324
      $region70: #{transformer_forward.20} parent=63 // pred_check_branch
        %1592 = sbr.rel (%p1590) target = $region72
      $region71: #{transformer_forward.20} parent=63 // pred_region
        _
      $region72: #{transformer_forward.20} parent=63 // pred_fallthru
        _
    $region64: #{transformer_forward.20} parent=5 // pred_fallthru
      _
    %p1593 = scmp.le.s32.totalorder 2, %s19
    // Predicated region
    $region73: #{transformer_forward.20} parent=5 // pred_check
      %p1594 = pneg %p1593
    $region74: #{transformer_forward.20} parent=5 // pred_check_branch
      %1596 = sbr.rel (%p1594) target = $region76
    $region75: #{transformer_forward.20} parent=5 // pred_region
      %s1597 = ssub.s32 %s19, 2
      // Predicated region
      $region77: #{transformer_forward.20} parent=75 // pred_check
        %p1598 = pneg %p304
      $region78: #{transformer_forward.20} parent=75 // pred_check_branch
        %1600 = sbr.rel (%p1598) target = $region80
      $region79: #{transformer_forward.20} parent=75 // pred_region
        %p1601 = scmp.lt.s32.totalorder %s25, 1
        %s1602 = scalar_select %p1601, %s25, 1
        %s1603 = smul.addr %s1602, 8
        %s1604 = scalar_lea.vmem %s11, %s1603
      $region80: #{transformer_forward.20} parent=75 // pred_fallthru
        _
      // Predicated region
      $region81: #{transformer_forward.20} parent=75 // pred_check
        %p1605 = pneg %p330
      $region82: #{transformer_forward.20} parent=75 // pred_check_branch
        %1607 = sbr.rel (%p1605) target = $region84
      $region83: #{transformer_forward.20} parent=75 // pred_region
        %p1608 = scmp.lt.s32.totalorder %s25, 1
        %s1609 = scalar_select %p1608, %s25, 1
        %s1610 = smul.addr %s1609, 8
        %s1611 = scalar_lea.vmem %s12, %s1610
      $region84: #{transformer_forward.20} parent=75 // pred_fallthru
        _
    $region76: #{transformer_forward.20} parent=5 // pred_fallthru
      _
  $region6: #{transformer_forward.20} parent=0 // loop_footer
    %s23 = sadd.s32 1, %s19
  $region7: #{transformer_forward.20} parent=0 // loop_footer_branch
    %18 = sbr.rel target = $region3
  $region8: #{transformer_forward.20} parent=0 // loop_exit
    _

// kernel: transformer_forward.22
$region0: #{transformer_forward.22}
  #allocation0 [shape = 'u32[]', space=smem, size = 0x4, offset = 0x4, fixed_abs, tag = 'smem constant byte address 0x4 - core index']
  #allocation1 [shape = 'u32[144,128]{1,0:T(1,128)}', space=vmem, size = 0x12000, scoped, tag = 'internal scratch']
  %s0 = inlined_call_operand.vmem [shape: f32[2,8,32], index: 0, kind: input, shape index: {}]
  %s1 = inlined_call_operand.vmem [shape: f32[2,16,32], index: 1, kind: input, shape index: {}]
  %s2 = inlined_call_operand.vmem [shape: f32[2,16,32], index: 2, kind: input, shape index: {}]
  %s3 = inlined_call_operand.vmem [shape: f32[2,8,32], index: 3, kind: input, shape index: {}]
  %s4 = inlined_call_operand.vmem [shape: f32[32,32], index: 4, kind: input, shape index: {}]
  %s5 = inlined_call_operand.vmem [shape: f32[1,32], index: 5, kind: input, shape index: {}]
  %s6 = inlined_call_operand.vmem [shape: f32[1,32], index: 6, kind: input, shape index: {}]
  %s7 = inlined_call_operand.vmem [shape: f32[1,32], index: 7, kind: input, shape index: {}]
  %s8 = inlined_call_operand.vmem [shape: f32[32,64], index: 8, kind: input, shape index: {}]
  %s9 = inlined_call_operand.vmem [shape: f32[1,64], index: 9, kind: input, shape index: {}]
  %s10 = inlined_call_operand.vmem [shape: f32[64,32], index: 10, kind: input, shape index: {}]
  %s11 = inlined_call_operand.vmem [shape: f32[1,32], index: 11, kind: input, shape index: {}]
  %s12 = inlined_call_operand.vmem [shape: f32[2,8,32], index: 12, kind: output, shape index: {}]
  %s13 = sld [smem:[#allocation0]]
  $region81: #{transformer_forward.22} parent=0
    _
  %s15 = ssub.s32 1, %s13
  %s16 = scalar_select 0, %s15, %s13
  loop: start=0, step=1, limit=4
  $region2: #{transformer_forward.22} parent=0 // loop_pre_header
    _
  $region3: #{transformer_forward.22} parent=0 // loop_header
    %s18 = sphi 0, %s22
    %p19 = scmp.ge.s32.totalorder %s18, 4
    %s28 = sphi 0, %s30
    %s31 = sphi 0, %s28
    %s32 = sphi 0, %s31
    %s48 = sphi 0, %s32
    %s54 = sphi 0, %s56
    %s57 = sphi 0, %s54
    %s58 = sphi 0, %s57
    %s74 = sphi 0, %s58
    %s80 = sphi 0, %s82
    %s83 = sphi 0, %s80
    %s84 = sphi 0, %s83
    %s100 = sphi 0, %s84
    %s106 = sphi 0, %s108
    %s109 = sphi 0, %s106
    %s110 = sphi 0, %s109
    %s126 = sphi 0, %s110
    %s130 = sphi 0, %s130
    %s132 = sphi 0, %s130
    %s133 = sphi 0, %s132
    %s147 = sphi 0, %s133
    %s151 = sphi 0, %s151
    %s153 = sphi 0, %s151
    %s154 = sphi 0, %s153
    %s168 = sphi 0, %s154
    %s172 = sphi 0, %s172
    %s174 = sphi 0, %s172
    %s175 = sphi 0, %s174
    %s189 = sphi 0, %s175
    %s193 = sphi 0, %s193
    %s195 = sphi 0, %s193
    %s196 = sphi 0, %s195
    %s210 = sphi 0, %s196
    %s214 = sphi 0, %s214
    %s216 = sphi 0, %s214
    %s217 = sphi 0, %s216
    %s231 = sphi 0, %s217
    %s235 = sphi 0, %s235
    %s237 = sphi 0, %s235
    %s238 = sphi 0, %s237
    %s252 = sphi 0, %s238
    %s256 = sphi 0, %s256
    %s258 = sphi 0, %s256
    %s259 = sphi 0, %s258
    %s273 = sphi 0, %s259
    %s277 = sphi 0, %s277
    %s279 = sphi 0, %s277
    %s280 = sphi 0, %s279
    %s294 = sphi 0, %s280
    %s300 = sphi 0, %s302
    %s303 = sphi 0, %s300
    %s304 = sphi 0, %s303
    %s320 = sphi 0, %s304
  $region4: #{transformer_forward.22} parent=0 // loop_header_branch
    %21 = sbr.rel (%p19) target = $region8
  $region5: #{transformer_forward.22} parent=0 // loop_body
    %s23 = ssub.s32 %s18, 1
    %s24 = ssub.s32 %s18, 2
    %s25 = sadd.s32 %s18, 1
    %s26 = ssub.s32 %s18, %s25
    %p27 = scmp.eq.s32.totalorder %s26, 0
    %s29 = sadd.s32 %s28, 1
    %s30 = scalar_select %p27, %s28, %s29
    %p33 = pneg %p27
    %p34 = scmp.eq.s32.totalorder %s18, 1
    %p35 = por %p33, %p34
    %p36 = scmp.ne.s32.totalorder %s28, %s31
    %p37 = scmp.eq.s32.totalorder %s18, 0
    %p38 = por %p36, %p37
    %p39 = scmp.ne.s32.totalorder %s28, %s31
    %p40 = scmp.eq.s32.totalorder %s23, 1
    %p41 = por %p39, %p40
    %p42 = scmp.ne.s32.totalorder %s31, %s32
    %p43 = scmp.eq.s32.totalorder %s23, 0
    %p44 = por %p42, %p43
    %p45 = scmp.ne.s32.totalorder %s31, %s32
    %p46 = scmp.eq.s32.totalorder %s24, 1
    %p47 = por %p45, %p46
    %p49 = scmp.ne.s32.totalorder %s32, %s48
    %p50 = scmp.eq.s32.totalorder %s24, 0
    %p51 = por %p49, %p50
    %s52 = ssub.s32 %s18, %s25
    %p53 = scmp.eq.s32.totalorder %s52, 0
    %s55 = sadd.s32 %s54, 1
    %s56 = scalar_select %p53, %s54, %s55
    %p59 = pneg %p53
    %p60 = scmp.eq.s32.totalorder %s18, 1
    %p61 = por %p59, %p60
    %p62 = scmp.ne.s32.totalorder %s54, %s57
    %p63 = scmp.eq.s32.totalorder %s18, 0
    %p64 = por %p62, %p63
    %p65 = scmp.ne.s32.totalorder %s54, %s57
    %p66 = scmp.eq.s32.totalorder %s23, 1
    %p67 = por %p65, %p66
    %p68 = scmp.ne.s32.totalorder %s57, %s58
    %p69 = scmp.eq.s32.totalorder %s23, 0
    %p70 = por %p68, %p69
    %p71 = scmp.ne.s32.totalorder %s57, %s58
    %p72 = scmp.eq.s32.totalorder %s24, 1
    %p73 = por %p71, %p72
    %p75 = scmp.ne.s32.totalorder %s58, %s74
    %p76 = scmp.eq.s32.totalorder %s24, 0
    %p77 = por %p75, %p76
    %s78 = ssub.s32 %s18, %s25
    %p79 = scmp.eq.s32.totalorder %s78, 0
    %s81 = sadd.s32 %s80, 1
    %s82 = scalar_select %p79, %s80, %s81
    %p85 = pneg %p79
    %p86 = scmp.eq.s32.totalorder %s18, 1
    %p87 = por %p85, %p86
    %p88 = scmp.ne.s32.totalorder %s80, %s83
    %p89 = scmp.eq.s32.totalorder %s18, 0
    %p90 = por %p88, %p89
    %p91 = scmp.ne.s32.totalorder %s80, %s83
    %p92 = scmp.eq.s32.totalorder %s23, 1
    %p93 = por %p91, %p92
    %p94 = scmp.ne.s32.totalorder %s83, %s84
    %p95 = scmp.eq.s32.totalorder %s23, 0
    %p96 = por %p94, %p95
    %p97 = scmp.ne.s32.totalorder %s83, %s84
    %p98 = scmp.eq.s32.totalorder %s24, 1
    %p99 = por %p97, %p98
    %p101 = scmp.ne.s32.totalorder %s84, %s100
    %p102 = scmp.eq.s32.totalorder %s24, 0
    %p103 = por %p101, %p102
    %s104 = ssub.s32 %s18, %s25
    %p105 = scmp.eq.s32.totalorder %s104, 0
    %s107 = sadd.s32 %s106, 1
    %s108 = scalar_select %p105, %s106, %s107
    %p111 = pneg %p105
    %p112 = scmp.eq.s32.totalorder %s18, 1
    %p113 = por %p111, %p112
    %p114 = scmp.ne.s32.totalorder %s106, %s109
    %p115 = scmp.eq.s32.totalorder %s18, 0
    %p116 = por %p114, %p115
    %p117 = scmp.ne.s32.totalorder %s106, %s109
    %p118 = scmp.eq.s32.totalorder %s23, 1
    %p119 = por %p117, %p118
    %p120 = scmp.ne.s32.totalorder %s109, %s110
    %p121 = scmp.eq.s32.totalorder %s23, 0
    %p122 = por %p120, %p121
    %p123 = scmp.ne.s32.totalorder %s109, %s110
    %p124 = scmp.eq.s32.totalorder %s24, 1
    %p125 = por %p123, %p124
    %p127 = scmp.ne.s32.totalorder %s110, %s126
    %p128 = scmp.eq.s32.totalorder %s24, 0
    %p129 = por %p127, %p128
    %s131 = sadd.s32 %s130, 1
    %p134 = scmp.eq.s32.totalorder %s18, 1
    %p135 = scmp.ne.s32.totalorder %s130, %s132
    %p136 = scmp.eq.s32.totalorder %s18, 0
    %p137 = por %p135, %p136
    %p138 = scmp.ne.s32.totalorder %s130, %s132
    %p139 = scmp.eq.s32.totalorder %s23, 1
    %p140 = por %p138, %p139
    %p141 = scmp.ne.s32.totalorder %s132, %s133
    %p142 = scmp.eq.s32.totalorder %s23, 0
    %p143 = por %p141, %p142
    %p144 = scmp.ne.s32.totalorder %s132, %s133
    %p145 = scmp.eq.s32.totalorder %s24, 1
    %p146 = por %p144, %p145
    %p148 = scmp.ne.s32.totalorder %s133, %s147
    %p149 = scmp.eq.s32.totalorder %s24, 0
    %p150 = por %p148, %p149
    %s152 = sadd.s32 %s151, 1
    %p155 = scmp.eq.s32.totalorder %s18, 1
    %p156 = scmp.ne.s32.totalorder %s151, %s153
    %p157 = scmp.eq.s32.totalorder %s18, 0
    %p158 = por %p156, %p157
    %p159 = scmp.ne.s32.totalorder %s151, %s153
    %p160 = scmp.eq.s32.totalorder %s23, 1
    %p161 = por %p159, %p160
    %p162 = scmp.ne.s32.totalorder %s153, %s154
    %p163 = scmp.eq.s32.totalorder %s23, 0
    %p164 = por %p162, %p163
    %p165 = scmp.ne.s32.totalorder %s153, %s154
    %p166 = scmp.eq.s32.totalorder %s24, 1
    %p167 = por %p165, %p166
    %p169 = scmp.ne.s32.totalorder %s154, %s168
    %p170 = scmp.eq.s32.totalorder %s24, 0
    %p171 = por %p169, %p170
    %s173 = sadd.s32 %s172, 1
    %p176 = scmp.eq.s32.totalorder %s18, 1
    %p177 = scmp.ne.s32.totalorder %s172, %s174
    %p178 = scmp.eq.s32.totalorder %s18, 0
    %p179 = por %p177, %p178
    %p180 = scmp.ne.s32.totalorder %s172, %s174
    %p181 = scmp.eq.s32.totalorder %s23, 1
    %p182 = por %p180, %p181
    %p183 = scmp.ne.s32.totalorder %s174, %s175
    %p184 = scmp.eq.s32.totalorder %s23, 0
    %p185 = por %p183, %p184
    %p186 = scmp.ne.s32.totalorder %s174, %s175
    %p187 = scmp.eq.s32.totalorder %s24, 1
    %p188 = por %p186, %p187
    %p190 = scmp.ne.s32.totalorder %s175, %s189
    %p191 = scmp.eq.s32.totalorder %s24, 0
    %p192 = por %p190, %p191
    %s194 = sadd.s32 %s193, 1
    %p197 = scmp.eq.s32.totalorder %s18, 1
    %p198 = scmp.ne.s32.totalorder %s193, %s195
    %p199 = scmp.eq.s32.totalorder %s18, 0
    %p200 = por %p198, %p199
    %p201 = scmp.ne.s32.totalorder %s193, %s195
    %p202 = scmp.eq.s32.totalorder %s23, 1
    %p203 = por %p201, %p202
    %p204 = scmp.ne.s32.totalorder %s195, %s196
    %p205 = scmp.eq.s32.totalorder %s23, 0
    %p206 = por %p204, %p205
    %p207 = scmp.ne.s32.totalorder %s195, %s196
    %p208 = scmp.eq.s32.totalorder %s24, 1
    %p209 = por %p207, %p208
    %p211 = scmp.ne.s32.totalorder %s196, %s210
    %p212 = scmp.eq.s32.totalorder %s24, 0
    %p213 = por %p211, %p212
    %s215 = sadd.s32 %s214, 1
    %p218 = scmp.eq.s32.totalorder %s18, 1
    %p219 = scmp.ne.s32.totalorder %s214, %s216
    %p220 = scmp.eq.s32.totalorder %s18, 0
    %p221 = por %p219, %p220
    %p222 = scmp.ne.s32.totalorder %s214, %s216
    %p223 = scmp.eq.s32.totalorder %s23, 1
    %p224 = por %p222, %p223
    %p225 = scmp.ne.s32.totalorder %s216, %s217
    %p226 = scmp.eq.s32.totalorder %s23, 0
    %p227 = por %p225, %p226
    %p228 = scmp.ne.s32.totalorder %s216, %s217
    %p229 = scmp.eq.s32.totalorder %s24, 1
    %p230 = por %p228, %p229
    %p232 = scmp.ne.s32.totalorder %s217, %s231
    %p233 = scmp.eq.s32.totalorder %s24, 0
    %p234 = por %p232, %p233
    %s236 = sadd.s32 %s235, 1
    %p239 = scmp.eq.s32.totalorder %s18, 1
    %p240 = scmp.ne.s32.totalorder %s235, %s237
    %p241 = scmp.eq.s32.totalorder %s18, 0
    %p242 = por %p240, %p241
    %p243 = scmp.ne.s32.totalorder %s235, %s237
    %p244 = scmp.eq.s32.totalorder %s23, 1
    %p245 = por %p243, %p244
    %p246 = scmp.ne.s32.totalorder %s237, %s238
    %p247 = scmp.eq.s32.totalorder %s23, 0
    %p248 = por %p246, %p247
    %p249 = scmp.ne.s32.totalorder %s237, %s238
    %p250 = scmp.eq.s32.totalorder %s24, 1
    %p251 = por %p249, %p250
    %p253 = scmp.ne.s32.totalorder %s238, %s252
    %p254 = scmp.eq.s32.totalorder %s24, 0
    %p255 = por %p253, %p254
    %s257 = sadd.s32 %s256, 1
    %p260 = scmp.eq.s32.totalorder %s18, 1
    %p261 = scmp.ne.s32.totalorder %s256, %s258
    %p262 = scmp.eq.s32.totalorder %s18, 0
    %p263 = por %p261, %p262
    %p264 = scmp.ne.s32.totalorder %s256, %s258
    %p265 = scmp.eq.s32.totalorder %s23, 1
    %p266 = por %p264, %p265
    %p267 = scmp.ne.s32.totalorder %s258, %s259
    %p268 = scmp.eq.s32.totalorder %s23, 0
    %p269 = por %p267, %p268
    %p270 = scmp.ne.s32.totalorder %s258, %s259
    %p271 = scmp.eq.s32.totalorder %s24, 1
    %p272 = por %p270, %p271
    %p274 = scmp.ne.s32.totalorder %s259, %s273
    %p275 = scmp.eq.s32.totalorder %s24, 0
    %p276 = por %p274, %p275
    %s278 = sadd.s32 %s277, 1
    %p281 = scmp.eq.s32.totalorder %s18, 1
    %p282 = scmp.ne.s32.totalorder %s277, %s279
    %p283 = scmp.eq.s32.totalorder %s18, 0
    %p284 = por %p282, %p283
    %p285 = scmp.ne.s32.totalorder %s277, %s279
    %p286 = scmp.eq.s32.totalorder %s23, 1
    %p287 = por %p285, %p286
    %p288 = scmp.ne.s32.totalorder %s279, %s280
    %p289 = scmp.eq.s32.totalorder %s23, 0
    %p290 = por %p288, %p289
    %p291 = scmp.ne.s32.totalorder %s279, %s280
    %p292 = scmp.eq.s32.totalorder %s24, 1
    %p293 = por %p291, %p292
    %p295 = scmp.ne.s32.totalorder %s280, %s294
    %p296 = scmp.eq.s32.totalorder %s24, 0
    %p297 = por %p295, %p296
    %s298 = ssub.s32 %s18, %s25
    %p299 = scmp.eq.s32.totalorder %s298, 0
    %s301 = sadd.s32 %s300, 1
    %s302 = scalar_select %p299, %s300, %s301
    %p305 = pneg %p299
    %p306 = scmp.eq.s32.totalorder %s18, 1
    %p307 = por %p305, %p306
    %p308 = scmp.ne.s32.totalorder %s300, %s303
    %p309 = scmp.eq.s32.totalorder %s18, 0
    %p310 = por %p308, %p309
    %p311 = scmp.ne.s32.totalorder %s300, %s303
    %p312 = scmp.eq.s32.totalorder %s23, 1
    %p313 = por %p311, %p312
    %p314 = scmp.ne.s32.totalorder %s303, %s304
    %p315 = scmp.eq.s32.totalorder %s23, 0
    %p316 = por %p314, %p315
    %p317 = scmp.ne.s32.totalorder %s303, %s304
    %p318 = scmp.eq.s32.totalorder %s24, 1
    %p319 = por %p317, %p318
    %p321 = scmp.ne.s32.totalorder %s304, %s320
    %p322 = scmp.eq.s32.totalorder %s24, 0
    %p323 = por %p321, %p322
    %p324 = scmp.le.s32.totalorder 1, %s18
    %p325 = scmp.lt.s32.totalorder %s18, 3
    %p326 = pnand %p324, %p325
    %p327 = pneg %p326
    // Predicated region
    $region9: #{transformer_forward.22} parent=5 // pred_check
      _
    $region10: #{transformer_forward.22} parent=5 // pred_check_branch
      %329 = sbr.rel (%p326) target = $region12
    $region11: #{transformer_forward.22} parent=5 // pred_region
      %s330 = ssub.s32 %s18, 1
      // Predicated region
      $region13: #{transformer_forward.22} parent=11 // pred_check
        %p331 = pneg %p143
      $region14: #{transformer_forward.22} parent=11 // pred_check_branch
        %333 = sbr.rel (%p331) target = $region16
      $region15: #{transformer_forward.22} parent=11 // pred_region
        _
      $region16: #{transformer_forward.22} parent=11 // pred_fallthru
        _
      // Predicated region
      $region17: #{transformer_forward.22} parent=11 // pred_check
        %p334 = pneg %p164
      $region18: #{transformer_forward.22} parent=11 // pred_check_branch
        %336 = sbr.rel (%p334) target = $region20
      $region19: #{transformer_forward.22} parent=11 // pred_region
        _
      $region20: #{transformer_forward.22} parent=11 // pred_fallthru
        _
      // Predicated region
      $region21: #{transformer_forward.22} parent=11 // pred_check
        %p337 = pneg %p185
      $region22: #{transformer_forward.22} parent=11 // pred_check_branch
        %339 = sbr.rel (%p337) target = $region24
      $region23: #{transformer_forward.22} parent=11 // pred_region
        _
      $region24: #{transformer_forward.22} parent=11 // pred_fallthru
        _
      // Predicated region
      $region25: #{transformer_forward.22} parent=11 // pred_check
        %p340 = pneg %p206
      $region26: #{transformer_forward.22} parent=11 // pred_check_branch
        %342 = sbr.rel (%p340) target = $region28
      $region27: #{transformer_forward.22} parent=11 // pred_region
        _
      $region28: #{transformer_forward.22} parent=11 // pred_fallthru
        _
      // Predicated region
      $region29: #{transformer_forward.22} parent=11 // pred_check
        %p343 = pneg %p227
      $region30: #{transformer_forward.22} parent=11 // pred_check_branch
        %345 = sbr.rel (%p343) target = $region32
      $region31: #{transformer_forward.22} parent=11 // pred_region
        _
      $region32: #{transformer_forward.22} parent=11 // pred_fallthru
        _
      // Predicated region
      $region33: #{transformer_forward.22} parent=11 // pred_check
        %p346 = pneg %p248
      $region34: #{transformer_forward.22} parent=11 // pred_check_branch
        %348 = sbr.rel (%p346) target = $region36
      $region35: #{transformer_forward.22} parent=11 // pred_region
        _
      $region36: #{transformer_forward.22} parent=11 // pred_fallthru
        _
      // Predicated region
      $region37: #{transformer_forward.22} parent=11 // pred_check
        %p349 = pneg %p269
      $region38: #{transformer_forward.22} parent=11 // pred_check_branch
        %351 = sbr.rel (%p349) target = $region40
      $region39: #{transformer_forward.22} parent=11 // pred_region
        _
      $region40: #{transformer_forward.22} parent=11 // pred_fallthru
        _
      // Predicated region
      $region41: #{transformer_forward.22} parent=11 // pred_check
        %p352 = pneg %p290
      $region42: #{transformer_forward.22} parent=11 // pred_check_branch
        %354 = sbr.rel (%p352) target = $region44
      $region43: #{transformer_forward.22} parent=11 // pred_region
        _
      $region44: #{transformer_forward.22} parent=11 // pred_fallthru
        _
    $region12: #{transformer_forward.22} parent=5 // pred_fallthru
      _
    %p355 = scmp.lt.s32.totalorder %s18, 2
    // Predicated region
    $region45: #{transformer_forward.22} parent=5 // pred_check
      %p356 = pneg %p355
    $region46: #{transformer_forward.22} parent=5 // pred_check_branch
      %358 = sbr.rel (%p356) target = $region48
    $region47: #{transformer_forward.22} parent=5 // pred_region
      // Predicated region
      $region49: #{transformer_forward.22} parent=47 // pred_check
        %p359 = pneg %p38
      $region50: #{transformer_forward.22} parent=47 // pred_check_branch
        %361 = sbr.rel (%p359) target = $region52
      $region51: #{transformer_forward.22} parent=47 // pred_region
        %p362 = scmp.lt.s32.totalorder %s18, 1
        %s363 = scalar_select %p362, %s18, 1
        %s364 = smul.addr %s363, 8
        %s365 = scalar_lea.vmem %s0, %s364
      $region52: #{transformer_forward.22} parent=47 // pred_fallthru
        _
      // Predicated region
      $region53: #{transformer_forward.22} parent=47 // pred_check
        %p366 = pneg %p64
      $region54: #{transformer_forward.22} parent=47 // pred_check_branch
        %368 = sbr.rel (%p366) target = $region56
      $region55: #{transformer_forward.22} parent=47 // pred_region
        %p369 = scmp.lt.s32.totalorder %s18, 1
        %s370 = scalar_select %p369, %s18, 1
        %s371 = smul.addr %s370, 2
        %s372 = smul.addr %s371, 8
        %s373 = scalar_lea.vmem %s1, %s372
      $region56: #{transformer_forward.22} parent=47 // pred_fallthru
        _
      // Predicated region
      $region57: #{transformer_forward.22} parent=47 // pred_check
        %p374 = pneg %p90
      $region58: #{transformer_forward.22} parent=47 // pred_check_branch
        %376 = sbr.rel (%p374) target = $region60
      $region59: #{transformer_forward.22} parent=47 // pred_region
        %p377 = scmp.lt.s32.totalorder %s18, 1
        %s378 = scalar_select %p377, %s18, 1
        %s379 = smul.addr %s378, 2
        %s380 = smul.addr %s379, 8
        %s381 = scalar_lea.vmem %s2, %s380
      $region60: #{transformer_forward.22} parent=47 // pred_fallthru
        _
      // Predicated region
      $region61: #{transformer_forward.22} parent=47 // pred_check
        %p382 = pneg %p116
      $region62: #{transformer_forward.22} parent=47 // pred_check_branch
        %384 = sbr.rel (%p382) target = $region64
      $region63: #{transformer_forward.22} parent=47 // pred_region
        %p385 = scmp.lt.s32.totalorder %s18, 1
        %s386 = scalar_select %p385, %s18, 1
        %s387 = smul.addr %s386, 8
        %s388 = scalar_lea.vmem %s3, %s387
      $region64: #{transformer_forward.22} parent=47 // pred_fallthru
        _
    $region48: #{transformer_forward.22} parent=5 // pred_fallthru
      _
    %p389 = scmp.le.s32.totalorder 1, %s18
    %p390 = scmp.lt.s32.totalorder %s18, 3
    %p391 = pnand %p389, %p390
    %p392 = pneg %p391
    // Predicated region
    $region65: #{transformer_forward.22} parent=5 // pred_check
      _
    $region66: #{transformer_forward.22} parent=5 // pred_check_branch
      %394 = sbr.rel (%p391) target = $region68
    $region67: #{transformer_forward.22} parent=5 // pred_region
      %s395 = ssub.s32 %s18, 1
      %p396 = scmp.lt.s32.totalorder %s23, 1
      %s397 = scalar_select %p396, %s23, 1
      %s398 = smul.addr %s397, 8
      %s399 = scalar_lea.vmem %s0, %s398
      %p400 = pneg %p44
      %p401 = pneg %p41
      %p402 = scmp.lt.s32.totalorder %s23, 1
      %s403 = scalar_select %p402, %s23, 1
      %s404 = smul.addr %s403, 2
      %s405 = smul.addr %s404, 8
      %s406 = scalar_lea.vmem %s1, %s405
      %p407 = pneg %p70
      %p408 = pneg %p67
      %p409 = scmp.lt.s32.totalorder %s23, 1
      %s410 = scalar_select %p409, %s23, 1
      %s411 = smul.addr %s410, 2
      %s412 = smul.addr %s411, 8
      %s413 = scalar_lea.vmem %s2, %s412
      %p414 = pneg %p96
      %p415 = pneg %p93
      %p416 = scmp.lt.s32.totalorder %s23, 1
      %s417 = scalar_select %p416, %s23, 1
      %s418 = smul.addr %s417, 8
      %s419 = scalar_lea.vmem %s3, %s418
      %p420 = pneg %p122
      %p421 = pneg %p119
      %p422 = pneg %p143
      %p423 = pneg %p140
      %p424 = pneg %p164
      %p425 = pneg %p161
      %p426 = pneg %p185
      %p427 = pneg %p182
      %p428 = pneg %p206
      %p429 = pneg %p203
      %p430 = pneg %p227
      %p431 = pneg %p224
      %p432 = pneg %p248
      %p433 = pneg %p245
      %p434 = pneg %p269
      %p435 = pneg %p266
      %p436 = pneg %p290
      %p437 = pneg %p287
      %p438 = pneg %p316
      %p439 = pneg %p313
      %p440 = scmp.lt.s32.totalorder %s23, 1
      %s441 = scalar_select %p440, %s23, 1
      %s442 = smul.addr %s441, 8
      %s443 = scalar_lea.vmem %s12, %s442
      %p444 = scmp.lt.s32.totalorder %s23, 1
      %s445 = scalar_select %p444, %s23, 1
      %s446 = smul.addr %s445, 8
      %s447 = scalar_lea.vmem %s0, %s446
      %p448 = scmp.lt.s32.totalorder %s23, 1
      %s449 = scalar_select %p448, %s23, 1
      %s450 = smul.addr %s449, 2
      %s451 = smul.addr %s450, 8
      %s452 = scalar_lea.vmem %s1, %s451
      %p453 = scmp.lt.s32.totalorder %s23, 1
      %s454 = scalar_select %p453, %s23, 1
      %s455 = smul.addr %s454, 2
      %s456 = smul.addr %s455, 8
      %s457 = scalar_lea.vmem %s2, %s456
      %p458 = scmp.lt.s32.totalorder %s23, 1
      %s459 = scalar_select %p458, %s23, 1
      %s460 = smul.addr %s459, 8
      %s461 = scalar_lea.vmem %s3, %s460
      %p462 = scmp.lt.s32.totalorder %s23, 1
      %s463 = scalar_select %p462, %s23, 1
      %s464 = smul.addr %s463, 8
      %s465 = scalar_lea.vmem %s12, %s464
      %v466 = vld [vmem:[%s447] sm:$0xff]
      %v467 = vld [vmem:[%s452] sm:$0xff]
      %v468 = vld [vmem:[%s452 + $0x8] sm:$0xff]
      %v469 = vld [vmem:[%s457] sm:$0xff]
      %v470 = vld [vmem:[%s457 + $0x8] sm:$0xff]
      %v471 = vld [vmem:[%s4] sm:$0xff]
      %v472 = vld [vmem:[%s4 + $0x8] sm:$0xff]
      %v473 = vld [vmem:[%s4 + $0x10] sm:$0xff]
      %v474 = vld [vmem:[%s4 + $0x18] sm:$0xff]
      %vm475 = vcmask 64512
      %v477 = vsel %vm475, %v466, 0
      %v480 = vsel %vm475, %v467, 0
      %v483 = vsel %vm475, %v468, 0
      %485 = vmatprep.subr.mxu0 0.0
      %486 = vmatpush1.xpose.msra.mxu0 0.0
      %487 = vmatprep.subr.mxu0 0.0
      %488 = vmatpush1.xpose.msra.mxu0 0.0
      %489 = vmatprep.subr.mxu0 0.0
      %490 = vmatpush1.xpose.msra.mxu0 0.0
      %491 = vmatprep.subr.mxu0 0.0
      %492 = vmatpush1.xpose.msra.mxu0 0.0
      %493 = vmatprep.subr.mxu0 0.0
      %494 = vmatpush1.xpose.msra.mxu0 0.0
      %495 = vmatprep.subr.mxu0 0.0
      %496 = vmatpush1.xpose.msra.mxu0 0.0
      %497 = vmatprep.subr.mxu0 0.0
      %498 = vmatpush1.xpose.msra.mxu0 0.0
      %499 = vmatprep.subr.mxu0 0.0
      %500 = vmatpush1.xpose.msra.mxu0 0.0
      %501 = vmatprep.subr.mxu0 0.0
      %502 = vmatpush1.xpose.msra.mxu0 0.0
      %503 = vmatprep.subr.mxu0 0.0
      %504 = vmatpush1.xpose.msra.mxu0 0.0
      %505 = vmatprep.subr.mxu0 0.0
      %506 = vmatpush1.xpose.msra.mxu0 0.0
      %507 = vmatprep.subr.mxu0 0.0
      %508 = vmatpush1.xpose.msra.mxu0 0.0
      %509 = vmatprep.subr.mxu0 0.0
      %510 = vmatpush1.xpose.msra.mxu0 0.0
      %511 = vmatprep.subr.mxu0 0.0
      %512 = vmatpush1.xpose.msra.mxu0 0.0
      %513 = vmatprep.subr.mxu0 0.0
      %514 = vmatpush1.xpose.msra.mxu0 %v483
      %515 = vmatprep.subr.mxu0 0.0
      %516 = vmatpush1.xpose.msra.mxu0 %v480
      %517 = vmatprep.subr.mxu0 0.0
      %518 = vmatpush2.xpose.msra.mxu0 0.0
      %519 = vmatprep.subr.mxu0 0.0
      %520 = vmatpush2.xpose.msra.mxu0 0.0
      %521 = vmatprep.subr.mxu0 0.0
      %522 = vmatpush2.xpose.msra.mxu0 0.0
      %523 = vmatprep.subr.mxu0 0.0
      %524 = vmatpush2.xpose.msra.mxu0 0.0
      %525 = vmatprep.subr.mxu0 0.0
      %526 = vmatpush2.xpose.msra.mxu0 0.0
      %527 = vmatprep.subr.mxu0 0.0
      %528 = vmatpush2.xpose.msra.mxu0 0.0
      %529 = vmatprep.subr.mxu0 0.0
      %530 = vmatpush2.xpose.msra.mxu0 0.0
      %531 = vmatprep.subr.mxu0 0.0
      %532 = vmatpush2.xpose.msra.mxu0 0.0
      %533 = vmatprep.subr.mxu0 0.0
      %534 = vmatpush2.xpose.msra.mxu0 0.0
      %535 = vmatprep.subr.mxu0 0.0
      %536 = vmatpush2.xpose.msra.mxu0 0.0
      %537 = vmatprep.subr.mxu0 0.0
      %538 = vmatpush2.xpose.msra.mxu0 0.0
      %539 = vmatprep.subr.mxu0 0.0
      %540 = vmatpush2.xpose.msra.mxu0 0.0
      %541 = vmatprep.subr.mxu0 0.0
      %542 = vmatpush2.xpose.msra.mxu0 0.0
      %543 = vmatprep.subr.mxu0 0.0
      %544 = vmatpush2.xpose.msra.mxu0 0.0
      %545 = vmatprep.subr.mxu0 0.0
      %546 = vmatpush2.xpose.msra.mxu0 0.0
      %547 = vmatprep.subr.mxu0 0.0
      %548 = vmatpush2.xpose.msra.mxu0 0.0
      %549 = vmatprep.mubr.f32.mxu0 0.0
      %550 = vmatmul.mubr.f32.gmra.mxu0 %v477
      %v551 = vpop.f32.mrf.mxu0
      %v552 = vadd.f32 0.0, %v551
      %v553 = vpop.f32.mrf.mxu0
      %554 = vdwg.mxu0
      %v555 = vmul.f32 %v552, 0.35355338
      %vm556 = vcmask 130048
      %v557 = vsel %vm556, %v555, -inf
      %558 = vmax.xlane.f32.xlu0 %v557
      %v559 = vpop.xlane.xlu0 %558
      %v560 = vsub.f32 %v555, %v559
      %v561 = vmul.f32 %v560, 1.442695
      %v562 = vpow.pop %v561
      %v563 = vsel %vm556, %v562, 0.0
      %564 = vadd.xlane.f32.xlu0 %v563
      %v565 = vpop.xlane.xlu0 %564
      %v566 = vrcp.pop %v565
      %v567 = vmul.f32 %v562, %v566
      %v569 = vsel %vm556, %v567, 0
      %571 = vmatprep.subr.mxu0 0.0
      %572 = vmatpush1.msra.mxu0 0.0
      %573 = vmatprep.subr.mxu0 0.0
      %574 = vmatpush1.msra.mxu0 0.0
      %575 = vmatprep.subr.mxu0 0.0
      %576 = vmatpush1.msra.mxu0 0.0
      %577 = vmatprep.subr.mxu0 0.0
      %578 = vmatpush1.msra.mxu0 0.0
      %579 = vmatprep.subr.mxu0 0.0
      %580 = vmatpush1.msra.mxu0 0.0
      %581 = vmatprep.subr.mxu0 0.0
      %582 = vmatpush1.msra.mxu0 0.0
      %583 = vmatprep.subr.mxu0 0.0
      %584 = vmatpush1.msra.mxu0 0.0
      %585 = vmatprep.subr.mxu0 0.0
      %586 = vmatpush1.msra.mxu0 0.0
      %587 = vmatprep.subr.mxu0 0.0
      %588 = vmatpush1.msra.mxu0 0.0
      %589 = vmatprep.subr.mxu0 0.0
      %590 = vmatpush1.msra.mxu0 0.0
      %591 = vmatprep.subr.mxu0 0.0
      %592 = vmatpush1.msra.mxu0 0.0
      %593 = vmatprep.subr.mxu0 0.0
      %594 = vmatpush1.msra.mxu0 0.0
      %595 = vmatprep.subr.mxu0 0.0
      %596 = vmatpush1.msra.mxu0 0.0
      %597 = vmatprep.subr.mxu0 0.0
      %598 = vmatpush1.msra.mxu0 0.0
      %599 = vmatprep.subr.mxu0 0.0
      %600 = vmatpush1.msra.mxu0 %v470
      %601 = vmatprep.subr.mxu0 0.0
      %602 = vmatpush1.msra.mxu0 %v469
      %603 = vmatprep.subr.mxu0 0.0
      %604 = vmatpush2.msra.mxu0 0.0
      %605 = vmatprep.subr.mxu0 0.0
      %606 = vmatpush2.msra.mxu0 0.0
      %607 = vmatprep.subr.mxu0 0.0
      %608 = vmatpush2.msra.mxu0 0.0
      %609 = vmatprep.subr.mxu0 0.0
      %610 = vmatpush2.msra.mxu0 0.0
      %611 = vmatprep.subr.mxu0 0.0
      %612 = vmatpush2.msra.mxu0 0.0
      %613 = vmatprep.subr.mxu0 0.0
      %614 = vmatpush2.msra.mxu0 0.0
      %615 = vmatprep.subr.mxu0 0.0
      %616 = vmatpush2.msra.mxu0 0.0
      %617 = vmatprep.subr.mxu0 0.0
      %618 = vmatpush2.msra.mxu0 0.0
      %619 = vmatprep.subr.mxu0 0.0
      %620 = vmatpush2.msra.mxu0 0.0
      %621 = vmatprep.subr.mxu0 0.0
      %622 = vmatpush2.msra.mxu0 0.0
      %623 = vmatprep.subr.mxu0 0.0
      %624 = vmatpush2.msra.mxu0 0.0
      %625 = vmatprep.subr.mxu0 0.0
      %626 = vmatpush2.msra.mxu0 0.0
      %627 = vmatprep.subr.mxu0 0.0
      %628 = vmatpush2.msra.mxu0 0.0
      %629 = vmatprep.subr.mxu0 0.0
      %630 = vmatpush2.msra.mxu0 0.0
      %631 = vmatprep.subr.mxu0 0.0
      %632 = vmatpush2.msra.mxu0 0.0
      %633 = vmatprep.subr.mxu0 0.0
      %634 = vmatpush2.msra.mxu0 0.0
      %635 = vmatprep.mubr.f32.mxu0 0.0
      %636 = vmatmul.mubr.f32.gmra.mxu0 %v569
      %v637 = vpop.f32.mrf.mxu0
      %v638 = vadd.f32 0.0, %v637
      %v639 = vpop.f32.mrf.mxu0
      %640 = vdwg.mxu0
      %641 = vrot.lane.b32.xlu0 %v466, 120
      %v642 = vpop.permute.xlu0 %641
      %643 = vrot.lane.b32.xlu0 %v467, 120
      %v644 = vpop.permute.xlu0 %643
      %645 = vrot.lane.b32.xlu0 %v468, 120
      %v646 = vpop.permute.xlu0 %645
      %v647 = vsel %vm475, %v642, 0
      %v649 = vsel %vm475, %v644, 0
      %v651 = vsel %vm475, %v646, 0
      %653 = vmatprep.subr.mxu0 0.0
      %654 = vmatpush1.xpose.msra.mxu0 0.0
      %655 = vmatprep.subr.mxu0 0.0
      %656 = vmatpush1.xpose.msra.mxu0 0.0
      %657 = vmatprep.subr.mxu0 0.0
      %658 = vmatpush1.xpose.msra.mxu0 0.0
      %659 = vmatprep.subr.mxu0 0.0
      %660 = vmatpush1.xpose.msra.mxu0 0.0
      %661 = vmatprep.subr.mxu0 0.0
      %662 = vmatpush1.xpose.msra.mxu0 0.0
      %663 = vmatprep.subr.mxu0 0.0
      %664 = vmatpush1.xpose.msra.mxu0 0.0
      %665 = vmatprep.subr.mxu0 0.0
      %666 = vmatpush1.xpose.msra.mxu0 0.0
      %667 = vmatprep.subr.mxu0 0.0
      %668 = vmatpush1.xpose.msra.mxu0 0.0
      %669 = vmatprep.subr.mxu0 0.0
      %670 = vmatpush1.xpose.msra.mxu0 0.0
      %671 = vmatprep.subr.mxu0 0.0
      %672 = vmatpush1.xpose.msra.mxu0 0.0
      %673 = vmatprep.subr.mxu0 0.0
      %674 = vmatpush1.xpose.msra.mxu0 0.0
      %675 = vmatprep.subr.mxu0 0.0
      %676 = vmatpush1.xpose.msra.mxu0 0.0
      %677 = vmatprep.subr.mxu0 0.0
      %678 = vmatpush1.xpose.msra.mxu0 0.0
      %679 = vmatprep.subr.mxu0 0.0
      %680 = vmatpush1.xpose.msra.mxu0 0.0
      %681 = vmatprep.subr.mxu0 0.0
      %682 = vmatpush1.xpose.msra.mxu0 %v651
      %683 = vmatprep.subr.mxu0 0.0
      %684 = vmatpush1.xpose.msra.mxu0 %v649
      %685 = vmatprep.subr.mxu0 0.0
      %686 = vmatpush2.xpose.msra.mxu0 0.0
      %687 = vmatprep.subr.mxu0 0.0
      %688 = vmatpush2.xpose.msra.mxu0 0.0
      %689 = vmatprep.subr.mxu0 0.0
      %690 = vmatpush2.xpose.msra.mxu0 0.0
      %691 = vmatprep.subr.mxu0 0.0
      %692 = vmatpush2.xpose.msra.mxu0 0.0
      %693 = vmatprep.subr.mxu0 0.0
      %694 = vmatpush2.xpose.msra.mxu0 0.0
      %695 = vmatprep.subr.mxu0 0.0
      %696 = vmatpush2.xpose.msra.mxu0 0.0
      %697 = vmatprep.subr.mxu0 0.0
      %698 = vmatpush2.xpose.msra.mxu0 0.0
      %699 = vmatprep.subr.mxu0 0.0
      %700 = vmatpush2.xpose.msra.mxu0 0.0
      %701 = vmatprep.subr.mxu0 0.0
      %702 = vmatpush2.xpose.msra.mxu0 0.0
      %703 = vmatprep.subr.mxu0 0.0
      %704 = vmatpush2.xpose.msra.mxu0 0.0
      %705 = vmatprep.subr.mxu0 0.0
      %706 = vmatpush2.xpose.msra.mxu0 0.0
      %707 = vmatprep.subr.mxu0 0.0
      %708 = vmatpush2.xpose.msra.mxu0 0.0
      %709 = vmatprep.subr.mxu0 0.0
      %710 = vmatpush2.xpose.msra.mxu0 0.0
      %711 = vmatprep.subr.mxu0 0.0
      %712 = vmatpush2.xpose.msra.mxu0 0.0
      %713 = vmatprep.subr.mxu0 0.0
      %714 = vmatpush2.xpose.msra.mxu0 0.0
      %715 = vmatprep.subr.mxu0 0.0
      %716 = vmatpush2.xpose.msra.mxu0 0.0
      %717 = vmatprep.mubr.f32.mxu0 0.0
      %718 = vmatmul.mubr.f32.gmra.mxu0 %v647
      %v719 = vpop.f32.mrf.mxu0
      %v720 = vadd.f32 0.0, %v719
      %v721 = vpop.f32.mrf.mxu0
      %722 = vdwg.mxu0
      %v723 = vmul.f32 %v720, 0.35355338
      %v724 = vsel %vm556, %v723, -inf
      %725 = vmax.xlane.f32.xlu0 %v724
      %v726 = vpop.xlane.xlu0 %725
      %v727 = vsub.f32 %v723, %v726
      %v728 = vmul.f32 %v727, 1.442695
      %v729 = vpow.pop %v728
      %v730 = vsel %vm556, %v729, 0.0
      %731 = vadd.xlane.f32.xlu0 %v730
      %v732 = vpop.xlane.xlu0 %731
      %v733 = vrcp.pop %v732
      %v734 = vmul.f32 %v729, %v733
      %737 = vrot.lane.b32.xlu0 %v469, 120
      %v738 = vpop.permute.xlu0 %737
      %739 = vrot.lane.b32.xlu0 %v470, 120
      %v740 = vpop.permute.xlu0 %739
      %v744 = vsel %vm556, %v734, 0
      %746 = vmatprep.subr.mxu0 0.0
      %747 = vmatpush1.msra.mxu0 0.0
      %748 = vmatprep.subr.mxu0 0.0
      %749 = vmatpush1.msra.mxu0 0.0
      %750 = vmatprep.subr.mxu0 0.0
      %751 = vmatpush1.msra.mxu0 0.0
      %752 = vmatprep.subr.mxu0 0.0
      %753 = vmatpush1.msra.mxu0 0.0
      %754 = vmatprep.subr.mxu0 0.0
      %755 = vmatpush1.msra.mxu0 0.0
      %756 = vmatprep.subr.mxu0 0.0
      %757 = vmatpush1.msra.mxu0 0.0
      %758 = vmatprep.subr.mxu0 0.0
      %759 = vmatpush1.msra.mxu0 0.0
      %760 = vmatprep.subr.mxu0 0.0
      %761 = vmatpush1.msra.mxu0 0.0
      %762 = vmatprep.subr.mxu0 0.0
      %763 = vmatpush1.msra.mxu0 0.0
      %764 = vmatprep.subr.mxu0 0.0
      %765 = vmatpush1.msra.mxu0 0.0
      %766 = vmatprep.subr.mxu0 0.0
      %767 = vmatpush1.msra.mxu0 0.0
      %768 = vmatprep.subr.mxu0 0.0
      %769 = vmatpush1.msra.mxu0 0.0
      %770 = vmatprep.subr.mxu0 0.0
      %771 = vmatpush1.msra.mxu0 0.0
      %772 = vmatprep.subr.mxu0 0.0
      %773 = vmatpush1.msra.mxu0 0.0
      %774 = vmatprep.subr.mxu0 0.0
      %775 = vmatpush1.msra.mxu0 %v740
      %776 = vmatprep.subr.mxu0 0.0
      %777 = vmatpush1.msra.mxu0 %v738
      %778 = vmatprep.subr.mxu0 0.0
      %779 = vmatpush2.msra.mxu0 0.0
      %780 = vmatprep.subr.mxu0 0.0
      %781 = vmatpush2.msra.mxu0 0.0
      %782 = vmatprep.subr.mxu0 0.0
      %783 = vmatpush2.msra.mxu0 0.0
      %784 = vmatprep.subr.mxu0 0.0
      %785 = vmatpush2.msra.mxu0 0.0
      %786 = vmatprep.subr.mxu0 0.0
      %787 = vmatpush2.msra.mxu0 0.0
      %788 = vmatprep.subr.mxu0 0.0
      %789 = vmatpush2.msra.mxu0 0.0
      %790 = vmatprep.subr.mxu0 0.0
      %791 = vmatpush2.msra.mxu0 0.0
      %792 = vmatprep.subr.mxu0 0.0
      %793 = vmatpush2.msra.mxu0 0.0
      %794 = vmatprep.subr.mxu0 0.0
      %795 = vmatpush2.msra.mxu0 0.0
      %796 = vmatprep.subr.mxu0 0.0
      %797 = vmatpush2.msra.mxu0 0.0
      %798 = vmatprep.subr.mxu0 0.0
      %799 = vmatpush2.msra.mxu0 0.0
      %800 = vmatprep.subr.mxu0 0.0
      %801 = vmatpush2.msra.mxu0 0.0
      %802 = vmatprep.subr.mxu0 0.0
      %803 = vmatpush2.msra.mxu0 0.0
      %804 = vmatprep.subr.mxu0 0.0
      %805 = vmatpush2.msra.mxu0 0.0
      %806 = vmatprep.subr.mxu0 0.0
      %807 = vmatpush2.msra.mxu0 0.0
      %808 = vmatprep.subr.mxu0 0.0
      %809 = vmatpush2.msra.mxu0 0.0
      %810 = vmatprep.mubr.f32.mxu0 0.0
      %811 = vmatmul.mubr.f32.gmra.mxu0 %v744
      %v812 = vpop.f32.mrf.mxu0
      %v813 = vadd.f32 0.0, %v812
      %v814 = vpop.f32.mrf.mxu0
      %815 = vdwg.mxu0
      %v817 = vsel %vm475, %v813, 0
      %819 = vmatprep.subr.mxu0 0.0
      %820 = vmatpush1.msra.mxu0 0.0
      %821 = vmatprep.subr.mxu0 0.0
      %822 = vmatpush1.msra.mxu0 0.0
      %823 = vmatprep.subr.mxu0 0.0
      %824 = vmatpush1.msra.mxu0 0.0
      %825 = vmatprep.subr.mxu0 0.0
      %826 = vmatpush1.msra.mxu0 0.0
      %827 = vmatprep.subr.mxu0 0.0
      %828 = vmatpush1.msra.mxu0 0.0
      %829 = vmatprep.subr.mxu0 0.0
      %830 = vmatpush1.msra.mxu0 0.0
      %831 = vmatprep.subr.mxu0 0.0
      %832 = vmatpush1.msra.mxu0 0.0
      %833 = vmatprep.subr.mxu0 0.0
      %834 = vmatpush1.msra.mxu0 0.0
      %835 = vmatprep.subr.mxu0 0.0
      %836 = vmatpush1.msra.mxu0 0.0
      %837 = vmatprep.subr.mxu0 0.0
      %838 = vmatpush1.msra.mxu0 0.0
      %839 = vmatprep.subr.mxu0 0.0
      %840 = vmatpush1.msra.mxu0 0.0
      %841 = vmatprep.subr.mxu0 0.0
      %842 = vmatpush1.msra.mxu0 0.0
      %843 = vmatprep.subr.mxu0 0.0
      %844 = vmatpush1.msra.mxu0 0.0
      %845 = vmatprep.subr.mxu0 0.0
      %846 = vmatpush1.msra.mxu0 0.0
      %847 = vmatprep.subr.mxu0 0.0
      %848 = vmatpush1.msra.mxu0 0.0
      %849 = vmatprep.subr.mxu0 0.0
      %850 = vmatpush1.msra.mxu0 %v472
      %851 = vmatprep.subr.mxu0 0.0
      %852 = vmatpush2.msra.mxu0 0.0
      %853 = vmatprep.subr.mxu0 0.0
      %854 = vmatpush2.msra.mxu0 0.0
      %855 = vmatprep.subr.mxu0 0.0
      %856 = vmatpush2.msra.mxu0 0.0
      %857 = vmatprep.subr.mxu0 0.0
      %858 = vmatpush2.msra.mxu0 0.0
      %859 = vmatprep.subr.mxu0 0.0
      %860 = vmatpush2.msra.mxu0 0.0
      %861 = vmatprep.subr.mxu0 0.0
      %862 = vmatpush2.msra.mxu0 0.0
      %863 = vmatprep.subr.mxu0 0.0
      %864 = vmatpush2.msra.mxu0 0.0
      %865 = vmatprep.subr.mxu0 0.0
      %866 = vmatpush2.msra.mxu0 0.0
      %867 = vmatprep.subr.mxu0 0.0
      %868 = vmatpush2.msra.mxu0 0.0
      %869 = vmatprep.subr.mxu0 0.0
      %870 = vmatpush2.msra.mxu0 0.0
      %871 = vmatprep.subr.mxu0 0.0
      %872 = vmatpush2.msra.mxu0 0.0
      %873 = vmatprep.subr.mxu0 0.0
      %874 = vmatpush2.msra.mxu0 0.0
      %875 = vmatprep.subr.mxu0 0.0
      %876 = vmatpush2.msra.mxu0 0.0
      %877 = vmatprep.subr.mxu0 0.0
      %878 = vmatpush2.msra.mxu0 0.0
      %879 = vmatprep.subr.mxu0 0.0
      %880 = vmatpush2.msra.mxu0 0.0
      %881 = vmatprep.subr.mxu0 0.0
      %882 = vmatpush2.msra.mxu0 0.0
      %883 = vmatprep.mubr.f32.mxu0 0.0
      %884 = vmatmul.mubr.f32.gmra.mxu0 %v817
      %v885 = vpop.f32.mrf.mxu0
      %v886 = vadd.f32 0.0, %v885
      %v887 = vpop.f32.mrf.mxu0
      %888 = vdwg.mxu0
      %v890 = vsel %vm475, %v638, 0
      %892 = vmatprep.subr.mxu0 0.0
      %893 = vmatpush1.msra.mxu0 0.0
      %894 = vmatprep.subr.mxu0 0.0
      %895 = vmatpush1.msra.mxu0 0.0
      %896 = vmatprep.subr.mxu0 0.0
      %897 = vmatpush1.msra.mxu0 0.0
      %898 = vmatprep.subr.mxu0 0.0
      %899 = vmatpush1.msra.mxu0 0.0
      %900 = vmatprep.subr.mxu0 0.0
      %901 = vmatpush1.msra.mxu0 0.0
      %902 = vmatprep.subr.mxu0 0.0
      %903 = vmatpush1.msra.mxu0 0.0
      %904 = vmatprep.subr.mxu0 0.0
      %905 = vmatpush1.msra.mxu0 0.0
      %906 = vmatprep.subr.mxu0 0.0
      %907 = vmatpush1.msra.mxu0 0.0
      %908 = vmatprep.subr.mxu0 0.0
      %909 = vmatpush1.msra.mxu0 0.0
      %910 = vmatprep.subr.mxu0 0.0
      %911 = vmatpush1.msra.mxu0 0.0
      %912 = vmatprep.subr.mxu0 0.0
      %913 = vmatpush1.msra.mxu0 0.0
      %914 = vmatprep.subr.mxu0 0.0
      %915 = vmatpush1.msra.mxu0 0.0
      %916 = vmatprep.subr.mxu0 0.0
      %917 = vmatpush1.msra.mxu0 0.0
      %918 = vmatprep.subr.mxu0 0.0
      %919 = vmatpush1.msra.mxu0 0.0
      %920 = vmatprep.subr.mxu0 0.0
      %921 = vmatpush1.msra.mxu0 0.0
      %922 = vmatprep.subr.mxu0 0.0
      %923 = vmatpush1.msra.mxu0 %v471
      %924 = vmatprep.subr.mxu0 0.0
      %925 = vmatpush2.msra.mxu0 0.0
      %926 = vmatprep.subr.mxu0 0.0
      %927 = vmatpush2.msra.mxu0 0.0
      %928 = vmatprep.subr.mxu0 0.0
      %929 = vmatpush2.msra.mxu0 0.0
      %930 = vmatprep.subr.mxu0 0.0
      %931 = vmatpush2.msra.mxu0 0.0
      %932 = vmatprep.subr.mxu0 0.0
      %933 = vmatpush2.msra.mxu0 0.0
      %934 = vmatprep.subr.mxu0 0.0
      %935 = vmatpush2.msra.mxu0 0.0
      %936 = vmatprep.subr.mxu0 0.0
      %937 = vmatpush2.msra.mxu0 0.0
      %938 = vmatprep.subr.mxu0 0.0
      %939 = vmatpush2.msra.mxu0 0.0
      %940 = vmatprep.subr.mxu0 0.0
      %941 = vmatpush2.msra.mxu0 0.0
      %942 = vmatprep.subr.mxu0 0.0
      %943 = vmatpush2.msra.mxu0 0.0
      %944 = vmatprep.subr.mxu0 0.0
      %945 = vmatpush2.msra.mxu0 0.0
      %946 = vmatprep.subr.mxu0 0.0
      %947 = vmatpush2.msra.mxu0 0.0
      %948 = vmatprep.subr.mxu0 0.0
      %949 = vmatpush2.msra.mxu0 0.0
      %950 = vmatprep.subr.mxu0 0.0
      %951 = vmatpush2.msra.mxu0 0.0
      %952 = vmatprep.subr.mxu0 0.0
      %953 = vmatpush2.msra.mxu0 0.0
      %954 = vmatprep.subr.mxu0 0.0
      %955 = vmatpush2.msra.mxu0 0.0
      %956 = vmatprep.mubr.f32.mxu0 0.0
      %957 = vmatmul.mubr.f32.gmra.mxu0 %v890
      %v958 = vpop.f32.mrf.mxu0
      %v959 = vadd.f32 %v886, %v958
      %v960 = vpop.f32.mrf.mxu0
      %961 = vdwg.mxu0
      %962 = vrot.lane.b32.xlu0 %v466, 112
      %v963 = vpop.permute.xlu0 %962
      %964 = vrot.lane.b32.xlu0 %v467, 112
      %v965 = vpop.permute.xlu0 %964
      %966 = vrot.lane.b32.xlu0 %v468, 112
      %v967 = vpop.permute.xlu0 %966
      %v968 = vsel %vm475, %v963, 0
      %v970 = vsel %vm475, %v965, 0
      %v972 = vsel %vm475, %v967, 0
      %974 = vmatprep.subr.mxu0 0.0
      %975 = vmatpush1.xpose.msra.mxu0 0.0
      %976 = vmatprep.subr.mxu0 0.0
      %977 = vmatpush1.xpose.msra.mxu0 0.0
      %978 = vmatprep.subr.mxu0 0.0
      %979 = vmatpush1.xpose.msra.mxu0 0.0
      %980 = vmatprep.subr.mxu0 0.0
      %981 = vmatpush1.xpose.msra.mxu0 0.0
      %982 = vmatprep.subr.mxu0 0.0
      %983 = vmatpush1.xpose.msra.mxu0 0.0
      %984 = vmatprep.subr.mxu0 0.0
      %985 = vmatpush1.xpose.msra.mxu0 0.0
      %986 = vmatprep.subr.mxu0 0.0
      %987 = vmatpush1.xpose.msra.mxu0 0.0
      %988 = vmatprep.subr.mxu0 0.0
      %989 = vmatpush1.xpose.msra.mxu0 0.0
      %990 = vmatprep.subr.mxu0 0.0
      %991 = vmatpush1.xpose.msra.mxu0 0.0
      %992 = vmatprep.subr.mxu0 0.0
      %993 = vmatpush1.xpose.msra.mxu0 0.0
      %994 = vmatprep.subr.mxu0 0.0
      %995 = vmatpush1.xpose.msra.mxu0 0.0
      %996 = vmatprep.subr.mxu0 0.0
      %997 = vmatpush1.xpose.msra.mxu0 0.0
      %998 = vmatprep.subr.mxu0 0.0
      %999 = vmatpush1.xpose.msra.mxu0 0.0
      %1000 = vmatprep.subr.mxu0 0.0
      %1001 = vmatpush1.xpose.msra.mxu0 0.0
      %1002 = vmatprep.subr.mxu0 0.0
      %1003 = vmatpush1.xpose.msra.mxu0 %v972
      %1004 = vmatprep.subr.mxu0 0.0
      %1005 = vmatpush1.xpose.msra.mxu0 %v970
      %1006 = vmatprep.subr.mxu0 0.0
      %1007 = vmatpush2.xpose.msra.mxu0 0.0
      %1008 = vmatprep.subr.mxu0 0.0
      %1009 = vmatpush2.xpose.msra.mxu0 0.0
      %1010 = vmatprep.subr.mxu0 0.0
      %1011 = vmatpush2.xpose.msra.mxu0 0.0
      %1012 = vmatprep.subr.mxu0 0.0
      %1013 = vmatpush2.xpose.msra.mxu0 0.0
      %1014 = vmatprep.subr.mxu0 0.0
      %1015 = vmatpush2.xpose.msra.mxu0 0.0
      %1016 = vmatprep.subr.mxu0 0.0
      %1017 = vmatpush2.xpose.msra.mxu0 0.0
      %1018 = vmatprep.subr.mxu0 0.0
      %1019 = vmatpush2.xpose.msra.mxu0 0.0
      %1020 = vmatprep.subr.mxu0 0.0
      %1021 = vmatpush2.xpose.msra.mxu0 0.0
      %1022 = vmatprep.subr.mxu0 0.0
      %1023 = vmatpush2.xpose.msra.mxu0 0.0
      %1024 = vmatprep.subr.mxu0 0.0
      %1025 = vmatpush2.xpose.msra.mxu0 0.0
      %1026 = vmatprep.subr.mxu0 0.0
      %1027 = vmatpush2.xpose.msra.mxu0 0.0
      %1028 = vmatprep.subr.mxu0 0.0
      %1029 = vmatpush2.xpose.msra.mxu0 0.0
      %1030 = vmatprep.subr.mxu0 0.0
      %1031 = vmatpush2.xpose.msra.mxu0 0.0
      %1032 = vmatprep.subr.mxu0 0.0
      %1033 = vmatpush2.xpose.msra.mxu0 0.0
      %1034 = vmatprep.subr.mxu0 0.0
      %1035 = vmatpush2.xpose.msra.mxu0 0.0
      %1036 = vmatprep.subr.mxu0 0.0
      %1037 = vmatpush2.xpose.msra.mxu0 0.0
      %1038 = vmatprep.mubr.f32.mxu0 0.0
      %1039 = vmatmul.mubr.f32.gmra.mxu0 %v968
      %v1040 = vpop.f32.mrf.mxu0
      %v1041 = vadd.f32 0.0, %v1040
      %v1042 = vpop.f32.mrf.mxu0
      %1043 = vdwg.mxu0
      %v1044 = vmul.f32 %v1041, 0.35355338
      %v1045 = vsel %vm556, %v1044, -inf
      %1046 = vmax.xlane.f32.xlu0 %v1045
      %v1047 = vpop.xlane.xlu0 %1046
      %v1048 = vsub.f32 %v1044, %v1047
      %v1049 = vmul.f32 %v1048, 1.442695
      %v1050 = vpow.pop %v1049
      %v1051 = vsel %vm556, %v1050, 0.0
      %1052 = vadd.xlane.f32.xlu0 %v1051
      %v1053 = vpop.xlane.xlu0 %1052
      %v1054 = vrcp.pop %v1053
      %v1055 = vmul.f32 %v1050, %v1054
      %1056 = vrot.lane.b32.xlu0 %v469, 112
      %v1057 = vpop.permute.xlu0 %1056
      %1058 = vrot.lane.b32.xlu0 %v470, 112
      %v1059 = vpop.permute.xlu0 %1058
      %v1063 = vsel %vm556, %v1055, 0
      %1065 = vmatprep.subr.mxu0 0.0
      %1066 = vmatpush1.msra.mxu0 0.0
      %1067 = vmatprep.subr.mxu0 0.0
      %1068 = vmatpush1.msra.mxu0 0.0
      %1069 = vmatprep.subr.mxu0 0.0
      %1070 = vmatpush1.msra.mxu0 0.0
      %1071 = vmatprep.subr.mxu0 0.0
      %1072 = vmatpush1.msra.mxu0 0.0
      %1073 = vmatprep.subr.mxu0 0.0
      %1074 = vmatpush1.msra.mxu0 0.0
      %1075 = vmatprep.subr.mxu0 0.0
      %1076 = vmatpush1.msra.mxu0 0.0
      %1077 = vmatprep.subr.mxu0 0.0
      %1078 = vmatpush1.msra.mxu0 0.0
      %1079 = vmatprep.subr.mxu0 0.0
      %1080 = vmatpush1.msra.mxu0 0.0
      %1081 = vmatprep.subr.mxu0 0.0
      %1082 = vmatpush1.msra.mxu0 0.0
      %1083 = vmatprep.subr.mxu0 0.0
      %1084 = vmatpush1.msra.mxu0 0.0
      %1085 = vmatprep.subr.mxu0 0.0
      %1086 = vmatpush1.msra.mxu0 0.0
      %1087 = vmatprep.subr.mxu0 0.0
      %1088 = vmatpush1.msra.mxu0 0.0
      %1089 = vmatprep.subr.mxu0 0.0
      %1090 = vmatpush1.msra.mxu0 0.0
      %1091 = vmatprep.subr.mxu0 0.0
      %1092 = vmatpush1.msra.mxu0 0.0
      %1093 = vmatprep.subr.mxu0 0.0
      %1094 = vmatpush1.msra.mxu0 %v1059
      %1095 = vmatprep.subr.mxu0 0.0
      %1096 = vmatpush1.msra.mxu0 %v1057
      %1097 = vmatprep.subr.mxu0 0.0
      %1098 = vmatpush2.msra.mxu0 0.0
      %1099 = vmatprep.subr.mxu0 0.0
      %1100 = vmatpush2.msra.mxu0 0.0
      %1101 = vmatprep.subr.mxu0 0.0
      %1102 = vmatpush2.msra.mxu0 0.0
      %1103 = vmatprep.subr.mxu0 0.0
      %1104 = vmatpush2.msra.mxu0 0.0
      %1105 = vmatprep.subr.mxu0 0.0
      %1106 = vmatpush2.msra.mxu0 0.0
      %1107 = vmatprep.subr.mxu0 0.0
      %1108 = vmatpush2.msra.mxu0 0.0
      %1109 = vmatprep.subr.mxu0 0.0
      %1110 = vmatpush2.msra.mxu0 0.0
      %1111 = vmatprep.subr.mxu0 0.0
      %1112 = vmatpush2.msra.mxu0 0.0
      %1113 = vmatprep.subr.mxu0 0.0
      %1114 = vmatpush2.msra.mxu0 0.0
      %1115 = vmatprep.subr.mxu0 0.0
      %1116 = vmatpush2.msra.mxu0 0.0
      %1117 = vmatprep.subr.mxu0 0.0
      %1118 = vmatpush2.msra.mxu0 0.0
      %1119 = vmatprep.subr.mxu0 0.0
      %1120 = vmatpush2.msra.mxu0 0.0
      %1121 = vmatprep.subr.mxu0 0.0
      %1122 = vmatpush2.msra.mxu0 0.0
      %1123 = vmatprep.subr.mxu0 0.0
      %1124 = vmatpush2.msra.mxu0 0.0
      %1125 = vmatprep.subr.mxu0 0.0
      %1126 = vmatpush2.msra.mxu0 0.0
      %1127 = vmatprep.subr.mxu0 0.0
      %1128 = vmatpush2.msra.mxu0 0.0
      %1129 = vmatprep.mubr.f32.mxu0 0.0
      %1130 = vmatmul.mubr.f32.gmra.mxu0 %v1063
      %v1131 = vpop.f32.mrf.mxu0
      %v1132 = vadd.f32 0.0, %v1131
      %v1133 = vpop.f32.mrf.mxu0
      %1134 = vdwg.mxu0
      %v1136 = vsel %vm475, %v1132, 0
      %1138 = vmatprep.subr.mxu0 0.0
      %1139 = vmatpush1.msra.mxu0 0.0
      %1140 = vmatprep.subr.mxu0 0.0
      %1141 = vmatpush1.msra.mxu0 0.0
      %1142 = vmatprep.subr.mxu0 0.0
      %1143 = vmatpush1.msra.mxu0 0.0
      %1144 = vmatprep.subr.mxu0 0.0
      %1145 = vmatpush1.msra.mxu0 0.0
      %1146 = vmatprep.subr.mxu0 0.0
      %1147 = vmatpush1.msra.mxu0 0.0
      %1148 = vmatprep.subr.mxu0 0.0
      %1149 = vmatpush1.msra.mxu0 0.0
      %1150 = vmatprep.subr.mxu0 0.0
      %1151 = vmatpush1.msra.mxu0 0.0
      %1152 = vmatprep.subr.mxu0 0.0
      %1153 = vmatpush1.msra.mxu0 0.0
      %1154 = vmatprep.subr.mxu0 0.0
      %1155 = vmatpush1.msra.mxu0 0.0
      %1156 = vmatprep.subr.mxu0 0.0
      %1157 = vmatpush1.msra.mxu0 0.0
      %1158 = vmatprep.subr.mxu0 0.0
      %1159 = vmatpush1.msra.mxu0 0.0
      %1160 = vmatprep.subr.mxu0 0.0
      %1161 = vmatpush1.msra.mxu0 0.0
      %1162 = vmatprep.subr.mxu0 0.0
      %1163 = vmatpush1.msra.mxu0 0.0
      %1164 = vmatprep.subr.mxu0 0.0
      %1165 = vmatpush1.msra.mxu0 0.0
      %1166 = vmatprep.subr.mxu0 0.0
      %1167 = vmatpush1.msra.mxu0 0.0
      %1168 = vmatprep.subr.mxu0 0.0
      %1169 = vmatpush1.msra.mxu0 %v473
      %1170 = vmatprep.subr.mxu0 0.0
      %1171 = vmatpush2.msra.mxu0 0.0
      %1172 = vmatprep.subr.mxu0 0.0
      %1173 = vmatpush2.msra.mxu0 0.0
      %1174 = vmatprep.subr.mxu0 0.0
      %1175 = vmatpush2.msra.mxu0 0.0
      %1176 = vmatprep.subr.mxu0 0.0
      %1177 = vmatpush2.msra.mxu0 0.0
      %1178 = vmatprep.subr.mxu0 0.0
      %1179 = vmatpush2.msra.mxu0 0.0
      %1180 = vmatprep.subr.mxu0 0.0
      %1181 = vmatpush2.msra.mxu0 0.0
      %1182 = vmatprep.subr.mxu0 0.0
      %1183 = vmatpush2.msra.mxu0 0.0
      %1184 = vmatprep.subr.mxu0 0.0
      %1185 = vmatpush2.msra.mxu0 0.0
      %1186 = vmatprep.subr.mxu0 0.0
      %1187 = vmatpush2.msra.mxu0 0.0
      %1188 = vmatprep.subr.mxu0 0.0
      %1189 = vmatpush2.msra.mxu0 0.0
      %1190 = vmatprep.subr.mxu0 0.0
      %1191 = vmatpush2.msra.mxu0 0.0
      %1192 = vmatprep.subr.mxu0 0.0
      %1193 = vmatpush2.msra.mxu0 0.0
      %1194 = vmatprep.subr.mxu0 0.0
      %1195 = vmatpush2.msra.mxu0 0.0
      %1196 = vmatprep.subr.mxu0 0.0
      %1197 = vmatpush2.msra.mxu0 0.0
      %1198 = vmatprep.subr.mxu0 0.0
      %1199 = vmatpush2.msra.mxu0 0.0
      %1200 = vmatprep.subr.mxu0 0.0
      %1201 = vmatpush2.msra.mxu0 0.0
      %1202 = vmatprep.mubr.f32.mxu0 0.0
      %1203 = vmatmul.mubr.f32.gmra.mxu0 %v1136
      %v1204 = vpop.f32.mrf.mxu0
      %v1205 = vadd.f32 0.0, %v1204
      %v1206 = vpop.f32.mrf.mxu0
      %1207 = vdwg.mxu0
      %v1208 = vadd.f32 %v959, %v1205
      %1209 = vrot.lane.b32.xlu0 %v466, 104
      %v1210 = vpop.permute.xlu0 %1209
      %1211 = vrot.lane.b32.xlu0 %v467, 104
      %v1212 = vpop.permute.xlu0 %1211
      %1213 = vrot.lane.b32.xlu0 %v468, 104
      %v1214 = vpop.permute.xlu0 %1213
      %v1215 = vsel %vm475, %v1210, 0
      %v1217 = vsel %vm475, %v1212, 0
      %v1219 = vsel %vm475, %v1214, 0
      %1221 = vmatprep.subr.mxu0 0.0
      %1222 = vmatpush1.xpose.msra.mxu0 0.0
      %1223 = vmatprep.subr.mxu0 0.0
      %1224 = vmatpush1.xpose.msra.mxu0 0.0
      %1225 = vmatprep.subr.mxu0 0.0
      %1226 = vmatpush1.xpose.msra.mxu0 0.0
      %1227 = vmatprep.subr.mxu0 0.0
      %1228 = vmatpush1.xpose.msra.mxu0 0.0
      %1229 = vmatprep.subr.mxu0 0.0
      %1230 = vmatpush1.xpose.msra.mxu0 0.0
      %1231 = vmatprep.subr.mxu0 0.0
      %1232 = vmatpush1.xpose.msra.mxu0 0.0
      %1233 = vmatprep.subr.mxu0 0.0
      %1234 = vmatpush1.xpose.msra.mxu0 0.0
      %1235 = vmatprep.subr.mxu0 0.0
      %1236 = vmatpush1.xpose.msra.mxu0 0.0
      %1237 = vmatprep.subr.mxu0 0.0
      %1238 = vmatpush1.xpose.msra.mxu0 0.0
      %1239 = vmatprep.subr.mxu0 0.0
      %1240 = vmatpush1.xpose.msra.mxu0 0.0
      %1241 = vmatprep.subr.mxu0 0.0
      %1242 = vmatpush1.xpose.msra.mxu0 0.0
      %1243 = vmatprep.subr.mxu0 0.0
      %1244 = vmatpush1.xpose.msra.mxu0 0.0
      %1245 = vmatprep.subr.mxu0 0.0
      %1246 = vmatpush1.xpose.msra.mxu0 0.0
      %1247 = vmatprep.subr.mxu0 0.0
      %1248 = vmatpush1.xpose.msra.mxu0 0.0
      %1249 = vmatprep.subr.mxu0 0.0
      %1250 = vmatpush1.xpose.msra.mxu0 %v1219
      %1251 = vmatprep.subr.mxu0 0.0
      %1252 = vmatpush1.xpose.msra.mxu0 %v1217
      %1253 = vmatprep.subr.mxu0 0.0
      %1254 = vmatpush2.xpose.msra.mxu0 0.0
      %1255 = vmatprep.subr.mxu0 0.0
      %1256 = vmatpush2.xpose.msra.mxu0 0.0
      %1257 = vmatprep.subr.mxu0 0.0
      %1258 = vmatpush2.xpose.msra.mxu0 0.0
      %1259 = vmatprep.subr.mxu0 0.0
      %1260 = vmatpush2.xpose.msra.mxu0 0.0
      %1261 = vmatprep.subr.mxu0 0.0
      %1262 = vmatpush2.xpose.msra.mxu0 0.0
      %1263 = vmatprep.subr.mxu0 0.0
      %1264 = vmatpush2.xpose.msra.mxu0 0.0
      %1265 = vmatprep.subr.mxu0 0.0
      %1266 = vmatpush2.xpose.msra.mxu0 0.0
      %1267 = vmatprep.subr.mxu0 0.0
      %1268 = vmatpush2.xpose.msra.mxu0 0.0
      %1269 = vmatprep.subr.mxu0 0.0
      %1270 = vmatpush2.xpose.msra.mxu0 0.0
      %1271 = vmatprep.subr.mxu0 0.0
      %1272 = vmatpush2.xpose.msra.mxu0 0.0
      %1273 = vmatprep.subr.mxu0 0.0
      %1274 = vmatpush2.xpose.msra.mxu0 0.0
      %1275 = vmatprep.subr.mxu0 0.0
      %1276 = vmatpush2.xpose.msra.mxu0 0.0
      %1277 = vmatprep.subr.mxu0 0.0
      %1278 = vmatpush2.xpose.msra.mxu0 0.0
      %1279 = vmatprep.subr.mxu0 0.0
      %1280 = vmatpush2.xpose.msra.mxu0 0.0
      %1281 = vmatprep.subr.mxu0 0.0
      %1282 = vmatpush2.xpose.msra.mxu0 0.0
      %1283 = vmatprep.subr.mxu0 0.0
      %1284 = vmatpush2.xpose.msra.mxu0 0.0
      %1285 = vmatprep.mubr.f32.mxu0 0.0
      %1286 = vmatmul.mubr.f32.gmra.mxu0 %v1215
      %v1287 = vpop.f32.mrf.mxu0
      %v1288 = vadd.f32 0.0, %v1287
      %v1289 = vpop.f32.mrf.mxu0
      %1290 = vdwg.mxu0
      %v1291 = vmul.f32 %v1288, 0.35355338
      %v1292 = vsel %vm556, %v1291, -inf
      %1293 = vmax.xlane.f32.xlu0 %v1292
      %v1294 = vpop.xlane.xlu0 %1293
      %v1295 = vsub.f32 %v1291, %v1294
      %v1296 = vmul.f32 %v1295, 1.442695
      %v1297 = vpow.pop %v1296
      %v1298 = vsel %vm556, %v1297, 0.0
      %1299 = vadd.xlane.f32.xlu0 %v1298
      %v1300 = vpop.xlane.xlu0 %1299
      %v1301 = vrcp.pop %v1300
      %v1302 = vmul.f32 %v1297, %v1301
      %1303 = vrot.lane.b32.xlu0 %v469, 104
      %v1304 = vpop.permute.xlu0 %1303
      %1305 = vrot.lane.b32.xlu0 %v470, 104
      %v1306 = vpop.permute.xlu0 %1305
      %v1310 = vsel %vm556, %v1302, 0
      %1312 = vmatprep.subr.mxu0 0.0
      %1313 = vmatpush1.msra.mxu0 0.0
      %1314 = vmatprep.subr.mxu0 0.0
      %1315 = vmatpush1.msra.mxu0 0.0
      %1316 = vmatprep.subr.mxu0 0.0
      %1317 = vmatpush1.msra.mxu0 0.0
      %1318 = vmatprep.subr.mxu0 0.0
      %1319 = vmatpush1.msra.mxu0 0.0
      %1320 = vmatprep.subr.mxu0 0.0
      %1321 = vmatpush1.msra.mxu0 0.0
      %1322 = vmatprep.subr.mxu0 0.0
      %1323 = vmatpush1.msra.mxu0 0.0
      %1324 = vmatprep.subr.mxu0 0.0
      %1325 = vmatpush1.msra.mxu0 0.0
      %1326 = vmatprep.subr.mxu0 0.0
      %1327 = vmatpush1.msra.mxu0 0.0
      %1328 = vmatprep.subr.mxu0 0.0
      %1329 = vmatpush1.msra.mxu0 0.0
      %1330 = vmatprep.subr.mxu0 0.0
      %1331 = vmatpush1.msra.mxu0 0.0
      %1332 = vmatprep.subr.mxu0 0.0
      %1333 = vmatpush1.msra.mxu0 0.0
      %1334 = vmatprep.subr.mxu0 0.0
      %1335 = vmatpush1.msra.mxu0 0.0
      %1336 = vmatprep.subr.mxu0 0.0
      %1337 = vmatpush1.msra.mxu0 0.0
      %1338 = vmatprep.subr.mxu0 0.0
      %1339 = vmatpush1.msra.mxu0 0.0
      %1340 = vmatprep.subr.mxu0 0.0
      %1341 = vmatpush1.msra.mxu0 %v1306
      %1342 = vmatprep.subr.mxu0 0.0
      %1343 = vmatpush1.msra.mxu0 %v1304
      %1344 = vmatprep.subr.mxu0 0.0
      %1345 = vmatpush2.msra.mxu0 0.0
      %1346 = vmatprep.subr.mxu0 0.0
      %1347 = vmatpush2.msra.mxu0 0.0
      %1348 = vmatprep.subr.mxu0 0.0
      %1349 = vmatpush2.msra.mxu0 0.0
      %1350 = vmatprep.subr.mxu0 0.0
      %1351 = vmatpush2.msra.mxu0 0.0
      %1352 = vmatprep.subr.mxu0 0.0
      %1353 = vmatpush2.msra.mxu0 0.0
      %1354 = vmatprep.subr.mxu0 0.0
      %1355 = vmatpush2.msra.mxu0 0.0
      %1356 = vmatprep.subr.mxu0 0.0
      %1357 = vmatpush2.msra.mxu0 0.0
      %1358 = vmatprep.subr.mxu0 0.0
      %1359 = vmatpush2.msra.mxu0 0.0
      %1360 = vmatprep.subr.mxu0 0.0
      %1361 = vmatpush2.msra.mxu0 0.0
      %1362 = vmatprep.subr.mxu0 0.0
      %1363 = vmatpush2.msra.mxu0 0.0
      %1364 = vmatprep.subr.mxu0 0.0
      %1365 = vmatpush2.msra.mxu0 0.0
      %1366 = vmatprep.subr.mxu0 0.0
      %1367 = vmatpush2.msra.mxu0 0.0
      %1368 = vmatprep.subr.mxu0 0.0
      %1369 = vmatpush2.msra.mxu0 0.0
      %1370 = vmatprep.subr.mxu0 0.0
      %1371 = vmatpush2.msra.mxu0 0.0
      %1372 = vmatprep.subr.mxu0 0.0
      %1373 = vmatpush2.msra.mxu0 0.0
      %1374 = vmatprep.subr.mxu0 0.0
      %1375 = vmatpush2.msra.mxu0 0.0
      %1376 = vmatprep.mubr.f32.mxu0 0.0
      %1377 = vmatmul.mubr.f32.gmra.mxu0 %v1310
      %v1378 = vpop.f32.mrf.mxu0
      %v1379 = vadd.f32 0.0, %v1378
      %v1380 = vpop.f32.mrf.mxu0
      %1381 = vdwg.mxu0
      %v1383 = vsel %vm475, %v1379, 0
      %1385 = vmatprep.subr.mxu0 0.0
      %1386 = vmatpush1.msra.mxu0 0.0
      %1387 = vmatprep.subr.mxu0 0.0
      %1388 = vmatpush1.msra.mxu0 0.0
      %1389 = vmatprep.subr.mxu0 0.0
      %1390 = vmatpush1.msra.mxu0 0.0
      %1391 = vmatprep.subr.mxu0 0.0
      %1392 = vmatpush1.msra.mxu0 0.0
      %1393 = vmatprep.subr.mxu0 0.0
      %1394 = vmatpush1.msra.mxu0 0.0
      %1395 = vmatprep.subr.mxu0 0.0
      %1396 = vmatpush1.msra.mxu0 0.0
      %1397 = vmatprep.subr.mxu0 0.0
      %1398 = vmatpush1.msra.mxu0 0.0
      %1399 = vmatprep.subr.mxu0 0.0
      %1400 = vmatpush1.msra.mxu0 0.0
      %1401 = vmatprep.subr.mxu0 0.0
      %1402 = vmatpush1.msra.mxu0 0.0
      %1403 = vmatprep.subr.mxu0 0.0
      %1404 = vmatpush1.msra.mxu0 0.0
      %1405 = vmatprep.subr.mxu0 0.0
      %1406 = vmatpush1.msra.mxu0 0.0
      %1407 = vmatprep.subr.mxu0 0.0
      %1408 = vmatpush1.msra.mxu0 0.0
      %1409 = vmatprep.subr.mxu0 0.0
      %1410 = vmatpush1.msra.mxu0 0.0
      %1411 = vmatprep.subr.mxu0 0.0
      %1412 = vmatpush1.msra.mxu0 0.0
      %1413 = vmatprep.subr.mxu0 0.0
      %1414 = vmatpush1.msra.mxu0 0.0
      %1415 = vmatprep.subr.mxu0 0.0
      %1416 = vmatpush1.msra.mxu0 %v474
      %1417 = vmatprep.subr.mxu0 0.0
      %1418 = vmatpush2.msra.mxu0 0.0
      %1419 = vmatprep.subr.mxu0 0.0
      %1420 = vmatpush2.msra.mxu0 0.0
      %1421 = vmatprep.subr.mxu0 0.0
      %1422 = vmatpush2.msra.mxu0 0.0
      %1423 = vmatprep.subr.mxu0 0.0
      %1424 = vmatpush2.msra.mxu0 0.0
      %1425 = vmatprep.subr.mxu0 0.0
      %1426 = vmatpush2.msra.mxu0 0.0
      %1427 = vmatprep.subr.mxu0 0.0
      %1428 = vmatpush2.msra.mxu0 0.0
      %1429 = vmatprep.subr.mxu0 0.0
      %1430 = vmatpush2.msra.mxu0 0.0
      %1431 = vmatprep.subr.mxu0 0.0
      %1432 = vmatpush2.msra.mxu0 0.0
      %1433 = vmatprep.subr.mxu0 0.0
      %1434 = vmatpush2.msra.mxu0 0.0
      %1435 = vmatprep.subr.mxu0 0.0
      %1436 = vmatpush2.msra.mxu0 0.0
      %1437 = vmatprep.subr.mxu0 0.0
      %1438 = vmatpush2.msra.mxu0 0.0
      %1439 = vmatprep.subr.mxu0 0.0
      %1440 = vmatpush2.msra.mxu0 0.0
      %1441 = vmatprep.subr.mxu0 0.0
      %1442 = vmatpush2.msra.mxu0 0.0
      %1443 = vmatprep.subr.mxu0 0.0
      %1444 = vmatpush2.msra.mxu0 0.0
      %1445 = vmatprep.subr.mxu0 0.0
      %1446 = vmatpush2.msra.mxu0 0.0
      %1447 = vmatprep.subr.mxu0 0.0
      %1448 = vmatpush2.msra.mxu0 0.0
      %1449 = vmatprep.mubr.f32.mxu0 0.0
      %1450 = vmatmul.mubr.f32.gmra.mxu0 %v1383
      %v1451 = vpop.f32.mrf.mxu0
      %v1452 = vadd.f32 0.0, %v1451
      %v1453 = vpop.f32.mrf.mxu0
      %1454 = vdwg.mxu0
      %v1455 = vadd.f32 %v1208, %v1452
      %v1456 = vld [vmem:[%s5] sm:$0x1]
      %v1458 = vlaneseq
      %v1459 = vshrl.u32 %v1458, 7
      %v1460 = vsub.s32 0, %v1459
      %v1461 = vrot.slane %v1456, %v1460
      %v1463 = vadd.f32 %v1455, %v1461
      %v1464 = vld [vmem:[%s461] sm:$0xff]
      %v1465 = vadd.f32 %v1463, %v1464
      %v1466 = vld [vmem:[%s6] sm:$0x1]
      %v1467 = vld [vmem:[%s7] sm:$0x1]
      %vm1468 = vcmask 261120
      %v1469 = vsel %vm1468, %v1465, 0.0
      %1470 = vadd.xlane.f32.xlu0 %v1469
      %v1471 = vpop.xlane.xlu0 %1470
      %v1472 = vrcp.pop 32.0
      %v1473 = vmul.f32 %v1471, %v1472
      %v1474 = vsub.f32 %v1465, %v1473
      %v1475 = vmul.f32 %v1474, %v1474
      %v1476 = vsel %vm1468, %v1475, 0.0
      %1477 = vadd.xlane.f32.xlu0 %v1476
      %v1478 = vpop.xlane.xlu0 %1477
      %v1479 = vmul.f32 %v1478, %v1472
      %v1480 = vadd.f32 %v1479, 1e-05
      %v1481 = vrsqrt.pop %v1480
      %v1482 = vmul.f32 %v1474, %v1481
      %v1484 = vlaneseq
      %v1485 = vshrl.u32 %v1484, 7
      %v1486 = vsub.s32 0, %v1485
      %v1487 = vrot.slane %v1466, %v1486
      %v1489 = vmul.f32 %v1482, %v1487
      %v1491 = vlaneseq
      %v1492 = vshrl.u32 %v1491, 7
      %v1493 = vsub.s32 0, %v1492
      %v1494 = vrot.slane %v1467, %v1493
      %v1496 = vadd.f32 %v1489, %v1494
      %v1497 = vld [vmem:[%s8] sm:$0xff]
      %v1498 = vld [vmem:[%s8 + $0x8] sm:$0xff]
      %v1499 = vld [vmem:[%s8 + $0x10] sm:$0xff]
      %v1500 = vld [vmem:[%s8 + $0x18] sm:$0xff]
      %v1501 = vld [vmem:[%s9] sm:$0x1]
      %v1503 = vlaneseq
      %v1504 = vshrl.u32 %v1503, 7
      %v1505 = vsub.s32 0, %v1504
      %v1506 = vrot.slane %v1501, %v1505
      %v1509 = vsel %vm1468, %v1496, 0
      %1511 = vmatprep.subr.mxu0 0.0
      %1512 = vmatpush1.msra.mxu0 0.0
      %1513 = vmatprep.subr.mxu0 0.0
      %1514 = vmatpush1.msra.mxu0 0.0
      %1515 = vmatprep.subr.mxu0 0.0
      %1516 = vmatpush1.msra.mxu0 0.0
      %1517 = vmatprep.subr.mxu0 0.0
      %1518 = vmatpush1.msra.mxu0 0.0
      %1519 = vmatprep.subr.mxu0 0.0
      %1520 = vmatpush1.msra.mxu0 0.0
      %1521 = vmatprep.subr.mxu0 0.0
      %1522 = vmatpush1.msra.mxu0 0.0
      %1523 = vmatprep.subr.mxu0 0.0
      %1524 = vmatpush1.msra.mxu0 0.0
      %1525 = vmatprep.subr.mxu0 0.0
      %1526 = vmatpush1.msra.mxu0 0.0
      %1527 = vmatprep.subr.mxu0 0.0
      %1528 = vmatpush1.msra.mxu0 0.0
      %1529 = vmatprep.subr.mxu0 0.0
      %1530 = vmatpush1.msra.mxu0 0.0
      %1531 = vmatprep.subr.mxu0 0.0
      %1532 = vmatpush1.msra.mxu0 0.0
      %1533 = vmatprep.subr.mxu0 0.0
      %1534 = vmatpush1.msra.mxu0 0.0
      %1535 = vmatprep.subr.mxu0 0.0
      %1536 = vmatpush1.msra.mxu0 %v1500
      %1537 = vmatprep.subr.mxu0 0.0
      %1538 = vmatpush1.msra.mxu0 %v1499
      %1539 = vmatprep.subr.mxu0 0.0
      %1540 = vmatpush1.msra.mxu0 %v1498
      %1541 = vmatprep.subr.mxu0 0.0
      %1542 = vmatpush1.msra.mxu0 %v1497
      %1543 = vmatprep.subr.mxu0 0.0
      %1544 = vmatpush2.msra.mxu0 0.0
      %1545 = vmatprep.subr.mxu0 0.0
      %1546 = vmatpush2.msra.mxu0 0.0
      %1547 = vmatprep.subr.mxu0 0.0
      %1548 = vmatpush2.msra.mxu0 0.0
      %1549 = vmatprep.subr.mxu0 0.0
      %1550 = vmatpush2.msra.mxu0 0.0
      %1551 = vmatprep.subr.mxu0 0.0
      %1552 = vmatpush2.msra.mxu0 0.0
      %1553 = vmatprep.subr.mxu0 0.0
      %1554 = vmatpush2.msra.mxu0 0.0
      %1555 = vmatprep.subr.mxu0 0.0
      %1556 = vmatpush2.msra.mxu0 0.0
      %1557 = vmatprep.subr.mxu0 0.0
      %1558 = vmatpush2.msra.mxu0 0.0
      %1559 = vmatprep.subr.mxu0 0.0
      %1560 = vmatpush2.msra.mxu0 0.0
      %1561 = vmatprep.subr.mxu0 0.0
      %1562 = vmatpush2.msra.mxu0 0.0
      %1563 = vmatprep.subr.mxu0 0.0
      %1564 = vmatpush2.msra.mxu0 0.0
      %1565 = vmatprep.subr.mxu0 0.0
      %1566 = vmatpush2.msra.mxu0 0.0
      %1567 = vmatprep.subr.mxu0 0.0
      %1568 = vmatpush2.msra.mxu0 0.0
      %1569 = vmatprep.subr.mxu0 0.0
      %1570 = vmatpush2.msra.mxu0 0.0
      %1571 = vmatprep.subr.mxu0 0.0
      %1572 = vmatpush2.msra.mxu0 0.0
      %1573 = vmatprep.subr.mxu0 0.0
      %1574 = vmatpush2.msra.mxu0 0.0
      %1575 = vmatprep.mubr.f32.mxu0 0.0
      %1576 = vmatmul.mubr.f32.gmra.mxu0 %v1509
      %v1577 = vpop.f32.mrf.mxu0
      %v1578 = vadd.f32 %v1506, %v1577
      %v1579 = vpop.f32.mrf.mxu0
      %1580 = vdwg.mxu0
      %v1581 = vmax.f32 %v1578, 0.0
      %v1582 = vld [vmem:[%s10] sm:$0xff]
      %v1583 = vld [vmem:[%s10 + $0x8] sm:$0xff]
      %v1584 = vld [vmem:[%s10 + $0x10] sm:$0xff]
      %v1585 = vld [vmem:[%s10 + $0x18] sm:$0xff]
      %v1586 = vld [vmem:[%s10 + $0x20] sm:$0xff]
      %v1587 = vld [vmem:[%s10 + $0x28] sm:$0xff]
      %v1588 = vld [vmem:[%s10 + $0x30] sm:$0xff]
      %v1589 = vld [vmem:[%s10 + $0x38] sm:$0xff]
      %v1590 = vld [vmem:[%s11] sm:$0x1]
      %v1592 = vlaneseq
      %v1593 = vshrl.u32 %v1592, 7
      %v1594 = vsub.s32 0, %v1593
      %v1595 = vrot.slane %v1590, %v1594
      %vm1597 = vcmask 523264
      %v1599 = vsel %vm1597, %v1581, 0
      %1601 = vmatprep.subr.mxu0 0.0
      %1602 = vmatpush1.msra.mxu0 0.0
      %1603 = vmatprep.subr.mxu0 0.0
      %1604 = vmatpush1.msra.mxu0 0.0
      %1605 = vmatprep.subr.mxu0 0.0
      %1606 = vmatpush1.msra.mxu0 0.0
      %1607 = vmatprep.subr.mxu0 0.0
      %1608 = vmatpush1.msra.mxu0 0.0
      %1609 = vmatprep.subr.mxu0 0.0
      %1610 = vmatpush1.msra.mxu0 0.0
      %1611 = vmatprep.subr.mxu0 0.0
      %1612 = vmatpush1.msra.mxu0 0.0
      %1613 = vmatprep.subr.mxu0 0.0
      %1614 = vmatpush1.msra.mxu0 0.0
      %1615 = vmatprep.subr.mxu0 0.0
      %1616 = vmatpush1.msra.mxu0 0.0
      %1617 = vmatprep.subr.mxu0 0.0
      %1618 = vmatpush1.msra.mxu0 %v1589
      %1619 = vmatprep.subr.mxu0 0.0
      %1620 = vmatpush1.msra.mxu0 %v1588
      %1621 = vmatprep.subr.mxu0 0.0
      %1622 = vmatpush1.msra.mxu0 %v1587
      %1623 = vmatprep.subr.mxu0 0.0
      %1624 = vmatpush1.msra.mxu0 %v1586
      %1625 = vmatprep.subr.mxu0 0.0
      %1626 = vmatpush1.msra.mxu0 %v1585
      %1627 = vmatprep.subr.mxu0 0.0
      %1628 = vmatpush1.msra.mxu0 %v1584
      %1629 = vmatprep.subr.mxu0 0.0
      %1630 = vmatpush1.msra.mxu0 %v1583
      %1631 = vmatprep.subr.mxu0 0.0
      %1632 = vmatpush1.msra.mxu0 %v1582
      %1633 = vmatprep.subr.mxu0 0.0
      %1634 = vmatpush2.msra.mxu0 0.0
      %1635 = vmatprep.subr.mxu0 0.0
      %1636 = vmatpush2.msra.mxu0 0.0
      %1637 = vmatprep.subr.mxu0 0.0
      %1638 = vmatpush2.msra.mxu0 0.0
      %1639 = vmatprep.subr.mxu0 0.0
      %1640 = vmatpush2.msra.mxu0 0.0
      %1641 = vmatprep.subr.mxu0 0.0
      %1642 = vmatpush2.msra.mxu0 0.0
      %1643 = vmatprep.subr.mxu0 0.0
      %1644 = vmatpush2.msra.mxu0 0.0
      %1645 = vmatprep.subr.mxu0 0.0
      %1646 = vmatpush2.msra.mxu0 0.0
      %1647 = vmatprep.subr.mxu0 0.0
      %1648 = vmatpush2.msra.mxu0 0.0
      %1649 = vmatprep.subr.mxu0 0.0
      %1650 = vmatpush2.msra.mxu0 0.0
      %1651 = vmatprep.subr.mxu0 0.0
      %1652 = vmatpush2.msra.mxu0 0.0
      %1653 = vmatprep.subr.mxu0 0.0
      %1654 = vmatpush2.msra.mxu0 0.0
      %1655 = vmatprep.subr.mxu0 0.0
      %1656 = vmatpush2.msra.mxu0 0.0
      %1657 = vmatprep.subr.mxu0 0.0
      %1658 = vmatpush2.msra.mxu0 0.0
      %1659 = vmatprep.subr.mxu0 0.0
      %1660 = vmatpush2.msra.mxu0 0.0
      %1661 = vmatprep.subr.mxu0 0.0
      %1662 = vmatpush2.msra.mxu0 0.0
      %1663 = vmatprep.subr.mxu0 0.0
      %1664 = vmatpush2.msra.mxu0 0.0
      %1665 = vmatprep.mubr.f32.mxu0 0.0
      %1666 = vmatmul.mubr.f32.gmra.mxu0 %v1599
      %v1667 = vpop.f32.mrf.mxu0
      %v1668 = vadd.f32 %v1595, %v1667
      %v1669 = vpop.f32.mrf.mxu0
      %1670 = vdwg.mxu0
      %v1671 = vadd.f32 %v1496, %v1668
      %1672 = vst.msk [vmem:[%s465] sm:$0xff] %vm1468, %v1671
      %p1673 = scmp.lt.s32.totalorder %s23, 1
      %s1674 = scalar_select %p1673, %s23, 1
      %s1675 = smul.addr %s1674, 8
      %s1676 = scalar_lea.vmem %s12, %s1675
      // Predicated region
      $region69: #{transformer_forward.22} parent=67 // pred_check
        %p1677 = pneg %p313
      $region70: #{transformer_forward.22} parent=67 // pred_check_branch
        %1679 = sbr.rel (%p1677) target = $region72
      $region71: #{transformer_forward.22} parent=67 // pred_region
        _
      $region72: #{transformer_forward.22} parent=67 // pred_fallthru
        _
    $region68: #{transformer_forward.22} parent=5 // pred_fallthru
      _
    %p1680 = scmp.le.s32.totalorder 2, %s18
    // Predicated region
    $region73: #{transformer_forward.22} parent=5 // pred_check
      %p1681 = pneg %p1680
    $region74: #{transformer_forward.22} parent=5 // pred_check_branch
      %1683 = sbr.rel (%p1681) target = $region76
    $region75: #{transformer_forward.22} parent=5 // pred_region
      %s1684 = ssub.s32 %s18, 2
      // Predicated region
      $region77: #{transformer_forward.22} parent=75 // pred_check
        %p1685 = pneg %p319
      $region78: #{transformer_forward.22} parent=75 // pred_check_branch
        %1687 = sbr.rel (%p1685) target = $region80
      $region79: #{transformer_forward.22} parent=75 // pred_region
        %p1688 = scmp.lt.s32.totalorder %s24, 1
        %s1689 = scalar_select %p1688, %s24, 1
        %s1690 = smul.addr %s1689, 8
        %s1691 = scalar_lea.vmem %s12, %s1690
      $region80: #{transformer_forward.22} parent=75 // pred_fallthru
        _
    $region76: #{transformer_forward.22} parent=5 // pred_fallthru
      _
  $region6: #{transformer_forward.22} parent=0 // loop_footer
    %s22 = sadd.s32 1, %s18
  $region7: #{transformer_forward.22} parent=0 // loop_footer_branch
    %17 = sbr.rel target = $region3
  $region8: #{transformer_forward.22} parent=0 // loop_exit
    _

</llo_original>
